<compile_context>
chip_gen: v7x
topology: tpu7x:2x2x1
jax: 0.10.0
libtpu: 0.0.40
codegen_flags: <defaults>
</compile_context>

<pallas_src>
import functools
import math

import jax
import jax.numpy as jnp
from jax import lax
from jax.experimental import pallas as pl
from jax.experimental.pallas import tpu as pltpu

LANE = 128
SUBLANE = 8


def _round_up(x, m):
    return ((x + m - 1) // m) * m


def _gelu_tanh(y):
    # TODO(synk): PyTorch nn.GELU defaults to the exact erf form; Mosaic has no
    # erf lowering, so the tanh approximation is used (~1e-3 deviation).
    return 0.5 * y * (1.0 + jnp.tanh(0.7978845608028654 * (y + 0.044715 * y * y * y)))


# Single-buffer the resident weights if this jax version supports pipeline_mode
# on BlockSpec (constant-index-map inputs otherwise get 2 pipeline buffers).
try:
    _WEIGHT_PIPELINE_MODE = pl.Buffered(1)
    pl.BlockSpec((SUBLANE, LANE), lambda i: (0, 0), pipeline_mode=_WEIGHT_PIPELINE_MODE)
except Exception:  # pragma: no cover - fall back to default double buffering
    _WEIGHT_PIPELINE_MODE = None


def _weight_spec(shape):
    nd = len(shape)
    index_map = lambda b, _nd=nd: (0,) * _nd
    if _WEIGHT_PIPELINE_MODE is not None:
        return pl.BlockSpec(shape, index_map, pipeline_mode=_WEIGHT_PIPELINE_MODE)
    return pl.BlockSpec(shape, index_map)


def _layer_vmem_bytes(weights, Sp, Hp, Fp):
    """Rough per-layer VMEM budget derived from actual block sizes."""
    w = sum(int(v.size) * v.dtype.itemsize for v in weights)
    if _WEIGHT_PIPELINE_MODE is None:
        w *= 2                                   # default double buffering
    act = 2 * Sp * Hp * 2                        # x block (bf16), 2 pipeline buffers
    act += 2 * Sp * Hp * 4                       # out block (f32 worst case), 2 buffers
    act += (3 * Sp * Hp + Sp * Fp + 3 * Sp * Hp) * 4   # in-kernel f32 intermediates
    act += Sp * Hp * 2                           # bf16 ctx scratch
    need = (w + act) * 5 // 4                    # +25% headroom
    return int(min(64 * 2 ** 20, max(32 * 2 ** 20, need)))


# ----------------------------------------------------------------------------
# Fused encoder-layer kernel (one pallas_call per layer, grid over batch)
# ----------------------------------------------------------------------------

def _encoder_layer_kernel(x_ref, bias_ref,
                          ln0g_ref, ln0b_ref,
                          wqkv_ref, bqkv_ref, wo_ref, bo_ref,
                          ln1g_ref, ln1b_ref,
                          wff1_ref, bff1_ref, wff2_ref, bff2_ref,
                          ln2g_ref, ln2b_ref,
                          o_ref, ctx_ref,
                          *, n_heads, head_dim, true_h, eps,
                          apply_input_ln, cls_only):
    Hp = x_ref.shape[-1]
    inv_h = 1.0 / true_h
    # Lane mask of the true (un-padded) hidden columns, shared by all LayerNorms.
    col_ok = lax.broadcasted_iota(jnp.int32, (1, Hp), 1) < true_h

    def ln(t, g_ref, b_ref):
        # LayerNorm over the true hidden width (pad columns of the input are
        # exactly zero; zero-padded gamma/beta force them back to zero).
        mu = jnp.sum(t, axis=-1, keepdims=True) * inv_h
        c = jnp.where(col_ok, t - mu, 0.0)                # two-pass variance
        var = jnp.sum(c * c, axis=-1, keepdims=True) * inv_h
        y = c * lax.rsqrt(var + eps)
        return y * g_ref[...] + b_ref[...]

    xf = x_ref[0].astype(jnp.float32)                     # (S, Hp)
    if apply_input_ln:                                    # fused embedding LN (layer 0)
        xf = ln(xf, ln0g_ref, ln0b_ref)

    # ---- fused QKV projection (attention scale pre-folded into Wq) ----------
    qkv = jnp.dot(xf.astype(jnp.bfloat16), wqkv_ref[...],
                  preferred_element_type=jnp.float32) + bqkv_ref[...]    # (S, 3Hp)
    q = qkv[:, 0 * Hp:1 * Hp]
    k = qkv[:, 1 * Hp:2 * Hp]
    v = qkv[:, 2 * Hp:3 * Hp]

    # ---- multi-head softmax attention ----------------------------------------
    # Per-head context is written into ONE lane-dense (S, Hp) bf16 scratch so
    # the output projection is a single (S,Hp)x(Hp,Hp) MXU matmul; the scratch
    # also releases the per-head intermediates (live-range bound).
    bias = bias_ref[0]                                     # (1, S) additive mask bias
    ctx_ref[...] = jnp.zeros_like(ctx_ref)                 # keep pad columns NaN-free
    for head in range(n_heads):
        lo = head * head_dim
        qh = q[:, lo:lo + head_dim].astype(jnp.bfloat16)
        kh = k[:, lo:lo + head_dim].astype(jnp.bfloat16)
        vh = v[:, lo:lo + head_dim].astype(jnp.bfloat16)
        s = lax.dot_general(qh, kh, (((1,), (1,)), ((), ())),
                            preferred_element_type=jnp.float32) + bias   # (S, S)
        s = s - jnp.max(s, axis=-1, keepdims=True)
        p = jnp.exp(s)
        p = p * pl.reciprocal(jnp.sum(p, axis=-1, keepdims=True), approx=True)
        ctx_ref[:, lo:lo + head_dim] = jnp.dot(
            p.astype(jnp.bfloat16), vh,
            preferred_element_type=jnp.float32).astype(jnp.bfloat16)

    attn = jnp.dot(ctx_ref[...], wo_ref[...],
                   preferred_element_type=jnp.float32) + bo_ref[...]     # (S, Hp)

    h1 = ln(xf + attn, ln1g_ref, ln1b_ref)                 # post-LN residual 1

    if cls_only:
        h1 = h1[0:1, :]                                    # only the CLS row is consumed

    # ---- feed-forward ---------------------------------------------------------
    ff = jnp.dot(h1.astype(jnp.bfloat16), wff1_ref[...],
                 preferred_element_type=jnp.float32) + bff1_ref[...]
    ff = _gelu_tanh(ff)
    ff = jnp.dot(ff.astype(jnp.bfloat16), wff2_ref[...],
                 preferred_element_type=jnp.float32) + bff2_ref[...]

    o_ref[0] = ln(h1 + ff, ln2g_ref, ln2b_ref).astype(o_ref.dtype)


def encoder_layer(x, attn_bias, emb_ln, lw, *, n_heads, head_dim, true_h,
                  apply_input_ln, cls_only, out_dtype):
    B, Sp, Hp = x.shape
    out_rows = 1 if cls_only else Sp
    kernel = functools.partial(
        _encoder_layer_kernel, n_heads=n_heads, head_dim=head_dim,
        true_h=true_h, eps=1e-12,          # TODO(synk): confirm eps vs MoLFormer config
        apply_input_ln=apply_input_ln, cls_only=cls_only)

    weights = [emb_ln[0], emb_ln[1],
               lw["wqkv"], lw["bqkv"], lw["wo"], lw["bo"],
               lw["ln1_g"], lw["ln1_b"],
               lw["wff1"], lw["bff1"], lw["wff2"], lw["bff2"],
               lw["ln2_g"], lw["ln2_b"]]

    return pl.pallas_call(
        kernel,
        out_shape=jax.ShapeDtypeStruct((B, out_rows, Hp), out_dtype),
        grid=(B,),
        in_specs=[
            pl.BlockSpec((1, Sp, Hp), lambda b: (b, 0, 0)),       # x
            pl.BlockSpec((1, 1, Sp), lambda b: (b, 0, 0)),        # mask bias
        ] + [_weight_spec(w.shape) for w in weights],
        out_specs=pl.BlockSpec((1, out_rows, Hp), lambda b: (b, 0, 0)),
        scratch_shapes=[pltpu.VMEM((Sp, Hp), jnp.bfloat16)],      # lane-dense ctx
        compiler_params=pltpu.CompilerParams(
            dimension_semantics=("parallel",),
            vmem_limit_bytes=_layer_vmem_bytes(weights, Sp, Hp, lw["wff1"].shape[1])),
    )(x, attn_bias, *weights)


# ----------------------------------------------------------------------------
# Synthetic MoLFormer backbone + regression head (glue in plain JAX)
# ----------------------------------------------------------------------------

def init_params(key, vocab, hidden, n_layers, n_heads, ffn):
    Hp = _round_up(hidden, LANE)
    Fp = _round_up(ffn, LANE)
    head_dim = hidden // n_heads
    ks = jax.random.split(key, 2 + n_layers)
    scale = 0.02

    def padded(a, rows, cols, dtype=jnp.bfloat16):
        out = jnp.zeros((rows, cols), dtype)
        return out.at[: a.shape[0], : a.shape[1]].set(a.astype(dtype))

    def gamma_row(n):   # ones on the true cols, zeros on pad cols
        return jnp.zeros((1, Hp), jnp.float32).at[0, :n].set(1.0)

    emb = scale * jax.random.normal(ks[0], (vocab, hidden), jnp.float32)
    params = {
        "emb": padded(emb, vocab, Hp, jnp.float32),
        "emb_ln_g": gamma_row(hidden),
        "emb_ln_b": jnp.zeros((1, Hp), jnp.float32),
        "head_w": scale * jax.random.normal(ks[1], (hidden, 1), jnp.float32),
        "head_b": jnp.zeros((1,), jnp.float32),
        "layers": [],
    }
    for li in range(n_layers):
        lk = jax.random.split(ks[2 + li], 6)
        # 1/sqrt(head_dim) attention scale folded into the Q weights (perf review).
        wq = (scale / math.sqrt(head_dim)) * jax.random.normal(lk[0], (hidden, hidden), jnp.float32)
        wk = scale * jax.random.normal(lk[1], (hidden, hidden), jnp.float32)
        wv = scale * jax.random.normal(lk[2], (hidden, hidden), jnp.float32)
        wo = scale * jax.random.normal(lk[3], (hidden, hidden), jnp.float32)
        wff1 = scale * jax.random.normal(lk[4], (hidden, ffn), jnp.float32)
        wff2 = scale * jax.random.normal(lk[5], (ffn, hidden), jnp.float32)
        params["layers"].append({
            # fused, lane-padded, bf16 QKV weight: (Hp, 3*Hp)
            "wqkv": jnp.concatenate([padded(wq, Hp, Hp), padded(wk, Hp, Hp),
                                     padded(wv, Hp, Hp)], axis=1),
            "bqkv": jnp.zeros((1, 3 * Hp), jnp.float32),
            "wo": padded(wo, Hp, Hp),
            "bo": jnp.zeros((1, Hp), jnp.float32),
            "ln1_g": gamma_row(hidden),
            "ln1_b": jnp.zeros((1, Hp), jnp.float32),
            "wff1": padded(wff1, Hp, Fp),
            "bff1": jnp.zeros((1, Fp), jnp.float32),
            "wff2": padded(wff2, Fp, Hp),
            "bff2": jnp.zeros((1, Hp), jnp.float32),
            "ln2_g": gamma_row(hidden),
            "ln2_b": jnp.zeros((1, Hp), jnp.float32),
        })
    return params


def molformer_with_regression_head(params, input_ids, attention_mask, *, n_heads, hidden):
    B, S = input_ids.shape
    Hp = params["emb"].shape[1]
    Sp = _round_up(S, LANE)
    head_dim = hidden // n_heads
    n_layers = len(params["layers"])

    # Sequence padded to a lane multiple; padded key positions get the -1e9 bias.
    mask = jnp.zeros((B, Sp), jnp.float32).at[:, :S].set(attention_mask.astype(jnp.float32))
    attn_bias = ((mask - 1.0) * 1e9).reshape(B, 1, Sp)

    # Embedding lookup (gather, XLA); embedding LN is fused into layer 0.
    x = jnp.take(params["emb"], input_ids, axis=0)                       # (B, S, Hp) f32
    x = jnp.zeros((B, Sp, Hp), jnp.bfloat16).at[:, :S, :].set(x.astype(jnp.bfloat16))

    emb_ln = (params["emb_ln_g"], params["emb_ln_b"])
    for li, lw in enumerate(params["layers"]):
        last = li == n_layers - 1
        x = encoder_layer(
            x, attn_bias, emb_ln, lw,
            n_heads=n_heads, head_dim=head_dim, true_h=hidden,
            apply_input_ln=(li == 0),
            cls_only=last,                                   # last layer: CLS row only
            out_dtype=jnp.float32 if last else jnp.bfloat16)  # bf16 inter-layer acts

    # Last layer emitted only the CLS row: x is (B, 1, Hp) f32.
    cls_token = x[:, 0, :hidden]                                         # (B, H)
    # TODO(synk): (H, 1) regression head left to XLA — a dedicated Pallas call
    # for a 1-lane output is pure launch overhead.
    return cls_token @ params["head_w"] + params["head_b"]               # (B, 1)


# ----------------------------------------------------------------------------
# Main
# ----------------------------------------------------------------------------

if __name__ == "__main__":
    VOCAB, HIDDEN, N_LAYERS, N_HEADS, FFN = 50, 32, 2, 4, 64
    B, S = 2, 8

    key = jax.random.PRNGKey(0)
    k_params, k_ids = jax.random.split(key)
    params = init_params(k_params, VOCAB, HIDDEN, N_LAYERS, N_HEADS, FFN)

    input_ids = jax.random.randint(k_ids, (B, S), 0, VOCAB, dtype=jnp.int32)
    attention_mask = jnp.ones((B, S), dtype=jnp.int32).at[1, 6:].set(0)  # emulate padding

    fwd = jax.jit(functools.partial(molformer_with_regression_head,
                                    n_heads=N_HEADS, hidden=HIDDEN))
    out = jax.block_until_ready(fwd(params, input_ids, attention_mask))

    assert out.shape == (B, 1), out.shape
    assert out.dtype == jnp.float32, out.dtype
    print("KERNEL_OK")
</pallas_src>

<mosaic_0001>
module attributes {stable_mosaic.version = 11 : i64} {
  func.func @_encoder_layer_kernel(%arg0: i32, %arg1: memref<1x128x128xbf16, #tpu.memory_space<vmem>>, %arg2: memref<1x1x128xf32, #tpu.memory_space<vmem>>, %arg3: memref<1x128xf32, #tpu.memory_space<vmem>>, %arg4: memref<1x128xf32, #tpu.memory_space<vmem>>, %arg5: memref<128x384xbf16, #tpu.memory_space<vmem>>, %arg6: memref<1x384xf32, #tpu.memory_space<vmem>>, %arg7: memref<128x128xbf16, #tpu.memory_space<vmem>>, %arg8: memref<1x128xf32, #tpu.memory_space<vmem>>, %arg9: memref<1x128xf32, #tpu.memory_space<vmem>>, %arg10: memref<1x128xf32, #tpu.memory_space<vmem>>, %arg11: memref<128x128xbf16, #tpu.memory_space<vmem>>, %arg12: memref<1x128xf32, #tpu.memory_space<vmem>>, %arg13: memref<128x128xbf16, #tpu.memory_space<vmem>>, %arg14: memref<1x128xf32, #tpu.memory_space<vmem>>, %arg15: memref<1x128xf32, #tpu.memory_space<vmem>>, %arg16: memref<1x128xf32, #tpu.memory_space<vmem>>, %arg17: memref<1x1x128xf32, #tpu.memory_space<vmem>>, %arg18: memref<128x128xbf16, #tpu.memory_space<vmem>>) attributes {dimension_semantics = [#tpu.dimension_semantics<parallel>], iteration_bounds = array<i64: 2>, scalar_prefetch = 0 : i64, scratch_operands = 1 : i64, tpu.core_type = #tpu.core_type<tc>, window_params = [{transform_indices = @transform_0, window_bounds = array<i64: 1, 128, 128>}, {transform_indices = @transform_1, window_bounds = array<i64: 1, 1, 128>}, {pipeline_mode = #tpu.pipeline_mode<synchronous>, transform_indices = @transform_2, window_bounds = array<i64: 1, 128>}, {pipeline_mode = #tpu.pipeline_mode<synchronous>, transform_indices = @transform_3, window_bounds = array<i64: 1, 128>}, {pipeline_mode = #tpu.pipeline_mode<synchronous>, transform_indices = @transform_4, window_bounds = array<i64: 128, 384>}, {pipeline_mode = #tpu.pipeline_mode<synchronous>, transform_indices = @transform_5, window_bounds = array<i64: 1, 384>}, {pipeline_mode = #tpu.pipeline_mode<synchronous>, transform_indices = @transform_6, window_bounds = array<i64: 128, 128>}, {pipeline_mode = #tpu.pipeline_mode<synchronous>, transform_indices = @transform_7, window_bounds = array<i64: 1, 128>}, {pipeline_mode = #tpu.pipeline_mode<synchronous>, transform_indices = @transform_8, window_bounds = array<i64: 1, 128>}, {pipeline_mode = #tpu.pipeline_mode<synchronous>, transform_indices = @transform_9, window_bounds = array<i64: 1, 128>}, {pipeline_mode = #tpu.pipeline_mode<synchronous>, transform_indices = @transform_10, window_bounds = array<i64: 128, 128>}, {pipeline_mode = #tpu.pipeline_mode<synchronous>, transform_indices = @transform_11, window_bounds = array<i64: 1, 128>}, {pipeline_mode = #tpu.pipeline_mode<synchronous>, transform_indices = @transform_12, window_bounds = array<i64: 128, 128>}, {pipeline_mode = #tpu.pipeline_mode<synchronous>, transform_indices = @transform_13, window_bounds = array<i64: 1, 128>}, {pipeline_mode = #tpu.pipeline_mode<synchronous>, transform_indices = @transform_14, window_bounds = array<i64: 1, 128>}, {pipeline_mode = #tpu.pipeline_mode<synchronous>, transform_indices = @transform_15, window_bounds = array<i64: 1, 128>}, {transform_indices = @transform_16, window_bounds = array<i64: 1, 1, 128>}]} {
    %0 = tpu.iota {dimensions = array<i32: 1>} : vector<1x128xi32>
    %c32_i32 = arith.constant 32 : i32
    %1 = vector.broadcast %c32_i32 : i32 to vector<1x128xi32>
    %2 = arith.cmpi slt, %0, %1 : vector<1x128xi32>
    %c0 = arith.constant 0 : index
    %c0_0 = arith.constant 0 : index
    %c0_1 = arith.constant 0 : index
    %3 = vector.load %arg1[%c0, %c0_0, %c0_1] : memref<1x128x128xbf16, #tpu.memory_space<vmem>>, vector<1x128x128xbf16>
    %4 = vector.shape_cast %3 : vector<1x128x128xbf16> to vector<128x128xbf16>
    %5 = arith.extf %4 : vector<128x128xbf16> to vector<128x128xf32>
    %6 = arith.truncf %5 : vector<128x128xf32> to vector<128x128xbf16>
    %c0_2 = arith.constant 0 : index
    %c0_3 = arith.constant 0 : index
    %7 = vector.load %arg5[%c0_2, %c0_3] : memref<128x384xbf16, #tpu.memory_space<vmem>>, vector<128x384xbf16>
    %cst = arith.constant dense<0.000000e+00> : vector<128x384xf32>
    %8 = tpu.matmul %6, %7, %cst {dimension_numbers = #tpu.dot_dimension_numbers<[1], [0], [0], [1], [0, 0, 1, 1], [], []>} : vector<128x128xbf16>, vector<128x384xbf16>, vector<128x384xf32> -> vector<128x384xf32>
    %c0_4 = arith.constant 0 : index
    %c0_5 = arith.constant 0 : index
    %9 = vector.load %arg6[%c0_4, %c0_5] : memref<1x384xf32, #tpu.memory_space<vmem>>, vector<1x384xf32>
    %10 = vector.broadcast %9 : vector<1x384xf32> to vector<128x384xf32>
    %11 = arith.addf %8, %10 : vector<128x384xf32>
    %12 = vector.extract_strided_slice %11 {offsets = [0, 0], sizes = [128, 128], strides = [1, 1]} : vector<128x384xf32> to vector<128x128xf32>
    %13 = vector.extract_strided_slice %11 {offsets = [0, 128], sizes = [128, 128], strides = [1, 1]} : vector<128x384xf32> to vector<128x128xf32>
    %14 = vector.extract_strided_slice %11 {offsets = [0, 256], sizes = [128, 128], strides = [1, 1]} : vector<128x384xf32> to vector<128x128xf32>
    %c0_6 = arith.constant 0 : index
    %c0_7 = arith.constant 0 : index
    %c0_8 = arith.constant 0 : index
    %15 = vector.load %arg2[%c0_6, %c0_7, %c0_8] : memref<1x1x128xf32, #tpu.memory_space<vmem>>, vector<1x1x128xf32>
    %16 = vector.shape_cast %15 : vector<1x1x128xf32> to vector<1x128xf32>
    %cst_9 = arith.constant 0.000000e+00 : bf16
    %17 = vector.broadcast %cst_9 : bf16 to vector<128x128xbf16>
    %c0_10 = arith.constant 0 : index
    %c0_11 = arith.constant 0 : index
    %18 = vector.load %arg18[%c0_10, %c0_11] : memref<128x128xbf16, #tpu.memory_space<vmem>>, vector<128x128xbf16>
    tpu.vector_store %arg18[%c0_10, %c0_11], %17 {strides = array<i32>} : memref<128x128xbf16, #tpu.memory_space<vmem>>, vector<128x128xbf16>,
    %19 = vector.extract_strided_slice %12 {offsets = [0, 0], sizes = [128, 8], strides = [1, 1]} : vector<128x128xf32> to vector<128x8xf32>
    %20 = arith.truncf %19 : vector<128x8xf32> to vector<128x8xbf16>
    %21 = vector.extract_strided_slice %13 {offsets = [0, 0], sizes = [128, 8], strides = [1, 1]} : vector<128x128xf32> to vector<128x8xf32>
    %22 = arith.truncf %21 : vector<128x8xf32> to vector<128x8xbf16>
    %23 = vector.extract_strided_slice %14 {offsets = [0, 0], sizes = [128, 8], strides = [1, 1]} : vector<128x128xf32> to vector<128x8xf32>
    %24 = arith.truncf %23 : vector<128x8xf32> to vector<128x8xbf16>
    %cst_12 = arith.constant dense<0.000000e+00> : vector<128x128xf32>
    %25 = tpu.matmul %20, %22, %cst_12 {dimension_numbers = #tpu.dot_dimension_numbers<[1], [1], [0], [0], [0, 0, 1, 0], [], []>} : vector<128x8xbf16>, vector<128x8xbf16>, vector<128x128xf32> -> vector<128x128xf32>
    %26 = vector.broadcast %16 : vector<1x128xf32> to vector<128x128xf32>
    %27 = arith.addf %25, %26 : vector<128x128xf32>
    %cst_13 = arith.constant dense<0xFF800000> : vector<128xf32>
    %28 = vector.multi_reduction <maximumf>, %27, %cst_13 [1] : vector<128x128xf32> to vector<128xf32>
    %29 = vector.shape_cast %28 : vector<128xf32> to vector<128x1xf32>
    %30 = vector.broadcast %29 : vector<128x1xf32> to vector<128x128xf32>
    %31 = arith.subf %27, %30 : vector<128x128xf32>
    %32 = math.exp %31 : vector<128x128xf32>
    %cst_14 = arith.constant dense<0.000000e+00> : vector<128xf32>
    %33 = vector.multi_reduction <add>, %32, %cst_14 [1] : vector<128x128xf32> to vector<128xf32>
    %34 = vector.shape_cast %33 : vector<128xf32> to vector<128x1xf32>
    %35 = tpu.reciprocal %34 {approx = true} : vector<128x1xf32> -> vector<128x1xf32>
    %36 = vector.broadcast %35 : vector<128x1xf32> to vector<128x128xf32>
    %37 = arith.mulf %32, %36 : vector<128x128xf32>
    %38 = arith.truncf %37 : vector<128x128xf32> to vector<128x128xbf16>
    %cst_15 = arith.constant dense<0.000000e+00> : vector<128x8xf32>
    %39 = tpu.matmul %38, %24, %cst_15 {dimension_numbers = #tpu.dot_dimension_numbers<[1], [0], [0], [1], [0, 0, 1, 1], [], []>} : vector<128x128xbf16>, vector<128x8xbf16>, vector<128x8xf32> -> vector<128x8xf32>
    %40 = arith.truncf %39 : vector<128x8xf32> to vector<128x8xbf16>
    %c0_16 = arith.constant 0 : index
    %c0_17 = arith.constant 0 : index
    %41 = vector.load %arg18[%c0_16, %c0_17] : memref<128x128xbf16, #tpu.memory_space<vmem>>, vector<128x8xbf16>
    tpu.vector_store %arg18[%c0_16, %c0_17], %40 {strides = array<i32>} : memref<128x128xbf16, #tpu.memory_space<vmem>>, vector<128x8xbf16>,
    %42 = vector.extract_strided_slice %12 {offsets = [0, 8], sizes = [128, 8], strides = [1, 1]} : vector<128x128xf32> to vector<128x8xf32>
    %43 = arith.truncf %42 : vector<128x8xf32> to vector<128x8xbf16>
    %44 = vector.extract_strided_slice %13 {offsets = [0, 8], sizes = [128, 8], strides = [1, 1]} : vector<128x128xf32> to vector<128x8xf32>
    %45 = arith.truncf %44 : vector<128x8xf32> to vector<128x8xbf16>
    %46 = vector.extract_strided_slice %14 {offsets = [0, 8], sizes = [128, 8], strides = [1, 1]} : vector<128x128xf32> to vector<128x8xf32>
    %47 = arith.truncf %46 : vector<128x8xf32> to vector<128x8xbf16>
    %cst_18 = arith.constant dense<0.000000e+00> : vector<128x128xf32>
    %48 = tpu.matmul %43, %45, %cst_18 {dimension_numbers = #tpu.dot_dimension_numbers<[1], [1], [0], [0], [0, 0, 1, 0], [], []>} : vector<128x8xbf16>, vector<128x8xbf16>, vector<128x128xf32> -> vector<128x128xf32>
    %49 = vector.broadcast %16 : vector<1x128xf32> to vector<128x128xf32>
    %50 = arith.addf %48, %49 : vector<128x128xf32>
    %cst_19 = arith.constant dense<0xFF800000> : vector<128xf32>
    %51 = vector.multi_reduction <maximumf>, %50, %cst_19 [1] : vector<128x128xf32> to vector<128xf32>
    %52 = vector.shape_cast %51 : vector<128xf32> to vector<128x1xf32>
    %53 = vector.broadcast %52 : vector<128x1xf32> to vector<128x128xf32>
    %54 = arith.subf %50, %53 : vector<128x128xf32>
    %55 = math.exp %54 : vector<128x128xf32>
    %cst_20 = arith.constant dense<0.000000e+00> : vector<128xf32>
    %56 = vector.multi_reduction <add>, %55, %cst_20 [1] : vector<128x128xf32> to vector<128xf32>
    %57 = vector.shape_cast %56 : vector<128xf32> to vector<128x1xf32>
    %58 = tpu.reciprocal %57 {approx = true} : vector<128x1xf32> -> vector<128x1xf32>
    %59 = vector.broadcast %58 : vector<128x1xf32> to vector<128x128xf32>
    %60 = arith.mulf %55, %59 : vector<128x128xf32>
    %61 = arith.truncf %60 : vector<128x128xf32> to vector<128x128xbf16>
    %cst_21 = arith.constant dense<0.000000e+00> : vector<128x8xf32>
    %62 = tpu.matmul %61, %47, %cst_21 {dimension_numbers = #tpu.dot_dimension_numbers<[1], [0], [0], [1], [0, 0, 1, 1], [], []>} : vector<128x128xbf16>, vector<128x8xbf16>, vector<128x8xf32> -> vector<128x8xf32>
    %63 = arith.truncf %62 : vector<128x8xf32> to vector<128x8xbf16>
    %c0_22 = arith.constant 0 : index
    %c8 = arith.constant 8 : index
    %64 = vector.load %arg18[%c0_22, %c8] : memref<128x128xbf16, #tpu.memory_space<vmem>>, vector<128x8xbf16>
    tpu.vector_store %arg18[%c0_22, %c8], %63 {strides = array<i32>} : memref<128x128xbf16, #tpu.memory_space<vmem>>, vector<128x8xbf16>,
    %65 = vector.extract_strided_slice %12 {offsets = [0, 16], sizes = [128, 8], strides = [1, 1]} : vector<128x128xf32> to vector<128x8xf32>
    %66 = arith.truncf %65 : vector<128x8xf32> to vector<128x8xbf16>
    %67 = vector.extract_strided_slice %13 {offsets = [0, 16], sizes = [128, 8], strides = [1, 1]} : vector<128x128xf32> to vector<128x8xf32>
    %68 = arith.truncf %67 : vector<128x8xf32> to vector<128x8xbf16>
    %69 = vector.extract_strided_slice %14 {offsets = [0, 16], sizes = [128, 8], strides = [1, 1]} : vector<128x128xf32> to vector<128x8xf32>
    %70 = arith.truncf %69 : vector<128x8xf32> to vector<128x8xbf16>
    %cst_23 = arith.constant dense<0.000000e+00> : vector<128x128xf32>
    %71 = tpu.matmul %66, %68, %cst_23 {dimension_numbers = #tpu.dot_dimension_numbers<[1], [1], [0], [0], [0, 0, 1, 0], [], []>} : vector<128x8xbf16>, vector<128x8xbf16>, vector<128x128xf32> -> vector<128x128xf32>
    %72 = vector.broadcast %16 : vector<1x128xf32> to vector<128x128xf32>
    %73 = arith.addf %71, %72 : vector<128x128xf32>
    %cst_24 = arith.constant dense<0xFF800000> : vector<128xf32>
    %74 = vector.multi_reduction <maximumf>, %73, %cst_24 [1] : vector<128x128xf32> to vector<128xf32>
    %75 = vector.shape_cast %74 : vector<128xf32> to vector<128x1xf32>
    %76 = vector.broadcast %75 : vector<128x1xf32> to vector<128x128xf32>
    %77 = arith.subf %73, %76 : vector<128x128xf32>
    %78 = math.exp %77 : vector<128x128xf32>
    %cst_25 = arith.constant dense<0.000000e+00> : vector<128xf32>
    %79 = vector.multi_reduction <add>, %78, %cst_25 [1] : vector<128x128xf32> to vector<128xf32>
    %80 = vector.shape_cast %79 : vector<128xf32> to vector<128x1xf32>
    %81 = tpu.reciprocal %80 {approx = true} : vector<128x1xf32> -> vector<128x1xf32>
    %82 = vector.broadcast %81 : vector<128x1xf32> to vector<128x128xf32>
    %83 = arith.mulf %78, %82 : vector<128x128xf32>
    %84 = arith.truncf %83 : vector<128x128xf32> to vector<128x128xbf16>
    %cst_26 = arith.constant dense<0.000000e+00> : vector<128x8xf32>
    %85 = tpu.matmul %84, %70, %cst_26 {dimension_numbers = #tpu.dot_dimension_numbers<[1], [0], [0], [1], [0, 0, 1, 1], [], []>} : vector<128x128xbf16>, vector<128x8xbf16>, vector<128x8xf32> -> vector<128x8xf32>
    %86 = arith.truncf %85 : vector<128x8xf32> to vector<128x8xbf16>
    %c0_27 = arith.constant 0 : index
    %c16 = arith.constant 16 : index
    %87 = vector.load %arg18[%c0_27, %c16] : memref<128x128xbf16, #tpu.memory_space<vmem>>, vector<128x8xbf16>
    tpu.vector_store %arg18[%c0_27, %c16], %86 {strides = array<i32>} : memref<128x128xbf16, #tpu.memory_space<vmem>>, vector<128x8xbf16>,
    %88 = vector.extract_strided_slice %12 {offsets = [0, 24], sizes = [128, 8], strides = [1, 1]} : vector<128x128xf32> to vector<128x8xf32>
    %89 = arith.truncf %88 : vector<128x8xf32> to vector<128x8xbf16>
    %90 = vector.extract_strided_slice %13 {offsets = [0, 24], sizes = [128, 8], strides = [1, 1]} : vector<128x128xf32> to vector<128x8xf32>
    %91 = arith.truncf %90 : vector<128x8xf32> to vector<128x8xbf16>
    %92 = vector.extract_strided_slice %14 {offsets = [0, 24], sizes = [128, 8], strides = [1, 1]} : vector<128x128xf32> to vector<128x8xf32>
    %93 = arith.truncf %92 : vector<128x8xf32> to vector<128x8xbf16>
    %cst_28 = arith.constant dense<0.000000e+00> : vector<128x128xf32>
    %94 = tpu.matmul %89, %91, %cst_28 {dimension_numbers = #tpu.dot_dimension_numbers<[1], [1], [0], [0], [0, 0, 1, 0], [], []>} : vector<128x8xbf16>, vector<128x8xbf16>, vector<128x128xf32> -> vector<128x128xf32>
    %95 = vector.broadcast %16 : vector<1x128xf32> to vector<128x128xf32>
    %96 = arith.addf %94, %95 : vector<128x128xf32>
    %cst_29 = arith.constant dense<0xFF800000> : vector<128xf32>
    %97 = vector.multi_reduction <maximumf>, %96, %cst_29 [1] : vector<128x128xf32> to vector<128xf32>
    %98 = vector.shape_cast %97 : vector<128xf32> to vector<128x1xf32>
    %99 = vector.broadcast %98 : vector<128x1xf32> to vector<128x128xf32>
    %100 = arith.subf %96, %99 : vector<128x128xf32>
    %101 = math.exp %100 : vector<128x128xf32>
    %cst_30 = arith.constant dense<0.000000e+00> : vector<128xf32>
    %102 = vector.multi_reduction <add>, %101, %cst_30 [1] : vector<128x128xf32> to vector<128xf32>
    %103 = vector.shape_cast %102 : vector<128xf32> to vector<128x1xf32>
    %104 = tpu.reciprocal %103 {approx = true} : vector<128x1xf32> -> vector<128x1xf32>
    %105 = vector.broadcast %104 : vector<128x1xf32> to vector<128x128xf32>
    %106 = arith.mulf %101, %105 : vector<128x128xf32>
    %107 = arith.truncf %106 : vector<128x128xf32> to vector<128x128xbf16>
    %cst_31 = arith.constant dense<0.000000e+00> : vector<128x8xf32>
    %108 = tpu.matmul %107, %93, %cst_31 {dimension_numbers = #tpu.dot_dimension_numbers<[1], [0], [0], [1], [0, 0, 1, 1], [], []>} : vector<128x128xbf16>, vector<128x8xbf16>, vector<128x8xf32> -> vector<128x8xf32>
    %109 = arith.truncf %108 : vector<128x8xf32> to vector<128x8xbf16>
    %c0_32 = arith.constant 0 : index
    %c24 = arith.constant 24 : index
    %110 = vector.load %arg18[%c0_32, %c24] : memref<128x128xbf16, #tpu.memory_space<vmem>>, vector<128x8xbf16>
    tpu.vector_store %arg18[%c0_32, %c24], %109 {strides = array<i32>} : memref<128x128xbf16, #tpu.memory_space<vmem>>, vector<128x8xbf16>,
    %c0_33 = arith.constant 0 : index
    %c0_34 = arith.constant 0 : index
    %111 = vector.load %arg18[%c0_33, %c0_34] : memref<128x128xbf16, #tpu.memory_space<vmem>>, vector<128x128xbf16>
    %c0_35 = arith.constant 0 : index
    %c0_36 = arith.constant 0 : index
    %112 = vector.load %arg7[%c0_35, %c0_36] : memref<128x128xbf16, #tpu.memory_space<vmem>>, vector<128x128xbf16>
    %cst_37 = arith.constant dense<0.000000e+00> : vector<128x128xf32>
    %113 = tpu.matmul %111, %112, %cst_37 {dimension_numbers = #tpu.dot_dimension_numbers<[1], [0], [0], [1], [0, 0, 1, 1], [], []>} : vector<128x128xbf16>, vector<128x128xbf16>, vector<128x128xf32> -> vector<128x128xf32>
    %c0_38 = arith.constant 0 : index
    %c0_39 = arith.constant 0 : index
    %114 = vector.load %arg8[%c0_38, %c0_39] : memref<1x128xf32, #tpu.memory_space<vmem>>, vector<1x128xf32>
    %115 = vector.broadcast %114 : vector<1x128xf32> to vector<128x128xf32>
    %116 = arith.addf %113, %115 : vector<128x128xf32>
    %117 = arith.addf %5, %116 : vector<128x128xf32>
    %cst_40 = arith.constant dense<0.000000e+00> : vector<128xf32>
    %118 = vector.multi_reduction <add>, %117, %cst_40 [1] : vector<128x128xf32> to vector<128xf32>
    %119 = vector.shape_cast %118 : vector<128xf32> to vector<128x1xf32>
    %cst_41 = arith.constant 3.125000e-02 : f32
    %120 = vector.broadcast %cst_41 : f32 to vector<128x1xf32>
    %121 = arith.mulf %119, %120 : vector<128x1xf32>
    %122 = vector.broadcast %121 : vector<128x1xf32> to vector<128x128xf32>
    %123 = arith.subf %117, %122 : vector<128x128xf32>
    %cst_42 = arith.constant 0.000000e+00 : f32
    %124 = vector.shape_cast %2 : vector<1x128xi1> to vector<1x128xi1>
    %125 = vector.broadcast %124 : vector<1x128xi1> to vector<128x128xi1>
    %126 = vector.broadcast %cst_42 : f32 to vector<128x128xf32>
    %127 = arith.select %125, %123, %126 : vector<128x128xi1>, vector<128x128xf32>
    %128 = arith.mulf %127, %127 : vector<128x128xf32>
    %cst_43 = arith.constant dense<0.000000e+00> : vector<128xf32>
    %129 = vector.multi_reduction <add>, %128, %cst_43 [1] : vector<128x128xf32> to vector<128xf32>
    %130 = vector.shape_cast %129 : vector<128xf32> to vector<128x1xf32>
    %cst_44 = arith.constant 3.125000e-02 : f32
    %131 = vector.broadcast %cst_44 : f32 to vector<128x1xf32>
    %132 = arith.mulf %130, %131 : vector<128x1xf32>
    %cst_45 = arith.constant 9.99999996E-13 : f32
    %133 = vector.broadcast %cst_45 : f32 to vector<128x1xf32>
    %134 = arith.addf %132, %133 : vector<128x1xf32>
    %135 = math.rsqrt %134 : vector<128x1xf32>
    %136 = vector.broadcast %135 : vector<128x1xf32> to vector<128x128xf32>
    %137 = arith.mulf %127, %136 : vector<128x128xf32>
    %c0_46 = arith.constant 0 : index
    %c0_47 = arith.constant 0 : index
    %138 = vector.load %arg9[%c0_46, %c0_47] : memref<1x128xf32, #tpu.memory_space<vmem>>, vector<1x128xf32>
    %139 = vector.broadcast %138 : vector<1x128xf32> to vector<128x128xf32>
    %140 = arith.mulf %137, %139 : vector<128x128xf32>
    %c0_48 = arith.constant 0 : index
    %c0_49 = arith.constant 0 : index
    %141 = vector.load %arg10[%c0_48, %c0_49] : memref<1x128xf32, #tpu.memory_space<vmem>>, vector<1x128xf32>
    %142 = vector.broadcast %141 : vector<1x128xf32> to vector<128x128xf32>
    %143 = arith.addf %140, %142 : vector<128x128xf32>
    %144 = vector.extract_strided_slice %143 {offsets = [0, 0], sizes = [1, 128], strides = [1, 1]} : vector<128x128xf32> to vector<1x128xf32>
    %145 = arith.truncf %144 : vector<1x128xf32> to vector<1x128xbf16>
    %c0_50 = arith.constant 0 : index
    %c0_51 = arith.constant 0 : index
    %146 = vector.load %arg11[%c0_50, %c0_51] : memref<128x128xbf16, #tpu.memory_space<vmem>>, vector<128x128xbf16>
    %cst_52 = arith.constant dense<0.000000e+00> : vector<1x128xf32>
    %147 = tpu.matmul %145, %146, %cst_52 {dimension_numbers = #tpu.dot_dimension_numbers<[1], [0], [0], [1], [0, 0, 1, 1], [], []>} : vector<1x128xbf16>, vector<128x128xbf16>, vector<1x128xf32> -> vector<1x128xf32>
    %c0_53 = arith.constant 0 : index
    %c0_54 = arith.constant 0 : index
    %148 = vector.load %arg12[%c0_53, %c0_54] : memref<1x128xf32, #tpu.memory_space<vmem>>, vector<1x128xf32>
    %149 = arith.addf %147, %148 : vector<1x128xf32>
    %cst_55 = arith.constant 5.000000e-01 : f32
    %150 = vector.broadcast %cst_55 : f32 to vector<1x128xf32>
    %151 = arith.mulf %150, %149 : vector<1x128xf32>
    %cst_56 = arith.constant 4.471500e-02 : f32
    %152 = vector.broadcast %cst_56 : f32 to vector<1x128xf32>
    %153 = arith.mulf %152, %149 : vector<1x128xf32>
    %154 = arith.mulf %153, %149 : vector<1x128xf32>
    %155 = arith.mulf %154, %149 : vector<1x128xf32>
    %156 = arith.addf %149, %155 : vector<1x128xf32>
    %cst_57 = arith.constant 0.797884583 : f32
    %157 = vector.broadcast %cst_57 : f32 to vector<1x128xf32>
    %158 = arith.mulf %157, %156 : vector<1x128xf32>
    %159 = math.tanh %158 : vector<1x128xf32>
    %cst_58 = arith.constant 1.000000e+00 : f32
    %160 = vector.broadcast %cst_58 : f32 to vector<1x128xf32>
    %161 = arith.addf %160, %159 : vector<1x128xf32>
    %162 = arith.mulf %151, %161 : vector<1x128xf32>
    %163 = arith.truncf %162 : vector<1x128xf32> to vector<1x128xbf16>
    %c0_59 = arith.constant 0 : index
    %c0_60 = arith.constant 0 : index
    %164 = vector.load %arg13[%c0_59, %c0_60] : memref<128x128xbf16, #tpu.memory_space<vmem>>, vector<128x128xbf16>
    %cst_61 = arith.constant dense<0.000000e+00> : vector<1x128xf32>
    %165 = tpu.matmul %163, %164, %cst_61 {dimension_numbers = #tpu.dot_dimension_numbers<[1], [0], [0], [1], [0, 0, 1, 1], [], []>} : vector<1x128xbf16>, vector<128x128xbf16>, vector<1x128xf32> -> vector<1x128xf32>
    %c0_62 = arith.constant 0 : index
    %c0_63 = arith.constant 0 : index
    %166 = vector.load %arg14[%c0_62, %c0_63] : memref<1x128xf32, #tpu.memory_space<vmem>>, vector<1x128xf32>
    %167 = arith.addf %165, %166 : vector<1x128xf32>
    %168 = arith.addf %144, %167 : vector<1x128xf32>
    %cst_64 = arith.constant dense<0.000000e+00> : vector<1xf32>
    %169 = vector.multi_reduction <add>, %168, %cst_64 [1] : vector<1x128xf32> to vector<1xf32>
    %170 = vector.shape_cast %169 : vector<1xf32> to vector<1x1xf32>
    %cst_65 = arith.constant 3.125000e-02 : f32
    %171 = vector.broadcast %cst_65 : f32 to vector<1x1xf32>
    %172 = arith.mulf %170, %171 : vector<1x1xf32>
    %173 = vector.broadcast %172 : vector<1x1xf32> to vector<1x128xf32>
    %174 = arith.subf %168, %173 : vector<1x128xf32>
    %cst_66 = arith.constant 0.000000e+00 : f32
    %175 = vector.broadcast %cst_66 : f32 to vector<1x128xf32>
    %176 = arith.select %2, %174, %175 : vector<1x128xi1>, vector<1x128xf32>
    %177 = arith.mulf %176, %176 : vector<1x128xf32>
    %cst_67 = arith.constant dense<0.000000e+00> : vector<1xf32>
    %178 = vector.multi_reduction <add>, %177, %cst_67 [1] : vector<1x128xf32> to vector<1xf32>
    %179 = vector.shape_cast %178 : vector<1xf32> to vector<1x1xf32>
    %cst_68 = arith.constant 3.125000e-02 : f32
    %180 = vector.broadcast %cst_68 : f32 to vector<1x1xf32>
    %181 = arith.mulf %179, %180 : vector<1x1xf32>
    %cst_69 = arith.constant 9.99999996E-13 : f32
    %182 = vector.broadcast %cst_69 : f32 to vector<1x1xf32>
    %183 = arith.addf %181, %182 : vector<1x1xf32>
    %184 = math.rsqrt %183 : vector<1x1xf32>
    %185 = vector.broadcast %184 : vector<1x1xf32> to vector<1x128xf32>
    %186 = arith.mulf %176, %185 : vector<1x128xf32>
    %c0_70 = arith.constant 0 : index
    %c0_71 = arith.constant 0 : index
    %187 = vector.load %arg15[%c0_70, %c0_71] : memref<1x128xf32, #tpu.memory_space<vmem>>, vector<1x128xf32>
    %188 = arith.mulf %186, %187 : vector<1x128xf32>
    %c0_72 = arith.constant 0 : index
    %c0_73 = arith.constant 0 : index
    %189 = vector.load %arg16[%c0_72, %c0_73] : memref<1x128xf32, #tpu.memory_space<vmem>>, vector<1x128xf32>
    %190 = arith.addf %188, %189 : vector<1x128xf32>
    %c0_74 = arith.constant 0 : index
    %c0_75 = arith.constant 0 : index
    %c0_76 = arith.constant 0 : index
    %191 = vector.load %arg17[%c0_74, %c0_75, %c0_76] : memref<1x1x128xf32, #tpu.memory_space<vmem>>, vector<1x1x128xf32>
    %192 = vector.shape_cast %191 : vector<1x1x128xf32> to vector<1x128xf32>
    %193 = vector.shape_cast %190 : vector<1x128xf32> to vector<1x1x128xf32>
    tpu.vector_store %arg17[%c0_74, %c0_75, %c0_76], %193 {strides = array<i32>} : memref<1x1x128xf32, #tpu.memory_space<vmem>>, vector<1x1x128xf32>,
    return
  }
  func.func @transform_0(%arg0: i32) -> (i32, i32, i32) {
    %c0_i32 = arith.constant 0 : i32
    %c0_i32_0 = arith.constant 0 : i32
    %c0_i32_1 = arith.constant 0 : i32
    return %arg0, %c0_i32, %c0_i32_0 : i32, i32, i32
  }
  func.func @transform_1(%arg0: i32) -> (i32, i32, i32) {
    %c0_i32 = arith.constant 0 : i32
    %c0_i32_0 = arith.constant 0 : i32
    %c0_i32_1 = arith.constant 0 : i32
    return %arg0, %c0_i32, %c0_i32_0 : i32, i32, i32
  }
  func.func @transform_2(%arg0: i32) -> (i32, i32) {
    %c0_i32 = arith.constant 0 : i32
    %c0_i32_0 = arith.constant 0 : i32
    %c0_i32_1 = arith.constant 0 : i32
    return %c0_i32, %c0_i32_0 : i32, i32
  }
  func.func @transform_3(%arg0: i32) -> (i32, i32) {
    %c0_i32 = arith.constant 0 : i32
    %c0_i32_0 = arith.constant 0 : i32
    %c0_i32_1 = arith.constant 0 : i32
    return %c0_i32, %c0_i32_0 : i32, i32
  }
  func.func @transform_4(%arg0: i32) -> (i32, i32) {
    %c0_i32 = arith.constant 0 : i32
    %c0_i32_0 = arith.constant 0 : i32
    %c0_i32_1 = arith.constant 0 : i32
    return %c0_i32, %c0_i32_0 : i32, i32
  }
  func.func @transform_5(%arg0: i32) -> (i32, i32) {
    %c0_i32 = arith.constant 0 : i32
    %c0_i32_0 = arith.constant 0 : i32
    %c0_i32_1 = arith.constant 0 : i32
    return %c0_i32, %c0_i32_0 : i32, i32
  }
  func.func @transform_6(%arg0: i32) -> (i32, i32) {
    %c0_i32 = arith.constant 0 : i32
    %c0_i32_0 = arith.constant 0 : i32
    %c0_i32_1 = arith.constant 0 : i32
    return %c0_i32, %c0_i32_0 : i32, i32
  }
  func.func @transform_7(%arg0: i32) -> (i32, i32) {
    %c0_i32 = arith.constant 0 : i32
    %c0_i32_0 = arith.constant 0 : i32
    %c0_i32_1 = arith.constant 0 : i32
    return %c0_i32, %c0_i32_0 : i32, i32
  }
  func.func @transform_8(%arg0: i32) -> (i32, i32) {
    %c0_i32 = arith.constant 0 : i32
    %c0_i32_0 = arith.constant 0 : i32
    %c0_i32_1 = arith.constant 0 : i32
    return %c0_i32, %c0_i32_0 : i32, i32
  }
  func.func @transform_9(%arg0: i32) -> (i32, i32) {
    %c0_i32 = arith.constant 0 : i32
    %c0_i32_0 = arith.constant 0 : i32
    %c0_i32_1 = arith.constant 0 : i32
    return %c0_i32, %c0_i32_0 : i32, i32
  }
  func.func @transform_10(%arg0: i32) -> (i32, i32) {
    %c0_i32 = arith.constant 0 : i32
    %c0_i32_0 = arith.constant 0 : i32
    %c0_i32_1 = arith.constant 0 : i32
    return %c0_i32, %c0_i32_0 : i32, i32
  }
  func.func @transform_11(%arg0: i32) -> (i32, i32) {
    %c0_i32 = arith.constant 0 : i32
    %c0_i32_0 = arith.constant 0 : i32
    %c0_i32_1 = arith.constant 0 : i32
    return %c0_i32, %c0_i32_0 : i32, i32
  }
  func.func @transform_12(%arg0: i32) -> (i32, i32) {
    %c0_i32 = arith.constant 0 : i32
    %c0_i32_0 = arith.constant 0 : i32
    %c0_i32_1 = arith.constant 0 : i32
    return %c0_i32, %c0_i32_0 : i32, i32
  }
  func.func @transform_13(%arg0: i32) -> (i32, i32) {
    %c0_i32 = arith.constant 0 : i32
    %c0_i32_0 = arith.constant 0 : i32
    %c0_i32_1 = arith.constant 0 : i32
    return %c0_i32, %c0_i32_0 : i32, i32
  }
  func.func @transform_14(%arg0: i32) -> (i32, i32) {
    %c0_i32 = arith.constant 0 : i32
    %c0_i32_0 = arith.constant 0 : i32
    %c0_i32_1 = arith.constant 0 : i32
    return %c0_i32, %c0_i32_0 : i32, i32
  }
  func.func @transform_15(%arg0: i32) -> (i32, i32) {
    %c0_i32 = arith.constant 0 : i32
    %c0_i32_0 = arith.constant 0 : i32
    %c0_i32_1 = arith.constant 0 : i32
    return %c0_i32, %c0_i32_0 : i32, i32
  }
  func.func @transform_16(%arg0: i32) -> (i32, i32, i32) {
    %c0_i32 = arith.constant 0 : i32
    %c0_i32_0 = arith.constant 0 : i32
    %c0_i32_1 = arith.constant 0 : i32
    return %arg0, %c0_i32, %c0_i32_0 : i32, i32, i32
  }
}

module attributes {stable_mosaic.version = 11 : i64} {
  func.func @_encoder_layer_kernel(%arg0: i32, %arg1: memref<1x128x128xbf16, #tpu.memory_space<vmem>>, %arg2: memref<1x1x128xf32, #tpu.memory_space<vmem>>, %arg3: memref<1x128xf32, #tpu.memory_space<vmem>>, %arg4: memref<1x128xf32, #tpu.memory_space<vmem>>, %arg5: memref<128x384xbf16, #tpu.memory_space<vmem>>, %arg6: memref<1x384xf32, #tpu.memory_space<vmem>>, %arg7: memref<128x128xbf16, #tpu.memory_space<vmem>>, %arg8: memref<1x128xf32, #tpu.memory_space<vmem>>, %arg9: memref<1x128xf32, #tpu.memory_space<vmem>>, %arg10: memref<1x128xf32, #tpu.memory_space<vmem>>, %arg11: memref<128x128xbf16, #tpu.memory_space<vmem>>, %arg12: memref<1x128xf32, #tpu.memory_space<vmem>>, %arg13: memref<128x128xbf16, #tpu.memory_space<vmem>>, %arg14: memref<1x128xf32, #tpu.memory_space<vmem>>, %arg15: memref<1x128xf32, #tpu.memory_space<vmem>>, %arg16: memref<1x128xf32, #tpu.memory_space<vmem>>, %arg17: memref<1x128x128xbf16, #tpu.memory_space<vmem>>, %arg18: memref<128x128xbf16, #tpu.memory_space<vmem>>) attributes {dimension_semantics = [#tpu.dimension_semantics<parallel>], iteration_bounds = array<i64: 2>, scalar_prefetch = 0 : i64, scratch_operands = 1 : i64, tpu.core_type = #tpu.core_type<tc>, window_params = [{transform_indices = @transform_0, window_bounds = array<i64: 1, 128, 128>}, {transform_indices = @transform_1, window_bounds = array<i64: 1, 1, 128>}, {pipeline_mode = #tpu.pipeline_mode<synchronous>, transform_indices = @transform_2, window_bounds = array<i64: 1, 128>}, {pipeline_mode = #tpu.pipeline_mode<synchronous>, transform_indices = @transform_3, window_bounds = array<i64: 1, 128>}, {pipeline_mode = #tpu.pipeline_mode<synchronous>, transform_indices = @transform_4, window_bounds = array<i64: 128, 384>}, {pipeline_mode = #tpu.pipeline_mode<synchronous>, transform_indices = @transform_5, window_bounds = array<i64: 1, 384>}, {pipeline_mode = #tpu.pipeline_mode<synchronous>, transform_indices = @transform_6, window_bounds = array<i64: 128, 128>}, {pipeline_mode = #tpu.pipeline_mode<synchronous>, transform_indices = @transform_7, window_bounds = array<i64: 1, 128>}, {pipeline_mode = #tpu.pipeline_mode<synchronous>, transform_indices = @transform_8, window_bounds = array<i64: 1, 128>}, {pipeline_mode = #tpu.pipeline_mode<synchronous>, transform_indices = @transform_9, window_bounds = array<i64: 1, 128>}, {pipeline_mode = #tpu.pipeline_mode<synchronous>, transform_indices = @transform_10, window_bounds = array<i64: 128, 128>}, {pipeline_mode = #tpu.pipeline_mode<synchronous>, transform_indices = @transform_11, window_bounds = array<i64: 1, 128>}, {pipeline_mode = #tpu.pipeline_mode<synchronous>, transform_indices = @transform_12, window_bounds = array<i64: 128, 128>}, {pipeline_mode = #tpu.pipeline_mode<synchronous>, transform_indices = @transform_13, window_bounds = array<i64: 1, 128>}, {pipeline_mode = #tpu.pipeline_mode<synchronous>, transform_indices = @transform_14, window_bounds = array<i64: 1, 128>}, {pipeline_mode = #tpu.pipeline_mode<synchronous>, transform_indices = @transform_15, window_bounds = array<i64: 1, 128>}, {transform_indices = @transform_16, window_bounds = array<i64: 1, 128, 128>}]} {
    %0 = tpu.iota {dimensions = array<i32: 1>} : vector<1x128xi32>
    %c32_i32 = arith.constant 32 : i32
    %1 = vector.broadcast %c32_i32 : i32 to vector<1x128xi32>
    %2 = arith.cmpi slt, %0, %1 : vector<1x128xi32>
    %c0 = arith.constant 0 : index
    %c0_0 = arith.constant 0 : index
    %c0_1 = arith.constant 0 : index
    %3 = vector.load %arg1[%c0, %c0_0, %c0_1] : memref<1x128x128xbf16, #tpu.memory_space<vmem>>, vector<1x128x128xbf16>
    %4 = vector.shape_cast %3 : vector<1x128x128xbf16> to vector<128x128xbf16>
    %5 = arith.extf %4 : vector<128x128xbf16> to vector<128x128xf32>
    %cst = arith.constant dense<0.000000e+00> : vector<128xf32>
    %6 = vector.multi_reduction <add>, %5, %cst [1] : vector<128x128xf32> to vector<128xf32>
    %7 = vector.shape_cast %6 : vector<128xf32> to vector<128x1xf32>
    %cst_2 = arith.constant 3.125000e-02 : f32
    %8 = vector.broadcast %cst_2 : f32 to vector<128x1xf32>
    %9 = arith.mulf %7, %8 : vector<128x1xf32>
    %10 = vector.broadcast %9 : vector<128x1xf32> to vector<128x128xf32>
    %11 = arith.subf %5, %10 : vector<128x128xf32>
    %cst_3 = arith.constant 0.000000e+00 : f32
    %12 = vector.shape_cast %2 : vector<1x128xi1> to vector<1x128xi1>
    %13 = vector.broadcast %12 : vector<1x128xi1> to vector<128x128xi1>
    %14 = vector.broadcast %cst_3 : f32 to vector<128x128xf32>
    %15 = arith.select %13, %11, %14 : vector<128x128xi1>, vector<128x128xf32>
    %16 = arith.mulf %15, %15 : vector<128x128xf32>
    %cst_4 = arith.constant dense<0.000000e+00> : vector<128xf32>
    %17 = vector.multi_reduction <add>, %16, %cst_4 [1] : vector<128x128xf32> to vector<128xf32>
    %18 = vector.shape_cast %17 : vector<128xf32> to vector<128x1xf32>
    %cst_5 = arith.constant 3.125000e-02 : f32
    %19 = vector.broadcast %cst_5 : f32 to vector<128x1xf32>
    %20 = arith.mulf %18, %19 : vector<128x1xf32>
    %cst_6 = arith.constant 9.99999996E-13 : f32
    %21 = vector.broadcast %cst_6 : f32 to vector<128x1xf32>
    %22 = arith.addf %20, %21 : vector<128x1xf32>
    %23 = math.rsqrt %22 : vector<128x1xf32>
    %24 = vector.broadcast %23 : vector<128x1xf32> to vector<128x128xf32>
    %25 = arith.mulf %15, %24 : vector<128x128xf32>
    %c0_7 = arith.constant 0 : index
    %c0_8 = arith.constant 0 : index
    %26 = vector.load %arg3[%c0_7, %c0_8] : memref<1x128xf32, #tpu.memory_space<vmem>>, vector<1x128xf32>
    %27 = vector.broadcast %26 : vector<1x128xf32> to vector<128x128xf32>
    %28 = arith.mulf %25, %27 : vector<128x128xf32>
    %c0_9 = arith.constant 0 : index
    %c0_10 = arith.constant 0 : index
    %29 = vector.load %arg4[%c0_9, %c0_10] : memref<1x128xf32, #tpu.memory_space<vmem>>, vector<1x128xf32>
    %30 = vector.broadcast %29 : vector<1x128xf32> to vector<128x128xf32>
    %31 = arith.addf %28, %30 : vector<128x128xf32>
    %32 = arith.truncf %31 : vector<128x128xf32> to vector<128x128xbf16>
    %c0_11 = arith.constant 0 : index
    %c0_12 = arith.constant 0 : index
    %33 = vector.load %arg5[%c0_11, %c0_12] : memref<128x384xbf16, #tpu.memory_space<vmem>>, vector<128x384xbf16>
    %cst_13 = arith.constant dense<0.000000e+00> : vector<128x384xf32>
    %34 = tpu.matmul %32, %33, %cst_13 {dimension_numbers = #tpu.dot_dimension_numbers<[1], [0], [0], [1], [0, 0, 1, 1], [], []>} : vector<128x128xbf16>, vector<128x384xbf16>, vector<128x384xf32> -> vector<128x384xf32>
    %c0_14 = arith.constant 0 : index
    %c0_15 = arith.constant 0 : index
    %35 = vector.load %arg6[%c0_14, %c0_15] : memref<1x384xf32, #tpu.memory_space<vmem>>, vector<1x384xf32>
    %36 = vector.broadcast %35 : vector<1x384xf32> to vector<128x384xf32>
    %37 = arith.addf %34, %36 : vector<128x384xf32>
    %38 = vector.extract_strided_slice %37 {offsets = [0, 0], sizes = [128, 128], strides = [1, 1]} : vector<128x384xf32> to vector<128x128xf32>
    %39 = vector.extract_strided_slice %37 {offsets = [0, 128], sizes = [128, 128], strides = [1, 1]} : vector<128x384xf32> to vector<128x128xf32>
    %40 = vector.extract_strided_slice %37 {offsets = [0, 256], sizes = [128, 128], strides = [1, 1]} : vector<128x384xf32> to vector<128x128xf32>
    %c0_16 = arith.constant 0 : index
    %c0_17 = arith.constant 0 : index
    %c0_18 = arith.constant 0 : index
    %41 = vector.load %arg2[%c0_16, %c0_17, %c0_18] : memref<1x1x128xf32, #tpu.memory_space<vmem>>, vector<1x1x128xf32>
    %42 = vector.shape_cast %41 : vector<1x1x128xf32> to vector<1x128xf32>
    %cst_19 = arith.constant 0.000000e+00 : bf16
    %43 = vector.broadcast %cst_19 : bf16 to vector<128x128xbf16>
    %c0_20 = arith.constant 0 : index
    %c0_21 = arith.constant 0 : index
    %44 = vector.load %arg18[%c0_20, %c0_21] : memref<128x128xbf16, #tpu.memory_space<vmem>>, vector<128x128xbf16>
    tpu.vector_store %arg18[%c0_20, %c0_21], %43 {strides = array<i32>} : memref<128x128xbf16, #tpu.memory_space<vmem>>, vector<128x128xbf16>,
    %45 = vector.extract_strided_slice %38 {offsets = [0, 0], sizes = [128, 8], strides = [1, 1]} : vector<128x128xf32> to vector<128x8xf32>
    %46 = arith.truncf %45 : vector<128x8xf32> to vector<128x8xbf16>
    %47 = vector.extract_strided_slice %39 {offsets = [0, 0], sizes = [128, 8], strides = [1, 1]} : vector<128x128xf32> to vector<128x8xf32>
    %48 = arith.truncf %47 : vector<128x8xf32> to vector<128x8xbf16>
    %49 = vector.extract_strided_slice %40 {offsets = [0, 0], sizes = [128, 8], strides = [1, 1]} : vector<128x128xf32> to vector<128x8xf32>
    %50 = arith.truncf %49 : vector<128x8xf32> to vector<128x8xbf16>
    %cst_22 = arith.constant dense<0.000000e+00> : vector<128x128xf32>
    %51 = tpu.matmul %46, %48, %cst_22 {dimension_numbers = #tpu.dot_dimension_numbers<[1], [1], [0], [0], [0, 0, 1, 0], [], []>} : vector<128x8xbf16>, vector<128x8xbf16>, vector<128x128xf32> -> vector<128x128xf32>
    %52 = vector.broadcast %42 : vector<1x128xf32> to vector<128x128xf32>
    %53 = arith.addf %51, %52 : vector<128x128xf32>
    %cst_23 = arith.constant dense<0xFF800000> : vector<128xf32>
    %54 = vector.multi_reduction <maximumf>, %53, %cst_23 [1] : vector<128x128xf32> to vector<128xf32>
    %55 = vector.shape_cast %54 : vector<128xf32> to vector<128x1xf32>
    %56 = vector.broadcast %55 : vector<128x1xf32> to vector<128x128xf32>
    %57 = arith.subf %53, %56 : vector<128x128xf32>
    %58 = math.exp %57 : vector<128x128xf32>
    %cst_24 = arith.constant dense<0.000000e+00> : vector<128xf32>
    %59 = vector.multi_reduction <add>, %58, %cst_24 [1] : vector<128x128xf32> to vector<128xf32>
    %60 = vector.shape_cast %59 : vector<128xf32> to vector<128x1xf32>
    %61 = tpu.reciprocal %60 {approx = true} : vector<128x1xf32> -> vector<128x1xf32>
    %62 = vector.broadcast %61 : vector<128x1xf32> to vector<128x128xf32>
    %63 = arith.mulf %58, %62 : vector<128x128xf32>
    %64 = arith.truncf %63 : vector<128x128xf32> to vector<128x128xbf16>
    %cst_25 = arith.constant dense<0.000000e+00> : vector<128x8xf32>
    %65 = tpu.matmul %64, %50, %cst_25 {dimension_numbers = #tpu.dot_dimension_numbers<[1], [0], [0], [1], [0, 0, 1, 1], [], []>} : vector<128x128xbf16>, vector<128x8xbf16>, vector<128x8xf32> -> vector<128x8xf32>
    %66 = arith.truncf %65 : vector<128x8xf32> to vector<128x8xbf16>
    %c0_26 = arith.constant 0 : index
    %c0_27 = arith.constant 0 : index
    %67 = vector.load %arg18[%c0_26, %c0_27] : memref<128x128xbf16, #tpu.memory_space<vmem>>, vector<128x8xbf16>
    tpu.vector_store %arg18[%c0_26, %c0_27], %66 {strides = array<i32>} : memref<128x128xbf16, #tpu.memory_space<vmem>>, vector<128x8xbf16>,
    %68 = vector.extract_strided_slice %38 {offsets = [0, 8], sizes = [128, 8], strides = [1, 1]} : vector<128x128xf32> to vector<128x8xf32>
    %69 = arith.truncf %68 : vector<128x8xf32> to vector<128x8xbf16>
    %70 = vector.extract_strided_slice %39 {offsets = [0, 8], sizes = [128, 8], strides = [1, 1]} : vector<128x128xf32> to vector<128x8xf32>
    %71 = arith.truncf %70 : vector<128x8xf32> to vector<128x8xbf16>
    %72 = vector.extract_strided_slice %40 {offsets = [0, 8], sizes = [128, 8], strides = [1, 1]} : vector<128x128xf32> to vector<128x8xf32>
    %73 = arith.truncf %72 : vector<128x8xf32> to vector<128x8xbf16>
    %cst_28 = arith.constant dense<0.000000e+00> : vector<128x128xf32>
    %74 = tpu.matmul %69, %71, %cst_28 {dimension_numbers = #tpu.dot_dimension_numbers<[1], [1], [0], [0], [0, 0, 1, 0], [], []>} : vector<128x8xbf16>, vector<128x8xbf16>, vector<128x128xf32> -> vector<128x128xf32>
    %75 = vector.broadcast %42 : vector<1x128xf32> to vector<128x128xf32>
    %76 = arith.addf %74, %75 : vector<128x128xf32>
    %cst_29 = arith.constant dense<0xFF800000> : vector<128xf32>
    %77 = vector.multi_reduction <maximumf>, %76, %cst_29 [1] : vector<128x128xf32> to vector<128xf32>
    %78 = vector.shape_cast %77 : vector<128xf32> to vector<128x1xf32>
    %79 = vector.broadcast %78 : vector<128x1xf32> to vector<128x128xf32>
    %80 = arith.subf %76, %79 : vector<128x128xf32>
    %81 = math.exp %80 : vector<128x128xf32>
    %cst_30 = arith.constant dense<0.000000e+00> : vector<128xf32>
    %82 = vector.multi_reduction <add>, %81, %cst_30 [1] : vector<128x128xf32> to vector<128xf32>
    %83 = vector.shape_cast %82 : vector<128xf32> to vector<128x1xf32>
    %84 = tpu.reciprocal %83 {approx = true} : vector<128x1xf32> -> vector<128x1xf32>
    %85 = vector.broadcast %84 : vector<128x1xf32> to vector<128x128xf32>
    %86 = arith.mulf %81, %85 : vector<128x128xf32>
    %87 = arith.truncf %86 : vector<128x128xf32> to vector<128x128xbf16>
    %cst_31 = arith.constant dense<0.000000e+00> : vector<128x8xf32>
    %88 = tpu.matmul %87, %73, %cst_31 {dimension_numbers = #tpu.dot_dimension_numbers<[1], [0], [0], [1], [0, 0, 1, 1], [], []>} : vector<128x128xbf16>, vector<128x8xbf16>, vector<128x8xf32> -> vector<128x8xf32>
    %89 = arith.truncf %88 : vector<128x8xf32> to vector<128x8xbf16>
    %c0_32 = arith.constant 0 : index
    %c8 = arith.constant 8 : index
    %90 = vector.load %arg18[%c0_32, %c8] : memref<128x128xbf16, #tpu.memory_space<vmem>>, vector<128x8xbf16>
    tpu.vector_store %arg18[%c0_32, %c8], %89 {strides = array<i32>} : memref<128x128xbf16, #tpu.memory_space<vmem>>, vector<128x8xbf16>,
    %91 = vector.extract_strided_slice %38 {offsets = [0, 16], sizes = [128, 8], strides = [1, 1]} : vector<128x128xf32> to vector<128x8xf32>
    %92 = arith.truncf %91 : vector<128x8xf32> to vector<128x8xbf16>
    %93 = vector.extract_strided_slice %39 {offsets = [0, 16], sizes = [128, 8], strides = [1, 1]} : vector<128x128xf32> to vector<128x8xf32>
    %94 = arith.truncf %93 : vector<128x8xf32> to vector<128x8xbf16>
    %95 = vector.extract_strided_slice %40 {offsets = [0, 16], sizes = [128, 8], strides = [1, 1]} : vector<128x128xf32> to vector<128x8xf32>
    %96 = arith.truncf %95 : vector<128x8xf32> to vector<128x8xbf16>
    %cst_33 = arith.constant dense<0.000000e+00> : vector<128x128xf32>
    %97 = tpu.matmul %92, %94, %cst_33 {dimension_numbers = #tpu.dot_dimension_numbers<[1], [1], [0], [0], [0, 0, 1, 0], [], []>} : vector<128x8xbf16>, vector<128x8xbf16>, vector<128x128xf32> -> vector<128x128xf32>
    %98 = vector.broadcast %42 : vector<1x128xf32> to vector<128x128xf32>
    %99 = arith.addf %97, %98 : vector<128x128xf32>
    %cst_34 = arith.constant dense<0xFF800000> : vector<128xf32>
    %100 = vector.multi_reduction <maximumf>, %99, %cst_34 [1] : vector<128x128xf32> to vector<128xf32>
    %101 = vector.shape_cast %100 : vector<128xf32> to vector<128x1xf32>
    %102 = vector.broadcast %101 : vector<128x1xf32> to vector<128x128xf32>
    %103 = arith.subf %99, %102 : vector<128x128xf32>
    %104 = math.exp %103 : vector<128x128xf32>
    %cst_35 = arith.constant dense<0.000000e+00> : vector<128xf32>
    %105 = vector.multi_reduction <add>, %104, %cst_35 [1] : vector<128x128xf32> to vector<128xf32>
    %106 = vector.shape_cast %105 : vector<128xf32> to vector<128x1xf32>
    %107 = tpu.reciprocal %106 {approx = true} : vector<128x1xf32> -> vector<128x1xf32>
    %108 = vector.broadcast %107 : vector<128x1xf32> to vector<128x128xf32>
    %109 = arith.mulf %104, %108 : vector<128x128xf32>
    %110 = arith.truncf %109 : vector<128x128xf32> to vector<128x128xbf16>
    %cst_36 = arith.constant dense<0.000000e+00> : vector<128x8xf32>
    %111 = tpu.matmul %110, %96, %cst_36 {dimension_numbers = #tpu.dot_dimension_numbers<[1], [0], [0], [1], [0, 0, 1, 1], [], []>} : vector<128x128xbf16>, vector<128x8xbf16>, vector<128x8xf32> -> vector<128x8xf32>
    %112 = arith.truncf %111 : vector<128x8xf32> to vector<128x8xbf16>
    %c0_37 = arith.constant 0 : index
    %c16 = arith.constant 16 : index
    %113 = vector.load %arg18[%c0_37, %c16] : memref<128x128xbf16, #tpu.memory_space<vmem>>, vector<128x8xbf16>
    tpu.vector_store %arg18[%c0_37, %c16], %112 {strides = array<i32>} : memref<128x128xbf16, #tpu.memory_space<vmem>>, vector<128x8xbf16>,
    %114 = vector.extract_strided_slice %38 {offsets = [0, 24], sizes = [128, 8], strides = [1, 1]} : vector<128x128xf32> to vector<128x8xf32>
    %115 = arith.truncf %114 : vector<128x8xf32> to vector<128x8xbf16>
    %116 = vector.extract_strided_slice %39 {offsets = [0, 24], sizes = [128, 8], strides = [1, 1]} : vector<128x128xf32> to vector<128x8xf32>
    %117 = arith.truncf %116 : vector<128x8xf32> to vector<128x8xbf16>
    %118 = vector.extract_strided_slice %40 {offsets = [0, 24], sizes = [128, 8], strides = [1, 1]} : vector<128x128xf32> to vector<128x8xf32>
    %119 = arith.truncf %118 : vector<128x8xf32> to vector<128x8xbf16>
    %cst_38 = arith.constant dense<0.000000e+00> : vector<128x128xf32>
    %120 = tpu.matmul %115, %117, %cst_38 {dimension_numbers = #tpu.dot_dimension_numbers<[1], [1], [0], [0], [0, 0, 1, 0], [], []>} : vector<128x8xbf16>, vector<128x8xbf16>, vector<128x128xf32> -> vector<128x128xf32>
    %121 = vector.broadcast %42 : vector<1x128xf32> to vector<128x128xf32>
    %122 = arith.addf %120, %121 : vector<128x128xf32>
    %cst_39 = arith.constant dense<0xFF800000> : vector<128xf32>
    %123 = vector.multi_reduction <maximumf>, %122, %cst_39 [1] : vector<128x128xf32> to vector<128xf32>
    %124 = vector.shape_cast %123 : vector<128xf32> to vector<128x1xf32>
    %125 = vector.broadcast %124 : vector<128x1xf32> to vector<128x128xf32>
    %126 = arith.subf %122, %125 : vector<128x128xf32>
    %127 = math.exp %126 : vector<128x128xf32>
    %cst_40 = arith.constant dense<0.000000e+00> : vector<128xf32>
    %128 = vector.multi_reduction <add>, %127, %cst_40 [1] : vector<128x128xf32> to vector<128xf32>
    %129 = vector.shape_cast %128 : vector<128xf32> to vector<128x1xf32>
    %130 = tpu.reciprocal %129 {approx = true} : vector<128x1xf32> -> vector<128x1xf32>
    %131 = vector.broadcast %130 : vector<128x1xf32> to vector<128x128xf32>
    %132 = arith.mulf %127, %131 : vector<128x128xf32>
    %133 = arith.truncf %132 : vector<128x128xf32> to vector<128x128xbf16>
    %cst_41 = arith.constant dense<0.000000e+00> : vector<128x8xf32>
    %134 = tpu.matmul %133, %119, %cst_41 {dimension_numbers = #tpu.dot_dimension_numbers<[1], [0], [0], [1], [0, 0, 1, 1], [], []>} : vector<128x128xbf16>, vector<128x8xbf16>, vector<128x8xf32> -> vector<128x8xf32>
    %135 = arith.truncf %134 : vector<128x8xf32> to vector<128x8xbf16>
    %c0_42 = arith.constant 0 : index
    %c24 = arith.constant 24 : index
    %136 = vector.load %arg18[%c0_42, %c24] : memref<128x128xbf16, #tpu.memory_space<vmem>>, vector<128x8xbf16>
    tpu.vector_store %arg18[%c0_42, %c24], %135 {strides = array<i32>} : memref<128x128xbf16, #tpu.memory_space<vmem>>, vector<128x8xbf16>,
    %c0_43 = arith.constant 0 : index
    %c0_44 = arith.constant 0 : index
    %137 = vector.load %arg18[%c0_43, %c0_44] : memref<128x128xbf16, #tpu.memory_space<vmem>>, vector<128x128xbf16>
    %c0_45 = arith.constant 0 : index
    %c0_46 = arith.constant 0 : index
    %138 = vector.load %arg7[%c0_45, %c0_46] : memref<128x128xbf16, #tpu.memory_space<vmem>>, vector<128x128xbf16>
    %cst_47 = arith.constant dense<0.000000e+00> : vector<128x128xf32>
    %139 = tpu.matmul %137, %138, %cst_47 {dimension_numbers = #tpu.dot_dimension_numbers<[1], [0], [0], [1], [0, 0, 1, 1], [], []>} : vector<128x128xbf16>, vector<128x128xbf16>, vector<128x128xf32> -> vector<128x128xf32>
    %c0_48 = arith.constant 0 : index
    %c0_49 = arith.constant 0 : index
    %140 = vector.load %arg8[%c0_48, %c0_49] : memref<1x128xf32, #tpu.memory_space<vmem>>, vector<1x128xf32>
    %141 = vector.broadcast %140 : vector<1x128xf32> to vector<128x128xf32>
    %142 = arith.addf %139, %141 : vector<128x128xf32>
    %143 = arith.addf %31, %142 : vector<128x128xf32>
    %cst_50 = arith.constant dense<0.000000e+00> : vector<128xf32>
    %144 = vector.multi_reduction <add>, %143, %cst_50 [1] : vector<128x128xf32> to vector<128xf32>
    %145 = vector.shape_cast %144 : vector<128xf32> to vector<128x1xf32>
    %cst_51 = arith.constant 3.125000e-02 : f32
    %146 = vector.broadcast %cst_51 : f32 to vector<128x1xf32>
    %147 = arith.mulf %145, %146 : vector<128x1xf32>
    %148 = vector.broadcast %147 : vector<128x1xf32> to vector<128x128xf32>
    %149 = arith.subf %143, %148 : vector<128x128xf32>
    %cst_52 = arith.constant 0.000000e+00 : f32
    %150 = vector.shape_cast %2 : vector<1x128xi1> to vector<1x128xi1>
    %151 = vector.broadcast %150 : vector<1x128xi1> to vector<128x128xi1>
    %152 = vector.broadcast %cst_52 : f32 to vector<128x128xf32>
    %153 = arith.select %151, %149, %152 : vector<128x128xi1>, vector<128x128xf32>
    %154 = arith.mulf %153, %153 : vector<128x128xf32>
    %cst_53 = arith.constant dense<0.000000e+00> : vector<128xf32>
    %155 = vector.multi_reduction <add>, %154, %cst_53 [1] : vector<128x128xf32> to vector<128xf32>
    %156 = vector.shape_cast %155 : vector<128xf32> to vector<128x1xf32>
    %cst_54 = arith.constant 3.125000e-02 : f32
    %157 = vector.broadcast %cst_54 : f32 to vector<128x1xf32>
    %158 = arith.mulf %156, %157 : vector<128x1xf32>
    %cst_55 = arith.constant 9.99999996E-13 : f32
    %159 = vector.broadcast %cst_55 : f32 to vector<128x1xf32>
    %160 = arith.addf %158, %159 : vector<128x1xf32>
    %161 = math.rsqrt %160 : vector<128x1xf32>
    %162 = vector.broadcast %161 : vector<128x1xf32> to vector<128x128xf32>
    %163 = arith.mulf %153, %162 : vector<128x128xf32>
    %c0_56 = arith.constant 0 : index
    %c0_57 = arith.constant 0 : index
    %164 = vector.load %arg9[%c0_56, %c0_57] : memref<1x128xf32, #tpu.memory_space<vmem>>, vector<1x128xf32>
    %165 = vector.broadcast %164 : vector<1x128xf32> to vector<128x128xf32>
    %166 = arith.mulf %163, %165 : vector<128x128xf32>
    %c0_58 = arith.constant 0 : index
    %c0_59 = arith.constant 0 : index
    %167 = vector.load %arg10[%c0_58, %c0_59] : memref<1x128xf32, #tpu.memory_space<vmem>>, vector<1x128xf32>
    %168 = vector.broadcast %167 : vector<1x128xf32> to vector<128x128xf32>
    %169 = arith.addf %166, %168 : vector<128x128xf32>
    %170 = arith.truncf %169 : vector<128x128xf32> to vector<128x128xbf16>
    %c0_60 = arith.constant 0 : index
    %c0_61 = arith.constant 0 : index
    %171 = vector.load %arg11[%c0_60, %c0_61] : memref<128x128xbf16, #tpu.memory_space<vmem>>, vector<128x128xbf16>
    %cst_62 = arith.constant dense<0.000000e+00> : vector<128x128xf32>
    %172 = tpu.matmul %170, %171, %cst_62 {dimension_numbers = #tpu.dot_dimension_numbers<[1], [0], [0], [1], [0, 0, 1, 1], [], []>} : vector<128x128xbf16>, vector<128x128xbf16>, vector<128x128xf32> -> vector<128x128xf32>
    %c0_63 = arith.constant 0 : index
    %c0_64 = arith.constant 0 : index
    %173 = vector.load %arg12[%c0_63, %c0_64] : memref<1x128xf32, #tpu.memory_space<vmem>>, vector<1x128xf32>
    %174 = vector.broadcast %173 : vector<1x128xf32> to vector<128x128xf32>
    %175 = arith.addf %172, %174 : vector<128x128xf32>
    %cst_65 = arith.constant 5.000000e-01 : f32
    %176 = vector.broadcast %cst_65 : f32 to vector<128x128xf32>
    %177 = arith.mulf %176, %175 : vector<128x128xf32>
    %cst_66 = arith.constant 4.471500e-02 : f32
    %178 = vector.broadcast %cst_66 : f32 to vector<128x128xf32>
    %179 = arith.mulf %178, %175 : vector<128x128xf32>
    %180 = arith.mulf %179, %175 : vector<128x128xf32>
    %181 = arith.mulf %180, %175 : vector<128x128xf32>
    %182 = arith.addf %175, %181 : vector<128x128xf32>
    %cst_67 = arith.constant 0.797884583 : f32
    %183 = vector.broadcast %cst_67 : f32 to vector<128x128xf32>
    %184 = arith.mulf %183, %182 : vector<128x128xf32>
    %185 = math.tanh %184 : vector<128x128xf32>
    %cst_68 = arith.constant 1.000000e+00 : f32
    %186 = vector.broadcast %cst_68 : f32 to vector<128x128xf32>
    %187 = arith.addf %186, %185 : vector<128x128xf32>
    %188 = arith.mulf %177, %187 : vector<128x128xf32>
    %189 = arith.truncf %188 : vector<128x128xf32> to vector<128x128xbf16>
    %c0_69 = arith.constant 0 : index
    %c0_70 = arith.constant 0 : index
    %190 = vector.load %arg13[%c0_69, %c0_70] : memref<128x128xbf16, #tpu.memory_space<vmem>>, vector<128x128xbf16>
    %cst_71 = arith.constant dense<0.000000e+00> : vector<128x128xf32>
    %191 = tpu.matmul %189, %190, %cst_71 {dimension_numbers = #tpu.dot_dimension_numbers<[1], [0], [0], [1], [0, 0, 1, 1], [], []>} : vector<128x128xbf16>, vector<128x128xbf16>, vector<128x128xf32> -> vector<128x128xf32>
    %c0_72 = arith.constant 0 : index
    %c0_73 = arith.constant 0 : index
    %192 = vector.load %arg14[%c0_72, %c0_73] : memref<1x128xf32, #tpu.memory_space<vmem>>, vector<1x128xf32>
    %193 = vector.broadcast %192 : vector<1x128xf32> to vector<128x128xf32>
    %194 = arith.addf %191, %193 : vector<128x128xf32>
    %195 = arith.addf %169, %194 : vector<128x128xf32>
    %cst_74 = arith.constant dense<0.000000e+00> : vector<128xf32>
    %196 = vector.multi_reduction <add>, %195, %cst_74 [1] : vector<128x128xf32> to vector<128xf32>
    %197 = vector.shape_cast %196 : vector<128xf32> to vector<128x1xf32>
    %cst_75 = arith.constant 3.125000e-02 : f32
    %198 = vector.broadcast %cst_75 : f32 to vector<128x1xf32>
    %199 = arith.mulf %197, %198 : vector<128x1xf32>
    %200 = vector.broadcast %199 : vector<128x1xf32> to vector<128x128xf32>
    %201 = arith.subf %195, %200 : vector<128x128xf32>
    %cst_76 = arith.constant 0.000000e+00 : f32
    %202 = vector.shape_cast %2 : vector<1x128xi1> to vector<1x128xi1>
    %203 = vector.broadcast %202 : vector<1x128xi1> to vector<128x128xi1>
    %204 = vector.broadcast %cst_76 : f32 to vector<128x128xf32>
    %205 = arith.select %203, %201, %204 : vector<128x128xi1>, vector<128x128xf32>
    %206 = arith.mulf %205, %205 : vector<128x128xf32>
    %cst_77 = arith.constant dense<0.000000e+00> : vector<128xf32>
    %207 = vector.multi_reduction <add>, %206, %cst_77 [1] : vector<128x128xf32> to vector<128xf32>
    %208 = vector.shape_cast %207 : vector<128xf32> to vector<128x1xf32>
    %cst_78 = arith.constant 3.125000e-02 : f32
    %209 = vector.broadcast %cst_78 : f32 to vector<128x1xf32>
    %210 = arith.mulf %208, %209 : vector<128x1xf32>
    %cst_79 = arith.constant 9.99999996E-13 : f32
    %211 = vector.broadcast %cst_79 : f32 to vector<128x1xf32>
    %212 = arith.addf %210, %211 : vector<128x1xf32>
    %213 = math.rsqrt %212 : vector<128x1xf32>
    %214 = vector.broadcast %213 : vector<128x1xf32> to vector<128x128xf32>
    %215 = arith.mulf %205, %214 : vector<128x128xf32>
    %c0_80 = arith.constant 0 : index
    %c0_81 = arith.constant 0 : index
    %216 = vector.load %arg15[%c0_80, %c0_81] : memref<1x128xf32, #tpu.memory_space<vmem>>, vector<1x128xf32>
    %217 = vector.broadcast %216 : vector<1x128xf32> to vector<128x128xf32>
    %218 = arith.mulf %215, %217 : vector<128x128xf32>
    %c0_82 = arith.constant 0 : index
    %c0_83 = arith.constant 0 : index
    %219 = vector.load %arg16[%c0_82, %c0_83] : memref<1x128xf32, #tpu.memory_space<vmem>>, vector<1x128xf32>
    %220 = vector.broadcast %219 : vector<1x128xf32> to vector<128x128xf32>
    %221 = arith.addf %218, %220 : vector<128x128xf32>
    %222 = arith.truncf %221 : vector<128x128xf32> to vector<128x128xbf16>
    %c0_84 = arith.constant 0 : index
    %c0_85 = arith.constant 0 : index
    %c0_86 = arith.constant 0 : index
    %223 = vector.load %arg17[%c0_84, %c0_85, %c0_86] : memref<1x128x128xbf16, #tpu.memory_space<vmem>>, vector<1x128x128xbf16>
    %224 = vector.shape_cast %223 : vector<1x128x128xbf16> to vector<128x128xbf16>
    %225 = vector.shape_cast %222 : vector<128x128xbf16> to vector<1x128x128xbf16>
    tpu.vector_store %arg17[%c0_84, %c0_85, %c0_86], %225 {strides = array<i32>} : memref<1x128x128xbf16, #tpu.memory_space<vmem>>, vector<1x128x128xbf16>,
    return
  }
  func.func @transform_0(%arg0: i32) -> (i32, i32, i32) {
    %c0_i32 = arith.constant 0 : i32
    %c0_i32_0 = arith.constant 0 : i32
    %c0_i32_1 = arith.constant 0 : i32
    return %arg0, %c0_i32, %c0_i32_0 : i32, i32, i32
  }
  func.func @transform_1(%arg0: i32) -> (i32, i32, i32) {
    %c0_i32 = arith.constant 0 : i32
    %c0_i32_0 = arith.constant 0 : i32
    %c0_i32_1 = arith.constant 0 : i32
    return %arg0, %c0_i32, %c0_i32_0 : i32, i32, i32
  }
  func.func @transform_2(%arg0: i32) -> (i32, i32) {
    %c0_i32 = arith.constant 0 : i32
    %c0_i32_0 = arith.constant 0 : i32
    %c0_i32_1 = arith.constant 0 : i32
    return %c0_i32, %c0_i32_0 : i32, i32
  }
  func.func @transform_3(%arg0: i32) -> (i32, i32) {
    %c0_i32 = arith.constant 0 : i32
    %c0_i32_0 = arith.constant 0 : i32
    %c0_i32_1 = arith.constant 0 : i32
    return %c0_i32, %c0_i32_0 : i32, i32
  }
  func.func @transform_4(%arg0: i32) -> (i32, i32) {
    %c0_i32 = arith.constant 0 : i32
    %c0_i32_0 = arith.constant 0 : i32
    %c0_i32_1 = arith.constant 0 : i32
    return %c0_i32, %c0_i32_0 : i32, i32
  }
  func.func @transform_5(%arg0: i32) -> (i32, i32) {
    %c0_i32 = arith.constant 0 : i32
    %c0_i32_0 = arith.constant 0 : i32
    %c0_i32_1 = arith.constant 0 : i32
    return %c0_i32, %c0_i32_0 : i32, i32
  }
  func.func @transform_6(%arg0: i32) -> (i32, i32) {
    %c0_i32 = arith.constant 0 : i32
    %c0_i32_0 = arith.constant 0 : i32
    %c0_i32_1 = arith.constant 0 : i32
    return %c0_i32, %c0_i32_0 : i32, i32
  }
  func.func @transform_7(%arg0: i32) -> (i32, i32) {
    %c0_i32 = arith.constant 0 : i32
    %c0_i32_0 = arith.constant 0 : i32
    %c0_i32_1 = arith.constant 0 : i32
    return %c0_i32, %c0_i32_0 : i32, i32
  }
  func.func @transform_8(%arg0: i32) -> (i32, i32) {
    %c0_i32 = arith.constant 0 : i32
    %c0_i32_0 = arith.constant 0 : i32
    %c0_i32_1 = arith.constant 0 : i32
    return %c0_i32, %c0_i32_0 : i32, i32
  }
  func.func @transform_9(%arg0: i32) -> (i32, i32) {
    %c0_i32 = arith.constant 0 : i32
    %c0_i32_0 = arith.constant 0 : i32
    %c0_i32_1 = arith.constant 0 : i32
    return %c0_i32, %c0_i32_0 : i32, i32
  }
  func.func @transform_10(%arg0: i32) -> (i32, i32) {
    %c0_i32 = arith.constant 0 : i32
    %c0_i32_0 = arith.constant 0 : i32
    %c0_i32_1 = arith.constant 0 : i32
    return %c0_i32, %c0_i32_0 : i32, i32
  }
  func.func @transform_11(%arg0: i32) -> (i32, i32) {
    %c0_i32 = arith.constant 0 : i32
    %c0_i32_0 = arith.constant 0 : i32
    %c0_i32_1 = arith.constant 0 : i32
    return %c0_i32, %c0_i32_0 : i32, i32
  }
  func.func @transform_12(%arg0: i32) -> (i32, i32) {
    %c0_i32 = arith.constant 0 : i32
    %c0_i32_0 = arith.constant 0 : i32
    %c0_i32_1 = arith.constant 0 : i32
    return %c0_i32, %c0_i32_0 : i32, i32
  }
  func.func @transform_13(%arg0: i32) -> (i32, i32) {
    %c0_i32 = arith.constant 0 : i32
    %c0_i32_0 = arith.constant 0 : i32
    %c0_i32_1 = arith.constant 0 : i32
    return %c0_i32, %c0_i32_0 : i32, i32
  }
  func.func @transform_14(%arg0: i32) -> (i32, i32) {
    %c0_i32 = arith.constant 0 : i32
    %c0_i32_0 = arith.constant 0 : i32
    %c0_i32_1 = arith.constant 0 : i32
    return %c0_i32, %c0_i32_0 : i32, i32
  }
  func.func @transform_15(%arg0: i32) -> (i32, i32) {
    %c0_i32 = arith.constant 0 : i32
    %c0_i32_0 = arith.constant 0 : i32
    %c0_i32_1 = arith.constant 0 : i32
    return %c0_i32, %c0_i32_0 : i32, i32
  }
  func.func @transform_16(%arg0: i32) -> (i32, i32, i32) {
    %c0_i32 = arith.constant 0 : i32
    %c0_i32_0 = arith.constant 0 : i32
    %c0_i32_1 = arith.constant 0 : i32
    return %arg0, %c0_i32, %c0_i32_0 : i32, i32, i32
  }
}

</mosaic_0001>

<llo_original>
// kernel: molformer_with_regression_head.3
$region0: #{molformer_with_regression_head.3}
  #allocation0 [shape = 'u32[]', space=smem, size = 0x4, offset = 0x4, fixed_abs, tag = 'smem constant byte address 0x4 - core index']
  #allocation1 [shape = 'u32[144,128]{1,0:T(1,128)}', space=vmem, size = 0x12000, scoped, tag = 'internal scratch']
  #allocation2 [shape = 'bf16[128,128]{1,0:T(16,128)(2,1)}', space=vmem, size = 0x8000, scoped, tag = 'scratch operand']
  %s0 = inlined_call_operand.vmem [shape: bf16[2,128,128], index: 0, kind: input, shape index: {}]
  %s1 = inlined_call_operand.vmem [shape: f32[2,1,128], index: 1, kind: input, shape index: {}]
  %s2 = inlined_call_operand.vmem [shape: f32[1,128], index: 2, kind: input, shape index: {}]
  %s3 = inlined_call_operand.vmem [shape: f32[1,128], index: 3, kind: input, shape index: {}]
  %s4 = inlined_call_operand.vmem [shape: bf16[128,384], index: 4, kind: input, shape index: {}]
  %s5 = inlined_call_operand.vmem [shape: f32[1,384], index: 5, kind: input, shape index: {}]
  %s6 = inlined_call_operand.vmem [shape: bf16[128,128], index: 6, kind: input, shape index: {}]
  %s7 = inlined_call_operand.vmem [shape: f32[1,128], index: 7, kind: input, shape index: {}]
  %s8 = inlined_call_operand.vmem [shape: f32[1,128], index: 8, kind: input, shape index: {}]
  %s9 = inlined_call_operand.vmem [shape: f32[1,128], index: 9, kind: input, shape index: {}]
  %s10 = inlined_call_operand.vmem [shape: bf16[128,128], index: 10, kind: input, shape index: {}]
  %s11 = inlined_call_operand.vmem [shape: f32[1,128], index: 11, kind: input, shape index: {}]
  %s12 = inlined_call_operand.vmem [shape: bf16[128,128], index: 12, kind: input, shape index: {}]
  %s13 = inlined_call_operand.vmem [shape: f32[1,128], index: 13, kind: input, shape index: {}]
  %s14 = inlined_call_operand.vmem [shape: f32[1,128], index: 14, kind: input, shape index: {}]
  %s15 = inlined_call_operand.vmem [shape: f32[1,128], index: 15, kind: input, shape index: {}]
  %s16 = inlined_call_operand.vmem [shape: f32[2,1,128], index: 16, kind: output, shape index: {}]
  %s17 = sld [smem:[#allocation0]]
  $region97: #{molformer_with_regression_head.3} parent=0
    _
  %s19 = ssub.s32 1, %s17
  %s20 = scalar_select 0, %s19, %s17
  loop: start=0, step=1, limit=4
  $region2: #{molformer_with_regression_head.3} parent=0 // loop_pre_header
    _
  $region3: #{molformer_with_regression_head.3} parent=0 // loop_header
    %s22 = sphi 0, %s26
    %p23 = scmp.ge.s32.totalorder %s22, 4
    %s32 = sphi 0, %s34
    %s35 = sphi 0, %s32
    %s36 = sphi 0, %s35
    %s52 = sphi 0, %s36
    %s58 = sphi 0, %s60
    %s61 = sphi 0, %s58
    %s62 = sphi 0, %s61
    %s78 = sphi 0, %s62
    %s82 = sphi 0, %s82
    %s84 = sphi 0, %s82
    %s85 = sphi 0, %s84
    %s99 = sphi 0, %s85
    %s103 = sphi 0, %s103
    %s105 = sphi 0, %s103
    %s106 = sphi 0, %s105
    %s120 = sphi 0, %s106
    %s124 = sphi 0, %s124
    %s126 = sphi 0, %s124
    %s127 = sphi 0, %s126
    %s141 = sphi 0, %s127
    %s145 = sphi 0, %s145
    %s147 = sphi 0, %s145
    %s148 = sphi 0, %s147
    %s162 = sphi 0, %s148
    %s166 = sphi 0, %s166
    %s168 = sphi 0, %s166
    %s169 = sphi 0, %s168
    %s183 = sphi 0, %s169
    %s187 = sphi 0, %s187
    %s189 = sphi 0, %s187
    %s190 = sphi 0, %s189
    %s204 = sphi 0, %s190
    %s208 = sphi 0, %s208
    %s210 = sphi 0, %s208
    %s211 = sphi 0, %s210
    %s225 = sphi 0, %s211
    %s229 = sphi 0, %s229
    %s231 = sphi 0, %s229
    %s232 = sphi 0, %s231
    %s246 = sphi 0, %s232
    %s250 = sphi 0, %s250
    %s252 = sphi 0, %s250
    %s253 = sphi 0, %s252
    %s267 = sphi 0, %s253
    %s271 = sphi 0, %s271
    %s273 = sphi 0, %s271
    %s274 = sphi 0, %s273
    %s288 = sphi 0, %s274
    %s292 = sphi 0, %s292
    %s294 = sphi 0, %s292
    %s295 = sphi 0, %s294
    %s309 = sphi 0, %s295
    %s313 = sphi 0, %s313
    %s315 = sphi 0, %s313
    %s316 = sphi 0, %s315
    %s330 = sphi 0, %s316
    %s334 = sphi 0, %s334
    %s336 = sphi 0, %s334
    %s337 = sphi 0, %s336
    %s351 = sphi 0, %s337
    %s355 = sphi 0, %s355
    %s357 = sphi 0, %s355
    %s358 = sphi 0, %s357
    %s372 = sphi 0, %s358
    %s378 = sphi 0, %s380
    %s381 = sphi 0, %s378
    %s382 = sphi 0, %s381
    %s398 = sphi 0, %s382
  $region4: #{molformer_with_regression_head.3} parent=0 // loop_header_branch
    %25 = sbr.rel (%p23) target = $region8
  $region5: #{molformer_with_regression_head.3} parent=0 // loop_body
    %s27 = ssub.s32 %s22, 1
    %s28 = ssub.s32 %s22, 2
    %s29 = sadd.s32 %s22, 1
    %s30 = ssub.s32 %s22, %s29
    %p31 = scmp.eq.s32.totalorder %s30, 0
    %s33 = sadd.s32 %s32, 1
    %s34 = scalar_select %p31, %s32, %s33
    %p37 = pneg %p31
    %p38 = scmp.eq.s32.totalorder %s22, 1
    %p39 = por %p37, %p38
    %p40 = scmp.ne.s32.totalorder %s32, %s35
    %p41 = scmp.eq.s32.totalorder %s22, 0
    %p42 = por %p40, %p41
    %p43 = scmp.ne.s32.totalorder %s32, %s35
    %p44 = scmp.eq.s32.totalorder %s27, 1
    %p45 = por %p43, %p44
    %p46 = scmp.ne.s32.totalorder %s35, %s36
    %p47 = scmp.eq.s32.totalorder %s27, 0
    %p48 = por %p46, %p47
    %p49 = scmp.ne.s32.totalorder %s35, %s36
    %p50 = scmp.eq.s32.totalorder %s28, 1
    %p51 = por %p49, %p50
    %p53 = scmp.ne.s32.totalorder %s36, %s52
    %p54 = scmp.eq.s32.totalorder %s28, 0
    %p55 = por %p53, %p54
    %s56 = ssub.s32 %s22, %s29
    %p57 = scmp.eq.s32.totalorder %s56, 0
    %s59 = sadd.s32 %s58, 1
    %s60 = scalar_select %p57, %s58, %s59
    %p63 = pneg %p57
    %p64 = scmp.eq.s32.totalorder %s22, 1
    %p65 = por %p63, %p64
    %p66 = scmp.ne.s32.totalorder %s58, %s61
    %p67 = scmp.eq.s32.totalorder %s22, 0
    %p68 = por %p66, %p67
    %p69 = scmp.ne.s32.totalorder %s58, %s61
    %p70 = scmp.eq.s32.totalorder %s27, 1
    %p71 = por %p69, %p70
    %p72 = scmp.ne.s32.totalorder %s61, %s62
    %p73 = scmp.eq.s32.totalorder %s27, 0
    %p74 = por %p72, %p73
    %p75 = scmp.ne.s32.totalorder %s61, %s62
    %p76 = scmp.eq.s32.totalorder %s28, 1
    %p77 = por %p75, %p76
    %p79 = scmp.ne.s32.totalorder %s62, %s78
    %p80 = scmp.eq.s32.totalorder %s28, 0
    %p81 = por %p79, %p80
    %s83 = sadd.s32 %s82, 1
    %p86 = scmp.eq.s32.totalorder %s22, 1
    %p87 = scmp.ne.s32.totalorder %s82, %s84
    %p88 = scmp.eq.s32.totalorder %s22, 0
    %p89 = por %p87, %p88
    %p90 = scmp.ne.s32.totalorder %s82, %s84
    %p91 = scmp.eq.s32.totalorder %s27, 1
    %p92 = por %p90, %p91
    %p93 = scmp.ne.s32.totalorder %s84, %s85
    %p94 = scmp.eq.s32.totalorder %s27, 0
    %p95 = por %p93, %p94
    %p96 = scmp.ne.s32.totalorder %s84, %s85
    %p97 = scmp.eq.s32.totalorder %s28, 1
    %p98 = por %p96, %p97
    %p100 = scmp.ne.s32.totalorder %s85, %s99
    %p101 = scmp.eq.s32.totalorder %s28, 0
    %p102 = por %p100, %p101
    %s104 = sadd.s32 %s103, 1
    %p107 = scmp.eq.s32.totalorder %s22, 1
    %p108 = scmp.ne.s32.totalorder %s103, %s105
    %p109 = scmp.eq.s32.totalorder %s22, 0
    %p110 = por %p108, %p109
    %p111 = scmp.ne.s32.totalorder %s103, %s105
    %p112 = scmp.eq.s32.totalorder %s27, 1
    %p113 = por %p111, %p112
    %p114 = scmp.ne.s32.totalorder %s105, %s106
    %p115 = scmp.eq.s32.totalorder %s27, 0
    %p116 = por %p114, %p115
    %p117 = scmp.ne.s32.totalorder %s105, %s106
    %p118 = scmp.eq.s32.totalorder %s28, 1
    %p119 = por %p117, %p118
    %p121 = scmp.ne.s32.totalorder %s106, %s120
    %p122 = scmp.eq.s32.totalorder %s28, 0
    %p123 = por %p121, %p122
    %s125 = sadd.s32 %s124, 1
    %p128 = scmp.eq.s32.totalorder %s22, 1
    %p129 = scmp.ne.s32.totalorder %s124, %s126
    %p130 = scmp.eq.s32.totalorder %s22, 0
    %p131 = por %p129, %p130
    %p132 = scmp.ne.s32.totalorder %s124, %s126
    %p133 = scmp.eq.s32.totalorder %s27, 1
    %p134 = por %p132, %p133
    %p135 = scmp.ne.s32.totalorder %s126, %s127
    %p136 = scmp.eq.s32.totalorder %s27, 0
    %p137 = por %p135, %p136
    %p138 = scmp.ne.s32.totalorder %s126, %s127
    %p139 = scmp.eq.s32.totalorder %s28, 1
    %p140 = por %p138, %p139
    %p142 = scmp.ne.s32.totalorder %s127, %s141
    %p143 = scmp.eq.s32.totalorder %s28, 0
    %p144 = por %p142, %p143
    %s146 = sadd.s32 %s145, 1
    %p149 = scmp.eq.s32.totalorder %s22, 1
    %p150 = scmp.ne.s32.totalorder %s145, %s147
    %p151 = scmp.eq.s32.totalorder %s22, 0
    %p152 = por %p150, %p151
    %p153 = scmp.ne.s32.totalorder %s145, %s147
    %p154 = scmp.eq.s32.totalorder %s27, 1
    %p155 = por %p153, %p154
    %p156 = scmp.ne.s32.totalorder %s147, %s148
    %p157 = scmp.eq.s32.totalorder %s27, 0
    %p158 = por %p156, %p157
    %p159 = scmp.ne.s32.totalorder %s147, %s148
    %p160 = scmp.eq.s32.totalorder %s28, 1
    %p161 = por %p159, %p160
    %p163 = scmp.ne.s32.totalorder %s148, %s162
    %p164 = scmp.eq.s32.totalorder %s28, 0
    %p165 = por %p163, %p164
    %s167 = sadd.s32 %s166, 1
    %p170 = scmp.eq.s32.totalorder %s22, 1
    %p171 = scmp.ne.s32.totalorder %s166, %s168
    %p172 = scmp.eq.s32.totalorder %s22, 0
    %p173 = por %p171, %p172
    %p174 = scmp.ne.s32.totalorder %s166, %s168
    %p175 = scmp.eq.s32.totalorder %s27, 1
    %p176 = por %p174, %p175
    %p177 = scmp.ne.s32.totalorder %s168, %s169
    %p178 = scmp.eq.s32.totalorder %s27, 0
    %p179 = por %p177, %p178
    %p180 = scmp.ne.s32.totalorder %s168, %s169
    %p181 = scmp.eq.s32.totalorder %s28, 1
    %p182 = por %p180, %p181
    %p184 = scmp.ne.s32.totalorder %s169, %s183
    %p185 = scmp.eq.s32.totalorder %s28, 0
    %p186 = por %p184, %p185
    %s188 = sadd.s32 %s187, 1
    %p191 = scmp.eq.s32.totalorder %s22, 1
    %p192 = scmp.ne.s32.totalorder %s187, %s189
    %p193 = scmp.eq.s32.totalorder %s22, 0
    %p194 = por %p192, %p193
    %p195 = scmp.ne.s32.totalorder %s187, %s189
    %p196 = scmp.eq.s32.totalorder %s27, 1
    %p197 = por %p195, %p196
    %p198 = scmp.ne.s32.totalorder %s189, %s190
    %p199 = scmp.eq.s32.totalorder %s27, 0
    %p200 = por %p198, %p199
    %p201 = scmp.ne.s32.totalorder %s189, %s190
    %p202 = scmp.eq.s32.totalorder %s28, 1
    %p203 = por %p201, %p202
    %p205 = scmp.ne.s32.totalorder %s190, %s204
    %p206 = scmp.eq.s32.totalorder %s28, 0
    %p207 = por %p205, %p206
    %s209 = sadd.s32 %s208, 1
    %p212 = scmp.eq.s32.totalorder %s22, 1
    %p213 = scmp.ne.s32.totalorder %s208, %s210
    %p214 = scmp.eq.s32.totalorder %s22, 0
    %p215 = por %p213, %p214
    %p216 = scmp.ne.s32.totalorder %s208, %s210
    %p217 = scmp.eq.s32.totalorder %s27, 1
    %p218 = por %p216, %p217
    %p219 = scmp.ne.s32.totalorder %s210, %s211
    %p220 = scmp.eq.s32.totalorder %s27, 0
    %p221 = por %p219, %p220
    %p222 = scmp.ne.s32.totalorder %s210, %s211
    %p223 = scmp.eq.s32.totalorder %s28, 1
    %p224 = por %p222, %p223
    %p226 = scmp.ne.s32.totalorder %s211, %s225
    %p227 = scmp.eq.s32.totalorder %s28, 0
    %p228 = por %p226, %p227
    %s230 = sadd.s32 %s229, 1
    %p233 = scmp.eq.s32.totalorder %s22, 1
    %p234 = scmp.ne.s32.totalorder %s229, %s231
    %p235 = scmp.eq.s32.totalorder %s22, 0
    %p236 = por %p234, %p235
    %p237 = scmp.ne.s32.totalorder %s229, %s231
    %p238 = scmp.eq.s32.totalorder %s27, 1
    %p239 = por %p237, %p238
    %p240 = scmp.ne.s32.totalorder %s231, %s232
    %p241 = scmp.eq.s32.totalorder %s27, 0
    %p242 = por %p240, %p241
    %p243 = scmp.ne.s32.totalorder %s231, %s232
    %p244 = scmp.eq.s32.totalorder %s28, 1
    %p245 = por %p243, %p244
    %p247 = scmp.ne.s32.totalorder %s232, %s246
    %p248 = scmp.eq.s32.totalorder %s28, 0
    %p249 = por %p247, %p248
    %s251 = sadd.s32 %s250, 1
    %p254 = scmp.eq.s32.totalorder %s22, 1
    %p255 = scmp.ne.s32.totalorder %s250, %s252
    %p256 = scmp.eq.s32.totalorder %s22, 0
    %p257 = por %p255, %p256
    %p258 = scmp.ne.s32.totalorder %s250, %s252
    %p259 = scmp.eq.s32.totalorder %s27, 1
    %p260 = por %p258, %p259
    %p261 = scmp.ne.s32.totalorder %s252, %s253
    %p262 = scmp.eq.s32.totalorder %s27, 0
    %p263 = por %p261, %p262
    %p264 = scmp.ne.s32.totalorder %s252, %s253
    %p265 = scmp.eq.s32.totalorder %s28, 1
    %p266 = por %p264, %p265
    %p268 = scmp.ne.s32.totalorder %s253, %s267
    %p269 = scmp.eq.s32.totalorder %s28, 0
    %p270 = por %p268, %p269
    %s272 = sadd.s32 %s271, 1
    %p275 = scmp.eq.s32.totalorder %s22, 1
    %p276 = scmp.ne.s32.totalorder %s271, %s273
    %p277 = scmp.eq.s32.totalorder %s22, 0
    %p278 = por %p276, %p277
    %p279 = scmp.ne.s32.totalorder %s271, %s273
    %p280 = scmp.eq.s32.totalorder %s27, 1
    %p281 = por %p279, %p280
    %p282 = scmp.ne.s32.totalorder %s273, %s274
    %p283 = scmp.eq.s32.totalorder %s27, 0
    %p284 = por %p282, %p283
    %p285 = scmp.ne.s32.totalorder %s273, %s274
    %p286 = scmp.eq.s32.totalorder %s28, 1
    %p287 = por %p285, %p286
    %p289 = scmp.ne.s32.totalorder %s274, %s288
    %p290 = scmp.eq.s32.totalorder %s28, 0
    %p291 = por %p289, %p290
    %s293 = sadd.s32 %s292, 1
    %p296 = scmp.eq.s32.totalorder %s22, 1
    %p297 = scmp.ne.s32.totalorder %s292, %s294
    %p298 = scmp.eq.s32.totalorder %s22, 0
    %p299 = por %p297, %p298
    %p300 = scmp.ne.s32.totalorder %s292, %s294
    %p301 = scmp.eq.s32.totalorder %s27, 1
    %p302 = por %p300, %p301
    %p303 = scmp.ne.s32.totalorder %s294, %s295
    %p304 = scmp.eq.s32.totalorder %s27, 0
    %p305 = por %p303, %p304
    %p306 = scmp.ne.s32.totalorder %s294, %s295
    %p307 = scmp.eq.s32.totalorder %s28, 1
    %p308 = por %p306, %p307
    %p310 = scmp.ne.s32.totalorder %s295, %s309
    %p311 = scmp.eq.s32.totalorder %s28, 0
    %p312 = por %p310, %p311
    %s314 = sadd.s32 %s313, 1
    %p317 = scmp.eq.s32.totalorder %s22, 1
    %p318 = scmp.ne.s32.totalorder %s313, %s315
    %p319 = scmp.eq.s32.totalorder %s22, 0
    %p320 = por %p318, %p319
    %p321 = scmp.ne.s32.totalorder %s313, %s315
    %p322 = scmp.eq.s32.totalorder %s27, 1
    %p323 = por %p321, %p322
    %p324 = scmp.ne.s32.totalorder %s315, %s316
    %p325 = scmp.eq.s32.totalorder %s27, 0
    %p326 = por %p324, %p325
    %p327 = scmp.ne.s32.totalorder %s315, %s316
    %p328 = scmp.eq.s32.totalorder %s28, 1
    %p329 = por %p327, %p328
    %p331 = scmp.ne.s32.totalorder %s316, %s330
    %p332 = scmp.eq.s32.totalorder %s28, 0
    %p333 = por %p331, %p332
    %s335 = sadd.s32 %s334, 1
    %p338 = scmp.eq.s32.totalorder %s22, 1
    %p339 = scmp.ne.s32.totalorder %s334, %s336
    %p340 = scmp.eq.s32.totalorder %s22, 0
    %p341 = por %p339, %p340
    %p342 = scmp.ne.s32.totalorder %s334, %s336
    %p343 = scmp.eq.s32.totalorder %s27, 1
    %p344 = por %p342, %p343
    %p345 = scmp.ne.s32.totalorder %s336, %s337
    %p346 = scmp.eq.s32.totalorder %s27, 0
    %p347 = por %p345, %p346
    %p348 = scmp.ne.s32.totalorder %s336, %s337
    %p349 = scmp.eq.s32.totalorder %s28, 1
    %p350 = por %p348, %p349
    %p352 = scmp.ne.s32.totalorder %s337, %s351
    %p353 = scmp.eq.s32.totalorder %s28, 0
    %p354 = por %p352, %p353
    %s356 = sadd.s32 %s355, 1
    %p359 = scmp.eq.s32.totalorder %s22, 1
    %p360 = scmp.ne.s32.totalorder %s355, %s357
    %p361 = scmp.eq.s32.totalorder %s22, 0
    %p362 = por %p360, %p361
    %p363 = scmp.ne.s32.totalorder %s355, %s357
    %p364 = scmp.eq.s32.totalorder %s27, 1
    %p365 = por %p363, %p364
    %p366 = scmp.ne.s32.totalorder %s357, %s358
    %p367 = scmp.eq.s32.totalorder %s27, 0
    %p368 = por %p366, %p367
    %p369 = scmp.ne.s32.totalorder %s357, %s358
    %p370 = scmp.eq.s32.totalorder %s28, 1
    %p371 = por %p369, %p370
    %p373 = scmp.ne.s32.totalorder %s358, %s372
    %p374 = scmp.eq.s32.totalorder %s28, 0
    %p375 = por %p373, %p374
    %s376 = ssub.s32 %s22, %s29
    %p377 = scmp.eq.s32.totalorder %s376, 0
    %s379 = sadd.s32 %s378, 1
    %s380 = scalar_select %p377, %s378, %s379
    %p383 = pneg %p377
    %p384 = scmp.eq.s32.totalorder %s22, 1
    %p385 = por %p383, %p384
    %p386 = scmp.ne.s32.totalorder %s378, %s381
    %p387 = scmp.eq.s32.totalorder %s22, 0
    %p388 = por %p386, %p387
    %p389 = scmp.ne.s32.totalorder %s378, %s381
    %p390 = scmp.eq.s32.totalorder %s27, 1
    %p391 = por %p389, %p390
    %p392 = scmp.ne.s32.totalorder %s381, %s382
    %p393 = scmp.eq.s32.totalorder %s27, 0
    %p394 = por %p392, %p393
    %p395 = scmp.ne.s32.totalorder %s381, %s382
    %p396 = scmp.eq.s32.totalorder %s28, 1
    %p397 = por %p395, %p396
    %p399 = scmp.ne.s32.totalorder %s382, %s398
    %p400 = scmp.eq.s32.totalorder %s28, 0
    %p401 = por %p399, %p400
    %p402 = scmp.le.s32.totalorder 1, %s22
    %p403 = scmp.lt.s32.totalorder %s22, 3
    %p404 = pnand %p402, %p403
    %p405 = pneg %p404
    // Predicated region
    $region9: #{molformer_with_regression_head.3} parent=5 // pred_check
      _
    $region10: #{molformer_with_regression_head.3} parent=5 // pred_check_branch
      %407 = sbr.rel (%p404) target = $region12
    $region11: #{molformer_with_regression_head.3} parent=5 // pred_region
      %s408 = ssub.s32 %s22, 1
      // Predicated region
      $region13: #{molformer_with_regression_head.3} parent=11 // pred_check
        %p409 = pneg %p95
      $region14: #{molformer_with_regression_head.3} parent=11 // pred_check_branch
        %411 = sbr.rel (%p409) target = $region16
      $region15: #{molformer_with_regression_head.3} parent=11 // pred_region
        _
      $region16: #{molformer_with_regression_head.3} parent=11 // pred_fallthru
        _
      // Predicated region
      $region17: #{molformer_with_regression_head.3} parent=11 // pred_check
        %p412 = pneg %p116
      $region18: #{molformer_with_regression_head.3} parent=11 // pred_check_branch
        %414 = sbr.rel (%p412) target = $region20
      $region19: #{molformer_with_regression_head.3} parent=11 // pred_region
        _
      $region20: #{molformer_with_regression_head.3} parent=11 // pred_fallthru
        _
      // Predicated region
      $region21: #{molformer_with_regression_head.3} parent=11 // pred_check
        %p415 = pneg %p137
      $region22: #{molformer_with_regression_head.3} parent=11 // pred_check_branch
        %417 = sbr.rel (%p415) target = $region24
      $region23: #{molformer_with_regression_head.3} parent=11 // pred_region
        _
      $region24: #{molformer_with_regression_head.3} parent=11 // pred_fallthru
        _
      // Predicated region
      $region25: #{molformer_with_regression_head.3} parent=11 // pred_check
        %p418 = pneg %p158
      $region26: #{molformer_with_regression_head.3} parent=11 // pred_check_branch
        %420 = sbr.rel (%p418) target = $region28
      $region27: #{molformer_with_regression_head.3} parent=11 // pred_region
        _
      $region28: #{molformer_with_regression_head.3} parent=11 // pred_fallthru
        _
      // Predicated region
      $region29: #{molformer_with_regression_head.3} parent=11 // pred_check
        %p421 = pneg %p179
      $region30: #{molformer_with_regression_head.3} parent=11 // pred_check_branch
        %423 = sbr.rel (%p421) target = $region32
      $region31: #{molformer_with_regression_head.3} parent=11 // pred_region
        _
      $region32: #{molformer_with_regression_head.3} parent=11 // pred_fallthru
        _
      // Predicated region
      $region33: #{molformer_with_regression_head.3} parent=11 // pred_check
        %p424 = pneg %p200
      $region34: #{molformer_with_regression_head.3} parent=11 // pred_check_branch
        %426 = sbr.rel (%p424) target = $region36
      $region35: #{molformer_with_regression_head.3} parent=11 // pred_region
        _
      $region36: #{molformer_with_regression_head.3} parent=11 // pred_fallthru
        _
      // Predicated region
      $region37: #{molformer_with_regression_head.3} parent=11 // pred_check
        %p427 = pneg %p221
      $region38: #{molformer_with_regression_head.3} parent=11 // pred_check_branch
        %429 = sbr.rel (%p427) target = $region40
      $region39: #{molformer_with_regression_head.3} parent=11 // pred_region
        _
      $region40: #{molformer_with_regression_head.3} parent=11 // pred_fallthru
        _
      // Predicated region
      $region41: #{molformer_with_regression_head.3} parent=11 // pred_check
        %p430 = pneg %p242
      $region42: #{molformer_with_regression_head.3} parent=11 // pred_check_branch
        %432 = sbr.rel (%p430) target = $region44
      $region43: #{molformer_with_regression_head.3} parent=11 // pred_region
        _
      $region44: #{molformer_with_regression_head.3} parent=11 // pred_fallthru
        _
      // Predicated region
      $region45: #{molformer_with_regression_head.3} parent=11 // pred_check
        %p433 = pneg %p263
      $region46: #{molformer_with_regression_head.3} parent=11 // pred_check_branch
        %435 = sbr.rel (%p433) target = $region48
      $region47: #{molformer_with_regression_head.3} parent=11 // pred_region
        _
      $region48: #{molformer_with_regression_head.3} parent=11 // pred_fallthru
        _
      // Predicated region
      $region49: #{molformer_with_regression_head.3} parent=11 // pred_check
        %p436 = pneg %p284
      $region50: #{molformer_with_regression_head.3} parent=11 // pred_check_branch
        %438 = sbr.rel (%p436) target = $region52
      $region51: #{molformer_with_regression_head.3} parent=11 // pred_region
        _
      $region52: #{molformer_with_regression_head.3} parent=11 // pred_fallthru
        _
      // Predicated region
      $region53: #{molformer_with_regression_head.3} parent=11 // pred_check
        %p439 = pneg %p305
      $region54: #{molformer_with_regression_head.3} parent=11 // pred_check_branch
        %441 = sbr.rel (%p439) target = $region56
      $region55: #{molformer_with_regression_head.3} parent=11 // pred_region
        _
      $region56: #{molformer_with_regression_head.3} parent=11 // pred_fallthru
        _
      // Predicated region
      $region57: #{molformer_with_regression_head.3} parent=11 // pred_check
        %p442 = pneg %p326
      $region58: #{molformer_with_regression_head.3} parent=11 // pred_check_branch
        %444 = sbr.rel (%p442) target = $region60
      $region59: #{molformer_with_regression_head.3} parent=11 // pred_region
        _
      $region60: #{molformer_with_regression_head.3} parent=11 // pred_fallthru
        _
      // Predicated region
      $region61: #{molformer_with_regression_head.3} parent=11 // pred_check
        %p445 = pneg %p347
      $region62: #{molformer_with_regression_head.3} parent=11 // pred_check_branch
        %447 = sbr.rel (%p445) target = $region64
      $region63: #{molformer_with_regression_head.3} parent=11 // pred_region
        _
      $region64: #{molformer_with_regression_head.3} parent=11 // pred_fallthru
        _
      // Predicated region
      $region65: #{molformer_with_regression_head.3} parent=11 // pred_check
        %p448 = pneg %p368
      $region66: #{molformer_with_regression_head.3} parent=11 // pred_check_branch
        %450 = sbr.rel (%p448) target = $region68
      $region67: #{molformer_with_regression_head.3} parent=11 // pred_region
        _
      $region68: #{molformer_with_regression_head.3} parent=11 // pred_fallthru
        _
    $region12: #{molformer_with_regression_head.3} parent=5 // pred_fallthru
      _
    %p451 = scmp.lt.s32.totalorder %s22, 2
    // Predicated region
    $region69: #{molformer_with_regression_head.3} parent=5 // pred_check
      %p452 = pneg %p451
    $region70: #{molformer_with_regression_head.3} parent=5 // pred_check_branch
      %454 = sbr.rel (%p452) target = $region72
    $region71: #{molformer_with_regression_head.3} parent=5 // pred_region
      // Predicated region
      $region73: #{molformer_with_regression_head.3} parent=71 // pred_check
        %p455 = pneg %p42
      $region74: #{molformer_with_regression_head.3} parent=71 // pred_check_branch
        %457 = sbr.rel (%p455) target = $region76
      $region75: #{molformer_with_regression_head.3} parent=71 // pred_region
        %p458 = scmp.lt.s32.totalorder %s22, 1
        %s459 = scalar_select %p458, %s22, 1
        %s460 = smul.addr %s459, 16
        %s461 = smul.addr %s460, 4
        %s462 = scalar_lea.vmem %s0, %s461
      $region76: #{molformer_with_regression_head.3} parent=71 // pred_fallthru
        _
      // Predicated region
      $region77: #{molformer_with_regression_head.3} parent=71 // pred_check
        %p463 = pneg %p68
      $region78: #{molformer_with_regression_head.3} parent=71 // pred_check_branch
        %465 = sbr.rel (%p463) target = $region80
      $region79: #{molformer_with_regression_head.3} parent=71 // pred_region
        %p466 = scmp.lt.s32.totalorder %s22, 1
        %s467 = scalar_select %p466, %s22, 1
        %s468 = scalar_lea.vmem %s1, %s467
      $region80: #{molformer_with_regression_head.3} parent=71 // pred_fallthru
        _
    $region72: #{molformer_with_regression_head.3} parent=5 // pred_fallthru
      _
    %p469 = scmp.le.s32.totalorder 1, %s22
    %p470 = scmp.lt.s32.totalorder %s22, 3
    %p471 = pnand %p469, %p470
    %p472 = pneg %p471
    // Predicated region
    $region81: #{molformer_with_regression_head.3} parent=5 // pred_check
      _
    $region82: #{molformer_with_regression_head.3} parent=5 // pred_check_branch
      %474 = sbr.rel (%p471) target = $region84
    $region83: #{molformer_with_regression_head.3} parent=5 // pred_region
      %s475 = ssub.s32 %s22, 1
      %p476 = scmp.lt.s32.totalorder %s27, 1
      %s477 = scalar_select %p476, %s27, 1
      %s478 = smul.addr %s477, 16
      %s479 = smul.addr %s478, 4
      %s480 = scalar_lea.vmem %s0, %s479
      %p481 = pneg %p48
      %p482 = pneg %p45
      %p483 = scmp.lt.s32.totalorder %s27, 1
      %s484 = scalar_select %p483, %s27, 1
      %s485 = scalar_lea.vmem %s1, %s484
      %p486 = pneg %p74
      %p487 = pneg %p71
      %p488 = pneg %p95
      %p489 = pneg %p92
      %p490 = pneg %p116
      %p491 = pneg %p113
      %p492 = pneg %p137
      %p493 = pneg %p134
      %p494 = pneg %p158
      %p495 = pneg %p155
      %p496 = pneg %p179
      %p497 = pneg %p176
      %p498 = pneg %p200
      %p499 = pneg %p197
      %p500 = pneg %p221
      %p501 = pneg %p218
      %p502 = pneg %p242
      %p503 = pneg %p239
      %p504 = pneg %p263
      %p505 = pneg %p260
      %p506 = pneg %p284
      %p507 = pneg %p281
      %p508 = pneg %p305
      %p509 = pneg %p302
      %p510 = pneg %p326
      %p511 = pneg %p323
      %p512 = pneg %p347
      %p513 = pneg %p344
      %p514 = pneg %p368
      %p515 = pneg %p365
      %p516 = pneg %p394
      %p517 = pneg %p391
      %p518 = scmp.lt.s32.totalorder %s27, 1
      %s519 = scalar_select %p518, %s27, 1
      %s520 = scalar_lea.vmem %s16, %s519
      %p521 = scmp.lt.s32.totalorder %s27, 1
      %s522 = scalar_select %p521, %s27, 1
      %s523 = smul.addr %s522, 16
      %s524 = smul.addr %s523, 4
      %s525 = scalar_lea.vmem %s0, %s524
      %p526 = scmp.lt.s32.totalorder %s27, 1
      %s527 = scalar_select %p526, %s27, 1
      %s528 = scalar_lea.vmem %s1, %s527
      %p529 = scmp.lt.s32.totalorder %s27, 1
      %s530 = scalar_select %p529, %s27, 1
      %s531 = scalar_lea.vmem %s16, %s530
      %v533 = vlaneseq
      %v534 = vand.u32 %v533, 127
      %vm535 = vcmp.lt.s32.totalorder %v534, 32
      %v536 = vld [vmem:[%s525] sm:$0xf]
      %v537 = vld [vmem:[%s525 + $0x4] sm:$0xf]
      %v538 = vld [vmem:[%s525 + $0x8] sm:$0xf]
      %v539 = vld [vmem:[%s525 + $0xc] sm:$0xf]
      %v540 = vld [vmem:[%s525 + $0x10] sm:$0xf]
      %v541 = vld [vmem:[%s525 + $0x14] sm:$0xf]
      %v542 = vld [vmem:[%s525 + $0x18] sm:$0xf]
      %v543 = vld [vmem:[%s525 + $0x1c] sm:$0xf]
      %v544 = vld [vmem:[%s525 + $0x20] sm:$0xf]
      %v545 = vld [vmem:[%s525 + $0x24] sm:$0xf]
      %v546 = vld [vmem:[%s525 + $0x28] sm:$0xf]
      %v547 = vld [vmem:[%s525 + $0x2c] sm:$0xf]
      %v548 = vld [vmem:[%s525 + $0x30] sm:$0xf]
      %v549 = vld [vmem:[%s525 + $0x34] sm:$0xf]
      %v550 = vld [vmem:[%s525 + $0x38] sm:$0xf]
      %v551 = vld [vmem:[%s525 + $0x3c] sm:$0xf]
      %v552 = vunpack.c.l.bf16 %v536
      %v553 = vld [vmem:[%s4] sm:$0xff]
      %v554 = vld [vmem:[%s4 + $0x8] sm:$0xf]
      %v555 = vld [vmem:[%s4 + $0xc] sm:$0xff]
      %v556 = vld [vmem:[%s4 + $0x14] sm:$0xf]
      %v557 = vld [vmem:[%s4 + $0x18] sm:$0xff]
      %v558 = vld [vmem:[%s4 + $0x20] sm:$0xf]
      %v559 = vld [vmem:[%s4 + $0x24] sm:$0xff]
      %v560 = vld [vmem:[%s4 + $0x2c] sm:$0xf]
      %v561 = vld [vmem:[%s4 + $0x30] sm:$0xff]
      %v562 = vld [vmem:[%s4 + $0x38] sm:$0xf]
      %v563 = vld [vmem:[%s4 + $0x3c] sm:$0xff]
      %v564 = vld [vmem:[%s4 + $0x44] sm:$0xf]
      %v565 = vld [vmem:[%s4 + $0x48] sm:$0xff]
      %v566 = vld [vmem:[%s4 + $0x50] sm:$0xf]
      %v567 = vld [vmem:[%s4 + $0x54] sm:$0xff]
      %v568 = vld [vmem:[%s4 + $0x5c] sm:$0xf]
      %v569 = vld [vmem:[%s4 + $0x60] sm:$0xff]
      %v570 = vld [vmem:[%s4 + $0x68] sm:$0xf]
      %v571 = vld [vmem:[%s4 + $0x6c] sm:$0xff]
      %v572 = vld [vmem:[%s4 + $0x74] sm:$0xf]
      %v573 = vld [vmem:[%s4 + $0x78] sm:$0xff]
      %v574 = vld [vmem:[%s4 + $0x80] sm:$0xf]
      %v575 = vld [vmem:[%s4 + $0x84] sm:$0xff]
      %v576 = vld [vmem:[%s4 + $0x8c] sm:$0xf]
      %v577 = vld [vmem:[%s4 + $0x90] sm:$0xff]
      %v578 = vld [vmem:[%s4 + $0x98] sm:$0xf]
      %v579 = vld [vmem:[%s4 + $0x9c] sm:$0xff]
      %v580 = vld [vmem:[%s4 + $0xa4] sm:$0xf]
      %v581 = vld [vmem:[%s4 + $0xa8] sm:$0xff]
      %v582 = vld [vmem:[%s4 + $0xb0] sm:$0xf]
      %v583 = vld [vmem:[%s4 + $0xb4] sm:$0xff]
      %v584 = vld [vmem:[%s4 + $0xbc] sm:$0xf]
      %v585 = vld [vmem:[%s5] sm:$0x7]
      %v587 = vlaneseq
      %v588 = vshrl.u32 %v587, 7
      %v589 = vsub.s32 0, %v588
      %v590 = vrot.slane %v585, %v589
      %v591 = vlaneseq
      %v592 = vshrl.u32 %v591, 7
      %v593 = vsub.s32 1, %v592
      %v594 = vrot.slane %v585, %v593
      %v595 = vlaneseq
      %v596 = vshrl.u32 %v595, 7
      %v597 = vsub.s32 2, %v596
      %v598 = vrot.slane %v585, %v597
      %v618 = vunpack.c.l.b16 %v536
      %v619 = vunpack.c.l.b16 %v537
      %v620 = vunpack.c.l.b16 %v538
      %v621 = vunpack.c.l.b16 %v539
      %v622 = vunpack.c.l.b16 %v540
      %v623 = vunpack.c.l.b16 %v541
      %v624 = vunpack.c.l.b16 %v542
      %v625 = vunpack.c.l.b16 %v543
      %v626 = vunpack.c.l.b16 %v544
      %v627 = vunpack.c.l.b16 %v545
      %v628 = vunpack.c.l.b16 %v546
      %v629 = vunpack.c.l.b16 %v547
      %v630 = vunpack.c.l.b16 %v548
      %v631 = vunpack.c.l.b16 %v549
      %v632 = vunpack.c.l.b16 %v550
      %v633 = vunpack.c.l.b16 %v551
      %v634 = vpack.c.b16 %v619, %v618
      %v635 = vpack.c.b16 %v621, %v620
      %v636 = vpack.c.b16 %v623, %v622
      %v637 = vpack.c.b16 %v625, %v624
      %v638 = vpack.c.b16 %v627, %v626
      %v639 = vpack.c.b16 %v629, %v628
      %v640 = vpack.c.b16 %v631, %v630
      %v641 = vpack.c.b16 %v633, %v632
      %v682 = vunpack.c.l.b16 %v553
      %v683 = vunpack.c.h.b16 %v553
      %v684 = vunpack.c.l.b16 %v554
      %v685 = vunpack.c.l.b16 %v555
      %v686 = vunpack.c.h.b16 %v555
      %v687 = vunpack.c.l.b16 %v556
      %v688 = vunpack.c.l.b16 %v557
      %v689 = vunpack.c.h.b16 %v557
      %v690 = vunpack.c.l.b16 %v558
      %v691 = vunpack.c.l.b16 %v559
      %v692 = vunpack.c.h.b16 %v559
      %v693 = vunpack.c.l.b16 %v560
      %v694 = vunpack.c.l.b16 %v561
      %v695 = vunpack.c.h.b16 %v561
      %v696 = vunpack.c.l.b16 %v562
      %v697 = vunpack.c.l.b16 %v563
      %v698 = vunpack.c.h.b16 %v563
      %v699 = vunpack.c.l.b16 %v564
      %v700 = vunpack.c.l.b16 %v565
      %v701 = vunpack.c.h.b16 %v565
      %v702 = vunpack.c.l.b16 %v566
      %v703 = vunpack.c.l.b16 %v567
      %v704 = vunpack.c.h.b16 %v567
      %v705 = vunpack.c.l.b16 %v568
      %v706 = vunpack.c.l.b16 %v569
      %v707 = vunpack.c.h.b16 %v569
      %v708 = vunpack.c.l.b16 %v570
      %v709 = vunpack.c.l.b16 %v571
      %v710 = vunpack.c.h.b16 %v571
      %v711 = vunpack.c.l.b16 %v572
      %v712 = vunpack.c.l.b16 %v573
      %v713 = vunpack.c.h.b16 %v573
      %v714 = vunpack.c.l.b16 %v574
      %v715 = vunpack.c.l.b16 %v575
      %v716 = vunpack.c.h.b16 %v575
      %v717 = vunpack.c.l.b16 %v576
      %v718 = vunpack.c.l.b16 %v577
      %v719 = vunpack.c.h.b16 %v577
      %v720 = vunpack.c.l.b16 %v578
      %v721 = vunpack.c.l.b16 %v579
      %v722 = vunpack.c.h.b16 %v579
      %v723 = vunpack.c.l.b16 %v580
      %v724 = vunpack.c.l.b16 %v581
      %v725 = vunpack.c.h.b16 %v581
      %v726 = vunpack.c.l.b16 %v582
      %v727 = vunpack.c.l.b16 %v583
      %v728 = vunpack.c.h.b16 %v583
      %v729 = vunpack.c.l.b16 %v584
      %v730 = vpack.c.b16 %v685, %v682
      %v731 = vpack.c.b16 %v686, %v683
      %v732 = vpack.c.b16 %v687, %v684
      %v733 = vpack.c.b16 %v691, %v688
      %v734 = vpack.c.b16 %v692, %v689
      %v735 = vpack.c.b16 %v693, %v690
      %v736 = vpack.c.b16 %v697, %v694
      %v737 = vpack.c.b16 %v698, %v695
      %v738 = vpack.c.b16 %v699, %v696
      %v739 = vpack.c.b16 %v703, %v700
      %v740 = vpack.c.b16 %v704, %v701
      %v741 = vpack.c.b16 %v705, %v702
      %v742 = vpack.c.b16 %v709, %v706
      %v743 = vpack.c.b16 %v710, %v707
      %v744 = vpack.c.b16 %v711, %v708
      %v745 = vpack.c.b16 %v715, %v712
      %v746 = vpack.c.b16 %v716, %v713
      %v747 = vpack.c.b16 %v717, %v714
      %v748 = vpack.c.b16 %v721, %v718
      %v749 = vpack.c.b16 %v722, %v719
      %v750 = vpack.c.b16 %v723, %v720
      %v751 = vpack.c.b16 %v727, %v724
      %v752 = vpack.c.b16 %v728, %v725
      %v753 = vpack.c.b16 %v729, %v726
      %778 = vmatprep.subr.bf16.mxu0 %v731
      %779 = vmatpush1.bf16.msra.mxu0 %v730
      %780 = vmatprep.subr.bf16.mxu0 %v734
      %781 = vmatpush1.bf16.msra.mxu0 %v733
      %782 = vmatprep.subr.bf16.mxu0 %v737
      %783 = vmatpush1.bf16.msra.mxu0 %v736
      %784 = vmatprep.subr.bf16.mxu0 %v740
      %785 = vmatpush1.bf16.msra.mxu0 %v739
      %786 = vmatprep.subr.bf16.mxu0 %v743
      %787 = vmatpush1.bf16.msra.mxu0 %v742
      %788 = vmatprep.subr.bf16.mxu0 %v746
      %789 = vmatpush1.bf16.msra.mxu0 %v745
      %790 = vmatprep.subr.bf16.mxu0 %v749
      %791 = vmatpush1.bf16.msra.mxu0 %v748
      %792 = vmatprep.subr.bf16.mxu0 %v752
      %793 = vmatpush1.bf16.msra.mxu0 %v751
      %794 = vmatprep.subr.bf16.mxu0 0
      %795 = vmatpush1.bf16.msra.mxu0 0
      %796 = vmatprep.subr.bf16.mxu0 0
      %797 = vmatpush1.bf16.msra.mxu0 0
      %798 = vmatprep.subr.bf16.mxu0 0
      %799 = vmatpush1.bf16.msra.mxu0 0
      %800 = vmatprep.subr.bf16.mxu0 0
      %801 = vmatpush1.bf16.msra.mxu0 0
      %802 = vmatprep.subr.bf16.mxu0 0
      %803 = vmatpush1.bf16.msra.mxu0 0
      %804 = vmatprep.subr.bf16.mxu0 0
      %805 = vmatpush1.bf16.msra.mxu0 0
      %806 = vmatprep.subr.bf16.mxu0 0
      %807 = vmatpush1.bf16.msra.mxu0 0
      %808 = vmatprep.subr.bf16.mxu0 0
      %809 = vmatpush1.bf16.msra.mxu0 0
      %810 = vmatprep.mubr.bf16.mxu0 0
      %811 = vmatmul.mubr.bf16.gmra.mrb[0].mxu0 %v634
      %v812 = vpop.f32.mrb[0].mxu0
      %v813 = vadd.f32 %v590, %v812
      %v814 = vpop.f32.mrb[0].mxu0
      %v815 = vadd.f32 %v594, %v814
      %v816 = vpop.f32.mrb[0].mxu0
      %v817 = vadd.f32 %v590, %v816
      %v818 = vpop.f32.mrb[0].mxu0
      %v819 = vadd.f32 %v594, %v818
      %820 = vmatprep.mubr.bf16.mxu0 0
      %821 = vmatmul.mubr.bf16.gmra.mrb[0].mxu0 %v635
      %v822 = vpop.f32.mrb[0].mxu0
      %v823 = vadd.f32 %v590, %v822
      %v824 = vpop.f32.mrb[0].mxu0
      %v825 = vadd.f32 %v594, %v824
      %v826 = vpop.f32.mrb[0].mxu0
      %v827 = vadd.f32 %v590, %v826
      %v828 = vpop.f32.mrb[0].mxu0
      %v829 = vadd.f32 %v594, %v828
      %830 = vmatprep.mubr.bf16.mxu0 0
      %831 = vmatmul.mubr.bf16.gmra.mrb[0].mxu0 %v636
      %v832 = vpop.f32.mrb[0].mxu0
      %v833 = vadd.f32 %v590, %v832
      %v834 = vpop.f32.mrb[0].mxu0
      %v835 = vadd.f32 %v594, %v834
      %v836 = vpop.f32.mrb[0].mxu0
      %v837 = vadd.f32 %v590, %v836
      %v838 = vpop.f32.mrb[0].mxu0
      %v839 = vadd.f32 %v594, %v838
      %840 = vmatprep.mubr.bf16.mxu0 0
      %841 = vmatmul.mubr.bf16.gmra.mrb[0].mxu0 %v637
      %v842 = vpop.f32.mrb[0].mxu0
      %v843 = vadd.f32 %v590, %v842
      %v844 = vpop.f32.mrb[0].mxu0
      %v845 = vadd.f32 %v594, %v844
      %v846 = vpop.f32.mrb[0].mxu0
      %v847 = vadd.f32 %v590, %v846
      %v848 = vpop.f32.mrb[0].mxu0
      %v849 = vadd.f32 %v594, %v848
      %850 = vmatprep.mubr.bf16.mxu0 0
      %851 = vmatmul.mubr.bf16.gmra.mrb[0].mxu0 %v638
      %v852 = vpop.f32.mrb[0].mxu0
      %v853 = vadd.f32 %v590, %v852
      %v854 = vpop.f32.mrb[0].mxu0
      %v855 = vadd.f32 %v594, %v854
      %v856 = vpop.f32.mrb[0].mxu0
      %v857 = vadd.f32 %v590, %v856
      %v858 = vpop.f32.mrb[0].mxu0
      %v859 = vadd.f32 %v594, %v858
      %860 = vmatprep.mubr.bf16.mxu0 0
      %861 = vmatmul.mubr.bf16.gmra.mrb[0].mxu0 %v639
      %v862 = vpop.f32.mrb[0].mxu0
      %v863 = vadd.f32 %v590, %v862
      %v864 = vpop.f32.mrb[0].mxu0
      %v865 = vadd.f32 %v594, %v864
      %v866 = vpop.f32.mrb[0].mxu0
      %v867 = vadd.f32 %v590, %v866
      %v868 = vpop.f32.mrb[0].mxu0
      %v869 = vadd.f32 %v594, %v868
      %870 = vmatprep.mubr.bf16.mxu0 0
      %871 = vmatmul.mubr.bf16.gmra.mrb[0].mxu0 %v640
      %v872 = vpop.f32.mrb[0].mxu0
      %v873 = vadd.f32 %v590, %v872
      %v874 = vpop.f32.mrb[0].mxu0
      %v875 = vadd.f32 %v594, %v874
      %v876 = vpop.f32.mrb[0].mxu0
      %v877 = vadd.f32 %v590, %v876
      %v878 = vpop.f32.mrb[0].mxu0
      %v879 = vadd.f32 %v594, %v878
      %880 = vmatprep.mubr.bf16.mxu0 0
      %881 = vmatmul.mubr.bf16.gmra.mrb[0].mxu0 %v641
      %v882 = vpop.f32.mrb[0].mxu0
      %v883 = vadd.f32 %v590, %v882
      %v884 = vpop.f32.mrb[0].mxu0
      %v885 = vadd.f32 %v594, %v884
      %v886 = vpop.f32.mrb[0].mxu0
      %v887 = vadd.f32 %v590, %v886
      %v888 = vpop.f32.mrb[0].mxu0
      %v889 = vadd.f32 %v594, %v888
      %890 = vdwg.mxu0
      %891 = vmatprep.subr.bf16.mxu0 0
      %892 = vmatpush1.bf16.msra.mxu0 %v732
      %893 = vmatprep.subr.bf16.mxu0 0
      %894 = vmatpush1.bf16.msra.mxu0 %v735
      %895 = vmatprep.subr.bf16.mxu0 0
      %896 = vmatpush1.bf16.msra.mxu0 %v738
      %897 = vmatprep.subr.bf16.mxu0 0
      %898 = vmatpush1.bf16.msra.mxu0 %v741
      %899 = vmatprep.subr.bf16.mxu0 0
      %900 = vmatpush1.bf16.msra.mxu0 %v744
      %901 = vmatprep.subr.bf16.mxu0 0
      %902 = vmatpush1.bf16.msra.mxu0 %v747
      %903 = vmatprep.subr.bf16.mxu0 0
      %904 = vmatpush1.bf16.msra.mxu0 %v750
      %905 = vmatprep.subr.bf16.mxu0 0
      %906 = vmatpush1.bf16.msra.mxu0 %v753
      %907 = vmatprep.subr.bf16.mxu0 0
      %908 = vmatpush1.bf16.msra.mxu0 0
      %909 = vmatprep.subr.bf16.mxu0 0
      %910 = vmatpush1.bf16.msra.mxu0 0
      %911 = vmatprep.subr.bf16.mxu0 0
      %912 = vmatpush1.bf16.msra.mxu0 0
      %913 = vmatprep.subr.bf16.mxu0 0
      %914 = vmatpush1.bf16.msra.mxu0 0
      %915 = vmatprep.subr.bf16.mxu0 0
      %916 = vmatpush1.bf16.msra.mxu0 0
      %917 = vmatprep.subr.bf16.mxu0 0
      %918 = vmatpush1.bf16.msra.mxu0 0
      %919 = vmatprep.subr.bf16.mxu0 0
      %920 = vmatpush1.bf16.msra.mxu0 0
      %921 = vmatprep.subr.bf16.mxu0 0
      %922 = vmatpush1.bf16.msra.mxu0 0
      %923 = vmatprep.mubr.bf16.mxu0 0
      %924 = vmatmul.mubr.bf16.gmra.mrb[0].mxu0 %v634
      %v925 = vpop.f32.mrb[0].mxu0
      %v926 = vadd.f32 %v598, %v925
      %v927 = vpop.f32.mrb[0].mxu0
      %v928 = vpop.f32.mrb[0].mxu0
      %v929 = vadd.f32 %v598, %v928
      %v930 = vpop.f32.mrb[0].mxu0
      %931 = vmatprep.mubr.bf16.mxu0 0
      %932 = vmatmul.mubr.bf16.gmra.mrb[0].mxu0 %v635
      %v933 = vpop.f32.mrb[0].mxu0
      %v934 = vadd.f32 %v598, %v933
      %v935 = vpop.f32.mrb[0].mxu0
      %v936 = vpop.f32.mrb[0].mxu0
      %v937 = vadd.f32 %v598, %v936
      %v938 = vpop.f32.mrb[0].mxu0
      %939 = vmatprep.mubr.bf16.mxu0 0
      %940 = vmatmul.mubr.bf16.gmra.mrb[0].mxu0 %v636
      %v941 = vpop.f32.mrb[0].mxu0
      %v942 = vadd.f32 %v598, %v941
      %v943 = vpop.f32.mrb[0].mxu0
      %v944 = vpop.f32.mrb[0].mxu0
      %v945 = vadd.f32 %v598, %v944
      %v946 = vpop.f32.mrb[0].mxu0
      %947 = vmatprep.mubr.bf16.mxu0 0
      %948 = vmatmul.mubr.bf16.gmra.mrb[0].mxu0 %v637
      %v949 = vpop.f32.mrb[0].mxu0
      %v950 = vadd.f32 %v598, %v949
      %v951 = vpop.f32.mrb[0].mxu0
      %v952 = vpop.f32.mrb[0].mxu0
      %v953 = vadd.f32 %v598, %v952
      %v954 = vpop.f32.mrb[0].mxu0
      %955 = vmatprep.mubr.bf16.mxu0 0
      %956 = vmatmul.mubr.bf16.gmra.mrb[0].mxu0 %v638
      %v957 = vpop.f32.mrb[0].mxu0
      %v958 = vadd.f32 %v598, %v957
      %v959 = vpop.f32.mrb[0].mxu0
      %v960 = vpop.f32.mrb[0].mxu0
      %v961 = vadd.f32 %v598, %v960
      %v962 = vpop.f32.mrb[0].mxu0
      %963 = vmatprep.mubr.bf16.mxu0 0
      %964 = vmatmul.mubr.bf16.gmra.mrb[0].mxu0 %v639
      %v965 = vpop.f32.mrb[0].mxu0
      %v966 = vadd.f32 %v598, %v965
      %v967 = vpop.f32.mrb[0].mxu0
      %v968 = vpop.f32.mrb[0].mxu0
      %v969 = vadd.f32 %v598, %v968
      %v970 = vpop.f32.mrb[0].mxu0
      %971 = vmatprep.mubr.bf16.mxu0 0
      %972 = vmatmul.mubr.bf16.gmra.mrb[0].mxu0 %v640
      %v973 = vpop.f32.mrb[0].mxu0
      %v974 = vadd.f32 %v598, %v973
      %v975 = vpop.f32.mrb[0].mxu0
      %v976 = vpop.f32.mrb[0].mxu0
      %v977 = vadd.f32 %v598, %v976
      %v978 = vpop.f32.mrb[0].mxu0
      %979 = vmatprep.mubr.bf16.mxu0 0
      %980 = vmatmul.mubr.bf16.gmra.mrb[0].mxu0 %v641
      %v981 = vpop.f32.mrb[0].mxu0
      %v982 = vadd.f32 %v598, %v981
      %v983 = vpop.f32.mrb[0].mxu0
      %v984 = vpop.f32.mrb[0].mxu0
      %v985 = vadd.f32 %v598, %v984
      %v986 = vpop.f32.mrb[0].mxu0
      %987 = vdwg.mxu0
      %v988 = vld [vmem:[%s528] sm:$0x1]
      %989 = vst [vmem:[#allocation2] sm:$0xff] 0
      %990 = vst [vmem:[#allocation2 + $0x8] sm:$0xff] 0
      %991 = vst [vmem:[#allocation2 + $0x10] sm:$0xff] 0
      %992 = vst [vmem:[#allocation2 + $0x18] sm:$0xff] 0
      %993 = vst [vmem:[#allocation2 + $0x20] sm:$0xff] 0
      %994 = vst [vmem:[#allocation2 + $0x28] sm:$0xff] 0
      %995 = vst [vmem:[#allocation2 + $0x30] sm:$0xff] 0
      %996 = vst [vmem:[#allocation2 + $0x38] sm:$0xff] 0
      %v997 = vpack.c.bf16 %v817, %v813
      %v998 = vpack.c.bf16 %v827, %v823
      %v999 = vpack.c.bf16 %v837, %v833
      %v1000 = vpack.c.bf16 %v847, %v843
      %v1001 = vpack.c.bf16 %v857, %v853
      %v1002 = vpack.c.bf16 %v867, %v863
      %v1003 = vpack.c.bf16 %v877, %v873
      %v1004 = vpack.c.bf16 %v887, %v883
      %v1005 = vpack.c.bf16 %v819, %v815
      %v1006 = vpack.c.bf16 %v829, %v825
      %v1007 = vpack.c.bf16 %v839, %v835
      %v1008 = vpack.c.bf16 %v849, %v845
      %v1009 = vpack.c.bf16 %v859, %v855
      %v1010 = vpack.c.bf16 %v869, %v865
      %v1011 = vpack.c.bf16 %v879, %v875
      %v1012 = vpack.c.bf16 %v889, %v885
      %v1013 = vpack.c.bf16 %v929, %v926
      %v1014 = vpack.c.bf16 %v937, %v934
      %v1015 = vpack.c.bf16 %v945, %v942
      %v1016 = vpack.c.bf16 %v953, %v950
      %v1017 = vpack.c.bf16 %v961, %v958
      %v1018 = vpack.c.bf16 %v969, %v966
      %v1019 = vpack.c.bf16 %v977, %v974
      %v1020 = vpack.c.bf16 %v985, %v982
      %v1022 = vlaneseq
      %v1023 = vshrl.u32 %v1022, 7
      %v1024 = vsub.s32 0, %v1023
      %v1025 = vrot.slane %v988, %v1024
      %vm1027 = vcmask 64512
      %v1029 = vsel %vm1027, %v997, 0
      %v1032 = vsel %vm1027, %v998, 0
      %v1035 = vsel %vm1027, %v999, 0
      %v1038 = vsel %vm1027, %v1000, 0
      %v1041 = vsel %vm1027, %v1001, 0
      %v1044 = vsel %vm1027, %v1002, 0
      %v1047 = vsel %vm1027, %v1003, 0
      %v1050 = vsel %vm1027, %v1004, 0
      %v1053 = vsel %vm1027, %v1005, 0
      %v1056 = vsel %vm1027, %v1006, 0
      %v1059 = vsel %vm1027, %v1007, 0
      %v1062 = vsel %vm1027, %v1008, 0
      %v1065 = vsel %vm1027, %v1009, 0
      %v1068 = vsel %vm1027, %v1010, 0
      %v1071 = vsel %vm1027, %v1011, 0
      %v1074 = vsel %vm1027, %v1012, 0
      %1076 = vmatprep.subr.bf16.mxu0 0
      %1077 = vmatpush1.bf16.xpose.msra.mxu0 %v1053
      %1078 = vmatprep.subr.bf16.mxu0 0
      %1079 = vmatpush1.bf16.xpose.msra.mxu0 %v1056
      %1080 = vmatprep.subr.bf16.mxu0 0
      %1081 = vmatpush1.bf16.xpose.msra.mxu0 %v1059
      %1082 = vmatprep.subr.bf16.mxu0 0
      %1083 = vmatpush1.bf16.xpose.msra.mxu0 %v1062
      %1084 = vmatprep.subr.bf16.mxu0 0
      %1085 = vmatpush1.bf16.xpose.msra.mxu0 %v1065
      %1086 = vmatprep.subr.bf16.mxu0 0
      %1087 = vmatpush1.bf16.xpose.msra.mxu0 %v1068
      %1088 = vmatprep.subr.bf16.mxu0 0
      %1089 = vmatpush1.bf16.xpose.msra.mxu0 %v1071
      %1090 = vmatprep.subr.bf16.mxu0 0
      %1091 = vmatpush1.bf16.xpose.msra.mxu0 %v1074
      %1092 = vmatprep.subr.bf16.mxu0 0
      %1093 = vmatpush1.bf16.xpose.msra.mxu0 0
      %1094 = vmatprep.subr.bf16.mxu0 0
      %1095 = vmatpush1.bf16.xpose.msra.mxu0 0
      %1096 = vmatprep.subr.bf16.mxu0 0
      %1097 = vmatpush1.bf16.xpose.msra.mxu0 0
      %1098 = vmatprep.subr.bf16.mxu0 0
      %1099 = vmatpush1.bf16.xpose.msra.mxu0 0
      %1100 = vmatprep.subr.bf16.mxu0 0
      %1101 = vmatpush1.bf16.xpose.msra.mxu0 0
      %1102 = vmatprep.subr.bf16.mxu0 0
      %1103 = vmatpush1.bf16.xpose.msra.mxu0 0
      %1104 = vmatprep.subr.bf16.mxu0 0
      %1105 = vmatpush1.bf16.xpose.msra.mxu0 0
      %1106 = vmatprep.subr.bf16.mxu0 0
      %1107 = vmatpush1.bf16.xpose.msra.mxu0 0
      %1108 = vmatprep.mubr.bf16.mxu0 0
      %1109 = vmatmul.mubr.bf16.gmra.mrb[0].mxu0 %v1029
      %v1110 = vpop.f32.mrb[0].mxu0
      %v1111 = vadd.f32 %v1025, %v1110
      %v1112 = vpop.f32.mrb[0].mxu0
      %v1113 = vpop.f32.mrb[0].mxu0
      %v1114 = vadd.f32 %v1025, %v1113
      %v1115 = vpop.f32.mrb[0].mxu0
      %1116 = vmatprep.mubr.bf16.mxu0 0
      %1117 = vmatmul.mubr.bf16.gmra.mrb[0].mxu0 %v1032
      %v1118 = vpop.f32.mrb[0].mxu0
      %v1119 = vadd.f32 %v1025, %v1118
      %v1120 = vpop.f32.mrb[0].mxu0
      %v1121 = vpop.f32.mrb[0].mxu0
      %v1122 = vadd.f32 %v1025, %v1121
      %v1123 = vpop.f32.mrb[0].mxu0
      %1124 = vmatprep.mubr.bf16.mxu0 0
      %1125 = vmatmul.mubr.bf16.gmra.mrb[0].mxu0 %v1035
      %v1126 = vpop.f32.mrb[0].mxu0
      %v1127 = vadd.f32 %v1025, %v1126
      %v1128 = vpop.f32.mrb[0].mxu0
      %v1129 = vpop.f32.mrb[0].mxu0
      %v1130 = vadd.f32 %v1025, %v1129
      %v1131 = vpop.f32.mrb[0].mxu0
      %1132 = vmatprep.mubr.bf16.mxu0 0
      %1133 = vmatmul.mubr.bf16.gmra.mrb[0].mxu0 %v1038
      %v1134 = vpop.f32.mrb[0].mxu0
      %v1135 = vadd.f32 %v1025, %v1134
      %v1136 = vpop.f32.mrb[0].mxu0
      %v1137 = vpop.f32.mrb[0].mxu0
      %v1138 = vadd.f32 %v1025, %v1137
      %v1139 = vpop.f32.mrb[0].mxu0
      %1140 = vmatprep.mubr.bf16.mxu0 0
      %1141 = vmatmul.mubr.bf16.gmra.mrb[0].mxu0 %v1041
      %v1142 = vpop.f32.mrb[0].mxu0
      %v1143 = vadd.f32 %v1025, %v1142
      %v1144 = vpop.f32.mrb[0].mxu0
      %v1145 = vpop.f32.mrb[0].mxu0
      %v1146 = vadd.f32 %v1025, %v1145
      %v1147 = vpop.f32.mrb[0].mxu0
      %1148 = vmatprep.mubr.bf16.mxu0 0
      %1149 = vmatmul.mubr.bf16.gmra.mrb[0].mxu0 %v1044
      %v1150 = vpop.f32.mrb[0].mxu0
      %v1151 = vadd.f32 %v1025, %v1150
      %v1152 = vpop.f32.mrb[0].mxu0
      %v1153 = vpop.f32.mrb[0].mxu0
      %v1154 = vadd.f32 %v1025, %v1153
      %v1155 = vpop.f32.mrb[0].mxu0
      %1156 = vmatprep.mubr.bf16.mxu0 0
      %1157 = vmatmul.mubr.bf16.gmra.mrb[0].mxu0 %v1047
      %v1158 = vpop.f32.mrb[0].mxu0
      %v1159 = vadd.f32 %v1025, %v1158
      %v1160 = vpop.f32.mrb[0].mxu0
      %v1161 = vpop.f32.mrb[0].mxu0
      %v1162 = vadd.f32 %v1025, %v1161
      %v1163 = vpop.f32.mrb[0].mxu0
      %1164 = vmatprep.mubr.bf16.mxu0 0
      %1165 = vmatmul.mubr.bf16.gmra.mrb[0].mxu0 %v1050
      %v1166 = vpop.f32.mrb[0].mxu0
      %v1167 = vadd.f32 %v1025, %v1166
      %v1168 = vpop.f32.mrb[0].mxu0
      %v1169 = vpop.f32.mrb[0].mxu0
      %v1170 = vadd.f32 %v1025, %v1169
      %v1171 = vpop.f32.mrb[0].mxu0
      %1172 = vdwg.mxu0
      %1173 = vmax.xlane.f32.xlu0 %v1111
      %v1174 = vpop.xlane.xlu0 %1173
      %1175 = vmax.xlane.f32.xlu0 %v1114
      %v1176 = vpop.xlane.xlu0 %1175
      %1177 = vmax.xlane.f32.xlu0 %v1119
      %v1178 = vpop.xlane.xlu0 %1177
      %1179 = vmax.xlane.f32.xlu0 %v1122
      %v1180 = vpop.xlane.xlu0 %1179
      %1181 = vmax.xlane.f32.xlu0 %v1127
      %v1182 = vpop.xlane.xlu0 %1181
      %1183 = vmax.xlane.f32.xlu0 %v1130
      %v1184 = vpop.xlane.xlu0 %1183
      %1185 = vmax.xlane.f32.xlu0 %v1135
      %v1186 = vpop.xlane.xlu0 %1185
      %1187 = vmax.xlane.f32.xlu0 %v1138
      %v1188 = vpop.xlane.xlu0 %1187
      %1189 = vmax.xlane.f32.xlu0 %v1143
      %v1190 = vpop.xlane.xlu0 %1189
      %1191 = vmax.xlane.f32.xlu0 %v1146
      %v1192 = vpop.xlane.xlu0 %1191
      %1193 = vmax.xlane.f32.xlu0 %v1151
      %v1194 = vpop.xlane.xlu0 %1193
      %1195 = vmax.xlane.f32.xlu0 %v1154
      %v1196 = vpop.xlane.xlu0 %1195
      %1197 = vmax.xlane.f32.xlu0 %v1159
      %v1198 = vpop.xlane.xlu0 %1197
      %1199 = vmax.xlane.f32.xlu0 %v1162
      %v1200 = vpop.xlane.xlu0 %1199
      %1201 = vmax.xlane.f32.xlu0 %v1167
      %v1202 = vpop.xlane.xlu0 %1201
      %1203 = vmax.xlane.f32.xlu0 %v1170
      %v1204 = vpop.xlane.xlu0 %1203
      %v1205 = vsub.f32 %v1111, %v1174
      %v1206 = vsub.f32 %v1114, %v1176
      %v1207 = vsub.f32 %v1119, %v1178
      %v1208 = vsub.f32 %v1122, %v1180
      %v1209 = vsub.f32 %v1127, %v1182
      %v1210 = vsub.f32 %v1130, %v1184
      %v1211 = vsub.f32 %v1135, %v1186
      %v1212 = vsub.f32 %v1138, %v1188
      %v1213 = vsub.f32 %v1143, %v1190
      %v1214 = vsub.f32 %v1146, %v1192
      %v1215 = vsub.f32 %v1151, %v1194
      %v1216 = vsub.f32 %v1154, %v1196
      %v1217 = vsub.f32 %v1159, %v1198
      %v1218 = vsub.f32 %v1162, %v1200
      %v1219 = vsub.f32 %v1167, %v1202
      %v1220 = vsub.f32 %v1170, %v1204
      %v1221 = vmul.f32 %v1205, 1.442695
      %v1222 = vpow.pop %v1221
      %v1223 = vmul.f32 %v1206, 1.442695
      %v1224 = vpow.pop %v1223
      %v1225 = vmul.f32 %v1207, 1.442695
      %v1226 = vpow.pop %v1225
      %v1227 = vmul.f32 %v1208, 1.442695
      %v1228 = vpow.pop %v1227
      %v1229 = vmul.f32 %v1209, 1.442695
      %v1230 = vpow.pop %v1229
      %v1231 = vmul.f32 %v1210, 1.442695
      %v1232 = vpow.pop %v1231
      %v1233 = vmul.f32 %v1211, 1.442695
      %v1234 = vpow.pop %v1233
      %v1235 = vmul.f32 %v1212, 1.442695
      %v1236 = vpow.pop %v1235
      %v1237 = vmul.f32 %v1213, 1.442695
      %v1238 = vpow.pop %v1237
      %v1239 = vmul.f32 %v1214, 1.442695
      %v1240 = vpow.pop %v1239
      %v1241 = vmul.f32 %v1215, 1.442695
      %v1242 = vpow.pop %v1241
      %v1243 = vmul.f32 %v1216, 1.442695
      %v1244 = vpow.pop %v1243
      %v1245 = vmul.f32 %v1217, 1.442695
      %v1246 = vpow.pop %v1245
      %v1247 = vmul.f32 %v1218, 1.442695
      %v1248 = vpow.pop %v1247
      %v1249 = vmul.f32 %v1219, 1.442695
      %v1250 = vpow.pop %v1249
      %v1251 = vmul.f32 %v1220, 1.442695
      %v1252 = vpow.pop %v1251
      %1253 = vadd.xlane.f32.xlu0 %v1222
      %v1254 = vpop.xlane.xlu0 %1253
      %1255 = vadd.xlane.f32.xlu0 %v1224
      %v1256 = vpop.xlane.xlu0 %1255
      %1257 = vadd.xlane.f32.xlu0 %v1226
      %v1258 = vpop.xlane.xlu0 %1257
      %1259 = vadd.xlane.f32.xlu0 %v1228
      %v1260 = vpop.xlane.xlu0 %1259
      %1261 = vadd.xlane.f32.xlu0 %v1230
      %v1262 = vpop.xlane.xlu0 %1261
      %1263 = vadd.xlane.f32.xlu0 %v1232
      %v1264 = vpop.xlane.xlu0 %1263
      %1265 = vadd.xlane.f32.xlu0 %v1234
      %v1266 = vpop.xlane.xlu0 %1265
      %1267 = vadd.xlane.f32.xlu0 %v1236
      %v1268 = vpop.xlane.xlu0 %1267
      %1269 = vadd.xlane.f32.xlu0 %v1238
      %v1270 = vpop.xlane.xlu0 %1269
      %1271 = vadd.xlane.f32.xlu0 %v1240
      %v1272 = vpop.xlane.xlu0 %1271
      %1273 = vadd.xlane.f32.xlu0 %v1242
      %v1274 = vpop.xlane.xlu0 %1273
      %1275 = vadd.xlane.f32.xlu0 %v1244
      %v1276 = vpop.xlane.xlu0 %1275
      %1277 = vadd.xlane.f32.xlu0 %v1246
      %v1278 = vpop.xlane.xlu0 %1277
      %1279 = vadd.xlane.f32.xlu0 %v1248
      %v1280 = vpop.xlane.xlu0 %1279
      %1281 = vadd.xlane.f32.xlu0 %v1250
      %v1282 = vpop.xlane.xlu0 %1281
      %1283 = vadd.xlane.f32.xlu0 %v1252
      %v1284 = vpop.xlane.xlu0 %1283
      %v1285 = vrcp.pop %v1254
      %v1286 = vrcp.pop %v1256
      %v1287 = vrcp.pop %v1258
      %v1288 = vrcp.pop %v1260
      %v1289 = vrcp.pop %v1262
      %v1290 = vrcp.pop %v1264
      %v1291 = vrcp.pop %v1266
      %v1292 = vrcp.pop %v1268
      %v1293 = vrcp.pop %v1270
      %v1294 = vrcp.pop %v1272
      %v1295 = vrcp.pop %v1274
      %v1296 = vrcp.pop %v1276
      %v1297 = vrcp.pop %v1278
      %v1298 = vrcp.pop %v1280
      %v1299 = vrcp.pop %v1282
      %v1300 = vrcp.pop %v1284
      %v1301 = vmul.f32 %v1222, %v1285
      %v1302 = vmul.f32 %v1224, %v1286
      %v1303 = vmul.f32 %v1226, %v1287
      %v1304 = vmul.f32 %v1228, %v1288
      %v1305 = vmul.f32 %v1230, %v1289
      %v1306 = vmul.f32 %v1232, %v1290
      %v1307 = vmul.f32 %v1234, %v1291
      %v1308 = vmul.f32 %v1236, %v1292
      %v1309 = vmul.f32 %v1238, %v1293
      %v1310 = vmul.f32 %v1240, %v1294
      %v1311 = vmul.f32 %v1242, %v1295
      %v1312 = vmul.f32 %v1244, %v1296
      %v1313 = vmul.f32 %v1246, %v1297
      %v1314 = vmul.f32 %v1248, %v1298
      %v1315 = vmul.f32 %v1250, %v1299
      %v1316 = vmul.f32 %v1252, %v1300
      %v1317 = vpack.c.bf16 %v1302, %v1301
      %v1318 = vpack.c.bf16 %v1304, %v1303
      %v1319 = vpack.c.bf16 %v1306, %v1305
      %v1320 = vpack.c.bf16 %v1308, %v1307
      %v1321 = vpack.c.bf16 %v1310, %v1309
      %v1322 = vpack.c.bf16 %v1312, %v1311
      %v1323 = vpack.c.bf16 %v1314, %v1313
      %v1324 = vpack.c.bf16 %v1316, %v1315
      %1325 = vmatprep.subr.bf16.mxu0 0
      %1326 = vmatpush1.bf16.msra.mxu0 %v1013
      %1327 = vmatprep.subr.bf16.mxu0 0
      %1328 = vmatpush1.bf16.msra.mxu0 %v1014
      %1329 = vmatprep.subr.bf16.mxu0 0
      %1330 = vmatpush1.bf16.msra.mxu0 %v1015
      %1331 = vmatprep.subr.bf16.mxu0 0
      %1332 = vmatpush1.bf16.msra.mxu0 %v1016
      %1333 = vmatprep.subr.bf16.mxu0 0
      %1334 = vmatpush1.bf16.msra.mxu0 %v1017
      %1335 = vmatprep.subr.bf16.mxu0 0
      %1336 = vmatpush1.bf16.msra.mxu0 %v1018
      %1337 = vmatprep.subr.bf16.mxu0 0
      %1338 = vmatpush1.bf16.msra.mxu0 %v1019
      %1339 = vmatprep.subr.bf16.mxu0 0
      %1340 = vmatpush1.bf16.msra.mxu0 %v1020
      %1341 = vmatprep.subr.bf16.mxu0 0
      %1342 = vmatpush1.bf16.msra.mxu0 0
      %1343 = vmatprep.subr.bf16.mxu0 0
      %1344 = vmatpush1.bf16.msra.mxu0 0
      %1345 = vmatprep.subr.bf16.mxu0 0
      %1346 = vmatpush1.bf16.msra.mxu0 0
      %1347 = vmatprep.subr.bf16.mxu0 0
      %1348 = vmatpush1.bf16.msra.mxu0 0
      %1349 = vmatprep.subr.bf16.mxu0 0
      %1350 = vmatpush1.bf16.msra.mxu0 0
      %1351 = vmatprep.subr.bf16.mxu0 0
      %1352 = vmatpush1.bf16.msra.mxu0 0
      %1353 = vmatprep.subr.bf16.mxu0 0
      %1354 = vmatpush1.bf16.msra.mxu0 0
      %1355 = vmatprep.subr.bf16.mxu0 0
      %1356 = vmatpush1.bf16.msra.mxu0 0
      %1357 = vmatprep.mubr.bf16.mxu0 0
      %1358 = vmatmul.mubr.bf16.gmra.mrb[0].mxu0 %v1317
      %v1359 = vpop.f32.mrb[0].mxu0
      %v1360 = vadd.f32 0.0, %v1359
      %v1361 = vpop.f32.mrb[0].mxu0
      %v1362 = vpop.f32.mrb[0].mxu0
      %v1363 = vadd.f32 0.0, %v1362
      %v1364 = vpop.f32.mrb[0].mxu0
      %1365 = vmatprep.mubr.bf16.mxu0 0
      %1366 = vmatmul.mubr.bf16.gmra.mrb[0].mxu0 %v1318
      %v1367 = vpop.f32.mrb[0].mxu0
      %v1368 = vadd.f32 0.0, %v1367
      %v1369 = vpop.f32.mrb[0].mxu0
      %v1370 = vpop.f32.mrb[0].mxu0
      %v1371 = vadd.f32 0.0, %v1370
      %v1372 = vpop.f32.mrb[0].mxu0
      %1373 = vmatprep.mubr.bf16.mxu0 0
      %1374 = vmatmul.mubr.bf16.gmra.mrb[0].mxu0 %v1319
      %v1375 = vpop.f32.mrb[0].mxu0
      %v1376 = vadd.f32 0.0, %v1375
      %v1377 = vpop.f32.mrb[0].mxu0
      %v1378 = vpop.f32.mrb[0].mxu0
      %v1379 = vadd.f32 0.0, %v1378
      %v1380 = vpop.f32.mrb[0].mxu0
      %1381 = vmatprep.mubr.bf16.mxu0 0
      %1382 = vmatmul.mubr.bf16.gmra.mrb[0].mxu0 %v1320
      %v1383 = vpop.f32.mrb[0].mxu0
      %v1384 = vadd.f32 0.0, %v1383
      %v1385 = vpop.f32.mrb[0].mxu0
      %v1386 = vpop.f32.mrb[0].mxu0
      %v1387 = vadd.f32 0.0, %v1386
      %v1388 = vpop.f32.mrb[0].mxu0
      %1389 = vmatprep.mubr.bf16.mxu0 0
      %1390 = vmatmul.mubr.bf16.gmra.mrb[0].mxu0 %v1321
      %v1391 = vpop.f32.mrb[0].mxu0
      %v1392 = vadd.f32 0.0, %v1391
      %v1393 = vpop.f32.mrb[0].mxu0
      %v1394 = vpop.f32.mrb[0].mxu0
      %v1395 = vadd.f32 0.0, %v1394
      %v1396 = vpop.f32.mrb[0].mxu0
      %1397 = vmatprep.mubr.bf16.mxu0 0
      %1398 = vmatmul.mubr.bf16.gmra.mrb[0].mxu0 %v1322
      %v1399 = vpop.f32.mrb[0].mxu0
      %v1400 = vadd.f32 0.0, %v1399
      %v1401 = vpop.f32.mrb[0].mxu0
      %v1402 = vpop.f32.mrb[0].mxu0
      %v1403 = vadd.f32 0.0, %v1402
      %v1404 = vpop.f32.mrb[0].mxu0
      %1405 = vmatprep.mubr.bf16.mxu0 0
      %1406 = vmatmul.mubr.bf16.gmra.mrb[0].mxu0 %v1323
      %v1407 = vpop.f32.mrb[0].mxu0
      %v1408 = vadd.f32 0.0, %v1407
      %v1409 = vpop.f32.mrb[0].mxu0
      %v1410 = vpop.f32.mrb[0].mxu0
      %v1411 = vadd.f32 0.0, %v1410
      %v1412 = vpop.f32.mrb[0].mxu0
      %1413 = vmatprep.mubr.bf16.mxu0 0
      %1414 = vmatmul.mubr.bf16.gmra.mrb[0].mxu0 %v1324
      %v1415 = vpop.f32.mrb[0].mxu0
      %v1416 = vadd.f32 0.0, %v1415
      %v1417 = vpop.f32.mrb[0].mxu0
      %v1418 = vpop.f32.mrb[0].mxu0
      %v1419 = vadd.f32 0.0, %v1418
      %v1420 = vpop.f32.mrb[0].mxu0
      %1421 = vdwg.mxu0
      %v1422 = vpack.c.bf16 %v1363, %v1360
      %v1423 = vpack.c.bf16 %v1371, %v1368
      %v1424 = vpack.c.bf16 %v1379, %v1376
      %v1425 = vpack.c.bf16 %v1387, %v1384
      %v1426 = vpack.c.bf16 %v1395, %v1392
      %v1427 = vpack.c.bf16 %v1403, %v1400
      %v1428 = vpack.c.bf16 %v1411, %v1408
      %v1429 = vpack.c.bf16 %v1419, %v1416
      %1430 = vst.msk [vmem:[#allocation2] sm:$0xff] %vm1027, %v1422
      %1431 = vst.msk [vmem:[#allocation2 + $0x8] sm:$0xff] %vm1027, %v1423
      %1432 = vst.msk [vmem:[#allocation2 + $0x10] sm:$0xff] %vm1027, %v1424
      %1433 = vst.msk [vmem:[#allocation2 + $0x18] sm:$0xff] %vm1027, %v1425
      %1434 = vst.msk [vmem:[#allocation2 + $0x20] sm:$0xff] %vm1027, %v1426
      %1435 = vst.msk [vmem:[#allocation2 + $0x28] sm:$0xff] %vm1027, %v1427
      %1436 = vst.msk [vmem:[#allocation2 + $0x30] sm:$0xff] %vm1027, %v1428
      %1437 = vst.msk [vmem:[#allocation2 + $0x38] sm:$0xff] %vm1027, %v1429
      %1446 = vrot.lane.b32.xlu0 %v997, 120
      %v1447 = vpop.permute.xlu0 %1446
      %1448 = vrot.lane.b32.xlu0 %v998, 120
      %v1449 = vpop.permute.xlu0 %1448
      %1450 = vrot.lane.b32.xlu0 %v999, 120
      %v1451 = vpop.permute.xlu0 %1450
      %1452 = vrot.lane.b32.xlu0 %v1000, 120
      %v1453 = vpop.permute.xlu0 %1452
      %1454 = vrot.lane.b32.xlu0 %v1001, 120
      %v1455 = vpop.permute.xlu0 %1454
      %1456 = vrot.lane.b32.xlu0 %v1002, 120
      %v1457 = vpop.permute.xlu0 %1456
      %1458 = vrot.lane.b32.xlu0 %v1003, 120
      %v1459 = vpop.permute.xlu0 %1458
      %1460 = vrot.lane.b32.xlu0 %v1004, 120
      %v1461 = vpop.permute.xlu0 %1460
      %1470 = vrot.lane.b32.xlu0 %v1005, 120
      %v1471 = vpop.permute.xlu0 %1470
      %1472 = vrot.lane.b32.xlu0 %v1006, 120
      %v1473 = vpop.permute.xlu0 %1472
      %1474 = vrot.lane.b32.xlu0 %v1007, 120
      %v1475 = vpop.permute.xlu0 %1474
      %1476 = vrot.lane.b32.xlu0 %v1008, 120
      %v1477 = vpop.permute.xlu0 %1476
      %1478 = vrot.lane.b32.xlu0 %v1009, 120
      %v1479 = vpop.permute.xlu0 %1478
      %1480 = vrot.lane.b32.xlu0 %v1010, 120
      %v1481 = vpop.permute.xlu0 %1480
      %1482 = vrot.lane.b32.xlu0 %v1011, 120
      %v1483 = vpop.permute.xlu0 %1482
      %1484 = vrot.lane.b32.xlu0 %v1012, 120
      %v1485 = vpop.permute.xlu0 %1484
      %v1487 = vsel %vm1027, %v1447, 0
      %v1490 = vsel %vm1027, %v1449, 0
      %v1493 = vsel %vm1027, %v1451, 0
      %v1496 = vsel %vm1027, %v1453, 0
      %v1499 = vsel %vm1027, %v1455, 0
      %v1502 = vsel %vm1027, %v1457, 0
      %v1505 = vsel %vm1027, %v1459, 0
      %v1508 = vsel %vm1027, %v1461, 0
      %v1511 = vsel %vm1027, %v1471, 0
      %v1514 = vsel %vm1027, %v1473, 0
      %v1517 = vsel %vm1027, %v1475, 0
      %v1520 = vsel %vm1027, %v1477, 0
      %v1523 = vsel %vm1027, %v1479, 0
      %v1526 = vsel %vm1027, %v1481, 0
      %v1529 = vsel %vm1027, %v1483, 0
      %v1532 = vsel %vm1027, %v1485, 0
      %1534 = vmatprep.subr.bf16.mxu0 0
      %1535 = vmatpush1.bf16.xpose.msra.mxu0 %v1511
      %1536 = vmatprep.subr.bf16.mxu0 0
      %1537 = vmatpush1.bf16.xpose.msra.mxu0 %v1514
      %1538 = vmatprep.subr.bf16.mxu0 0
      %1539 = vmatpush1.bf16.xpose.msra.mxu0 %v1517
      %1540 = vmatprep.subr.bf16.mxu0 0
      %1541 = vmatpush1.bf16.xpose.msra.mxu0 %v1520
      %1542 = vmatprep.subr.bf16.mxu0 0
      %1543 = vmatpush1.bf16.xpose.msra.mxu0 %v1523
      %1544 = vmatprep.subr.bf16.mxu0 0
      %1545 = vmatpush1.bf16.xpose.msra.mxu0 %v1526
      %1546 = vmatprep.subr.bf16.mxu0 0
      %1547 = vmatpush1.bf16.xpose.msra.mxu0 %v1529
      %1548 = vmatprep.subr.bf16.mxu0 0
      %1549 = vmatpush1.bf16.xpose.msra.mxu0 %v1532
      %1550 = vmatprep.subr.bf16.mxu0 0
      %1551 = vmatpush1.bf16.xpose.msra.mxu0 0
      %1552 = vmatprep.subr.bf16.mxu0 0
      %1553 = vmatpush1.bf16.xpose.msra.mxu0 0
      %1554 = vmatprep.subr.bf16.mxu0 0
      %1555 = vmatpush1.bf16.xpose.msra.mxu0 0
      %1556 = vmatprep.subr.bf16.mxu0 0
      %1557 = vmatpush1.bf16.xpose.msra.mxu0 0
      %1558 = vmatprep.subr.bf16.mxu0 0
      %1559 = vmatpush1.bf16.xpose.msra.mxu0 0
      %1560 = vmatprep.subr.bf16.mxu0 0
      %1561 = vmatpush1.bf16.xpose.msra.mxu0 0
      %1562 = vmatprep.subr.bf16.mxu0 0
      %1563 = vmatpush1.bf16.xpose.msra.mxu0 0
      %1564 = vmatprep.subr.bf16.mxu0 0
      %1565 = vmatpush1.bf16.xpose.msra.mxu0 0
      %1566 = vmatprep.mubr.bf16.mxu0 0
      %1567 = vmatmul.mubr.bf16.gmra.mrb[0].mxu0 %v1487
      %v1568 = vpop.f32.mrb[0].mxu0
      %v1569 = vadd.f32 %v1025, %v1568
      %v1570 = vpop.f32.mrb[0].mxu0
      %v1571 = vpop.f32.mrb[0].mxu0
      %v1572 = vadd.f32 %v1025, %v1571
      %v1573 = vpop.f32.mrb[0].mxu0
      %1574 = vmatprep.mubr.bf16.mxu0 0
      %1575 = vmatmul.mubr.bf16.gmra.mrb[0].mxu0 %v1490
      %v1576 = vpop.f32.mrb[0].mxu0
      %v1577 = vadd.f32 %v1025, %v1576
      %v1578 = vpop.f32.mrb[0].mxu0
      %v1579 = vpop.f32.mrb[0].mxu0
      %v1580 = vadd.f32 %v1025, %v1579
      %v1581 = vpop.f32.mrb[0].mxu0
      %1582 = vmatprep.mubr.bf16.mxu0 0
      %1583 = vmatmul.mubr.bf16.gmra.mrb[0].mxu0 %v1493
      %v1584 = vpop.f32.mrb[0].mxu0
      %v1585 = vadd.f32 %v1025, %v1584
      %v1586 = vpop.f32.mrb[0].mxu0
      %v1587 = vpop.f32.mrb[0].mxu0
      %v1588 = vadd.f32 %v1025, %v1587
      %v1589 = vpop.f32.mrb[0].mxu0
      %1590 = vmatprep.mubr.bf16.mxu0 0
      %1591 = vmatmul.mubr.bf16.gmra.mrb[0].mxu0 %v1496
      %v1592 = vpop.f32.mrb[0].mxu0
      %v1593 = vadd.f32 %v1025, %v1592
      %v1594 = vpop.f32.mrb[0].mxu0
      %v1595 = vpop.f32.mrb[0].mxu0
      %v1596 = vadd.f32 %v1025, %v1595
      %v1597 = vpop.f32.mrb[0].mxu0
      %1598 = vmatprep.mubr.bf16.mxu0 0
      %1599 = vmatmul.mubr.bf16.gmra.mrb[0].mxu0 %v1499
      %v1600 = vpop.f32.mrb[0].mxu0
      %v1601 = vadd.f32 %v1025, %v1600
      %v1602 = vpop.f32.mrb[0].mxu0
      %v1603 = vpop.f32.mrb[0].mxu0
      %v1604 = vadd.f32 %v1025, %v1603
      %v1605 = vpop.f32.mrb[0].mxu0
      %1606 = vmatprep.mubr.bf16.mxu0 0
      %1607 = vmatmul.mubr.bf16.gmra.mrb[0].mxu0 %v1502
      %v1608 = vpop.f32.mrb[0].mxu0
      %v1609 = vadd.f32 %v1025, %v1608
      %v1610 = vpop.f32.mrb[0].mxu0
      %v1611 = vpop.f32.mrb[0].mxu0
      %v1612 = vadd.f32 %v1025, %v1611
      %v1613 = vpop.f32.mrb[0].mxu0
      %1614 = vmatprep.mubr.bf16.mxu0 0
      %1615 = vmatmul.mubr.bf16.gmra.mrb[0].mxu0 %v1505
      %v1616 = vpop.f32.mrb[0].mxu0
      %v1617 = vadd.f32 %v1025, %v1616
      %v1618 = vpop.f32.mrb[0].mxu0
      %v1619 = vpop.f32.mrb[0].mxu0
      %v1620 = vadd.f32 %v1025, %v1619
      %v1621 = vpop.f32.mrb[0].mxu0
      %1622 = vmatprep.mubr.bf16.mxu0 0
      %1623 = vmatmul.mubr.bf16.gmra.mrb[0].mxu0 %v1508
      %v1624 = vpop.f32.mrb[0].mxu0
      %v1625 = vadd.f32 %v1025, %v1624
      %v1626 = vpop.f32.mrb[0].mxu0
      %v1627 = vpop.f32.mrb[0].mxu0
      %v1628 = vadd.f32 %v1025, %v1627
      %v1629 = vpop.f32.mrb[0].mxu0
      %1630 = vdwg.mxu0
      %1631 = vmax.xlane.f32.xlu0 %v1569
      %v1632 = vpop.xlane.xlu0 %1631
      %1633 = vmax.xlane.f32.xlu0 %v1572
      %v1634 = vpop.xlane.xlu0 %1633
      %1635 = vmax.xlane.f32.xlu0 %v1577
      %v1636 = vpop.xlane.xlu0 %1635
      %1637 = vmax.xlane.f32.xlu0 %v1580
      %v1638 = vpop.xlane.xlu0 %1637
      %1639 = vmax.xlane.f32.xlu0 %v1585
      %v1640 = vpop.xlane.xlu0 %1639
      %1641 = vmax.xlane.f32.xlu0 %v1588
      %v1642 = vpop.xlane.xlu0 %1641
      %1643 = vmax.xlane.f32.xlu0 %v1593
      %v1644 = vpop.xlane.xlu0 %1643
      %1645 = vmax.xlane.f32.xlu0 %v1596
      %v1646 = vpop.xlane.xlu0 %1645
      %1647 = vmax.xlane.f32.xlu0 %v1601
      %v1648 = vpop.xlane.xlu0 %1647
      %1649 = vmax.xlane.f32.xlu0 %v1604
      %v1650 = vpop.xlane.xlu0 %1649
      %1651 = vmax.xlane.f32.xlu0 %v1609
      %v1652 = vpop.xlane.xlu0 %1651
      %1653 = vmax.xlane.f32.xlu0 %v1612
      %v1654 = vpop.xlane.xlu0 %1653
      %1655 = vmax.xlane.f32.xlu0 %v1617
      %v1656 = vpop.xlane.xlu0 %1655
      %1657 = vmax.xlane.f32.xlu0 %v1620
      %v1658 = vpop.xlane.xlu0 %1657
      %1659 = vmax.xlane.f32.xlu0 %v1625
      %v1660 = vpop.xlane.xlu0 %1659
      %1661 = vmax.xlane.f32.xlu0 %v1628
      %v1662 = vpop.xlane.xlu0 %1661
      %v1663 = vsub.f32 %v1569, %v1632
      %v1664 = vsub.f32 %v1572, %v1634
      %v1665 = vsub.f32 %v1577, %v1636
      %v1666 = vsub.f32 %v1580, %v1638
      %v1667 = vsub.f32 %v1585, %v1640
      %v1668 = vsub.f32 %v1588, %v1642
      %v1669 = vsub.f32 %v1593, %v1644
      %v1670 = vsub.f32 %v1596, %v1646
      %v1671 = vsub.f32 %v1601, %v1648
      %v1672 = vsub.f32 %v1604, %v1650
      %v1673 = vsub.f32 %v1609, %v1652
      %v1674 = vsub.f32 %v1612, %v1654
      %v1675 = vsub.f32 %v1617, %v1656
      %v1676 = vsub.f32 %v1620, %v1658
      %v1677 = vsub.f32 %v1625, %v1660
      %v1678 = vsub.f32 %v1628, %v1662
      %v1679 = vmul.f32 %v1663, 1.442695
      %v1680 = vpow.pop %v1679
      %v1681 = vmul.f32 %v1664, 1.442695
      %v1682 = vpow.pop %v1681
      %v1683 = vmul.f32 %v1665, 1.442695
      %v1684 = vpow.pop %v1683
      %v1685 = vmul.f32 %v1666, 1.442695
      %v1686 = vpow.pop %v1685
      %v1687 = vmul.f32 %v1667, 1.442695
      %v1688 = vpow.pop %v1687
      %v1689 = vmul.f32 %v1668, 1.442695
      %v1690 = vpow.pop %v1689
      %v1691 = vmul.f32 %v1669, 1.442695
      %v1692 = vpow.pop %v1691
      %v1693 = vmul.f32 %v1670, 1.442695
      %v1694 = vpow.pop %v1693
      %v1695 = vmul.f32 %v1671, 1.442695
      %v1696 = vpow.pop %v1695
      %v1697 = vmul.f32 %v1672, 1.442695
      %v1698 = vpow.pop %v1697
      %v1699 = vmul.f32 %v1673, 1.442695
      %v1700 = vpow.pop %v1699
      %v1701 = vmul.f32 %v1674, 1.442695
      %v1702 = vpow.pop %v1701
      %v1703 = vmul.f32 %v1675, 1.442695
      %v1704 = vpow.pop %v1703
      %v1705 = vmul.f32 %v1676, 1.442695
      %v1706 = vpow.pop %v1705
      %v1707 = vmul.f32 %v1677, 1.442695
      %v1708 = vpow.pop %v1707
      %v1709 = vmul.f32 %v1678, 1.442695
      %v1710 = vpow.pop %v1709
      %1711 = vadd.xlane.f32.xlu0 %v1680
      %v1712 = vpop.xlane.xlu0 %1711
      %1713 = vadd.xlane.f32.xlu0 %v1682
      %v1714 = vpop.xlane.xlu0 %1713
      %1715 = vadd.xlane.f32.xlu0 %v1684
      %v1716 = vpop.xlane.xlu0 %1715
      %1717 = vadd.xlane.f32.xlu0 %v1686
      %v1718 = vpop.xlane.xlu0 %1717
      %1719 = vadd.xlane.f32.xlu0 %v1688
      %v1720 = vpop.xlane.xlu0 %1719
      %1721 = vadd.xlane.f32.xlu0 %v1690
      %v1722 = vpop.xlane.xlu0 %1721
      %1723 = vadd.xlane.f32.xlu0 %v1692
      %v1724 = vpop.xlane.xlu0 %1723
      %1725 = vadd.xlane.f32.xlu0 %v1694
      %v1726 = vpop.xlane.xlu0 %1725
      %1727 = vadd.xlane.f32.xlu0 %v1696
      %v1728 = vpop.xlane.xlu0 %1727
      %1729 = vadd.xlane.f32.xlu0 %v1698
      %v1730 = vpop.xlane.xlu0 %1729
      %1731 = vadd.xlane.f32.xlu0 %v1700
      %v1732 = vpop.xlane.xlu0 %1731
      %1733 = vadd.xlane.f32.xlu0 %v1702
      %v1734 = vpop.xlane.xlu0 %1733
      %1735 = vadd.xlane.f32.xlu0 %v1704
      %v1736 = vpop.xlane.xlu0 %1735
      %1737 = vadd.xlane.f32.xlu0 %v1706
      %v1738 = vpop.xlane.xlu0 %1737
      %1739 = vadd.xlane.f32.xlu0 %v1708
      %v1740 = vpop.xlane.xlu0 %1739
      %1741 = vadd.xlane.f32.xlu0 %v1710
      %v1742 = vpop.xlane.xlu0 %1741
      %v1743 = vrcp.pop %v1712
      %v1744 = vrcp.pop %v1714
      %v1745 = vrcp.pop %v1716
      %v1746 = vrcp.pop %v1718
      %v1747 = vrcp.pop %v1720
      %v1748 = vrcp.pop %v1722
      %v1749 = vrcp.pop %v1724
      %v1750 = vrcp.pop %v1726
      %v1751 = vrcp.pop %v1728
      %v1752 = vrcp.pop %v1730
      %v1753 = vrcp.pop %v1732
      %v1754 = vrcp.pop %v1734
      %v1755 = vrcp.pop %v1736
      %v1756 = vrcp.pop %v1738
      %v1757 = vrcp.pop %v1740
      %v1758 = vrcp.pop %v1742
      %v1759 = vmul.f32 %v1680, %v1743
      %v1760 = vmul.f32 %v1682, %v1744
      %v1761 = vmul.f32 %v1684, %v1745
      %v1762 = vmul.f32 %v1686, %v1746
      %v1763 = vmul.f32 %v1688, %v1747
      %v1764 = vmul.f32 %v1690, %v1748
      %v1765 = vmul.f32 %v1692, %v1749
      %v1766 = vmul.f32 %v1694, %v1750
      %v1767 = vmul.f32 %v1696, %v1751
      %v1768 = vmul.f32 %v1698, %v1752
      %v1769 = vmul.f32 %v1700, %v1753
      %v1770 = vmul.f32 %v1702, %v1754
      %v1771 = vmul.f32 %v1704, %v1755
      %v1772 = vmul.f32 %v1706, %v1756
      %v1773 = vmul.f32 %v1708, %v1757
      %v1774 = vmul.f32 %v1710, %v1758
      %v1775 = vpack.c.bf16 %v1760, %v1759
      %v1776 = vpack.c.bf16 %v1762, %v1761
      %v1777 = vpack.c.bf16 %v1764, %v1763
      %v1778 = vpack.c.bf16 %v1766, %v1765
      %v1779 = vpack.c.bf16 %v1768, %v1767
      %v1780 = vpack.c.bf16 %v1770, %v1769
      %v1781 = vpack.c.bf16 %v1772, %v1771
      %v1782 = vpack.c.bf16 %v1774, %v1773
      %1791 = vrot.lane.b32.xlu0 %v1013, 120
      %v1792 = vpop.permute.xlu0 %1791
      %1793 = vrot.lane.b32.xlu0 %v1014, 120
      %v1794 = vpop.permute.xlu0 %1793
      %1795 = vrot.lane.b32.xlu0 %v1015, 120
      %v1796 = vpop.permute.xlu0 %1795
      %1797 = vrot.lane.b32.xlu0 %v1016, 120
      %v1798 = vpop.permute.xlu0 %1797
      %1799 = vrot.lane.b32.xlu0 %v1017, 120
      %v1800 = vpop.permute.xlu0 %1799
      %1801 = vrot.lane.b32.xlu0 %v1018, 120
      %v1802 = vpop.permute.xlu0 %1801
      %1803 = vrot.lane.b32.xlu0 %v1019, 120
      %v1804 = vpop.permute.xlu0 %1803
      %1805 = vrot.lane.b32.xlu0 %v1020, 120
      %v1806 = vpop.permute.xlu0 %1805
      %1815 = vmatprep.subr.bf16.mxu0 0
      %1816 = vmatpush1.bf16.msra.mxu0 %v1792
      %1817 = vmatprep.subr.bf16.mxu0 0
      %1818 = vmatpush1.bf16.msra.mxu0 %v1794
      %1819 = vmatprep.subr.bf16.mxu0 0
      %1820 = vmatpush1.bf16.msra.mxu0 %v1796
      %1821 = vmatprep.subr.bf16.mxu0 0
      %1822 = vmatpush1.bf16.msra.mxu0 %v1798
      %1823 = vmatprep.subr.bf16.mxu0 0
      %1824 = vmatpush1.bf16.msra.mxu0 %v1800
      %1825 = vmatprep.subr.bf16.mxu0 0
      %1826 = vmatpush1.bf16.msra.mxu0 %v1802
      %1827 = vmatprep.subr.bf16.mxu0 0
      %1828 = vmatpush1.bf16.msra.mxu0 %v1804
      %1829 = vmatprep.subr.bf16.mxu0 0
      %1830 = vmatpush1.bf16.msra.mxu0 %v1806
      %1831 = vmatprep.subr.bf16.mxu0 0
      %1832 = vmatpush1.bf16.msra.mxu0 0
      %1833 = vmatprep.subr.bf16.mxu0 0
      %1834 = vmatpush1.bf16.msra.mxu0 0
      %1835 = vmatprep.subr.bf16.mxu0 0
      %1836 = vmatpush1.bf16.msra.mxu0 0
      %1837 = vmatprep.subr.bf16.mxu0 0
      %1838 = vmatpush1.bf16.msra.mxu0 0
      %1839 = vmatprep.subr.bf16.mxu0 0
      %1840 = vmatpush1.bf16.msra.mxu0 0
      %1841 = vmatprep.subr.bf16.mxu0 0
      %1842 = vmatpush1.bf16.msra.mxu0 0
      %1843 = vmatprep.subr.bf16.mxu0 0
      %1844 = vmatpush1.bf16.msra.mxu0 0
      %1845 = vmatprep.subr.bf16.mxu0 0
      %1846 = vmatpush1.bf16.msra.mxu0 0
      %1847 = vmatprep.mubr.bf16.mxu0 0
      %1848 = vmatmul.mubr.bf16.gmra.mrb[0].mxu0 %v1775
      %v1849 = vpop.f32.mrb[0].mxu0
      %v1850 = vadd.f32 0.0, %v1849
      %v1851 = vpop.f32.mrb[0].mxu0
      %v1852 = vpop.f32.mrb[0].mxu0
      %v1853 = vadd.f32 0.0, %v1852
      %v1854 = vpop.f32.mrb[0].mxu0
      %1855 = vmatprep.mubr.bf16.mxu0 0
      %1856 = vmatmul.mubr.bf16.gmra.mrb[0].mxu0 %v1776
      %v1857 = vpop.f32.mrb[0].mxu0
      %v1858 = vadd.f32 0.0, %v1857
      %v1859 = vpop.f32.mrb[0].mxu0
      %v1860 = vpop.f32.mrb[0].mxu0
      %v1861 = vadd.f32 0.0, %v1860
      %v1862 = vpop.f32.mrb[0].mxu0
      %1863 = vmatprep.mubr.bf16.mxu0 0
      %1864 = vmatmul.mubr.bf16.gmra.mrb[0].mxu0 %v1777
      %v1865 = vpop.f32.mrb[0].mxu0
      %v1866 = vadd.f32 0.0, %v1865
      %v1867 = vpop.f32.mrb[0].mxu0
      %v1868 = vpop.f32.mrb[0].mxu0
      %v1869 = vadd.f32 0.0, %v1868
      %v1870 = vpop.f32.mrb[0].mxu0
      %1871 = vmatprep.mubr.bf16.mxu0 0
      %1872 = vmatmul.mubr.bf16.gmra.mrb[0].mxu0 %v1778
      %v1873 = vpop.f32.mrb[0].mxu0
      %v1874 = vadd.f32 0.0, %v1873
      %v1875 = vpop.f32.mrb[0].mxu0
      %v1876 = vpop.f32.mrb[0].mxu0
      %v1877 = vadd.f32 0.0, %v1876
      %v1878 = vpop.f32.mrb[0].mxu0
      %1879 = vmatprep.mubr.bf16.mxu0 0
      %1880 = vmatmul.mubr.bf16.gmra.mrb[0].mxu0 %v1779
      %v1881 = vpop.f32.mrb[0].mxu0
      %v1882 = vadd.f32 0.0, %v1881
      %v1883 = vpop.f32.mrb[0].mxu0
      %v1884 = vpop.f32.mrb[0].mxu0
      %v1885 = vadd.f32 0.0, %v1884
      %v1886 = vpop.f32.mrb[0].mxu0
      %1887 = vmatprep.mubr.bf16.mxu0 0
      %1888 = vmatmul.mubr.bf16.gmra.mrb[0].mxu0 %v1780
      %v1889 = vpop.f32.mrb[0].mxu0
      %v1890 = vadd.f32 0.0, %v1889
      %v1891 = vpop.f32.mrb[0].mxu0
      %v1892 = vpop.f32.mrb[0].mxu0
      %v1893 = vadd.f32 0.0, %v1892
      %v1894 = vpop.f32.mrb[0].mxu0
      %1895 = vmatprep.mubr.bf16.mxu0 0
      %1896 = vmatmul.mubr.bf16.gmra.mrb[0].mxu0 %v1781
      %v1897 = vpop.f32.mrb[0].mxu0
      %v1898 = vadd.f32 0.0, %v1897
      %v1899 = vpop.f32.mrb[0].mxu0
      %v1900 = vpop.f32.mrb[0].mxu0
      %v1901 = vadd.f32 0.0, %v1900
      %v1902 = vpop.f32.mrb[0].mxu0
      %1903 = vmatprep.mubr.bf16.mxu0 0
      %1904 = vmatmul.mubr.bf16.gmra.mrb[0].mxu0 %v1782
      %v1905 = vpop.f32.mrb[0].mxu0
      %v1906 = vadd.f32 0.0, %v1905
      %v1907 = vpop.f32.mrb[0].mxu0
      %v1908 = vpop.f32.mrb[0].mxu0
      %v1909 = vadd.f32 0.0, %v1908
      %v1910 = vpop.f32.mrb[0].mxu0
      %1911 = vdwg.mxu0
      %v1912 = vpack.c.bf16 %v1853, %v1850
      %v1913 = vpack.c.bf16 %v1861, %v1858
      %v1914 = vpack.c.bf16 %v1869, %v1866
      %v1915 = vpack.c.bf16 %v1877, %v1874
      %v1916 = vpack.c.bf16 %v1885, %v1882
      %v1917 = vpack.c.bf16 %v1893, %v1890
      %v1918 = vpack.c.bf16 %v1901, %v1898
      %v1919 = vpack.c.bf16 %v1909, %v1906
      %1928 = vrot.lane.b32.xlu0 %v1912, 8
      %v1929 = vpop.permute.xlu0 %1928
      %1930 = vrot.lane.b32.xlu0 %v1913, 8
      %v1931 = vpop.permute.xlu0 %1930
      %1932 = vrot.lane.b32.xlu0 %v1914, 8
      %v1933 = vpop.permute.xlu0 %1932
      %1934 = vrot.lane.b32.xlu0 %v1915, 8
      %v1935 = vpop.permute.xlu0 %1934
      %1936 = vrot.lane.b32.xlu0 %v1916, 8
      %v1937 = vpop.permute.xlu0 %1936
      %1938 = vrot.lane.b32.xlu0 %v1917, 8
      %v1939 = vpop.permute.xlu0 %1938
      %1940 = vrot.lane.b32.xlu0 %v1918, 8
      %v1941 = vpop.permute.xlu0 %1940
      %1942 = vrot.lane.b32.xlu0 %v1919, 8
      %v1943 = vpop.permute.xlu0 %1942
      %vm1952 = vcmask 130112
      %1953 = vst.msk [vmem:[#allocation2] sm:$0xff] %vm1952, %v1929
      %1954 = vst.msk [vmem:[#allocation2 + $0x8] sm:$0xff] %vm1952, %v1931
      %1955 = vst.msk [vmem:[#allocation2 + $0x10] sm:$0xff] %vm1952, %v1933
      %1956 = vst.msk [vmem:[#allocation2 + $0x18] sm:$0xff] %vm1952, %v1935
      %1957 = vst.msk [vmem:[#allocation2 + $0x20] sm:$0xff] %vm1952, %v1937
      %1958 = vst.msk [vmem:[#allocation2 + $0x28] sm:$0xff] %vm1952, %v1939
      %1959 = vst.msk [vmem:[#allocation2 + $0x30] sm:$0xff] %vm1952, %v1941
      %1960 = vst.msk [vmem:[#allocation2 + $0x38] sm:$0xff] %vm1952, %v1943
      %1961 = vrot.lane.b32.xlu0 %v997, 112
      %v1962 = vpop.permute.xlu0 %1961
      %1963 = vrot.lane.b32.xlu0 %v998, 112
      %v1964 = vpop.permute.xlu0 %1963
      %1965 = vrot.lane.b32.xlu0 %v999, 112
      %v1966 = vpop.permute.xlu0 %1965
      %1967 = vrot.lane.b32.xlu0 %v1000, 112
      %v1968 = vpop.permute.xlu0 %1967
      %1969 = vrot.lane.b32.xlu0 %v1001, 112
      %v1970 = vpop.permute.xlu0 %1969
      %1971 = vrot.lane.b32.xlu0 %v1002, 112
      %v1972 = vpop.permute.xlu0 %1971
      %1973 = vrot.lane.b32.xlu0 %v1003, 112
      %v1974 = vpop.permute.xlu0 %1973
      %1975 = vrot.lane.b32.xlu0 %v1004, 112
      %v1976 = vpop.permute.xlu0 %1975
      %1977 = vrot.lane.b32.xlu0 %v1005, 112
      %v1978 = vpop.permute.xlu0 %1977
      %1979 = vrot.lane.b32.xlu0 %v1006, 112
      %v1980 = vpop.permute.xlu0 %1979
      %1981 = vrot.lane.b32.xlu0 %v1007, 112
      %v1982 = vpop.permute.xlu0 %1981
      %1983 = vrot.lane.b32.xlu0 %v1008, 112
      %v1984 = vpop.permute.xlu0 %1983
      %1985 = vrot.lane.b32.xlu0 %v1009, 112
      %v1986 = vpop.permute.xlu0 %1985
      %1987 = vrot.lane.b32.xlu0 %v1010, 112
      %v1988 = vpop.permute.xlu0 %1987
      %1989 = vrot.lane.b32.xlu0 %v1011, 112
      %v1990 = vpop.permute.xlu0 %1989
      %1991 = vrot.lane.b32.xlu0 %v1012, 112
      %v1992 = vpop.permute.xlu0 %1991
      %v1994 = vsel %vm1027, %v1962, 0
      %v1997 = vsel %vm1027, %v1964, 0
      %v2000 = vsel %vm1027, %v1966, 0
      %v2003 = vsel %vm1027, %v1968, 0
      %v2006 = vsel %vm1027, %v1970, 0
      %v2009 = vsel %vm1027, %v1972, 0
      %v2012 = vsel %vm1027, %v1974, 0
      %v2015 = vsel %vm1027, %v1976, 0
      %v2018 = vsel %vm1027, %v1978, 0
      %v2021 = vsel %vm1027, %v1980, 0
      %v2024 = vsel %vm1027, %v1982, 0
      %v2027 = vsel %vm1027, %v1984, 0
      %v2030 = vsel %vm1027, %v1986, 0
      %v2033 = vsel %vm1027, %v1988, 0
      %v2036 = vsel %vm1027, %v1990, 0
      %v2039 = vsel %vm1027, %v1992, 0
      %2041 = vmatprep.subr.bf16.mxu0 0
      %2042 = vmatpush1.bf16.xpose.msra.mxu0 %v2018
      %2043 = vmatprep.subr.bf16.mxu0 0
      %2044 = vmatpush1.bf16.xpose.msra.mxu0 %v2021
      %2045 = vmatprep.subr.bf16.mxu0 0
      %2046 = vmatpush1.bf16.xpose.msra.mxu0 %v2024
      %2047 = vmatprep.subr.bf16.mxu0 0
      %2048 = vmatpush1.bf16.xpose.msra.mxu0 %v2027
      %2049 = vmatprep.subr.bf16.mxu0 0
      %2050 = vmatpush1.bf16.xpose.msra.mxu0 %v2030
      %2051 = vmatprep.subr.bf16.mxu0 0
      %2052 = vmatpush1.bf16.xpose.msra.mxu0 %v2033
      %2053 = vmatprep.subr.bf16.mxu0 0
      %2054 = vmatpush1.bf16.xpose.msra.mxu0 %v2036
      %2055 = vmatprep.subr.bf16.mxu0 0
      %2056 = vmatpush1.bf16.xpose.msra.mxu0 %v2039
      %2057 = vmatprep.subr.bf16.mxu0 0
      %2058 = vmatpush1.bf16.xpose.msra.mxu0 0
      %2059 = vmatprep.subr.bf16.mxu0 0
      %2060 = vmatpush1.bf16.xpose.msra.mxu0 0
      %2061 = vmatprep.subr.bf16.mxu0 0
      %2062 = vmatpush1.bf16.xpose.msra.mxu0 0
      %2063 = vmatprep.subr.bf16.mxu0 0
      %2064 = vmatpush1.bf16.xpose.msra.mxu0 0
      %2065 = vmatprep.subr.bf16.mxu0 0
      %2066 = vmatpush1.bf16.xpose.msra.mxu0 0
      %2067 = vmatprep.subr.bf16.mxu0 0
      %2068 = vmatpush1.bf16.xpose.msra.mxu0 0
      %2069 = vmatprep.subr.bf16.mxu0 0
      %2070 = vmatpush1.bf16.xpose.msra.mxu0 0
      %2071 = vmatprep.subr.bf16.mxu0 0
      %2072 = vmatpush1.bf16.xpose.msra.mxu0 0
      %2073 = vmatprep.mubr.bf16.mxu0 0
      %2074 = vmatmul.mubr.bf16.gmra.mrb[0].mxu0 %v1994
      %v2075 = vpop.f32.mrb[0].mxu0
      %v2076 = vadd.f32 %v1025, %v2075
      %v2077 = vpop.f32.mrb[0].mxu0
      %v2078 = vpop.f32.mrb[0].mxu0
      %v2079 = vadd.f32 %v1025, %v2078
      %v2080 = vpop.f32.mrb[0].mxu0
      %2081 = vmatprep.mubr.bf16.mxu0 0
      %2082 = vmatmul.mubr.bf16.gmra.mrb[0].mxu0 %v1997
      %v2083 = vpop.f32.mrb[0].mxu0
      %v2084 = vadd.f32 %v1025, %v2083
      %v2085 = vpop.f32.mrb[0].mxu0
      %v2086 = vpop.f32.mrb[0].mxu0
      %v2087 = vadd.f32 %v1025, %v2086
      %v2088 = vpop.f32.mrb[0].mxu0
      %2089 = vmatprep.mubr.bf16.mxu0 0
      %2090 = vmatmul.mubr.bf16.gmra.mrb[0].mxu0 %v2000
      %v2091 = vpop.f32.mrb[0].mxu0
      %v2092 = vadd.f32 %v1025, %v2091
      %v2093 = vpop.f32.mrb[0].mxu0
      %v2094 = vpop.f32.mrb[0].mxu0
      %v2095 = vadd.f32 %v1025, %v2094
      %v2096 = vpop.f32.mrb[0].mxu0
      %2097 = vmatprep.mubr.bf16.mxu0 0
      %2098 = vmatmul.mubr.bf16.gmra.mrb[0].mxu0 %v2003
      %v2099 = vpop.f32.mrb[0].mxu0
      %v2100 = vadd.f32 %v1025, %v2099
      %v2101 = vpop.f32.mrb[0].mxu0
      %v2102 = vpop.f32.mrb[0].mxu0
      %v2103 = vadd.f32 %v1025, %v2102
      %v2104 = vpop.f32.mrb[0].mxu0
      %2105 = vmatprep.mubr.bf16.mxu0 0
      %2106 = vmatmul.mubr.bf16.gmra.mrb[0].mxu0 %v2006
      %v2107 = vpop.f32.mrb[0].mxu0
      %v2108 = vadd.f32 %v1025, %v2107
      %v2109 = vpop.f32.mrb[0].mxu0
      %v2110 = vpop.f32.mrb[0].mxu0
      %v2111 = vadd.f32 %v1025, %v2110
      %v2112 = vpop.f32.mrb[0].mxu0
      %2113 = vmatprep.mubr.bf16.mxu0 0
      %2114 = vmatmul.mubr.bf16.gmra.mrb[0].mxu0 %v2009
      %v2115 = vpop.f32.mrb[0].mxu0
      %v2116 = vadd.f32 %v1025, %v2115
      %v2117 = vpop.f32.mrb[0].mxu0
      %v2118 = vpop.f32.mrb[0].mxu0
      %v2119 = vadd.f32 %v1025, %v2118
      %v2120 = vpop.f32.mrb[0].mxu0
      %2121 = vmatprep.mubr.bf16.mxu0 0
      %2122 = vmatmul.mubr.bf16.gmra.mrb[0].mxu0 %v2012
      %v2123 = vpop.f32.mrb[0].mxu0
      %v2124 = vadd.f32 %v1025, %v2123
      %v2125 = vpop.f32.mrb[0].mxu0
      %v2126 = vpop.f32.mrb[0].mxu0
      %v2127 = vadd.f32 %v1025, %v2126
      %v2128 = vpop.f32.mrb[0].mxu0
      %2129 = vmatprep.mubr.bf16.mxu0 0
      %2130 = vmatmul.mubr.bf16.gmra.mrb[0].mxu0 %v2015
      %v2131 = vpop.f32.mrb[0].mxu0
      %v2132 = vadd.f32 %v1025, %v2131
      %v2133 = vpop.f32.mrb[0].mxu0
      %v2134 = vpop.f32.mrb[0].mxu0
      %v2135 = vadd.f32 %v1025, %v2134
      %v2136 = vpop.f32.mrb[0].mxu0
      %2137 = vdwg.mxu0
      %2138 = vmax.xlane.f32.xlu0 %v2076
      %v2139 = vpop.xlane.xlu0 %2138
      %2140 = vmax.xlane.f32.xlu0 %v2079
      %v2141 = vpop.xlane.xlu0 %2140
      %2142 = vmax.xlane.f32.xlu0 %v2084
      %v2143 = vpop.xlane.xlu0 %2142
      %2144 = vmax.xlane.f32.xlu0 %v2087
      %v2145 = vpop.xlane.xlu0 %2144
      %2146 = vmax.xlane.f32.xlu0 %v2092
      %v2147 = vpop.xlane.xlu0 %2146
      %2148 = vmax.xlane.f32.xlu0 %v2095
      %v2149 = vpop.xlane.xlu0 %2148
      %2150 = vmax.xlane.f32.xlu0 %v2100
      %v2151 = vpop.xlane.xlu0 %2150
      %2152 = vmax.xlane.f32.xlu0 %v2103
      %v2153 = vpop.xlane.xlu0 %2152
      %2154 = vmax.xlane.f32.xlu0 %v2108
      %v2155 = vpop.xlane.xlu0 %2154
      %2156 = vmax.xlane.f32.xlu0 %v2111
      %v2157 = vpop.xlane.xlu0 %2156
      %2158 = vmax.xlane.f32.xlu0 %v2116
      %v2159 = vpop.xlane.xlu0 %2158
      %2160 = vmax.xlane.f32.xlu0 %v2119
      %v2161 = vpop.xlane.xlu0 %2160
      %2162 = vmax.xlane.f32.xlu0 %v2124
      %v2163 = vpop.xlane.xlu0 %2162
      %2164 = vmax.xlane.f32.xlu0 %v2127
      %v2165 = vpop.xlane.xlu0 %2164
      %2166 = vmax.xlane.f32.xlu0 %v2132
      %v2167 = vpop.xlane.xlu0 %2166
      %2168 = vmax.xlane.f32.xlu0 %v2135
      %v2169 = vpop.xlane.xlu0 %2168
      %v2170 = vsub.f32 %v2076, %v2139
      %v2171 = vsub.f32 %v2079, %v2141
      %v2172 = vsub.f32 %v2084, %v2143
      %v2173 = vsub.f32 %v2087, %v2145
      %v2174 = vsub.f32 %v2092, %v2147
      %v2175 = vsub.f32 %v2095, %v2149
      %v2176 = vsub.f32 %v2100, %v2151
      %v2177 = vsub.f32 %v2103, %v2153
      %v2178 = vsub.f32 %v2108, %v2155
      %v2179 = vsub.f32 %v2111, %v2157
      %v2180 = vsub.f32 %v2116, %v2159
      %v2181 = vsub.f32 %v2119, %v2161
      %v2182 = vsub.f32 %v2124, %v2163
      %v2183 = vsub.f32 %v2127, %v2165
      %v2184 = vsub.f32 %v2132, %v2167
      %v2185 = vsub.f32 %v2135, %v2169
      %v2186 = vmul.f32 %v2170, 1.442695
      %v2187 = vpow.pop %v2186
      %v2188 = vmul.f32 %v2171, 1.442695
      %v2189 = vpow.pop %v2188
      %v2190 = vmul.f32 %v2172, 1.442695
      %v2191 = vpow.pop %v2190
      %v2192 = vmul.f32 %v2173, 1.442695
      %v2193 = vpow.pop %v2192
      %v2194 = vmul.f32 %v2174, 1.442695
      %v2195 = vpow.pop %v2194
      %v2196 = vmul.f32 %v2175, 1.442695
      %v2197 = vpow.pop %v2196
      %v2198 = vmul.f32 %v2176, 1.442695
      %v2199 = vpow.pop %v2198
      %v2200 = vmul.f32 %v2177, 1.442695
      %v2201 = vpow.pop %v2200
      %v2202 = vmul.f32 %v2178, 1.442695
      %v2203 = vpow.pop %v2202
      %v2204 = vmul.f32 %v2179, 1.442695
      %v2205 = vpow.pop %v2204
      %v2206 = vmul.f32 %v2180, 1.442695
      %v2207 = vpow.pop %v2206
      %v2208 = vmul.f32 %v2181, 1.442695
      %v2209 = vpow.pop %v2208
      %v2210 = vmul.f32 %v2182, 1.442695
      %v2211 = vpow.pop %v2210
      %v2212 = vmul.f32 %v2183, 1.442695
      %v2213 = vpow.pop %v2212
      %v2214 = vmul.f32 %v2184, 1.442695
      %v2215 = vpow.pop %v2214
      %v2216 = vmul.f32 %v2185, 1.442695
      %v2217 = vpow.pop %v2216
      %2218 = vadd.xlane.f32.xlu0 %v2187
      %v2219 = vpop.xlane.xlu0 %2218
      %2220 = vadd.xlane.f32.xlu0 %v2189
      %v2221 = vpop.xlane.xlu0 %2220
      %2222 = vadd.xlane.f32.xlu0 %v2191
      %v2223 = vpop.xlane.xlu0 %2222
      %2224 = vadd.xlane.f32.xlu0 %v2193
      %v2225 = vpop.xlane.xlu0 %2224
      %2226 = vadd.xlane.f32.xlu0 %v2195
      %v2227 = vpop.xlane.xlu0 %2226
      %2228 = vadd.xlane.f32.xlu0 %v2197
      %v2229 = vpop.xlane.xlu0 %2228
      %2230 = vadd.xlane.f32.xlu0 %v2199
      %v2231 = vpop.xlane.xlu0 %2230
      %2232 = vadd.xlane.f32.xlu0 %v2201
      %v2233 = vpop.xlane.xlu0 %2232
      %2234 = vadd.xlane.f32.xlu0 %v2203
      %v2235 = vpop.xlane.xlu0 %2234
      %2236 = vadd.xlane.f32.xlu0 %v2205
      %v2237 = vpop.xlane.xlu0 %2236
      %2238 = vadd.xlane.f32.xlu0 %v2207
      %v2239 = vpop.xlane.xlu0 %2238
      %2240 = vadd.xlane.f32.xlu0 %v2209
      %v2241 = vpop.xlane.xlu0 %2240
      %2242 = vadd.xlane.f32.xlu0 %v2211
      %v2243 = vpop.xlane.xlu0 %2242
      %2244 = vadd.xlane.f32.xlu0 %v2213
      %v2245 = vpop.xlane.xlu0 %2244
      %2246 = vadd.xlane.f32.xlu0 %v2215
      %v2247 = vpop.xlane.xlu0 %2246
      %2248 = vadd.xlane.f32.xlu0 %v2217
      %v2249 = vpop.xlane.xlu0 %2248
      %v2250 = vrcp.pop %v2219
      %v2251 = vrcp.pop %v2221
      %v2252 = vrcp.pop %v2223
      %v2253 = vrcp.pop %v2225
      %v2254 = vrcp.pop %v2227
      %v2255 = vrcp.pop %v2229
      %v2256 = vrcp.pop %v2231
      %v2257 = vrcp.pop %v2233
      %v2258 = vrcp.pop %v2235
      %v2259 = vrcp.pop %v2237
      %v2260 = vrcp.pop %v2239
      %v2261 = vrcp.pop %v2241
      %v2262 = vrcp.pop %v2243
      %v2263 = vrcp.pop %v2245
      %v2264 = vrcp.pop %v2247
      %v2265 = vrcp.pop %v2249
      %v2266 = vmul.f32 %v2187, %v2250
      %v2267 = vmul.f32 %v2189, %v2251
      %v2268 = vmul.f32 %v2191, %v2252
      %v2269 = vmul.f32 %v2193, %v2253
      %v2270 = vmul.f32 %v2195, %v2254
      %v2271 = vmul.f32 %v2197, %v2255
      %v2272 = vmul.f32 %v2199, %v2256
      %v2273 = vmul.f32 %v2201, %v2257
      %v2274 = vmul.f32 %v2203, %v2258
      %v2275 = vmul.f32 %v2205, %v2259
      %v2276 = vmul.f32 %v2207, %v2260
      %v2277 = vmul.f32 %v2209, %v2261
      %v2278 = vmul.f32 %v2211, %v2262
      %v2279 = vmul.f32 %v2213, %v2263
      %v2280 = vmul.f32 %v2215, %v2264
      %v2281 = vmul.f32 %v2217, %v2265
      %v2282 = vpack.c.bf16 %v2267, %v2266
      %v2283 = vpack.c.bf16 %v2269, %v2268
      %v2284 = vpack.c.bf16 %v2271, %v2270
      %v2285 = vpack.c.bf16 %v2273, %v2272
      %v2286 = vpack.c.bf16 %v2275, %v2274
      %v2287 = vpack.c.bf16 %v2277, %v2276
      %v2288 = vpack.c.bf16 %v2279, %v2278
      %v2289 = vpack.c.bf16 %v2281, %v2280
      %2290 = vrot.lane.b32.xlu0 %v1013, 112
      %v2291 = vpop.permute.xlu0 %2290
      %2292 = vrot.lane.b32.xlu0 %v1014, 112
      %v2293 = vpop.permute.xlu0 %2292
      %2294 = vrot.lane.b32.xlu0 %v1015, 112
      %v2295 = vpop.permute.xlu0 %2294
      %2296 = vrot.lane.b32.xlu0 %v1016, 112
      %v2297 = vpop.permute.xlu0 %2296
      %2298 = vrot.lane.b32.xlu0 %v1017, 112
      %v2299 = vpop.permute.xlu0 %2298
      %2300 = vrot.lane.b32.xlu0 %v1018, 112
      %v2301 = vpop.permute.xlu0 %2300
      %2302 = vrot.lane.b32.xlu0 %v1019, 112
      %v2303 = vpop.permute.xlu0 %2302
      %2304 = vrot.lane.b32.xlu0 %v1020, 112
      %v2305 = vpop.permute.xlu0 %2304
      %2314 = vmatprep.subr.bf16.mxu0 0
      %2315 = vmatpush1.bf16.msra.mxu0 %v2291
      %2316 = vmatprep.subr.bf16.mxu0 0
      %2317 = vmatpush1.bf16.msra.mxu0 %v2293
      %2318 = vmatprep.subr.bf16.mxu0 0
      %2319 = vmatpush1.bf16.msra.mxu0 %v2295
      %2320 = vmatprep.subr.bf16.mxu0 0
      %2321 = vmatpush1.bf16.msra.mxu0 %v2297
      %2322 = vmatprep.subr.bf16.mxu0 0
      %2323 = vmatpush1.bf16.msra.mxu0 %v2299
      %2324 = vmatprep.subr.bf16.mxu0 0
      %2325 = vmatpush1.bf16.msra.mxu0 %v2301
      %2326 = vmatprep.subr.bf16.mxu0 0
      %2327 = vmatpush1.bf16.msra.mxu0 %v2303
      %2328 = vmatprep.subr.bf16.mxu0 0
      %2329 = vmatpush1.bf16.msra.mxu0 %v2305
      %2330 = vmatprep.subr.bf16.mxu0 0
      %2331 = vmatpush1.bf16.msra.mxu0 0
      %2332 = vmatprep.subr.bf16.mxu0 0
      %2333 = vmatpush1.bf16.msra.mxu0 0
      %2334 = vmatprep.subr.bf16.mxu0 0
      %2335 = vmatpush1.bf16.msra.mxu0 0
      %2336 = vmatprep.subr.bf16.mxu0 0
      %2337 = vmatpush1.bf16.msra.mxu0 0
      %2338 = vmatprep.subr.bf16.mxu0 0
      %2339 = vmatpush1.bf16.msra.mxu0 0
      %2340 = vmatprep.subr.bf16.mxu0 0
      %2341 = vmatpush1.bf16.msra.mxu0 0
      %2342 = vmatprep.subr.bf16.mxu0 0
      %2343 = vmatpush1.bf16.msra.mxu0 0
      %2344 = vmatprep.subr.bf16.mxu0 0
      %2345 = vmatpush1.bf16.msra.mxu0 0
      %2346 = vmatprep.mubr.bf16.mxu0 0
      %2347 = vmatmul.mubr.bf16.gmra.mrb[0].mxu0 %v2282
      %v2348 = vpop.f32.mrb[0].mxu0
      %v2349 = vadd.f32 0.0, %v2348
      %v2350 = vpop.f32.mrb[0].mxu0
      %v2351 = vpop.f32.mrb[0].mxu0
      %v2352 = vadd.f32 0.0, %v2351
      %v2353 = vpop.f32.mrb[0].mxu0
      %2354 = vmatprep.mubr.bf16.mxu0 0
      %2355 = vmatmul.mubr.bf16.gmra.mrb[0].mxu0 %v2283
      %v2356 = vpop.f32.mrb[0].mxu0
      %v2357 = vadd.f32 0.0, %v2356
      %v2358 = vpop.f32.mrb[0].mxu0
      %v2359 = vpop.f32.mrb[0].mxu0
      %v2360 = vadd.f32 0.0, %v2359
      %v2361 = vpop.f32.mrb[0].mxu0
      %2362 = vmatprep.mubr.bf16.mxu0 0
      %2363 = vmatmul.mubr.bf16.gmra.mrb[0].mxu0 %v2284
      %v2364 = vpop.f32.mrb[0].mxu0
      %v2365 = vadd.f32 0.0, %v2364
      %v2366 = vpop.f32.mrb[0].mxu0
      %v2367 = vpop.f32.mrb[0].mxu0
      %v2368 = vadd.f32 0.0, %v2367
      %v2369 = vpop.f32.mrb[0].mxu0
      %2370 = vmatprep.mubr.bf16.mxu0 0
      %2371 = vmatmul.mubr.bf16.gmra.mrb[0].mxu0 %v2285
      %v2372 = vpop.f32.mrb[0].mxu0
      %v2373 = vadd.f32 0.0, %v2372
      %v2374 = vpop.f32.mrb[0].mxu0
      %v2375 = vpop.f32.mrb[0].mxu0
      %v2376 = vadd.f32 0.0, %v2375
      %v2377 = vpop.f32.mrb[0].mxu0
      %2378 = vmatprep.mubr.bf16.mxu0 0
      %2379 = vmatmul.mubr.bf16.gmra.mrb[0].mxu0 %v2286
      %v2380 = vpop.f32.mrb[0].mxu0
      %v2381 = vadd.f32 0.0, %v2380
      %v2382 = vpop.f32.mrb[0].mxu0
      %v2383 = vpop.f32.mrb[0].mxu0
      %v2384 = vadd.f32 0.0, %v2383
      %v2385 = vpop.f32.mrb[0].mxu0
      %2386 = vmatprep.mubr.bf16.mxu0 0
      %2387 = vmatmul.mubr.bf16.gmra.mrb[0].mxu0 %v2287
      %v2388 = vpop.f32.mrb[0].mxu0
      %v2389 = vadd.f32 0.0, %v2388
      %v2390 = vpop.f32.mrb[0].mxu0
      %v2391 = vpop.f32.mrb[0].mxu0
      %v2392 = vadd.f32 0.0, %v2391
      %v2393 = vpop.f32.mrb[0].mxu0
      %2394 = vmatprep.mubr.bf16.mxu0 0
      %2395 = vmatmul.mubr.bf16.gmra.mrb[0].mxu0 %v2288
      %v2396 = vpop.f32.mrb[0].mxu0
      %v2397 = vadd.f32 0.0, %v2396
      %v2398 = vpop.f32.mrb[0].mxu0
      %v2399 = vpop.f32.mrb[0].mxu0
      %v2400 = vadd.f32 0.0, %v2399
      %v2401 = vpop.f32.mrb[0].mxu0
      %2402 = vmatprep.mubr.bf16.mxu0 0
      %2403 = vmatmul.mubr.bf16.gmra.mrb[0].mxu0 %v2289
      %v2404 = vpop.f32.mrb[0].mxu0
      %v2405 = vadd.f32 0.0, %v2404
      %v2406 = vpop.f32.mrb[0].mxu0
      %v2407 = vpop.f32.mrb[0].mxu0
      %v2408 = vadd.f32 0.0, %v2407
      %v2409 = vpop.f32.mrb[0].mxu0
      %2410 = vdwg.mxu0
      %v2411 = vpack.c.bf16 %v2352, %v2349
      %v2412 = vpack.c.bf16 %v2360, %v2357
      %v2413 = vpack.c.bf16 %v2368, %v2365
      %v2414 = vpack.c.bf16 %v2376, %v2373
      %v2415 = vpack.c.bf16 %v2384, %v2381
      %v2416 = vpack.c.bf16 %v2392, %v2389
      %v2417 = vpack.c.bf16 %v2400, %v2397
      %v2418 = vpack.c.bf16 %v2408, %v2405
      %2427 = vrot.lane.b32.xlu0 %v2411, 16
      %v2428 = vpop.permute.xlu0 %2427
      %2429 = vrot.lane.b32.xlu0 %v2412, 16
      %v2430 = vpop.permute.xlu0 %2429
      %2431 = vrot.lane.b32.xlu0 %v2413, 16
      %v2432 = vpop.permute.xlu0 %2431
      %2433 = vrot.lane.b32.xlu0 %v2414, 16
      %v2434 = vpop.permute.xlu0 %2433
      %2435 = vrot.lane.b32.xlu0 %v2415, 16
      %v2436 = vpop.permute.xlu0 %2435
      %2437 = vrot.lane.b32.xlu0 %v2416, 16
      %v2438 = vpop.permute.xlu0 %2437
      %2439 = vrot.lane.b32.xlu0 %v2417, 16
      %v2440 = vpop.permute.xlu0 %2439
      %2441 = vrot.lane.b32.xlu0 %v2418, 16
      %v2442 = vpop.permute.xlu0 %2441
      %vm2451 = vcmask 195712
      %2452 = vst.msk [vmem:[#allocation2] sm:$0xff] %vm2451, %v2428
      %2453 = vst.msk [vmem:[#allocation2 + $0x8] sm:$0xff] %vm2451, %v2430
      %2454 = vst.msk [vmem:[#allocation2 + $0x10] sm:$0xff] %vm2451, %v2432
      %2455 = vst.msk [vmem:[#allocation2 + $0x18] sm:$0xff] %vm2451, %v2434
      %2456 = vst.msk [vmem:[#allocation2 + $0x20] sm:$0xff] %vm2451, %v2436
      %2457 = vst.msk [vmem:[#allocation2 + $0x28] sm:$0xff] %vm2451, %v2438
      %2458 = vst.msk [vmem:[#allocation2 + $0x30] sm:$0xff] %vm2451, %v2440
      %2459 = vst.msk [vmem:[#allocation2 + $0x38] sm:$0xff] %vm2451, %v2442
      %2460 = vrot.lane.b32.xlu0 %v997, 104
      %v2461 = vpop.permute.xlu0 %2460
      %2462 = vrot.lane.b32.xlu0 %v998, 104
      %v2463 = vpop.permute.xlu0 %2462
      %2464 = vrot.lane.b32.xlu0 %v999, 104
      %v2465 = vpop.permute.xlu0 %2464
      %2466 = vrot.lane.b32.xlu0 %v1000, 104
      %v2467 = vpop.permute.xlu0 %2466
      %2468 = vrot.lane.b32.xlu0 %v1001, 104
      %v2469 = vpop.permute.xlu0 %2468
      %2470 = vrot.lane.b32.xlu0 %v1002, 104
      %v2471 = vpop.permute.xlu0 %2470
      %2472 = vrot.lane.b32.xlu0 %v1003, 104
      %v2473 = vpop.permute.xlu0 %2472
      %2474 = vrot.lane.b32.xlu0 %v1004, 104
      %v2475 = vpop.permute.xlu0 %2474
      %2476 = vrot.lane.b32.xlu0 %v1005, 104
      %v2477 = vpop.permute.xlu0 %2476
      %2478 = vrot.lane.b32.xlu0 %v1006, 104
      %v2479 = vpop.permute.xlu0 %2478
      %2480 = vrot.lane.b32.xlu0 %v1007, 104
      %v2481 = vpop.permute.xlu0 %2480
      %2482 = vrot.lane.b32.xlu0 %v1008, 104
      %v2483 = vpop.permute.xlu0 %2482
      %2484 = vrot.lane.b32.xlu0 %v1009, 104
      %v2485 = vpop.permute.xlu0 %2484
      %2486 = vrot.lane.b32.xlu0 %v1010, 104
      %v2487 = vpop.permute.xlu0 %2486
      %2488 = vrot.lane.b32.xlu0 %v1011, 104
      %v2489 = vpop.permute.xlu0 %2488
      %2490 = vrot.lane.b32.xlu0 %v1012, 104
      %v2491 = vpop.permute.xlu0 %2490
      %v2493 = vsel %vm1027, %v2461, 0
      %v2496 = vsel %vm1027, %v2463, 0
      %v2499 = vsel %vm1027, %v2465, 0
      %v2502 = vsel %vm1027, %v2467, 0
      %v2505 = vsel %vm1027, %v2469, 0
      %v2508 = vsel %vm1027, %v2471, 0
      %v2511 = vsel %vm1027, %v2473, 0
      %v2514 = vsel %vm1027, %v2475, 0
      %v2517 = vsel %vm1027, %v2477, 0
      %v2520 = vsel %vm1027, %v2479, 0
      %v2523 = vsel %vm1027, %v2481, 0
      %v2526 = vsel %vm1027, %v2483, 0
      %v2529 = vsel %vm1027, %v2485, 0
      %v2532 = vsel %vm1027, %v2487, 0
      %v2535 = vsel %vm1027, %v2489, 0
      %v2538 = vsel %vm1027, %v2491, 0
      %2540 = vmatprep.subr.bf16.mxu0 0
      %2541 = vmatpush1.bf16.xpose.msra.mxu0 %v2517
      %2542 = vmatprep.subr.bf16.mxu0 0
      %2543 = vmatpush1.bf16.xpose.msra.mxu0 %v2520
      %2544 = vmatprep.subr.bf16.mxu0 0
      %2545 = vmatpush1.bf16.xpose.msra.mxu0 %v2523
      %2546 = vmatprep.subr.bf16.mxu0 0
      %2547 = vmatpush1.bf16.xpose.msra.mxu0 %v2526
      %2548 = vmatprep.subr.bf16.mxu0 0
      %2549 = vmatpush1.bf16.xpose.msra.mxu0 %v2529
      %2550 = vmatprep.subr.bf16.mxu0 0
      %2551 = vmatpush1.bf16.xpose.msra.mxu0 %v2532
      %2552 = vmatprep.subr.bf16.mxu0 0
      %2553 = vmatpush1.bf16.xpose.msra.mxu0 %v2535
      %2554 = vmatprep.subr.bf16.mxu0 0
      %2555 = vmatpush1.bf16.xpose.msra.mxu0 %v2538
      %2556 = vmatprep.subr.bf16.mxu0 0
      %2557 = vmatpush1.bf16.xpose.msra.mxu0 0
      %2558 = vmatprep.subr.bf16.mxu0 0
      %2559 = vmatpush1.bf16.xpose.msra.mxu0 0
      %2560 = vmatprep.subr.bf16.mxu0 0
      %2561 = vmatpush1.bf16.xpose.msra.mxu0 0
      %2562 = vmatprep.subr.bf16.mxu0 0
      %2563 = vmatpush1.bf16.xpose.msra.mxu0 0
      %2564 = vmatprep.subr.bf16.mxu0 0
      %2565 = vmatpush1.bf16.xpose.msra.mxu0 0
      %2566 = vmatprep.subr.bf16.mxu0 0
      %2567 = vmatpush1.bf16.xpose.msra.mxu0 0
      %2568 = vmatprep.subr.bf16.mxu0 0
      %2569 = vmatpush1.bf16.xpose.msra.mxu0 0
      %2570 = vmatprep.subr.bf16.mxu0 0
      %2571 = vmatpush1.bf16.xpose.msra.mxu0 0
      %2572 = vmatprep.mubr.bf16.mxu0 0
      %2573 = vmatmul.mubr.bf16.gmra.mrb[0].mxu0 %v2493
      %v2574 = vpop.f32.mrb[0].mxu0
      %v2575 = vadd.f32 %v1025, %v2574
      %v2576 = vpop.f32.mrb[0].mxu0
      %v2577 = vpop.f32.mrb[0].mxu0
      %v2578 = vadd.f32 %v1025, %v2577
      %v2579 = vpop.f32.mrb[0].mxu0
      %2580 = vmatprep.mubr.bf16.mxu0 0
      %2581 = vmatmul.mubr.bf16.gmra.mrb[0].mxu0 %v2496
      %v2582 = vpop.f32.mrb[0].mxu0
      %v2583 = vadd.f32 %v1025, %v2582
      %v2584 = vpop.f32.mrb[0].mxu0
      %v2585 = vpop.f32.mrb[0].mxu0
      %v2586 = vadd.f32 %v1025, %v2585
      %v2587 = vpop.f32.mrb[0].mxu0
      %2588 = vmatprep.mubr.bf16.mxu0 0
      %2589 = vmatmul.mubr.bf16.gmra.mrb[0].mxu0 %v2499
      %v2590 = vpop.f32.mrb[0].mxu0
      %v2591 = vadd.f32 %v1025, %v2590
      %v2592 = vpop.f32.mrb[0].mxu0
      %v2593 = vpop.f32.mrb[0].mxu0
      %v2594 = vadd.f32 %v1025, %v2593
      %v2595 = vpop.f32.mrb[0].mxu0
      %2596 = vmatprep.mubr.bf16.mxu0 0
      %2597 = vmatmul.mubr.bf16.gmra.mrb[0].mxu0 %v2502
      %v2598 = vpop.f32.mrb[0].mxu0
      %v2599 = vadd.f32 %v1025, %v2598
      %v2600 = vpop.f32.mrb[0].mxu0
      %v2601 = vpop.f32.mrb[0].mxu0
      %v2602 = vadd.f32 %v1025, %v2601
      %v2603 = vpop.f32.mrb[0].mxu0
      %2604 = vmatprep.mubr.bf16.mxu0 0
      %2605 = vmatmul.mubr.bf16.gmra.mrb[0].mxu0 %v2505
      %v2606 = vpop.f32.mrb[0].mxu0
      %v2607 = vadd.f32 %v1025, %v2606
      %v2608 = vpop.f32.mrb[0].mxu0
      %v2609 = vpop.f32.mrb[0].mxu0
      %v2610 = vadd.f32 %v1025, %v2609
      %v2611 = vpop.f32.mrb[0].mxu0
      %2612 = vmatprep.mubr.bf16.mxu0 0
      %2613 = vmatmul.mubr.bf16.gmra.mrb[0].mxu0 %v2508
      %v2614 = vpop.f32.mrb[0].mxu0
      %v2615 = vadd.f32 %v1025, %v2614
      %v2616 = vpop.f32.mrb[0].mxu0
      %v2617 = vpop.f32.mrb[0].mxu0
      %v2618 = vadd.f32 %v1025, %v2617
      %v2619 = vpop.f32.mrb[0].mxu0
      %2620 = vmatprep.mubr.bf16.mxu0 0
      %2621 = vmatmul.mubr.bf16.gmra.mrb[0].mxu0 %v2511
      %v2622 = vpop.f32.mrb[0].mxu0
      %v2623 = vadd.f32 %v1025, %v2622
      %v2624 = vpop.f32.mrb[0].mxu0
      %v2625 = vpop.f32.mrb[0].mxu0
      %v2626 = vadd.f32 %v1025, %v2625
      %v2627 = vpop.f32.mrb[0].mxu0
      %2628 = vmatprep.mubr.bf16.mxu0 0
      %2629 = vmatmul.mubr.bf16.gmra.mrb[0].mxu0 %v2514
      %v2630 = vpop.f32.mrb[0].mxu0
      %v2631 = vadd.f32 %v1025, %v2630
      %v2632 = vpop.f32.mrb[0].mxu0
      %v2633 = vpop.f32.mrb[0].mxu0
      %v2634 = vadd.f32 %v1025, %v2633
      %v2635 = vpop.f32.mrb[0].mxu0
      %2636 = vdwg.mxu0
      %2637 = vmax.xlane.f32.xlu0 %v2575
      %v2638 = vpop.xlane.xlu0 %2637
      %2639 = vmax.xlane.f32.xlu0 %v2578
      %v2640 = vpop.xlane.xlu0 %2639
      %2641 = vmax.xlane.f32.xlu0 %v2583
      %v2642 = vpop.xlane.xlu0 %2641
      %2643 = vmax.xlane.f32.xlu0 %v2586
      %v2644 = vpop.xlane.xlu0 %2643
      %2645 = vmax.xlane.f32.xlu0 %v2591
      %v2646 = vpop.xlane.xlu0 %2645
      %2647 = vmax.xlane.f32.xlu0 %v2594
      %v2648 = vpop.xlane.xlu0 %2647
      %2649 = vmax.xlane.f32.xlu0 %v2599
      %v2650 = vpop.xlane.xlu0 %2649
      %2651 = vmax.xlane.f32.xlu0 %v2602
      %v2652 = vpop.xlane.xlu0 %2651
      %2653 = vmax.xlane.f32.xlu0 %v2607
      %v2654 = vpop.xlane.xlu0 %2653
      %2655 = vmax.xlane.f32.xlu0 %v2610
      %v2656 = vpop.xlane.xlu0 %2655
      %2657 = vmax.xlane.f32.xlu0 %v2615
      %v2658 = vpop.xlane.xlu0 %2657
      %2659 = vmax.xlane.f32.xlu0 %v2618
      %v2660 = vpop.xlane.xlu0 %2659
      %2661 = vmax.xlane.f32.xlu0 %v2623
      %v2662 = vpop.xlane.xlu0 %2661
      %2663 = vmax.xlane.f32.xlu0 %v2626
      %v2664 = vpop.xlane.xlu0 %2663
      %2665 = vmax.xlane.f32.xlu0 %v2631
      %v2666 = vpop.xlane.xlu0 %2665
      %2667 = vmax.xlane.f32.xlu0 %v2634
      %v2668 = vpop.xlane.xlu0 %2667
      %v2669 = vsub.f32 %v2575, %v2638
      %v2670 = vsub.f32 %v2578, %v2640
      %v2671 = vsub.f32 %v2583, %v2642
      %v2672 = vsub.f32 %v2586, %v2644
      %v2673 = vsub.f32 %v2591, %v2646
      %v2674 = vsub.f32 %v2594, %v2648
      %v2675 = vsub.f32 %v2599, %v2650
      %v2676 = vsub.f32 %v2602, %v2652
      %v2677 = vsub.f32 %v2607, %v2654
      %v2678 = vsub.f32 %v2610, %v2656
      %v2679 = vsub.f32 %v2615, %v2658
      %v2680 = vsub.f32 %v2618, %v2660
      %v2681 = vsub.f32 %v2623, %v2662
      %v2682 = vsub.f32 %v2626, %v2664
      %v2683 = vsub.f32 %v2631, %v2666
      %v2684 = vsub.f32 %v2634, %v2668
      %v2685 = vmul.f32 %v2669, 1.442695
      %v2686 = vpow.pop %v2685
      %v2687 = vmul.f32 %v2670, 1.442695
      %v2688 = vpow.pop %v2687
      %v2689 = vmul.f32 %v2671, 1.442695
      %v2690 = vpow.pop %v2689
      %v2691 = vmul.f32 %v2672, 1.442695
      %v2692 = vpow.pop %v2691
      %v2693 = vmul.f32 %v2673, 1.442695
      %v2694 = vpow.pop %v2693
      %v2695 = vmul.f32 %v2674, 1.442695
      %v2696 = vpow.pop %v2695
      %v2697 = vmul.f32 %v2675, 1.442695
      %v2698 = vpow.pop %v2697
      %v2699 = vmul.f32 %v2676, 1.442695
      %v2700 = vpow.pop %v2699
      %v2701 = vmul.f32 %v2677, 1.442695
      %v2702 = vpow.pop %v2701
      %v2703 = vmul.f32 %v2678, 1.442695
      %v2704 = vpow.pop %v2703
      %v2705 = vmul.f32 %v2679, 1.442695
      %v2706 = vpow.pop %v2705
      %v2707 = vmul.f32 %v2680, 1.442695
      %v2708 = vpow.pop %v2707
      %v2709 = vmul.f32 %v2681, 1.442695
      %v2710 = vpow.pop %v2709
      %v2711 = vmul.f32 %v2682, 1.442695
      %v2712 = vpow.pop %v2711
      %v2713 = vmul.f32 %v2683, 1.442695
      %v2714 = vpow.pop %v2713
      %v2715 = vmul.f32 %v2684, 1.442695
      %v2716 = vpow.pop %v2715
      %2717 = vadd.xlane.f32.xlu0 %v2686
      %v2718 = vpop.xlane.xlu0 %2717
      %2719 = vadd.xlane.f32.xlu0 %v2688
      %v2720 = vpop.xlane.xlu0 %2719
      %2721 = vadd.xlane.f32.xlu0 %v2690
      %v2722 = vpop.xlane.xlu0 %2721
      %2723 = vadd.xlane.f32.xlu0 %v2692
      %v2724 = vpop.xlane.xlu0 %2723
      %2725 = vadd.xlane.f32.xlu0 %v2694
      %v2726 = vpop.xlane.xlu0 %2725
      %2727 = vadd.xlane.f32.xlu0 %v2696
      %v2728 = vpop.xlane.xlu0 %2727
      %2729 = vadd.xlane.f32.xlu0 %v2698
      %v2730 = vpop.xlane.xlu0 %2729
      %2731 = vadd.xlane.f32.xlu0 %v2700
      %v2732 = vpop.xlane.xlu0 %2731
      %2733 = vadd.xlane.f32.xlu0 %v2702
      %v2734 = vpop.xlane.xlu0 %2733
      %2735 = vadd.xlane.f32.xlu0 %v2704
      %v2736 = vpop.xlane.xlu0 %2735
      %2737 = vadd.xlane.f32.xlu0 %v2706
      %v2738 = vpop.xlane.xlu0 %2737
      %2739 = vadd.xlane.f32.xlu0 %v2708
      %v2740 = vpop.xlane.xlu0 %2739
      %2741 = vadd.xlane.f32.xlu0 %v2710
      %v2742 = vpop.xlane.xlu0 %2741
      %2743 = vadd.xlane.f32.xlu0 %v2712
      %v2744 = vpop.xlane.xlu0 %2743
      %2745 = vadd.xlane.f32.xlu0 %v2714
      %v2746 = vpop.xlane.xlu0 %2745
      %2747 = vadd.xlane.f32.xlu0 %v2716
      %v2748 = vpop.xlane.xlu0 %2747
      %v2749 = vrcp.pop %v2718
      %v2750 = vrcp.pop %v2720
      %v2751 = vrcp.pop %v2722
      %v2752 = vrcp.pop %v2724
      %v2753 = vrcp.pop %v2726
      %v2754 = vrcp.pop %v2728
      %v2755 = vrcp.pop %v2730
      %v2756 = vrcp.pop %v2732
      %v2757 = vrcp.pop %v2734
      %v2758 = vrcp.pop %v2736
      %v2759 = vrcp.pop %v2738
      %v2760 = vrcp.pop %v2740
      %v2761 = vrcp.pop %v2742
      %v2762 = vrcp.pop %v2744
      %v2763 = vrcp.pop %v2746
      %v2764 = vrcp.pop %v2748
      %v2765 = vmul.f32 %v2686, %v2749
      %v2766 = vmul.f32 %v2688, %v2750
      %v2767 = vmul.f32 %v2690, %v2751
      %v2768 = vmul.f32 %v2692, %v2752
      %v2769 = vmul.f32 %v2694, %v2753
      %v2770 = vmul.f32 %v2696, %v2754
      %v2771 = vmul.f32 %v2698, %v2755
      %v2772 = vmul.f32 %v2700, %v2756
      %v2773 = vmul.f32 %v2702, %v2757
      %v2774 = vmul.f32 %v2704, %v2758
      %v2775 = vmul.f32 %v2706, %v2759
      %v2776 = vmul.f32 %v2708, %v2760
      %v2777 = vmul.f32 %v2710, %v2761
      %v2778 = vmul.f32 %v2712, %v2762
      %v2779 = vmul.f32 %v2714, %v2763
      %v2780 = vmul.f32 %v2716, %v2764
      %v2781 = vpack.c.bf16 %v2766, %v2765
      %v2782 = vpack.c.bf16 %v2768, %v2767
      %v2783 = vpack.c.bf16 %v2770, %v2769
      %v2784 = vpack.c.bf16 %v2772, %v2771
      %v2785 = vpack.c.bf16 %v2774, %v2773
      %v2786 = vpack.c.bf16 %v2776, %v2775
      %v2787 = vpack.c.bf16 %v2778, %v2777
      %v2788 = vpack.c.bf16 %v2780, %v2779
      %2789 = vrot.lane.b32.xlu0 %v1013, 104
      %v2790 = vpop.permute.xlu0 %2789
      %2791 = vrot.lane.b32.xlu0 %v1014, 104
      %v2792 = vpop.permute.xlu0 %2791
      %2793 = vrot.lane.b32.xlu0 %v1015, 104
      %v2794 = vpop.permute.xlu0 %2793
      %2795 = vrot.lane.b32.xlu0 %v1016, 104
      %v2796 = vpop.permute.xlu0 %2795
      %2797 = vrot.lane.b32.xlu0 %v1017, 104
      %v2798 = vpop.permute.xlu0 %2797
      %2799 = vrot.lane.b32.xlu0 %v1018, 104
      %v2800 = vpop.permute.xlu0 %2799
      %2801 = vrot.lane.b32.xlu0 %v1019, 104
      %v2802 = vpop.permute.xlu0 %2801
      %2803 = vrot.lane.b32.xlu0 %v1020, 104
      %v2804 = vpop.permute.xlu0 %2803
      %2813 = vmatprep.subr.bf16.mxu0 0
      %2814 = vmatpush1.bf16.msra.mxu0 %v2790
      %2815 = vmatprep.subr.bf16.mxu0 0
      %2816 = vmatpush1.bf16.msra.mxu0 %v2792
      %2817 = vmatprep.subr.bf16.mxu0 0
      %2818 = vmatpush1.bf16.msra.mxu0 %v2794
      %2819 = vmatprep.subr.bf16.mxu0 0
      %2820 = vmatpush1.bf16.msra.mxu0 %v2796
      %2821 = vmatprep.subr.bf16.mxu0 0
      %2822 = vmatpush1.bf16.msra.mxu0 %v2798
      %2823 = vmatprep.subr.bf16.mxu0 0
      %2824 = vmatpush1.bf16.msra.mxu0 %v2800
      %2825 = vmatprep.subr.bf16.mxu0 0
      %2826 = vmatpush1.bf16.msra.mxu0 %v2802
      %2827 = vmatprep.subr.bf16.mxu0 0
      %2828 = vmatpush1.bf16.msra.mxu0 %v2804
      %2829 = vmatprep.subr.bf16.mxu0 0
      %2830 = vmatpush1.bf16.msra.mxu0 0
      %2831 = vmatprep.subr.bf16.mxu0 0
      %2832 = vmatpush1.bf16.msra.mxu0 0
      %2833 = vmatprep.subr.bf16.mxu0 0
      %2834 = vmatpush1.bf16.msra.mxu0 0
      %2835 = vmatprep.subr.bf16.mxu0 0
      %2836 = vmatpush1.bf16.msra.mxu0 0
      %2837 = vmatprep.subr.bf16.mxu0 0
      %2838 = vmatpush1.bf16.msra.mxu0 0
      %2839 = vmatprep.subr.bf16.mxu0 0
      %2840 = vmatpush1.bf16.msra.mxu0 0
      %2841 = vmatprep.subr.bf16.mxu0 0
      %2842 = vmatpush1.bf16.msra.mxu0 0
      %2843 = vmatprep.subr.bf16.mxu0 0
      %2844 = vmatpush1.bf16.msra.mxu0 0
      %2845 = vmatprep.mubr.bf16.mxu0 0
      %2846 = vmatmul.mubr.bf16.gmra.mrb[0].mxu0 %v2781
      %v2847 = vpop.f32.mrb[0].mxu0
      %v2848 = vadd.f32 0.0, %v2847
      %v2849 = vpop.f32.mrb[0].mxu0
      %v2850 = vpop.f32.mrb[0].mxu0
      %v2851 = vadd.f32 0.0, %v2850
      %v2852 = vpop.f32.mrb[0].mxu0
      %2853 = vmatprep.mubr.bf16.mxu0 0
      %2854 = vmatmul.mubr.bf16.gmra.mrb[0].mxu0 %v2782
      %v2855 = vpop.f32.mrb[0].mxu0
      %v2856 = vadd.f32 0.0, %v2855
      %v2857 = vpop.f32.mrb[0].mxu0
      %v2858 = vpop.f32.mrb[0].mxu0
      %v2859 = vadd.f32 0.0, %v2858
      %v2860 = vpop.f32.mrb[0].mxu0
      %2861 = vmatprep.mubr.bf16.mxu0 0
      %2862 = vmatmul.mubr.bf16.gmra.mrb[0].mxu0 %v2783
      %v2863 = vpop.f32.mrb[0].mxu0
      %v2864 = vadd.f32 0.0, %v2863
      %v2865 = vpop.f32.mrb[0].mxu0
      %v2866 = vpop.f32.mrb[0].mxu0
      %v2867 = vadd.f32 0.0, %v2866
      %v2868 = vpop.f32.mrb[0].mxu0
      %2869 = vmatprep.mubr.bf16.mxu0 0
      %2870 = vmatmul.mubr.bf16.gmra.mrb[0].mxu0 %v2784
      %v2871 = vpop.f32.mrb[0].mxu0
      %v2872 = vadd.f32 0.0, %v2871
      %v2873 = vpop.f32.mrb[0].mxu0
      %v2874 = vpop.f32.mrb[0].mxu0
      %v2875 = vadd.f32 0.0, %v2874
      %v2876 = vpop.f32.mrb[0].mxu0
      %2877 = vmatprep.mubr.bf16.mxu0 0
      %2878 = vmatmul.mubr.bf16.gmra.mrb[0].mxu0 %v2785
      %v2879 = vpop.f32.mrb[0].mxu0
      %v2880 = vadd.f32 0.0, %v2879
      %v2881 = vpop.f32.mrb[0].mxu0
      %v2882 = vpop.f32.mrb[0].mxu0
      %v2883 = vadd.f32 0.0, %v2882
      %v2884 = vpop.f32.mrb[0].mxu0
      %2885 = vmatprep.mubr.bf16.mxu0 0
      %2886 = vmatmul.mubr.bf16.gmra.mrb[0].mxu0 %v2786
      %v2887 = vpop.f32.mrb[0].mxu0
      %v2888 = vadd.f32 0.0, %v2887
      %v2889 = vpop.f32.mrb[0].mxu0
      %v2890 = vpop.f32.mrb[0].mxu0
      %v2891 = vadd.f32 0.0, %v2890
      %v2892 = vpop.f32.mrb[0].mxu0
      %2893 = vmatprep.mubr.bf16.mxu0 0
      %2894 = vmatmul.mubr.bf16.gmra.mrb[0].mxu0 %v2787
      %v2895 = vpop.f32.mrb[0].mxu0
      %v2896 = vadd.f32 0.0, %v2895
      %v2897 = vpop.f32.mrb[0].mxu0
      %v2898 = vpop.f32.mrb[0].mxu0
      %v2899 = vadd.f32 0.0, %v2898
      %v2900 = vpop.f32.mrb[0].mxu0
      %2901 = vmatprep.mubr.bf16.mxu0 0
      %2902 = vmatmul.mubr.bf16.gmra.mrb[0].mxu0 %v2788
      %v2903 = vpop.f32.mrb[0].mxu0
      %v2904 = vadd.f32 0.0, %v2903
      %v2905 = vpop.f32.mrb[0].mxu0
      %v2906 = vpop.f32.mrb[0].mxu0
      %v2907 = vadd.f32 0.0, %v2906
      %v2908 = vpop.f32.mrb[0].mxu0
      %2909 = vdwg.mxu0
      %v2910 = vpack.c.bf16 %v2851, %v2848
      %v2911 = vpack.c.bf16 %v2859, %v2856
      %v2912 = vpack.c.bf16 %v2867, %v2864
      %v2913 = vpack.c.bf16 %v2875, %v2872
      %v2914 = vpack.c.bf16 %v2883, %v2880
      %v2915 = vpack.c.bf16 %v2891, %v2888
      %v2916 = vpack.c.bf16 %v2899, %v2896
      %v2917 = vpack.c.bf16 %v2907, %v2904
      %2926 = vrot.lane.b32.xlu0 %v2910, 24
      %v2927 = vpop.permute.xlu0 %2926
      %2928 = vrot.lane.b32.xlu0 %v2911, 24
      %v2929 = vpop.permute.xlu0 %2928
      %2930 = vrot.lane.b32.xlu0 %v2912, 24
      %v2931 = vpop.permute.xlu0 %2930
      %2932 = vrot.lane.b32.xlu0 %v2913, 24
      %v2933 = vpop.permute.xlu0 %2932
      %2934 = vrot.lane.b32.xlu0 %v2914, 24
      %v2935 = vpop.permute.xlu0 %2934
      %2936 = vrot.lane.b32.xlu0 %v2915, 24
      %v2937 = vpop.permute.xlu0 %2936
      %2938 = vrot.lane.b32.xlu0 %v2916, 24
      %v2939 = vpop.permute.xlu0 %2938
      %2940 = vrot.lane.b32.xlu0 %v2917, 24
      %v2941 = vpop.permute.xlu0 %2940
      %vm2950 = vcmask 261312
      %2951 = vst.msk [vmem:[#allocation2] sm:$0xff] %vm2950, %v2927
      %2952 = vst.msk [vmem:[#allocation2 + $0x8] sm:$0xff] %vm2950, %v2929
      %2953 = vst.msk [vmem:[#allocation2 + $0x10] sm:$0xff] %vm2950, %v2931
      %2954 = vst.msk [vmem:[#allocation2 + $0x18] sm:$0xff] %vm2950, %v2933
      %2955 = vst.msk [vmem:[#allocation2 + $0x20] sm:$0xff] %vm2950, %v2935
      %2956 = vst.msk [vmem:[#allocation2 + $0x28] sm:$0xff] %vm2950, %v2937
      %2957 = vst.msk [vmem:[#allocation2 + $0x30] sm:$0xff] %vm2950, %v2939
      %2958 = vst.msk [vmem:[#allocation2 + $0x38] sm:$0xff] %vm2950, %v2941
      %v2959 = vld [vmem:[#allocation2] sm:$0xff]
      %v2960 = vld [vmem:[#allocation2 + $0x8] sm:$0xff]
      %v2961 = vld [vmem:[#allocation2 + $0x10] sm:$0xff]
      %v2962 = vld [vmem:[#allocation2 + $0x18] sm:$0xff]
      %v2963 = vld [vmem:[#allocation2 + $0x20] sm:$0xff]
      %v2964 = vld [vmem:[#allocation2 + $0x28] sm:$0xff]
      %v2965 = vld [vmem:[#allocation2 + $0x30] sm:$0xff]
      %v2966 = vld [vmem:[#allocation2 + $0x38] sm:$0xff]
      %v2967 = vld [vmem:[%s6] sm:$0xf]
      %v2968 = vld [vmem:[%s6 + $0x4] sm:$0xf]
      %v2969 = vld [vmem:[%s6 + $0x8] sm:$0xf]
      %v2970 = vld [vmem:[%s6 + $0xc] sm:$0xf]
      %v2971 = vld [vmem:[%s6 + $0x10] sm:$0xf]
      %v2972 = vld [vmem:[%s6 + $0x14] sm:$0xf]
      %v2973 = vld [vmem:[%s6 + $0x18] sm:$0xf]
      %v2974 = vld [vmem:[%s6 + $0x1c] sm:$0xf]
      %v2975 = vld [vmem:[%s6 + $0x20] sm:$0xf]
      %v2976 = vld [vmem:[%s6 + $0x24] sm:$0xf]
      %v2977 = vld [vmem:[%s6 + $0x28] sm:$0xf]
      %v2978 = vld [vmem:[%s6 + $0x2c] sm:$0xf]
      %v2979 = vld [vmem:[%s6 + $0x30] sm:$0xf]
      %v2980 = vld [vmem:[%s6 + $0x34] sm:$0xf]
      %v2981 = vld [vmem:[%s6 + $0x38] sm:$0xf]
      %v2982 = vld [vmem:[%s6 + $0x3c] sm:$0xf]
      %v2983 = vld [vmem:[%s7] sm:$0x1]
      %v2985 = vlaneseq
      %v2986 = vshrl.u32 %v2985, 7
      %v2987 = vsub.s32 0, %v2986
      %v2988 = vrot.slane %v2983, %v2987
      %v3006 = vunpack.c.l.b16 %v2967
      %v3007 = vunpack.c.l.b16 %v2968
      %v3008 = vunpack.c.l.b16 %v2969
      %v3009 = vunpack.c.l.b16 %v2970
      %v3010 = vunpack.c.l.b16 %v2971
      %v3011 = vunpack.c.l.b16 %v2972
      %v3012 = vunpack.c.l.b16 %v2973
      %v3013 = vunpack.c.l.b16 %v2974
      %v3014 = vunpack.c.l.b16 %v2975
      %v3015 = vunpack.c.l.b16 %v2976
      %v3016 = vunpack.c.l.b16 %v2977
      %v3017 = vunpack.c.l.b16 %v2978
      %v3018 = vunpack.c.l.b16 %v2979
      %v3019 = vunpack.c.l.b16 %v2980
      %v3020 = vunpack.c.l.b16 %v2981
      %v3021 = vunpack.c.l.b16 %v2982
      %v3022 = vpack.c.b16 %v3007, %v3006
      %v3023 = vpack.c.b16 %v3009, %v3008
      %v3024 = vpack.c.b16 %v3011, %v3010
      %v3025 = vpack.c.b16 %v3013, %v3012
      %v3026 = vpack.c.b16 %v3015, %v3014
      %v3027 = vpack.c.b16 %v3017, %v3016
      %v3028 = vpack.c.b16 %v3019, %v3018
      %v3029 = vpack.c.b16 %v3021, %v3020
      %3038 = vmatprep.subr.bf16.mxu0 0
      %3039 = vmatpush1.bf16.msra.mxu0 %v3022
      %3040 = vmatprep.subr.bf16.mxu0 0
      %3041 = vmatpush1.bf16.msra.mxu0 %v3023
      %3042 = vmatprep.subr.bf16.mxu0 0
      %3043 = vmatpush1.bf16.msra.mxu0 %v3024
      %3044 = vmatprep.subr.bf16.mxu0 0
      %3045 = vmatpush1.bf16.msra.mxu0 %v3025
      %3046 = vmatprep.subr.bf16.mxu0 0
      %3047 = vmatpush1.bf16.msra.mxu0 %v3026
      %3048 = vmatprep.subr.bf16.mxu0 0
      %3049 = vmatpush1.bf16.msra.mxu0 %v3027
      %3050 = vmatprep.subr.bf16.mxu0 0
      %3051 = vmatpush1.bf16.msra.mxu0 %v3028
      %3052 = vmatprep.subr.bf16.mxu0 0
      %3053 = vmatpush1.bf16.msra.mxu0 %v3029
      %3054 = vmatprep.subr.bf16.mxu0 0
      %3055 = vmatpush1.bf16.msra.mxu0 0
      %3056 = vmatprep.subr.bf16.mxu0 0
      %3057 = vmatpush1.bf16.msra.mxu0 0
      %3058 = vmatprep.subr.bf16.mxu0 0
      %3059 = vmatpush1.bf16.msra.mxu0 0
      %3060 = vmatprep.subr.bf16.mxu0 0
      %3061 = vmatpush1.bf16.msra.mxu0 0
      %3062 = vmatprep.subr.bf16.mxu0 0
      %3063 = vmatpush1.bf16.msra.mxu0 0
      %3064 = vmatprep.subr.bf16.mxu0 0
      %3065 = vmatpush1.bf16.msra.mxu0 0
      %3066 = vmatprep.subr.bf16.mxu0 0
      %3067 = vmatpush1.bf16.msra.mxu0 0
      %3068 = vmatprep.subr.bf16.mxu0 0
      %3069 = vmatpush1.bf16.msra.mxu0 0
      %3070 = vmatprep.mubr.bf16.mxu0 0
      %3071 = vmatmul.mubr.bf16.gmra.mrb[0].mxu0 %v2959
      %v3072 = vpop.f32.mrb[0].mxu0
      %v3073 = vadd.f32 %v2988, %v3072
      %v3074 = vpop.f32.mrb[0].mxu0
      %v3075 = vpop.f32.mrb[0].mxu0
      %v3076 = vpop.f32.mrb[0].mxu0
      %3077 = vmatprep.mubr.bf16.mxu0 0
      %3078 = vmatmul.mubr.bf16.gmra.mrb[0].mxu0 %v2960
      %v3079 = vpop.f32.mrb[0].mxu0
      %v3080 = vpop.f32.mrb[0].mxu0
      %v3081 = vpop.f32.mrb[0].mxu0
      %v3082 = vpop.f32.mrb[0].mxu0
      %3083 = vmatprep.mubr.bf16.mxu0 0
      %3084 = vmatmul.mubr.bf16.gmra.mrb[0].mxu0 %v2961
      %v3085 = vpop.f32.mrb[0].mxu0
      %v3086 = vpop.f32.mrb[0].mxu0
      %v3087 = vpop.f32.mrb[0].mxu0
      %v3088 = vpop.f32.mrb[0].mxu0
      %3089 = vmatprep.mubr.bf16.mxu0 0
      %3090 = vmatmul.mubr.bf16.gmra.mrb[0].mxu0 %v2962
      %v3091 = vpop.f32.mrb[0].mxu0
      %v3092 = vpop.f32.mrb[0].mxu0
      %v3093 = vpop.f32.mrb[0].mxu0
      %v3094 = vpop.f32.mrb[0].mxu0
      %3095 = vmatprep.mubr.bf16.mxu0 0
      %3096 = vmatmul.mubr.bf16.gmra.mrb[0].mxu0 %v2963
      %v3097 = vpop.f32.mrb[0].mxu0
      %v3098 = vpop.f32.mrb[0].mxu0
      %v3099 = vpop.f32.mrb[0].mxu0
      %v3100 = vpop.f32.mrb[0].mxu0
      %3101 = vmatprep.mubr.bf16.mxu0 0
      %3102 = vmatmul.mubr.bf16.gmra.mrb[0].mxu0 %v2964
      %v3103 = vpop.f32.mrb[0].mxu0
      %v3104 = vpop.f32.mrb[0].mxu0
      %v3105 = vpop.f32.mrb[0].mxu0
      %v3106 = vpop.f32.mrb[0].mxu0
      %3107 = vmatprep.mubr.bf16.mxu0 0
      %3108 = vmatmul.mubr.bf16.gmra.mrb[0].mxu0 %v2965
      %v3109 = vpop.f32.mrb[0].mxu0
      %v3110 = vpop.f32.mrb[0].mxu0
      %v3111 = vpop.f32.mrb[0].mxu0
      %v3112 = vpop.f32.mrb[0].mxu0
      %3113 = vmatprep.mubr.bf16.mxu0 0
      %3114 = vmatmul.mubr.bf16.gmra.mrb[0].mxu0 %v2966
      %v3115 = vpop.f32.mrb[0].mxu0
      %v3116 = vpop.f32.mrb[0].mxu0
      %v3117 = vpop.f32.mrb[0].mxu0
      %v3118 = vpop.f32.mrb[0].mxu0
      %3119 = vdwg.mxu0
      %v3120 = vadd.f32 %v552, %v3073
      %3121 = vadd.xlane.f32.xlu0 %v3120
      %v3122 = vpop.xlane.xlu0 %3121
      %v3123 = vmul.f32 %v3122, 0.03125
      %v3124 = vsub.f32 %v3120, %v3123
      %v3125 = vsel %vm535, 1, 0
      %vm3126 = vcmp.eq.s32.totalorder %v3125, 1
      %v3127 = vsel %vm3126, %v3124, 0.0
      %v3128 = vmul.f32 %v3127, %v3127
      %3129 = vadd.xlane.f32.xlu0 %v3128
      %v3130 = vpop.xlane.xlu0 %3129
      %v3131 = vmul.f32 %v3130, 0.03125
      %v3132 = vadd.f32 %v3131, 1e-12
      %v3133 = vrsqrt.pop %v3132
      %v3134 = vmul.f32 %v3127, %v3133
      %v3135 = vld [vmem:[%s8] sm:$0x1]
      %v3137 = vlaneseq
      %v3138 = vshrl.u32 %v3137, 7
      %v3139 = vsub.s32 0, %v3138
      %v3140 = vrot.slane %v3135, %v3139
      %v3142 = vmul.f32 %v3134, %v3140
      %v3143 = vld [vmem:[%s9] sm:$0x1]
      %v3145 = vlaneseq
      %v3146 = vshrl.u32 %v3145, 7
      %v3147 = vsub.s32 0, %v3146
      %v3148 = vrot.slane %v3143, %v3147
      %v3150 = vadd.f32 %v3142, %v3148
      %v3151 = vpack.c.bf16 %v3150, %v3150
      %v3152 = vld [vmem:[%s10] sm:$0xf]
      %v3153 = vld [vmem:[%s10 + $0x4] sm:$0xf]
      %v3154 = vld [vmem:[%s10 + $0x8] sm:$0xf]
      %v3155 = vld [vmem:[%s10 + $0xc] sm:$0xf]
      %v3156 = vld [vmem:[%s10 + $0x10] sm:$0xf]
      %v3157 = vld [vmem:[%s10 + $0x14] sm:$0xf]
      %v3158 = vld [vmem:[%s10 + $0x18] sm:$0xf]
      %v3159 = vld [vmem:[%s10 + $0x1c] sm:$0xf]
      %v3160 = vld [vmem:[%s10 + $0x20] sm:$0xf]
      %v3161 = vld [vmem:[%s10 + $0x24] sm:$0xf]
      %v3162 = vld [vmem:[%s10 + $0x28] sm:$0xf]
      %v3163 = vld [vmem:[%s10 + $0x2c] sm:$0xf]
      %v3164 = vld [vmem:[%s10 + $0x30] sm:$0xf]
      %v3165 = vld [vmem:[%s10 + $0x34] sm:$0xf]
      %v3166 = vld [vmem:[%s10 + $0x38] sm:$0xf]
      %v3167 = vld [vmem:[%s10 + $0x3c] sm:$0xf]
      %v3168 = vld [vmem:[%s11] sm:$0x1]
      %v3185 = vunpack.c.l.b16 %v3152
      %v3186 = vunpack.c.l.b16 %v3153
      %v3187 = vunpack.c.l.b16 %v3154
      %v3188 = vunpack.c.l.b16 %v3155
      %v3189 = vunpack.c.l.b16 %v3156
      %v3190 = vunpack.c.l.b16 %v3157
      %v3191 = vunpack.c.l.b16 %v3158
      %v3192 = vunpack.c.l.b16 %v3159
      %v3193 = vunpack.c.l.b16 %v3160
      %v3194 = vunpack.c.l.b16 %v3161
      %v3195 = vunpack.c.l.b16 %v3162
      %v3196 = vunpack.c.l.b16 %v3163
      %v3197 = vunpack.c.l.b16 %v3164
      %v3198 = vunpack.c.l.b16 %v3165
      %v3199 = vunpack.c.l.b16 %v3166
      %v3200 = vunpack.c.l.b16 %v3167
      %v3201 = vpack.c.b16 %v3186, %v3185
      %v3202 = vpack.c.b16 %v3188, %v3187
      %v3203 = vpack.c.b16 %v3190, %v3189
      %v3204 = vpack.c.b16 %v3192, %v3191
      %v3205 = vpack.c.b16 %v3194, %v3193
      %v3206 = vpack.c.b16 %v3196, %v3195
      %v3207 = vpack.c.b16 %v3198, %v3197
      %v3208 = vpack.c.b16 %v3200, %v3199
      %3217 = vmatprep.subr.bf16.mxu0 0
      %3218 = vmatpush1.bf16.msra.mxu0 %v3201
      %3219 = vmatprep.subr.bf16.mxu0 0
      %3220 = vmatpush1.bf16.msra.mxu0 %v3202
      %3221 = vmatprep.subr.bf16.mxu0 0
      %3222 = vmatpush1.bf16.msra.mxu0 %v3203
      %3223 = vmatprep.subr.bf16.mxu0 0
      %3224 = vmatpush1.bf16.msra.mxu0 %v3204
      %3225 = vmatprep.subr.bf16.mxu0 0
      %3226 = vmatpush1.bf16.msra.mxu0 %v3205
      %3227 = vmatprep.subr.bf16.mxu0 0
      %3228 = vmatpush1.bf16.msra.mxu0 %v3206
      %3229 = vmatprep.subr.bf16.mxu0 0
      %3230 = vmatpush1.bf16.msra.mxu0 %v3207
      %3231 = vmatprep.subr.bf16.mxu0 0
      %3232 = vmatpush1.bf16.msra.mxu0 %v3208
      %3233 = vmatprep.subr.bf16.mxu0 0
      %3234 = vmatpush1.bf16.msra.mxu0 0
      %3235 = vmatprep.subr.bf16.mxu0 0
      %3236 = vmatpush1.bf16.msra.mxu0 0
      %3237 = vmatprep.subr.bf16.mxu0 0
      %3238 = vmatpush1.bf16.msra.mxu0 0
      %3239 = vmatprep.subr.bf16.mxu0 0
      %3240 = vmatpush1.bf16.msra.mxu0 0
      %3241 = vmatprep.subr.bf16.mxu0 0
      %3242 = vmatpush1.bf16.msra.mxu0 0
      %3243 = vmatprep.subr.bf16.mxu0 0
      %3244 = vmatpush1.bf16.msra.mxu0 0
      %3245 = vmatprep.subr.bf16.mxu0 0
      %3246 = vmatpush1.bf16.msra.mxu0 0
      %3247 = vmatprep.subr.bf16.mxu0 0
      %3248 = vmatpush1.bf16.msra.mxu0 0
      %3249 = vmatprep.mubr.bf16.mxu0 0
      %3250 = vmatmul.mubr.bf16.gmra.mrb[0].mxu0 %v3151
      %v3251 = vpop.f32.mrb[0].mxu0
      %v3252 = vadd.f32 %v3168, %v3251
      %v3253 = vpop.f32.mrb[0].mxu0
      %v3254 = vpop.f32.mrb[0].mxu0
      %v3255 = vpop.f32.mrb[0].mxu0
      %3256 = vdwg.mxu0
      %v3257 = vmul.f32 %v3252, 0.5
      %v3258 = vmul.f32 %v3252, 0.044715
      %v3259 = vmul.f32 %v3258, %v3252
      %v3260 = vmul.f32 %v3259, %v3252
      %v3261 = vadd.f32 %v3252, %v3260
      %v3262 = vmul.f32 %v3261, 0.7978846
      %v3263 = vtanh.pop %v3262
      %v3264 = vadd.f32 %v3263, 1.0
      %v3265 = vmul.f32 %v3257, %v3264
      %v3266 = vpack.c.bf16 %v3265, %v3265
      %v3267 = vld [vmem:[%s12] sm:$0xf]
      %v3268 = vld [vmem:[%s12 + $0x4] sm:$0xf]
      %v3269 = vld [vmem:[%s12 + $0x8] sm:$0xf]
      %v3270 = vld [vmem:[%s12 + $0xc] sm:$0xf]
      %v3271 = vld [vmem:[%s12 + $0x10] sm:$0xf]
      %v3272 = vld [vmem:[%s12 + $0x14] sm:$0xf]
      %v3273 = vld [vmem:[%s12 + $0x18] sm:$0xf]
      %v3274 = vld [vmem:[%s12 + $0x1c] sm:$0xf]
      %v3275 = vld [vmem:[%s12 + $0x20] sm:$0xf]
      %v3276 = vld [vmem:[%s12 + $0x24] sm:$0xf]
      %v3277 = vld [vmem:[%s12 + $0x28] sm:$0xf]
      %v3278 = vld [vmem:[%s12 + $0x2c] sm:$0xf]
      %v3279 = vld [vmem:[%s12 + $0x30] sm:$0xf]
      %v3280 = vld [vmem:[%s12 + $0x34] sm:$0xf]
      %v3281 = vld [vmem:[%s12 + $0x38] sm:$0xf]
      %v3282 = vld [vmem:[%s12 + $0x3c] sm:$0xf]
      %v3283 = vld [vmem:[%s13] sm:$0x1]
      %v3300 = vunpack.c.l.b16 %v3267
      %v3301 = vunpack.c.l.b16 %v3268
      %v3302 = vunpack.c.l.b16 %v3269
      %v3303 = vunpack.c.l.b16 %v3270
      %v3304 = vunpack.c.l.b16 %v3271
      %v3305 = vunpack.c.l.b16 %v3272
      %v3306 = vunpack.c.l.b16 %v3273
      %v3307 = vunpack.c.l.b16 %v3274
      %v3308 = vunpack.c.l.b16 %v3275
      %v3309 = vunpack.c.l.b16 %v3276
      %v3310 = vunpack.c.l.b16 %v3277
      %v3311 = vunpack.c.l.b16 %v3278
      %v3312 = vunpack.c.l.b16 %v3279
      %v3313 = vunpack.c.l.b16 %v3280
      %v3314 = vunpack.c.l.b16 %v3281
      %v3315 = vunpack.c.l.b16 %v3282
      %v3316 = vpack.c.b16 %v3301, %v3300
      %v3317 = vpack.c.b16 %v3303, %v3302
      %v3318 = vpack.c.b16 %v3305, %v3304
      %v3319 = vpack.c.b16 %v3307, %v3306
      %v3320 = vpack.c.b16 %v3309, %v3308
      %v3321 = vpack.c.b16 %v3311, %v3310
      %v3322 = vpack.c.b16 %v3313, %v3312
      %v3323 = vpack.c.b16 %v3315, %v3314
      %3332 = vmatprep.subr.bf16.mxu0 0
      %3333 = vmatpush1.bf16.msra.mxu0 %v3316
      %3334 = vmatprep.subr.bf16.mxu0 0
      %3335 = vmatpush1.bf16.msra.mxu0 %v3317
      %3336 = vmatprep.subr.bf16.mxu0 0
      %3337 = vmatpush1.bf16.msra.mxu0 %v3318
      %3338 = vmatprep.subr.bf16.mxu0 0
      %3339 = vmatpush1.bf16.msra.mxu0 %v3319
      %3340 = vmatprep.subr.bf16.mxu0 0
      %3341 = vmatpush1.bf16.msra.mxu0 %v3320
      %3342 = vmatprep.subr.bf16.mxu0 0
      %3343 = vmatpush1.bf16.msra.mxu0 %v3321
      %3344 = vmatprep.subr.bf16.mxu0 0
      %3345 = vmatpush1.bf16.msra.mxu0 %v3322
      %3346 = vmatprep.subr.bf16.mxu0 0
      %3347 = vmatpush1.bf16.msra.mxu0 %v3323
      %3348 = vmatprep.subr.bf16.mxu0 0
      %3349 = vmatpush1.bf16.msra.mxu0 0
      %3350 = vmatprep.subr.bf16.mxu0 0
      %3351 = vmatpush1.bf16.msra.mxu0 0
      %3352 = vmatprep.subr.bf16.mxu0 0
      %3353 = vmatpush1.bf16.msra.mxu0 0
      %3354 = vmatprep.subr.bf16.mxu0 0
      %3355 = vmatpush1.bf16.msra.mxu0 0
      %3356 = vmatprep.subr.bf16.mxu0 0
      %3357 = vmatpush1.bf16.msra.mxu0 0
      %3358 = vmatprep.subr.bf16.mxu0 0
      %3359 = vmatpush1.bf16.msra.mxu0 0
      %3360 = vmatprep.subr.bf16.mxu0 0
      %3361 = vmatpush1.bf16.msra.mxu0 0
      %3362 = vmatprep.subr.bf16.mxu0 0
      %3363 = vmatpush1.bf16.msra.mxu0 0
      %3364 = vmatprep.mubr.bf16.mxu0 0
      %3365 = vmatmul.mubr.bf16.gmra.mrb[0].mxu0 %v3266
      %v3366 = vpop.f32.mrb[0].mxu0
      %v3367 = vadd.f32 %v3283, %v3366
      %v3368 = vpop.f32.mrb[0].mxu0
      %v3369 = vpop.f32.mrb[0].mxu0
      %v3370 = vpop.f32.mrb[0].mxu0
      %3371 = vdwg.mxu0
      %v3372 = vadd.f32 %v3150, %v3367
      %vm3373 = vcmask 1040384
      %v3374 = vsel %vm3373, %v3372, 0.0
      %3375 = vadd.xlane.f32.xlu0 %v3374
      %v3376 = vpop.xlane.xlu0 %3375
      %v3377 = vmul.f32 %v3376, 0.03125
      %v3378 = vsub.f32 %v3372, %v3377
      %v3379 = vsel %vm535, %v3378, 0.0
      %v3380 = vmul.f32 %v3379, %v3379
      %v3381 = vsel %vm3373, %v3380, 0.0
      %3382 = vadd.xlane.f32.xlu0 %v3381
      %v3383 = vpop.xlane.xlu0 %3382
      %v3384 = vmul.f32 %v3383, 0.03125
      %v3385 = vadd.f32 %v3384, 1e-12
      %v3386 = vrsqrt.pop %v3385
      %v3387 = vmul.f32 %v3379, %v3386
      %v3388 = vld [vmem:[%s14] sm:$0x1]
      %v3389 = vmul.f32 %v3387, %v3388
      %v3390 = vld [vmem:[%s15] sm:$0x1]
      %v3391 = vadd.f32 %v3389, %v3390
      %3392 = vst [vmem:[%s531] sm:$0x1] %v3391
      %p3393 = scmp.lt.s32.totalorder %s27, 1
      %s3394 = scalar_select %p3393, %s27, 1
      %s3395 = scalar_lea.vmem %s16, %s3394
      // Predicated region
      $region85: #{molformer_with_regression_head.3} parent=83 // pred_check
        %p3396 = pneg %p391
      $region86: #{molformer_with_regression_head.3} parent=83 // pred_check_branch
        %3398 = sbr.rel (%p3396) target = $region88
      $region87: #{molformer_with_regression_head.3} parent=83 // pred_region
        _
      $region88: #{molformer_with_regression_head.3} parent=83 // pred_fallthru
        _
    $region84: #{molformer_with_regression_head.3} parent=5 // pred_fallthru
      _
    %p3399 = scmp.le.s32.totalorder 2, %s22
    // Predicated region
    $region89: #{molformer_with_regression_head.3} parent=5 // pred_check
      %p3400 = pneg %p3399
    $region90: #{molformer_with_regression_head.3} parent=5 // pred_check_branch
      %3402 = sbr.rel (%p3400) target = $region92
    $region91: #{molformer_with_regression_head.3} parent=5 // pred_region
      %s3403 = ssub.s32 %s22, 2
      // Predicated region
      $region93: #{molformer_with_regression_head.3} parent=91 // pred_check
        %p3404 = pneg %p397
      $region94: #{molformer_with_regression_head.3} parent=91 // pred_check_branch
        %3406 = sbr.rel (%p3404) target = $region96
      $region95: #{molformer_with_regression_head.3} parent=91 // pred_region
        %p3407 = scmp.lt.s32.totalorder %s28, 1
        %s3408 = scalar_select %p3407, %s28, 1
        %s3409 = scalar_lea.vmem %s16, %s3408
      $region96: #{molformer_with_regression_head.3} parent=91 // pred_fallthru
        _
    $region92: #{molformer_with_regression_head.3} parent=5 // pred_fallthru
      _
  $region6: #{molformer_with_regression_head.3} parent=0 // loop_footer
    %s26 = sadd.s32 1, %s22
  $region7: #{molformer_with_regression_head.3} parent=0 // loop_footer_branch
    %21 = sbr.rel target = $region3
  $region8: #{molformer_with_regression_head.3} parent=0 // loop_exit
    _

// kernel: molformer_with_regression_head.2
$region0: #{molformer_with_regression_head.2}
  #allocation0 [shape = 'u32[]', space=smem, size = 0x4, offset = 0x4, fixed_abs, tag = 'smem constant byte address 0x4 - core index']
  #allocation1 [shape = 'u32[144,128]{1,0:T(1,128)}', space=vmem, size = 0x12000, scoped, tag = 'internal scratch']
  #allocation2 [shape = 'bf16[128,128]{1,0:T(16,128)(2,1)}', space=vmem, size = 0x8000, scoped, tag = 'scratch operand']
  %s0 = inlined_call_operand.vmem [shape: bf16[2,128,128], index: 0, kind: input, shape index: {}]
  %s1 = inlined_call_operand.vmem [shape: f32[2,1,128], index: 1, kind: input, shape index: {}]
  %s2 = inlined_call_operand.vmem [shape: f32[1,128], index: 2, kind: input, shape index: {}]
  %s3 = inlined_call_operand.vmem [shape: f32[1,128], index: 3, kind: input, shape index: {}]
  %s4 = inlined_call_operand.vmem [shape: bf16[128,384], index: 4, kind: input, shape index: {}]
  %s5 = inlined_call_operand.vmem [shape: f32[1,384], index: 5, kind: input, shape index: {}]
  %s6 = inlined_call_operand.vmem [shape: bf16[128,128], index: 6, kind: input, shape index: {}]
  %s7 = inlined_call_operand.vmem [shape: f32[1,128], index: 7, kind: input, shape index: {}]
  %s8 = inlined_call_operand.vmem [shape: f32[1,128], index: 8, kind: input, shape index: {}]
  %s9 = inlined_call_operand.vmem [shape: f32[1,128], index: 9, kind: input, shape index: {}]
  %s10 = inlined_call_operand.vmem [shape: bf16[128,128], index: 10, kind: input, shape index: {}]
  %s11 = inlined_call_operand.vmem [shape: f32[1,128], index: 11, kind: input, shape index: {}]
  %s12 = inlined_call_operand.hbm [shape: bf16[128,128], index: 12, kind: input, shape index: {}]
  %s13 = inlined_call_operand.vmem [shape: f32[1,128], index: 13, kind: input, shape index: {}]
  %s14 = inlined_call_operand.hbm [shape: f32[1,128], index: 14, kind: input, shape index: {}]
  %s15 = inlined_call_operand.hbm [shape: f32[1,128], index: 15, kind: input, shape index: {}]
  %s16 = inlined_call_operand.vmem [shape: bf16[2,128,128], index: 16, kind: output, shape index: {}]
  %s17 = sld [smem:[#allocation0]]
  $region109: #{molformer_with_regression_head.2} parent=0
    _
  %s19 = ssub.s32 1, %s17
  %s20 = scalar_select 0, %s19, %s17
  $region1: #{molformer_with_regression_head.2} parent=0
    #allocation3 [shape = 'u8[32768]{0}', space=vmem, size = 0x8000, scoped, tag = 'input window, operand 12, single buffered']
    #allocation4 [shape = 's32[2]{0}', space=sflag, size = 0x8, scoped, tag = 'scoped memory for molformer_with_regression_head.2']
    #allocation5 [shape = 'u8[512]{0}', space=vmem, size = 0x400, scoped, tag = 'input window, operand 14, single buffered']
    #allocation6 [shape = 's32[1]{0}', space=sflag, size = 0x4, scoped, tag = 'scoped memory for molformer_with_regression_head.2']
    #allocation7 [shape = 'u8[512]{0}', space=vmem, size = 0x400, scoped, tag = 'input window, operand 15, single buffered']
    %21 = vsyncpa [#allocation4], 0
    %22 = vsyncpa [#allocation6], 0
    loop: start=0, step=1, limit=4
    $region2: #{molformer_with_regression_head.2} parent=1 // loop_pre_header
      _
    $region3: #{molformer_with_regression_head.2} parent=1 // loop_header
      %s24 = sphi 0, %s28
      %p25 = scmp.ge.s32.totalorder %s24, 4
      %s34 = sphi 0, %s36
      %s37 = sphi 0, %s34
      %s38 = sphi 0, %s37
      %s54 = sphi 0, %s38
      %s60 = sphi 0, %s62
      %s63 = sphi 0, %s60
      %s64 = sphi 0, %s63
      %s80 = sphi 0, %s64
      %s84 = sphi 0, %s84
      %s86 = sphi 0, %s84
      %s87 = sphi 0, %s86
      %s101 = sphi 0, %s87
      %s105 = sphi 0, %s105
      %s107 = sphi 0, %s105
      %s108 = sphi 0, %s107
      %s122 = sphi 0, %s108
      %s126 = sphi 0, %s126
      %s128 = sphi 0, %s126
      %s129 = sphi 0, %s128
      %s143 = sphi 0, %s129
      %s147 = sphi 0, %s147
      %s149 = sphi 0, %s147
      %s150 = sphi 0, %s149
      %s164 = sphi 0, %s150
      %s168 = sphi 0, %s168
      %s170 = sphi 0, %s168
      %s171 = sphi 0, %s170
      %s185 = sphi 0, %s171
      %s189 = sphi 0, %s189
      %s191 = sphi 0, %s189
      %s192 = sphi 0, %s191
      %s206 = sphi 0, %s192
      %s210 = sphi 0, %s210
      %s212 = sphi 0, %s210
      %s213 = sphi 0, %s212
      %s227 = sphi 0, %s213
      %s231 = sphi 0, %s231
      %s233 = sphi 0, %s231
      %s234 = sphi 0, %s233
      %s248 = sphi 0, %s234
      %s252 = sphi 0, %s252
      %s254 = sphi 0, %s252
      %s255 = sphi 0, %s254
      %s269 = sphi 0, %s255
      %s273 = sphi 0, %s273
      %s275 = sphi 0, %s273
      %s276 = sphi 0, %s275
      %s290 = sphi 0, %s276
      %s294 = sphi 0, %s294
      %s296 = sphi 0, %s294
      %s297 = sphi 0, %s296
      %s311 = sphi 0, %s297
      %s315 = sphi 0, %s315
      %s317 = sphi 0, %s315
      %s318 = sphi 0, %s317
      %s332 = sphi 0, %s318
      %s336 = sphi 0, %s336
      %s338 = sphi 0, %s336
      %s339 = sphi 0, %s338
      %s353 = sphi 0, %s339
      %s357 = sphi 0, %s357
      %s359 = sphi 0, %s357
      %s360 = sphi 0, %s359
      %s374 = sphi 0, %s360
      %s380 = sphi 0, %s382
      %s383 = sphi 0, %s380
      %s384 = sphi 0, %s383
      %s400 = sphi 0, %s384
    $region4: #{molformer_with_regression_head.2} parent=1 // loop_header_branch
      %27 = sbr.rel (%p25) target = $region8
    $region5: #{molformer_with_regression_head.2} parent=1 // loop_body
      %s29 = ssub.s32 %s24, 1
      %s30 = ssub.s32 %s24, 2
      %s31 = sadd.s32 %s24, 1
      %s32 = ssub.s32 %s24, %s31
      %p33 = scmp.eq.s32.totalorder %s32, 0
      %s35 = sadd.s32 %s34, 1
      %s36 = scalar_select %p33, %s34, %s35
      %p39 = pneg %p33
      %p40 = scmp.eq.s32.totalorder %s24, 1
      %p41 = por %p39, %p40
      %p42 = scmp.ne.s32.totalorder %s34, %s37
      %p43 = scmp.eq.s32.totalorder %s24, 0
      %p44 = por %p42, %p43
      %p45 = scmp.ne.s32.totalorder %s34, %s37
      %p46 = scmp.eq.s32.totalorder %s29, 1
      %p47 = por %p45, %p46
      %p48 = scmp.ne.s32.totalorder %s37, %s38
      %p49 = scmp.eq.s32.totalorder %s29, 0
      %p50 = por %p48, %p49
      %p51 = scmp.ne.s32.totalorder %s37, %s38
      %p52 = scmp.eq.s32.totalorder %s30, 1
      %p53 = por %p51, %p52
      %p55 = scmp.ne.s32.totalorder %s38, %s54
      %p56 = scmp.eq.s32.totalorder %s30, 0
      %p57 = por %p55, %p56
      %s58 = ssub.s32 %s24, %s31
      %p59 = scmp.eq.s32.totalorder %s58, 0
      %s61 = sadd.s32 %s60, 1
      %s62 = scalar_select %p59, %s60, %s61
      %p65 = pneg %p59
      %p66 = scmp.eq.s32.totalorder %s24, 1
      %p67 = por %p65, %p66
      %p68 = scmp.ne.s32.totalorder %s60, %s63
      %p69 = scmp.eq.s32.totalorder %s24, 0
      %p70 = por %p68, %p69
      %p71 = scmp.ne.s32.totalorder %s60, %s63
      %p72 = scmp.eq.s32.totalorder %s29, 1
      %p73 = por %p71, %p72
      %p74 = scmp.ne.s32.totalorder %s63, %s64
      %p75 = scmp.eq.s32.totalorder %s29, 0
      %p76 = por %p74, %p75
      %p77 = scmp.ne.s32.totalorder %s63, %s64
      %p78 = scmp.eq.s32.totalorder %s30, 1
      %p79 = por %p77, %p78
      %p81 = scmp.ne.s32.totalorder %s64, %s80
      %p82 = scmp.eq.s32.totalorder %s30, 0
      %p83 = por %p81, %p82
      %s85 = sadd.s32 %s84, 1
      %p88 = scmp.eq.s32.totalorder %s24, 1
      %p89 = scmp.ne.s32.totalorder %s84, %s86
      %p90 = scmp.eq.s32.totalorder %s24, 0
      %p91 = por %p89, %p90
      %p92 = scmp.ne.s32.totalorder %s84, %s86
      %p93 = scmp.eq.s32.totalorder %s29, 1
      %p94 = por %p92, %p93
      %p95 = scmp.ne.s32.totalorder %s86, %s87
      %p96 = scmp.eq.s32.totalorder %s29, 0
      %p97 = por %p95, %p96
      %p98 = scmp.ne.s32.totalorder %s86, %s87
      %p99 = scmp.eq.s32.totalorder %s30, 1
      %p100 = por %p98, %p99
      %p102 = scmp.ne.s32.totalorder %s87, %s101
      %p103 = scmp.eq.s32.totalorder %s30, 0
      %p104 = por %p102, %p103
      %s106 = sadd.s32 %s105, 1
      %p109 = scmp.eq.s32.totalorder %s24, 1
      %p110 = scmp.ne.s32.totalorder %s105, %s107
      %p111 = scmp.eq.s32.totalorder %s24, 0
      %p112 = por %p110, %p111
      %p113 = scmp.ne.s32.totalorder %s105, %s107
      %p114 = scmp.eq.s32.totalorder %s29, 1
      %p115 = por %p113, %p114
      %p116 = scmp.ne.s32.totalorder %s107, %s108
      %p117 = scmp.eq.s32.totalorder %s29, 0
      %p118 = por %p116, %p117
      %p119 = scmp.ne.s32.totalorder %s107, %s108
      %p120 = scmp.eq.s32.totalorder %s30, 1
      %p121 = por %p119, %p120
      %p123 = scmp.ne.s32.totalorder %s108, %s122
      %p124 = scmp.eq.s32.totalorder %s30, 0
      %p125 = por %p123, %p124
      %s127 = sadd.s32 %s126, 1
      %p130 = scmp.eq.s32.totalorder %s24, 1
      %p131 = scmp.ne.s32.totalorder %s126, %s128
      %p132 = scmp.eq.s32.totalorder %s24, 0
      %p133 = por %p131, %p132
      %p134 = scmp.ne.s32.totalorder %s126, %s128
      %p135 = scmp.eq.s32.totalorder %s29, 1
      %p136 = por %p134, %p135
      %p137 = scmp.ne.s32.totalorder %s128, %s129
      %p138 = scmp.eq.s32.totalorder %s29, 0
      %p139 = por %p137, %p138
      %p140 = scmp.ne.s32.totalorder %s128, %s129
      %p141 = scmp.eq.s32.totalorder %s30, 1
      %p142 = por %p140, %p141
      %p144 = scmp.ne.s32.totalorder %s129, %s143
      %p145 = scmp.eq.s32.totalorder %s30, 0
      %p146 = por %p144, %p145
      %s148 = sadd.s32 %s147, 1
      %p151 = scmp.eq.s32.totalorder %s24, 1
      %p152 = scmp.ne.s32.totalorder %s147, %s149
      %p153 = scmp.eq.s32.totalorder %s24, 0
      %p154 = por %p152, %p153
      %p155 = scmp.ne.s32.totalorder %s147, %s149
      %p156 = scmp.eq.s32.totalorder %s29, 1
      %p157 = por %p155, %p156
      %p158 = scmp.ne.s32.totalorder %s149, %s150
      %p159 = scmp.eq.s32.totalorder %s29, 0
      %p160 = por %p158, %p159
      %p161 = scmp.ne.s32.totalorder %s149, %s150
      %p162 = scmp.eq.s32.totalorder %s30, 1
      %p163 = por %p161, %p162
      %p165 = scmp.ne.s32.totalorder %s150, %s164
      %p166 = scmp.eq.s32.totalorder %s30, 0
      %p167 = por %p165, %p166
      %s169 = sadd.s32 %s168, 1
      %p172 = scmp.eq.s32.totalorder %s24, 1
      %p173 = scmp.ne.s32.totalorder %s168, %s170
      %p174 = scmp.eq.s32.totalorder %s24, 0
      %p175 = por %p173, %p174
      %p176 = scmp.ne.s32.totalorder %s168, %s170
      %p177 = scmp.eq.s32.totalorder %s29, 1
      %p178 = por %p176, %p177
      %p179 = scmp.ne.s32.totalorder %s170, %s171
      %p180 = scmp.eq.s32.totalorder %s29, 0
      %p181 = por %p179, %p180
      %p182 = scmp.ne.s32.totalorder %s170, %s171
      %p183 = scmp.eq.s32.totalorder %s30, 1
      %p184 = por %p182, %p183
      %p186 = scmp.ne.s32.totalorder %s171, %s185
      %p187 = scmp.eq.s32.totalorder %s30, 0
      %p188 = por %p186, %p187
      %s190 = sadd.s32 %s189, 1
      %p193 = scmp.eq.s32.totalorder %s24, 1
      %p194 = scmp.ne.s32.totalorder %s189, %s191
      %p195 = scmp.eq.s32.totalorder %s24, 0
      %p196 = por %p194, %p195
      %p197 = scmp.ne.s32.totalorder %s189, %s191
      %p198 = scmp.eq.s32.totalorder %s29, 1
      %p199 = por %p197, %p198
      %p200 = scmp.ne.s32.totalorder %s191, %s192
      %p201 = scmp.eq.s32.totalorder %s29, 0
      %p202 = por %p200, %p201
      %p203 = scmp.ne.s32.totalorder %s191, %s192
      %p204 = scmp.eq.s32.totalorder %s30, 1
      %p205 = por %p203, %p204
      %p207 = scmp.ne.s32.totalorder %s192, %s206
      %p208 = scmp.eq.s32.totalorder %s30, 0
      %p209 = por %p207, %p208
      %s211 = sadd.s32 %s210, 1
      %p214 = scmp.eq.s32.totalorder %s24, 1
      %p215 = scmp.ne.s32.totalorder %s210, %s212
      %p216 = scmp.eq.s32.totalorder %s24, 0
      %p217 = por %p215, %p216
      %p218 = scmp.ne.s32.totalorder %s210, %s212
      %p219 = scmp.eq.s32.totalorder %s29, 1
      %p220 = por %p218, %p219
      %p221 = scmp.ne.s32.totalorder %s212, %s213
      %p222 = scmp.eq.s32.totalorder %s29, 0
      %p223 = por %p221, %p222
      %p224 = scmp.ne.s32.totalorder %s212, %s213
      %p225 = scmp.eq.s32.totalorder %s30, 1
      %p226 = por %p224, %p225
      %p228 = scmp.ne.s32.totalorder %s213, %s227
      %p229 = scmp.eq.s32.totalorder %s30, 0
      %p230 = por %p228, %p229
      %s232 = sadd.s32 %s231, 1
      %p235 = scmp.eq.s32.totalorder %s24, 1
      %p236 = scmp.ne.s32.totalorder %s231, %s233
      %p237 = scmp.eq.s32.totalorder %s24, 0
      %p238 = por %p236, %p237
      %p239 = scmp.ne.s32.totalorder %s231, %s233
      %p240 = scmp.eq.s32.totalorder %s29, 1
      %p241 = por %p239, %p240
      %p242 = scmp.ne.s32.totalorder %s233, %s234
      %p243 = scmp.eq.s32.totalorder %s29, 0
      %p244 = por %p242, %p243
      %p245 = scmp.ne.s32.totalorder %s233, %s234
      %p246 = scmp.eq.s32.totalorder %s30, 1
      %p247 = por %p245, %p246
      %p249 = scmp.ne.s32.totalorder %s234, %s248
      %p250 = scmp.eq.s32.totalorder %s30, 0
      %p251 = por %p249, %p250
      %s253 = sadd.s32 %s252, 1
      %p256 = scmp.eq.s32.totalorder %s24, 1
      %p257 = scmp.ne.s32.totalorder %s252, %s254
      %p258 = scmp.eq.s32.totalorder %s24, 0
      %p259 = por %p257, %p258
      %p260 = scmp.ne.s32.totalorder %s252, %s254
      %p261 = scmp.eq.s32.totalorder %s29, 1
      %p262 = por %p260, %p261
      %p263 = scmp.ne.s32.totalorder %s254, %s255
      %p264 = scmp.eq.s32.totalorder %s29, 0
      %p265 = por %p263, %p264
      %p266 = scmp.ne.s32.totalorder %s254, %s255
      %p267 = scmp.eq.s32.totalorder %s30, 1
      %p268 = por %p266, %p267
      %p270 = scmp.ne.s32.totalorder %s255, %s269
      %p271 = scmp.eq.s32.totalorder %s30, 0
      %p272 = por %p270, %p271
      %s274 = sadd.s32 %s273, 1
      %p277 = scmp.eq.s32.totalorder %s24, 1
      %p278 = scmp.ne.s32.totalorder %s273, %s275
      %p279 = scmp.eq.s32.totalorder %s24, 0
      %p280 = por %p278, %p279
      %p281 = scmp.ne.s32.totalorder %s273, %s275
      %p282 = scmp.eq.s32.totalorder %s29, 1
      %p283 = por %p281, %p282
      %p284 = scmp.ne.s32.totalorder %s275, %s276
      %p285 = scmp.eq.s32.totalorder %s29, 0
      %p286 = por %p284, %p285
      %p287 = scmp.ne.s32.totalorder %s275, %s276
      %p288 = scmp.eq.s32.totalorder %s30, 1
      %p289 = por %p287, %p288
      %p291 = scmp.ne.s32.totalorder %s276, %s290
      %p292 = scmp.eq.s32.totalorder %s30, 0
      %p293 = por %p291, %p292
      %s295 = sadd.s32 %s294, 1
      %p298 = scmp.eq.s32.totalorder %s24, 1
      %p299 = scmp.ne.s32.totalorder %s294, %s296
      %p300 = scmp.eq.s32.totalorder %s24, 0
      %p301 = por %p299, %p300
      %p302 = scmp.ne.s32.totalorder %s294, %s296
      %p303 = scmp.eq.s32.totalorder %s29, 1
      %p304 = por %p302, %p303
      %p305 = scmp.ne.s32.totalorder %s296, %s297
      %p306 = scmp.eq.s32.totalorder %s29, 0
      %p307 = por %p305, %p306
      %p308 = scmp.ne.s32.totalorder %s296, %s297
      %p309 = scmp.eq.s32.totalorder %s30, 1
      %p310 = por %p308, %p309
      %p312 = scmp.ne.s32.totalorder %s297, %s311
      %p313 = scmp.eq.s32.totalorder %s30, 0
      %p314 = por %p312, %p313
      %s316 = sadd.s32 %s315, 1
      %p319 = scmp.eq.s32.totalorder %s24, 1
      %p320 = scmp.ne.s32.totalorder %s315, %s317
      %p321 = scmp.eq.s32.totalorder %s24, 0
      %p322 = por %p320, %p321
      %p323 = scmp.ne.s32.totalorder %s315, %s317
      %p324 = scmp.eq.s32.totalorder %s29, 1
      %p325 = por %p323, %p324
      %p326 = scmp.ne.s32.totalorder %s317, %s318
      %p327 = scmp.eq.s32.totalorder %s29, 0
      %p328 = por %p326, %p327
      %p329 = scmp.ne.s32.totalorder %s317, %s318
      %p330 = scmp.eq.s32.totalorder %s30, 1
      %p331 = por %p329, %p330
      %p333 = scmp.ne.s32.totalorder %s318, %s332
      %p334 = scmp.eq.s32.totalorder %s30, 0
      %p335 = por %p333, %p334
      %s337 = sadd.s32 %s336, 1
      %p340 = scmp.eq.s32.totalorder %s24, 1
      %p341 = scmp.ne.s32.totalorder %s336, %s338
      %p342 = scmp.eq.s32.totalorder %s24, 0
      %p343 = por %p341, %p342
      %p344 = scmp.ne.s32.totalorder %s336, %s338
      %p345 = scmp.eq.s32.totalorder %s29, 1
      %p346 = por %p344, %p345
      %p347 = scmp.ne.s32.totalorder %s338, %s339
      %p348 = scmp.eq.s32.totalorder %s29, 0
      %p349 = por %p347, %p348
      %p350 = scmp.ne.s32.totalorder %s338, %s339
      %p351 = scmp.eq.s32.totalorder %s30, 1
      %p352 = por %p350, %p351
      %p354 = scmp.ne.s32.totalorder %s339, %s353
      %p355 = scmp.eq.s32.totalorder %s30, 0
      %p356 = por %p354, %p355
      %s358 = sadd.s32 %s357, 1
      %p361 = scmp.eq.s32.totalorder %s24, 1
      %p362 = scmp.ne.s32.totalorder %s357, %s359
      %p363 = scmp.eq.s32.totalorder %s24, 0
      %p364 = por %p362, %p363
      %p365 = scmp.ne.s32.totalorder %s357, %s359
      %p366 = scmp.eq.s32.totalorder %s29, 1
      %p367 = por %p365, %p366
      %p368 = scmp.ne.s32.totalorder %s359, %s360
      %p369 = scmp.eq.s32.totalorder %s29, 0
      %p370 = por %p368, %p369
      %p371 = scmp.ne.s32.totalorder %s359, %s360
      %p372 = scmp.eq.s32.totalorder %s30, 1
      %p373 = por %p371, %p372
      %p375 = scmp.ne.s32.totalorder %s360, %s374
      %p376 = scmp.eq.s32.totalorder %s30, 0
      %p377 = por %p375, %p376
      %s378 = ssub.s32 %s24, %s31
      %p379 = scmp.eq.s32.totalorder %s378, 0
      %s381 = sadd.s32 %s380, 1
      %s382 = scalar_select %p379, %s380, %s381
      %p385 = pneg %p379
      %p386 = scmp.eq.s32.totalorder %s24, 1
      %p387 = por %p385, %p386
      %p388 = scmp.ne.s32.totalorder %s380, %s383
      %p389 = scmp.eq.s32.totalorder %s24, 0
      %p390 = por %p388, %p389
      %p391 = scmp.ne.s32.totalorder %s380, %s383
      %p392 = scmp.eq.s32.totalorder %s29, 1
      %p393 = por %p391, %p392
      %p394 = scmp.ne.s32.totalorder %s383, %s384
      %p395 = scmp.eq.s32.totalorder %s29, 0
      %p396 = por %p394, %p395
      %p397 = scmp.ne.s32.totalorder %s383, %s384
      %p398 = scmp.eq.s32.totalorder %s30, 1
      %p399 = por %p397, %p398
      %p401 = scmp.ne.s32.totalorder %s384, %s400
      %p402 = scmp.eq.s32.totalorder %s30, 0
      %p403 = por %p401, %p402
      %p404 = scmp.le.s32.totalorder 1, %s24
      %p405 = scmp.lt.s32.totalorder %s24, 3
      %p406 = pnand %p404, %p405
      %p407 = pneg %p406
      // Predicated region
      $region9: #{molformer_with_regression_head.2} parent=5 // pred_check
        _
      $region10: #{molformer_with_regression_head.2} parent=5 // pred_check_branch
        %409 = sbr.rel (%p406) target = $region12
      $region11: #{molformer_with_regression_head.2} parent=5 // pred_region
        %s410 = ssub.s32 %s24, 1
        // Predicated region
        $region13: #{molformer_with_regression_head.2} parent=11 // pred_check
          %p411 = pneg %p97
        $region14: #{molformer_with_regression_head.2} parent=11 // pred_check_branch
          %413 = sbr.rel (%p411) target = $region16
        $region15: #{molformer_with_regression_head.2} parent=11 // pred_region
          _
        $region16: #{molformer_with_regression_head.2} parent=11 // pred_fallthru
          _
        // Predicated region
        $region17: #{molformer_with_regression_head.2} parent=11 // pred_check
          %p414 = pneg %p118
        $region18: #{molformer_with_regression_head.2} parent=11 // pred_check_branch
          %416 = sbr.rel (%p414) target = $region20
        $region19: #{molformer_with_regression_head.2} parent=11 // pred_region
          _
        $region20: #{molformer_with_regression_head.2} parent=11 // pred_fallthru
          _
        // Predicated region
        $region21: #{molformer_with_regression_head.2} parent=11 // pred_check
          %p417 = pneg %p139
        $region22: #{molformer_with_regression_head.2} parent=11 // pred_check_branch
          %419 = sbr.rel (%p417) target = $region24
        $region23: #{molformer_with_regression_head.2} parent=11 // pred_region
          _
        $region24: #{molformer_with_regression_head.2} parent=11 // pred_fallthru
          _
        // Predicated region
        $region25: #{molformer_with_regression_head.2} parent=11 // pred_check
          %p420 = pneg %p160
        $region26: #{molformer_with_regression_head.2} parent=11 // pred_check_branch
          %422 = sbr.rel (%p420) target = $region28
        $region27: #{molformer_with_regression_head.2} parent=11 // pred_region
          _
        $region28: #{molformer_with_regression_head.2} parent=11 // pred_fallthru
          _
        // Predicated region
        $region29: #{molformer_with_regression_head.2} parent=11 // pred_check
          %p423 = pneg %p181
        $region30: #{molformer_with_regression_head.2} parent=11 // pred_check_branch
          %425 = sbr.rel (%p423) target = $region32
        $region31: #{molformer_with_regression_head.2} parent=11 // pred_region
          _
        $region32: #{molformer_with_regression_head.2} parent=11 // pred_fallthru
          _
        // Predicated region
        $region33: #{molformer_with_regression_head.2} parent=11 // pred_check
          %p426 = pneg %p202
        $region34: #{molformer_with_regression_head.2} parent=11 // pred_check_branch
          %428 = sbr.rel (%p426) target = $region36
        $region35: #{molformer_with_regression_head.2} parent=11 // pred_region
          _
        $region36: #{molformer_with_regression_head.2} parent=11 // pred_fallthru
          _
        // Predicated region
        $region37: #{molformer_with_regression_head.2} parent=11 // pred_check
          %p429 = pneg %p223
        $region38: #{molformer_with_regression_head.2} parent=11 // pred_check_branch
          %431 = sbr.rel (%p429) target = $region40
        $region39: #{molformer_with_regression_head.2} parent=11 // pred_region
          _
        $region40: #{molformer_with_regression_head.2} parent=11 // pred_fallthru
          _
        // Predicated region
        $region41: #{molformer_with_regression_head.2} parent=11 // pred_check
          %p432 = pneg %p244
        $region42: #{molformer_with_regression_head.2} parent=11 // pred_check_branch
          %434 = sbr.rel (%p432) target = $region44
        $region43: #{molformer_with_regression_head.2} parent=11 // pred_region
          _
        $region44: #{molformer_with_regression_head.2} parent=11 // pred_fallthru
          _
        // Predicated region
        $region45: #{molformer_with_regression_head.2} parent=11 // pred_check
          %p435 = pneg %p265
        $region46: #{molformer_with_regression_head.2} parent=11 // pred_check_branch
          %437 = sbr.rel (%p435) target = $region48
        $region47: #{molformer_with_regression_head.2} parent=11 // pred_region
          _
        $region48: #{molformer_with_regression_head.2} parent=11 // pred_fallthru
          _
        // Predicated region
        $region49: #{molformer_with_regression_head.2} parent=11 // pred_check
          %p438 = pneg %p286
        $region50: #{molformer_with_regression_head.2} parent=11 // pred_check_branch
          %440 = sbr.rel (%p438) target = $region52
        $region51: #{molformer_with_regression_head.2} parent=11 // pred_region
          _
        $region52: #{molformer_with_regression_head.2} parent=11 // pred_fallthru
          _
        // Predicated region
        $region53: #{molformer_with_regression_head.2} parent=11 // pred_check
          %p441 = pneg %p307
        $region54: #{molformer_with_regression_head.2} parent=11 // pred_check_branch
          %443 = sbr.rel (%p441) target = $region56
        $region55: #{molformer_with_regression_head.2} parent=11 // pred_region
          %s445 = ssub.s32 1024, 1024
          %446 = vsyncadd [#allocation4], %s445
          %s447 = sshll.u32 [#allocation3], 4
          %s448 = int_to_ptr.vmem [resolvable:$true] %s447
          %453 = dma.hbm_to_vmem [thread:$0]  %s12, 1024, %s448, [#allocation4], 64, 64, 4
        $region56: #{molformer_with_regression_head.2} parent=11 // pred_fallthru
          _
        // Predicated region
        $region57: #{molformer_with_regression_head.2} parent=11 // pred_check
          %p454 = pneg %p328
        $region58: #{molformer_with_regression_head.2} parent=11 // pred_check_branch
          %456 = sbr.rel (%p454) target = $region60
        $region59: #{molformer_with_regression_head.2} parent=11 // pred_region
          _
        $region60: #{molformer_with_regression_head.2} parent=11 // pred_fallthru
          _
        // Predicated region
        $region61: #{molformer_with_regression_head.2} parent=11 // pred_check
          %p457 = pneg %p349
        $region62: #{molformer_with_regression_head.2} parent=11 // pred_check_branch
          %459 = sbr.rel (%p457) target = $region64
        $region63: #{molformer_with_regression_head.2} parent=11 // pred_region
          %s461 = ssub.s32 16, 16
          %462 = vsyncadd [#allocation6], %s461
          %s464 = sshll.u32 [#allocation5], 4
          %s465 = int_to_ptr.vmem [resolvable:$true] %s464
          %467 = dma.hbm_to_vmem [thread:$0]  %s14, 16, %s465, [#allocation6]
        $region64: #{molformer_with_regression_head.2} parent=11 // pred_fallthru
          _
        // Predicated region
        $region65: #{molformer_with_regression_head.2} parent=11 // pred_check
          %p468 = pneg %p370
        $region66: #{molformer_with_regression_head.2} parent=11 // pred_check_branch
          %470 = sbr.rel (%p468) target = $region68
        $region67: #{molformer_with_regression_head.2} parent=11 // pred_region
          %s472 = ssub.s32 16, 16
          %473 = vsyncadd [#allocation6], %s472
          %s475 = sshll.u32 [#allocation7], 4
          %s476 = int_to_ptr.vmem [resolvable:$true] %s475
          %478 = dma.hbm_to_vmem [thread:$0]  %s15, 16, %s476, [#allocation6]
        $region68: #{molformer_with_regression_head.2} parent=11 // pred_fallthru
          _
      $region12: #{molformer_with_regression_head.2} parent=5 // pred_fallthru
        _
      %p479 = scmp.lt.s32.totalorder %s24, 2
      // Predicated region
      $region69: #{molformer_with_regression_head.2} parent=5 // pred_check
        %p480 = pneg %p479
      $region70: #{molformer_with_regression_head.2} parent=5 // pred_check_branch
        %482 = sbr.rel (%p480) target = $region72
      $region71: #{molformer_with_regression_head.2} parent=5 // pred_region
        // Predicated region
        $region73: #{molformer_with_regression_head.2} parent=71 // pred_check
          %p483 = pneg %p44
        $region74: #{molformer_with_regression_head.2} parent=71 // pred_check_branch
          %485 = sbr.rel (%p483) target = $region76
        $region75: #{molformer_with_regression_head.2} parent=71 // pred_region
          %p486 = scmp.lt.s32.totalorder %s24, 1
          %s487 = scalar_select %p486, %s24, 1
          %s488 = smul.addr %s487, 16
          %s489 = smul.addr %s488, 4
          %s490 = scalar_lea.vmem %s0, %s489
        $region76: #{molformer_with_regression_head.2} parent=71 // pred_fallthru
          _
        // Predicated region
        $region77: #{molformer_with_regression_head.2} parent=71 // pred_check
          %p491 = pneg %p70
        $region78: #{molformer_with_regression_head.2} parent=71 // pred_check_branch
          %493 = sbr.rel (%p491) target = $region80
        $region79: #{molformer_with_regression_head.2} parent=71 // pred_region
          %p494 = scmp.lt.s32.totalorder %s24, 1
          %s495 = scalar_select %p494, %s24, 1
          %s496 = scalar_lea.vmem %s1, %s495
        $region80: #{molformer_with_regression_head.2} parent=71 // pred_fallthru
          _
      $region72: #{molformer_with_regression_head.2} parent=5 // pred_fallthru
        _
      %p497 = scmp.le.s32.totalorder 1, %s24
      %p498 = scmp.lt.s32.totalorder %s24, 3
      %p499 = pnand %p497, %p498
      %p500 = pneg %p499
      // Predicated region
      $region81: #{molformer_with_regression_head.2} parent=5 // pred_check
        _
      $region82: #{molformer_with_regression_head.2} parent=5 // pred_check_branch
        %502 = sbr.rel (%p499) target = $region84
      $region83: #{molformer_with_regression_head.2} parent=5 // pred_region
        %s503 = ssub.s32 %s24, 1
        // Predicated region
        $region85: #{molformer_with_regression_head.2} parent=83 // pred_check
          %p504 = pneg %p307
        $region86: #{molformer_with_regression_head.2} parent=83 // pred_check_branch
          %506 = sbr.rel (%p504) target = $region88
        $region87: #{molformer_with_regression_head.2} parent=83 // pred_region
          %507 = dma.done [#allocation4], 1024
        $region88: #{molformer_with_regression_head.2} parent=83 // pred_fallthru
          _
        // Predicated region
        $region89: #{molformer_with_regression_head.2} parent=83 // pred_check
          %p508 = pneg %p349
        $region90: #{molformer_with_regression_head.2} parent=83 // pred_check_branch
          %510 = sbr.rel (%p508) target = $region92
        $region91: #{molformer_with_regression_head.2} parent=83 // pred_region
          %511 = dma.done [#allocation6], 16
        $region92: #{molformer_with_regression_head.2} parent=83 // pred_fallthru
          _
        // Predicated region
        $region93: #{molformer_with_regression_head.2} parent=83 // pred_check
          %p512 = pneg %p370
        $region94: #{molformer_with_regression_head.2} parent=83 // pred_check_branch
          %514 = sbr.rel (%p512) target = $region96
        $region95: #{molformer_with_regression_head.2} parent=83 // pred_region
          %515 = dma.done [#allocation6], 16
        $region96: #{molformer_with_regression_head.2} parent=83 // pred_fallthru
          _
        %p516 = scmp.lt.s32.totalorder %s29, 1
        %s517 = scalar_select %p516, %s29, 1
        %s518 = smul.addr %s517, 16
        %s519 = smul.addr %s518, 4
        %s520 = scalar_lea.vmem %s0, %s519
        %p521 = pneg %p50
        %p522 = pneg %p47
        %p523 = scmp.lt.s32.totalorder %s29, 1
        %s524 = scalar_select %p523, %s29, 1
        %s525 = scalar_lea.vmem %s1, %s524
        %p526 = pneg %p76
        %p527 = pneg %p73
        %p528 = pneg %p97
        %p529 = pneg %p94
        %p530 = pneg %p118
        %p531 = pneg %p115
        %p532 = pneg %p139
        %p533 = pneg %p136
        %p534 = pneg %p160
        %p535 = pneg %p157
        %p536 = pneg %p181
        %p537 = pneg %p178
        %p538 = pneg %p202
        %p539 = pneg %p199
        %p540 = pneg %p223
        %p541 = pneg %p220
        %p542 = pneg %p244
        %p543 = pneg %p241
        %p544 = pneg %p265
        %p545 = pneg %p262
        %p546 = pneg %p286
        %p547 = pneg %p283
        %p548 = pneg %p307
        %p549 = pneg %p304
        %p550 = pneg %p328
        %p551 = pneg %p325
        %p552 = pneg %p349
        %p553 = pneg %p346
        %p554 = pneg %p370
        %p555 = pneg %p367
        %p556 = pneg %p396
        %p557 = pneg %p393
        %p558 = scmp.lt.s32.totalorder %s29, 1
        %s559 = scalar_select %p558, %s29, 1
        %s560 = smul.addr %s559, 16
        %s561 = smul.addr %s560, 4
        %s562 = scalar_lea.vmem %s16, %s561
        %p563 = scmp.lt.s32.totalorder %s29, 1
        %s564 = scalar_select %p563, %s29, 1
        %s565 = smul.addr %s564, 16
        %s566 = smul.addr %s565, 4
        %s567 = scalar_lea.vmem %s0, %s566
        %p568 = scmp.lt.s32.totalorder %s29, 1
        %s569 = scalar_select %p568, %s29, 1
        %s570 = scalar_lea.vmem %s1, %s569
        %p571 = scmp.lt.s32.totalorder %s29, 1
        %s572 = scalar_select %p571, %s29, 1
        %s573 = smul.addr %s572, 16
        %s574 = smul.addr %s573, 4
        %s575 = scalar_lea.vmem %s16, %s574
        %v577 = vlaneseq
        %v578 = vand.u32 %v577, 127
        %vm579 = vcmp.lt.s32.totalorder %v578, 32
        %v580 = vld [vmem:[%s567] sm:$0xf]
        %v581 = vld [vmem:[%s567 + $0x4] sm:$0xf]
        %v582 = vld [vmem:[%s567 + $0x8] sm:$0xf]
        %v583 = vld [vmem:[%s567 + $0xc] sm:$0xf]
        %v584 = vld [vmem:[%s567 + $0x10] sm:$0xf]
        %v585 = vld [vmem:[%s567 + $0x14] sm:$0xf]
        %v586 = vld [vmem:[%s567 + $0x18] sm:$0xf]
        %v587 = vld [vmem:[%s567 + $0x1c] sm:$0xf]
        %v588 = vld [vmem:[%s567 + $0x20] sm:$0xf]
        %v589 = vld [vmem:[%s567 + $0x24] sm:$0xf]
        %v590 = vld [vmem:[%s567 + $0x28] sm:$0xf]
        %v591 = vld [vmem:[%s567 + $0x2c] sm:$0xf]
        %v592 = vld [vmem:[%s567 + $0x30] sm:$0xf]
        %v593 = vld [vmem:[%s567 + $0x34] sm:$0xf]
        %v594 = vld [vmem:[%s567 + $0x38] sm:$0xf]
        %v595 = vld [vmem:[%s567 + $0x3c] sm:$0xf]
        %v596 = vunpack.c.l.bf16 %v580
        %v597 = vunpack.c.l.bf16 %v581
        %v598 = vunpack.c.l.bf16 %v582
        %v599 = vunpack.c.l.bf16 %v583
        %v600 = vunpack.c.l.bf16 %v584
        %v601 = vunpack.c.l.bf16 %v585
        %v602 = vunpack.c.l.bf16 %v586
        %v603 = vunpack.c.l.bf16 %v587
        %v604 = vunpack.c.l.bf16 %v588
        %v605 = vunpack.c.l.bf16 %v589
        %v606 = vunpack.c.l.bf16 %v590
        %v607 = vunpack.c.l.bf16 %v591
        %v608 = vunpack.c.l.bf16 %v592
        %v609 = vunpack.c.l.bf16 %v593
        %v610 = vunpack.c.l.bf16 %v594
        %v611 = vunpack.c.l.bf16 %v595
        %612 = vadd.xlane.f32.xlu0 %v596
        %v613 = vpop.xlane.xlu0 %612
        %614 = vadd.xlane.f32.xlu0 %v597
        %v615 = vpop.xlane.xlu0 %614
        %616 = vadd.xlane.f32.xlu0 %v598
        %v617 = vpop.xlane.xlu0 %616
        %618 = vadd.xlane.f32.xlu0 %v599
        %v619 = vpop.xlane.xlu0 %618
        %620 = vadd.xlane.f32.xlu0 %v600
        %v621 = vpop.xlane.xlu0 %620
        %622 = vadd.xlane.f32.xlu0 %v601
        %v623 = vpop.xlane.xlu0 %622
        %624 = vadd.xlane.f32.xlu0 %v602
        %v625 = vpop.xlane.xlu0 %624
        %626 = vadd.xlane.f32.xlu0 %v603
        %v627 = vpop.xlane.xlu0 %626
        %628 = vadd.xlane.f32.xlu0 %v604
        %v629 = vpop.xlane.xlu0 %628
        %630 = vadd.xlane.f32.xlu0 %v605
        %v631 = vpop.xlane.xlu0 %630
        %632 = vadd.xlane.f32.xlu0 %v606
        %v633 = vpop.xlane.xlu0 %632
        %634 = vadd.xlane.f32.xlu0 %v607
        %v635 = vpop.xlane.xlu0 %634
        %636 = vadd.xlane.f32.xlu0 %v608
        %v637 = vpop.xlane.xlu0 %636
        %638 = vadd.xlane.f32.xlu0 %v609
        %v639 = vpop.xlane.xlu0 %638
        %640 = vadd.xlane.f32.xlu0 %v610
        %v641 = vpop.xlane.xlu0 %640
        %642 = vadd.xlane.f32.xlu0 %v611
        %v643 = vpop.xlane.xlu0 %642
        %v644 = vmul.f32 %v613, 0.03125
        %v645 = vmul.f32 %v615, 0.03125
        %v646 = vmul.f32 %v617, 0.03125
        %v647 = vmul.f32 %v619, 0.03125
        %v648 = vmul.f32 %v621, 0.03125
        %v649 = vmul.f32 %v623, 0.03125
        %v650 = vmul.f32 %v625, 0.03125
        %v651 = vmul.f32 %v627, 0.03125
        %v652 = vmul.f32 %v629, 0.03125
        %v653 = vmul.f32 %v631, 0.03125
        %v654 = vmul.f32 %v633, 0.03125
        %v655 = vmul.f32 %v635, 0.03125
        %v656 = vmul.f32 %v637, 0.03125
        %v657 = vmul.f32 %v639, 0.03125
        %v658 = vmul.f32 %v641, 0.03125
        %v659 = vmul.f32 %v643, 0.03125
        %v660 = vsub.f32 %v596, %v644
        %v661 = vsub.f32 %v597, %v645
        %v662 = vsub.f32 %v598, %v646
        %v663 = vsub.f32 %v599, %v647
        %v664 = vsub.f32 %v600, %v648
        %v665 = vsub.f32 %v601, %v649
        %v666 = vsub.f32 %v602, %v650
        %v667 = vsub.f32 %v603, %v651
        %v668 = vsub.f32 %v604, %v652
        %v669 = vsub.f32 %v605, %v653
        %v670 = vsub.f32 %v606, %v654
        %v671 = vsub.f32 %v607, %v655
        %v672 = vsub.f32 %v608, %v656
        %v673 = vsub.f32 %v609, %v657
        %v674 = vsub.f32 %v610, %v658
        %v675 = vsub.f32 %v611, %v659
        %v676 = vsel %vm579, 1, 0
        %vm677 = vcmp.eq.s32.totalorder %v676, 1
        %v678 = vsel %vm677, %v660, 0.0
        %v679 = vsel %vm677, %v661, 0.0
        %v680 = vsel %vm677, %v662, 0.0
        %v681 = vsel %vm677, %v663, 0.0
        %v682 = vsel %vm677, %v664, 0.0
        %v683 = vsel %vm677, %v665, 0.0
        %v684 = vsel %vm677, %v666, 0.0
        %v685 = vsel %vm677, %v667, 0.0
        %v686 = vsel %vm677, %v668, 0.0
        %v687 = vsel %vm677, %v669, 0.0
        %v688 = vsel %vm677, %v670, 0.0
        %v689 = vsel %vm677, %v671, 0.0
        %v690 = vsel %vm677, %v672, 0.0
        %v691 = vsel %vm677, %v673, 0.0
        %v692 = vsel %vm677, %v674, 0.0
        %v693 = vsel %vm677, %v675, 0.0
        %v694 = vmul.f32 %v678, %v678
        %v695 = vmul.f32 %v679, %v679
        %v696 = vmul.f32 %v680, %v680
        %v697 = vmul.f32 %v681, %v681
        %v698 = vmul.f32 %v682, %v682
        %v699 = vmul.f32 %v683, %v683
        %v700 = vmul.f32 %v684, %v684
        %v701 = vmul.f32 %v685, %v685
        %v702 = vmul.f32 %v686, %v686
        %v703 = vmul.f32 %v687, %v687
        %v704 = vmul.f32 %v688, %v688
        %v705 = vmul.f32 %v689, %v689
        %v706 = vmul.f32 %v690, %v690
        %v707 = vmul.f32 %v691, %v691
        %v708 = vmul.f32 %v692, %v692
        %v709 = vmul.f32 %v693, %v693
        %710 = vadd.xlane.f32.xlu0 %v694
        %v711 = vpop.xlane.xlu0 %710
        %712 = vadd.xlane.f32.xlu0 %v695
        %v713 = vpop.xlane.xlu0 %712
        %714 = vadd.xlane.f32.xlu0 %v696
        %v715 = vpop.xlane.xlu0 %714
        %716 = vadd.xlane.f32.xlu0 %v697
        %v717 = vpop.xlane.xlu0 %716
        %718 = vadd.xlane.f32.xlu0 %v698
        %v719 = vpop.xlane.xlu0 %718
        %720 = vadd.xlane.f32.xlu0 %v699
        %v721 = vpop.xlane.xlu0 %720
        %722 = vadd.xlane.f32.xlu0 %v700
        %v723 = vpop.xlane.xlu0 %722
        %724 = vadd.xlane.f32.xlu0 %v701
        %v725 = vpop.xlane.xlu0 %724
        %726 = vadd.xlane.f32.xlu0 %v702
        %v727 = vpop.xlane.xlu0 %726
        %728 = vadd.xlane.f32.xlu0 %v703
        %v729 = vpop.xlane.xlu0 %728
        %730 = vadd.xlane.f32.xlu0 %v704
        %v731 = vpop.xlane.xlu0 %730
        %732 = vadd.xlane.f32.xlu0 %v705
        %v733 = vpop.xlane.xlu0 %732
        %734 = vadd.xlane.f32.xlu0 %v706
        %v735 = vpop.xlane.xlu0 %734
        %736 = vadd.xlane.f32.xlu0 %v707
        %v737 = vpop.xlane.xlu0 %736
        %738 = vadd.xlane.f32.xlu0 %v708
        %v739 = vpop.xlane.xlu0 %738
        %740 = vadd.xlane.f32.xlu0 %v709
        %v741 = vpop.xlane.xlu0 %740
        %v742 = vmul.f32 %v711, 0.03125
        %v743 = vmul.f32 %v713, 0.03125
        %v744 = vmul.f32 %v715, 0.03125
        %v745 = vmul.f32 %v717, 0.03125
        %v746 = vmul.f32 %v719, 0.03125
        %v747 = vmul.f32 %v721, 0.03125
        %v748 = vmul.f32 %v723, 0.03125
        %v749 = vmul.f32 %v725, 0.03125
        %v750 = vmul.f32 %v727, 0.03125
        %v751 = vmul.f32 %v729, 0.03125
        %v752 = vmul.f32 %v731, 0.03125
        %v753 = vmul.f32 %v733, 0.03125
        %v754 = vmul.f32 %v735, 0.03125
        %v755 = vmul.f32 %v737, 0.03125
        %v756 = vmul.f32 %v739, 0.03125
        %v757 = vmul.f32 %v741, 0.03125
        %v758 = vadd.f32 %v742, 1e-12
        %v759 = vadd.f32 %v743, 1e-12
        %v760 = vadd.f32 %v744, 1e-12
        %v761 = vadd.f32 %v745, 1e-12
        %v762 = vadd.f32 %v746, 1e-12
        %v763 = vadd.f32 %v747, 1e-12
        %v764 = vadd.f32 %v748, 1e-12
        %v765 = vadd.f32 %v749, 1e-12
        %v766 = vadd.f32 %v750, 1e-12
        %v767 = vadd.f32 %v751, 1e-12
        %v768 = vadd.f32 %v752, 1e-12
        %v769 = vadd.f32 %v753, 1e-12
        %v770 = vadd.f32 %v754, 1e-12
        %v771 = vadd.f32 %v755, 1e-12
        %v772 = vadd.f32 %v756, 1e-12
        %v773 = vadd.f32 %v757, 1e-12
        %v774 = vrsqrt.pop %v758
        %v775 = vrsqrt.pop %v759
        %v776 = vrsqrt.pop %v760
        %v777 = vrsqrt.pop %v761
        %v778 = vrsqrt.pop %v762
        %v779 = vrsqrt.pop %v763
        %v780 = vrsqrt.pop %v764
        %v781 = vrsqrt.pop %v765
        %v782 = vrsqrt.pop %v766
        %v783 = vrsqrt.pop %v767
        %v784 = vrsqrt.pop %v768
        %v785 = vrsqrt.pop %v769
        %v786 = vrsqrt.pop %v770
        %v787 = vrsqrt.pop %v771
        %v788 = vrsqrt.pop %v772
        %v789 = vrsqrt.pop %v773
        %v790 = vmul.f32 %v678, %v774
        %v791 = vmul.f32 %v679, %v775
        %v792 = vmul.f32 %v680, %v776
        %v793 = vmul.f32 %v681, %v777
        %v794 = vmul.f32 %v682, %v778
        %v795 = vmul.f32 %v683, %v779
        %v796 = vmul.f32 %v684, %v780
        %v797 = vmul.f32 %v685, %v781
        %v798 = vmul.f32 %v686, %v782
        %v799 = vmul.f32 %v687, %v783
        %v800 = vmul.f32 %v688, %v784
        %v801 = vmul.f32 %v689, %v785
        %v802 = vmul.f32 %v690, %v786
        %v803 = vmul.f32 %v691, %v787
        %v804 = vmul.f32 %v692, %v788
        %v805 = vmul.f32 %v693, %v789
        %v806 = vld [vmem:[%s2] sm:$0x1]
        %v808 = vlaneseq
        %v809 = vshrl.u32 %v808, 7
        %v810 = vsub.s32 0, %v809
        %v811 = vrot.slane %v806, %v810
        %v813 = vmul.f32 %v790, %v811
        %v814 = vmul.f32 %v791, %v811
        %v815 = vmul.f32 %v792, %v811
        %v816 = vmul.f32 %v793, %v811
        %v817 = vmul.f32 %v794, %v811
        %v818 = vmul.f32 %v795, %v811
        %v819 = vmul.f32 %v796, %v811
        %v820 = vmul.f32 %v797, %v811
        %v821 = vmul.f32 %v798, %v811
        %v822 = vmul.f32 %v799, %v811
        %v823 = vmul.f32 %v800, %v811
        %v824 = vmul.f32 %v801, %v811
        %v825 = vmul.f32 %v802, %v811
        %v826 = vmul.f32 %v803, %v811
        %v827 = vmul.f32 %v804, %v811
        %v828 = vmul.f32 %v805, %v811
        %v829 = vld [vmem:[%s3] sm:$0x1]
        %v831 = vlaneseq
        %v832 = vshrl.u32 %v831, 7
        %v833 = vsub.s32 0, %v832
        %v834 = vrot.slane %v829, %v833
        %v836 = vadd.f32 %v813, %v834
        %v837 = vadd.f32 %v814, %v834
        %v838 = vadd.f32 %v815, %v834
        %v839 = vadd.f32 %v816, %v834
        %v840 = vadd.f32 %v817, %v834
        %v841 = vadd.f32 %v818, %v834
        %v842 = vadd.f32 %v819, %v834
        %v843 = vadd.f32 %v820, %v834
        %v844 = vadd.f32 %v821, %v834
        %v845 = vadd.f32 %v822, %v834
        %v846 = vadd.f32 %v823, %v834
        %v847 = vadd.f32 %v824, %v834
        %v848 = vadd.f32 %v825, %v834
        %v849 = vadd.f32 %v826, %v834
        %v850 = vadd.f32 %v827, %v834
        %v851 = vadd.f32 %v828, %v834
        %v852 = vpack.c.bf16 %v837, %v836
        %v853 = vpack.c.bf16 %v839, %v838
        %v854 = vpack.c.bf16 %v841, %v840
        %v855 = vpack.c.bf16 %v843, %v842
        %v856 = vpack.c.bf16 %v845, %v844
        %v857 = vpack.c.bf16 %v847, %v846
        %v858 = vpack.c.bf16 %v849, %v848
        %v859 = vpack.c.bf16 %v851, %v850
        %v860 = vld [vmem:[%s4] sm:$0xff]
        %v861 = vld [vmem:[%s4 + $0x8] sm:$0xf]
        %v862 = vld [vmem:[%s4 + $0xc] sm:$0xff]
        %v863 = vld [vmem:[%s4 + $0x14] sm:$0xf]
        %v864 = vld [vmem:[%s4 + $0x18] sm:$0xff]
        %v865 = vld [vmem:[%s4 + $0x20] sm:$0xf]
        %v866 = vld [vmem:[%s4 + $0x24] sm:$0xff]
        %v867 = vld [vmem:[%s4 + $0x2c] sm:$0xf]
        %v868 = vld [vmem:[%s4 + $0x30] sm:$0xff]
        %v869 = vld [vmem:[%s4 + $0x38] sm:$0xf]
        %v870 = vld [vmem:[%s4 + $0x3c] sm:$0xff]
        %v871 = vld [vmem:[%s4 + $0x44] sm:$0xf]
        %v872 = vld [vmem:[%s4 + $0x48] sm:$0xff]
        %v873 = vld [vmem:[%s4 + $0x50] sm:$0xf]
        %v874 = vld [vmem:[%s4 + $0x54] sm:$0xff]
        %v875 = vld [vmem:[%s4 + $0x5c] sm:$0xf]
        %v876 = vld [vmem:[%s4 + $0x60] sm:$0xff]
        %v877 = vld [vmem:[%s4 + $0x68] sm:$0xf]
        %v878 = vld [vmem:[%s4 + $0x6c] sm:$0xff]
        %v879 = vld [vmem:[%s4 + $0x74] sm:$0xf]
        %v880 = vld [vmem:[%s4 + $0x78] sm:$0xff]
        %v881 = vld [vmem:[%s4 + $0x80] sm:$0xf]
        %v882 = vld [vmem:[%s4 + $0x84] sm:$0xff]
        %v883 = vld [vmem:[%s4 + $0x8c] sm:$0xf]
        %v884 = vld [vmem:[%s4 + $0x90] sm:$0xff]
        %v885 = vld [vmem:[%s4 + $0x98] sm:$0xf]
        %v886 = vld [vmem:[%s4 + $0x9c] sm:$0xff]
        %v887 = vld [vmem:[%s4 + $0xa4] sm:$0xf]
        %v888 = vld [vmem:[%s4 + $0xa8] sm:$0xff]
        %v889 = vld [vmem:[%s4 + $0xb0] sm:$0xf]
        %v890 = vld [vmem:[%s4 + $0xb4] sm:$0xff]
        %v891 = vld [vmem:[%s4 + $0xbc] sm:$0xf]
        %v892 = vld [vmem:[%s5] sm:$0x7]
        %v894 = vlaneseq
        %v895 = vshrl.u32 %v894, 7
        %v896 = vsub.s32 0, %v895
        %v897 = vrot.slane %v892, %v896
        %v898 = vlaneseq
        %v899 = vshrl.u32 %v898, 7
        %v900 = vsub.s32 1, %v899
        %v901 = vrot.slane %v892, %v900
        %v902 = vlaneseq
        %v903 = vshrl.u32 %v902, 7
        %v904 = vsub.s32 2, %v903
        %v905 = vrot.slane %v892, %v904
        %v941 = vunpack.c.l.b16 %v860
        %v942 = vunpack.c.h.b16 %v860
        %v943 = vunpack.c.l.b16 %v861
        %v944 = vunpack.c.l.b16 %v862
        %v945 = vunpack.c.h.b16 %v862
        %v946 = vunpack.c.l.b16 %v863
        %v947 = vunpack.c.l.b16 %v864
        %v948 = vunpack.c.h.b16 %v864
        %v949 = vunpack.c.l.b16 %v865
        %v950 = vunpack.c.l.b16 %v866
        %v951 = vunpack.c.h.b16 %v866
        %v952 = vunpack.c.l.b16 %v867
        %v953 = vunpack.c.l.b16 %v868
        %v954 = vunpack.c.h.b16 %v868
        %v955 = vunpack.c.l.b16 %v869
        %v956 = vunpack.c.l.b16 %v870
        %v957 = vunpack.c.h.b16 %v870
        %v958 = vunpack.c.l.b16 %v871
        %v959 = vunpack.c.l.b16 %v872
        %v960 = vunpack.c.h.b16 %v872
        %v961 = vunpack.c.l.b16 %v873
        %v962 = vunpack.c.l.b16 %v874
        %v963 = vunpack.c.h.b16 %v874
        %v964 = vunpack.c.l.b16 %v875
        %v965 = vunpack.c.l.b16 %v876
        %v966 = vunpack.c.h.b16 %v876
        %v967 = vunpack.c.l.b16 %v877
        %v968 = vunpack.c.l.b16 %v878
        %v969 = vunpack.c.h.b16 %v878
        %v970 = vunpack.c.l.b16 %v879
        %v971 = vunpack.c.l.b16 %v880
        %v972 = vunpack.c.h.b16 %v880
        %v973 = vunpack.c.l.b16 %v881
        %v974 = vunpack.c.l.b16 %v882
        %v975 = vunpack.c.h.b16 %v882
        %v976 = vunpack.c.l.b16 %v883
        %v977 = vunpack.c.l.b16 %v884
        %v978 = vunpack.c.h.b16 %v884
        %v979 = vunpack.c.l.b16 %v885
        %v980 = vunpack.c.l.b16 %v886
        %v981 = vunpack.c.h.b16 %v886
        %v982 = vunpack.c.l.b16 %v887
        %v983 = vunpack.c.l.b16 %v888
        %v984 = vunpack.c.h.b16 %v888
        %v985 = vunpack.c.l.b16 %v889
        %v986 = vunpack.c.l.b16 %v890
        %v987 = vunpack.c.h.b16 %v890
        %v988 = vunpack.c.l.b16 %v891
        %v989 = vpack.c.b16 %v944, %v941
        %v990 = vpack.c.b16 %v945, %v942
        %v991 = vpack.c.b16 %v946, %v943
        %v992 = vpack.c.b16 %v950, %v947
        %v993 = vpack.c.b16 %v951, %v948
        %v994 = vpack.c.b16 %v952, %v949
        %v995 = vpack.c.b16 %v956, %v953
        %v996 = vpack.c.b16 %v957, %v954
        %v997 = vpack.c.b16 %v958, %v955
        %v998 = vpack.c.b16 %v962, %v959
        %v999 = vpack.c.b16 %v963, %v960
        %v1000 = vpack.c.b16 %v964, %v961
        %v1001 = vpack.c.b16 %v968, %v965
        %v1002 = vpack.c.b16 %v969, %v966
        %v1003 = vpack.c.b16 %v970, %v967
        %v1004 = vpack.c.b16 %v974, %v971
        %v1005 = vpack.c.b16 %v975, %v972
        %v1006 = vpack.c.b16 %v976, %v973
        %v1007 = vpack.c.b16 %v980, %v977
        %v1008 = vpack.c.b16 %v981, %v978
        %v1009 = vpack.c.b16 %v982, %v979
        %v1010 = vpack.c.b16 %v986, %v983
        %v1011 = vpack.c.b16 %v987, %v984
        %v1012 = vpack.c.b16 %v988, %v985
        %1037 = vmatprep.subr.bf16.mxu0 %v990
        %1038 = vmatpush1.bf16.msra.mxu0 %v989
        %1039 = vmatprep.subr.bf16.mxu0 %v993
        %1040 = vmatpush1.bf16.msra.mxu0 %v992
        %1041 = vmatprep.subr.bf16.mxu0 %v996
        %1042 = vmatpush1.bf16.msra.mxu0 %v995
        %1043 = vmatprep.subr.bf16.mxu0 %v999
        %1044 = vmatpush1.bf16.msra.mxu0 %v998
        %1045 = vmatprep.subr.bf16.mxu0 %v1002
        %1046 = vmatpush1.bf16.msra.mxu0 %v1001
        %1047 = vmatprep.subr.bf16.mxu0 %v1005
        %1048 = vmatpush1.bf16.msra.mxu0 %v1004
        %1049 = vmatprep.subr.bf16.mxu0 %v1008
        %1050 = vmatpush1.bf16.msra.mxu0 %v1007
        %1051 = vmatprep.subr.bf16.mxu0 %v1011
        %1052 = vmatpush1.bf16.msra.mxu0 %v1010
        %1053 = vmatprep.subr.bf16.mxu0 0
        %1054 = vmatpush1.bf16.msra.mxu0 0
        %1055 = vmatprep.subr.bf16.mxu0 0
        %1056 = vmatpush1.bf16.msra.mxu0 0
        %1057 = vmatprep.subr.bf16.mxu0 0
        %1058 = vmatpush1.bf16.msra.mxu0 0
        %1059 = vmatprep.subr.bf16.mxu0 0
        %1060 = vmatpush1.bf16.msra.mxu0 0
        %1061 = vmatprep.subr.bf16.mxu0 0
        %1062 = vmatpush1.bf16.msra.mxu0 0
        %1063 = vmatprep.subr.bf16.mxu0 0
        %1064 = vmatpush1.bf16.msra.mxu0 0
        %1065 = vmatprep.subr.bf16.mxu0 0
        %1066 = vmatpush1.bf16.msra.mxu0 0
        %1067 = vmatprep.subr.bf16.mxu0 0
        %1068 = vmatpush1.bf16.msra.mxu0 0
        %1069 = vmatprep.mubr.bf16.mxu0 0
        %1070 = vmatmul.mubr.bf16.gmra.mrb[0].mxu0 %v852
        %v1071 = vpop.f32.mrb[0].mxu0
        %v1072 = vadd.f32 %v897, %v1071
        %v1073 = vpop.f32.mrb[0].mxu0
        %v1074 = vadd.f32 %v901, %v1073
        %v1075 = vpop.f32.mrb[0].mxu0
        %v1076 = vadd.f32 %v897, %v1075
        %v1077 = vpop.f32.mrb[0].mxu0
        %v1078 = vadd.f32 %v901, %v1077
        %1079 = vmatprep.mubr.bf16.mxu0 0
        %1080 = vmatmul.mubr.bf16.gmra.mrb[0].mxu0 %v853
        %v1081 = vpop.f32.mrb[0].mxu0
        %v1082 = vadd.f32 %v897, %v1081
        %v1083 = vpop.f32.mrb[0].mxu0
        %v1084 = vadd.f32 %v901, %v1083
        %v1085 = vpop.f32.mrb[0].mxu0
        %v1086 = vadd.f32 %v897, %v1085
        %v1087 = vpop.f32.mrb[0].mxu0
        %v1088 = vadd.f32 %v901, %v1087
        %1089 = vmatprep.mubr.bf16.mxu0 0
        %1090 = vmatmul.mubr.bf16.gmra.mrb[0].mxu0 %v854
        %v1091 = vpop.f32.mrb[0].mxu0
        %v1092 = vadd.f32 %v897, %v1091
        %v1093 = vpop.f32.mrb[0].mxu0
        %v1094 = vadd.f32 %v901, %v1093
        %v1095 = vpop.f32.mrb[0].mxu0
        %v1096 = vadd.f32 %v897, %v1095
        %v1097 = vpop.f32.mrb[0].mxu0
        %v1098 = vadd.f32 %v901, %v1097
        %1099 = vmatprep.mubr.bf16.mxu0 0
        %1100 = vmatmul.mubr.bf16.gmra.mrb[0].mxu0 %v855
        %v1101 = vpop.f32.mrb[0].mxu0
        %v1102 = vadd.f32 %v897, %v1101
        %v1103 = vpop.f32.mrb[0].mxu0
        %v1104 = vadd.f32 %v901, %v1103
        %v1105 = vpop.f32.mrb[0].mxu0
        %v1106 = vadd.f32 %v897, %v1105
        %v1107 = vpop.f32.mrb[0].mxu0
        %v1108 = vadd.f32 %v901, %v1107
        %1109 = vmatprep.mubr.bf16.mxu0 0
        %1110 = vmatmul.mubr.bf16.gmra.mrb[0].mxu0 %v856
        %v1111 = vpop.f32.mrb[0].mxu0
        %v1112 = vadd.f32 %v897, %v1111
        %v1113 = vpop.f32.mrb[0].mxu0
        %v1114 = vadd.f32 %v901, %v1113
        %v1115 = vpop.f32.mrb[0].mxu0
        %v1116 = vadd.f32 %v897, %v1115
        %v1117 = vpop.f32.mrb[0].mxu0
        %v1118 = vadd.f32 %v901, %v1117
        %1119 = vmatprep.mubr.bf16.mxu0 0
        %1120 = vmatmul.mubr.bf16.gmra.mrb[0].mxu0 %v857
        %v1121 = vpop.f32.mrb[0].mxu0
        %v1122 = vadd.f32 %v897, %v1121
        %v1123 = vpop.f32.mrb[0].mxu0
        %v1124 = vadd.f32 %v901, %v1123
        %v1125 = vpop.f32.mrb[0].mxu0
        %v1126 = vadd.f32 %v897, %v1125
        %v1127 = vpop.f32.mrb[0].mxu0
        %v1128 = vadd.f32 %v901, %v1127
        %1129 = vmatprep.mubr.bf16.mxu0 0
        %1130 = vmatmul.mubr.bf16.gmra.mrb[0].mxu0 %v858
        %v1131 = vpop.f32.mrb[0].mxu0
        %v1132 = vadd.f32 %v897, %v1131
        %v1133 = vpop.f32.mrb[0].mxu0
        %v1134 = vadd.f32 %v901, %v1133
        %v1135 = vpop.f32.mrb[0].mxu0
        %v1136 = vadd.f32 %v897, %v1135
        %v1137 = vpop.f32.mrb[0].mxu0
        %v1138 = vadd.f32 %v901, %v1137
        %1139 = vmatprep.mubr.bf16.mxu0 0
        %1140 = vmatmul.mubr.bf16.gmra.mrb[0].mxu0 %v859
        %v1141 = vpop.f32.mrb[0].mxu0
        %v1142 = vadd.f32 %v897, %v1141
        %v1143 = vpop.f32.mrb[0].mxu0
        %v1144 = vadd.f32 %v901, %v1143
        %v1145 = vpop.f32.mrb[0].mxu0
        %v1146 = vadd.f32 %v897, %v1145
        %v1147 = vpop.f32.mrb[0].mxu0
        %v1148 = vadd.f32 %v901, %v1147
        %1149 = vdwg.mxu0
        %1150 = vmatprep.subr.bf16.mxu0 0
        %1151 = vmatpush1.bf16.msra.mxu0 %v991
        %1152 = vmatprep.subr.bf16.mxu0 0
        %1153 = vmatpush1.bf16.msra.mxu0 %v994
        %1154 = vmatprep.subr.bf16.mxu0 0
        %1155 = vmatpush1.bf16.msra.mxu0 %v997
        %1156 = vmatprep.subr.bf16.mxu0 0
        %1157 = vmatpush1.bf16.msra.mxu0 %v1000
        %1158 = vmatprep.subr.bf16.mxu0 0
        %1159 = vmatpush1.bf16.msra.mxu0 %v1003
        %1160 = vmatprep.subr.bf16.mxu0 0
        %1161 = vmatpush1.bf16.msra.mxu0 %v1006
        %1162 = vmatprep.subr.bf16.mxu0 0
        %1163 = vmatpush1.bf16.msra.mxu0 %v1009
        %1164 = vmatprep.subr.bf16.mxu0 0
        %1165 = vmatpush1.bf16.msra.mxu0 %v1012
        %1166 = vmatprep.subr.bf16.mxu0 0
        %1167 = vmatpush1.bf16.msra.mxu0 0
        %1168 = vmatprep.subr.bf16.mxu0 0
        %1169 = vmatpush1.bf16.msra.mxu0 0
        %1170 = vmatprep.subr.bf16.mxu0 0
        %1171 = vmatpush1.bf16.msra.mxu0 0
        %1172 = vmatprep.subr.bf16.mxu0 0
        %1173 = vmatpush1.bf16.msra.mxu0 0
        %1174 = vmatprep.subr.bf16.mxu0 0
        %1175 = vmatpush1.bf16.msra.mxu0 0
        %1176 = vmatprep.subr.bf16.mxu0 0
        %1177 = vmatpush1.bf16.msra.mxu0 0
        %1178 = vmatprep.subr.bf16.mxu0 0
        %1179 = vmatpush1.bf16.msra.mxu0 0
        %1180 = vmatprep.subr.bf16.mxu0 0
        %1181 = vmatpush1.bf16.msra.mxu0 0
        %1182 = vmatprep.mubr.bf16.mxu0 0
        %1183 = vmatmul.mubr.bf16.gmra.mrb[0].mxu0 %v852
        %v1184 = vpop.f32.mrb[0].mxu0
        %v1185 = vadd.f32 %v905, %v1184
        %v1186 = vpop.f32.mrb[0].mxu0
        %v1187 = vpop.f32.mrb[0].mxu0
        %v1188 = vadd.f32 %v905, %v1187
        %v1189 = vpop.f32.mrb[0].mxu0
        %1190 = vmatprep.mubr.bf16.mxu0 0
        %1191 = vmatmul.mubr.bf16.gmra.mrb[0].mxu0 %v853
        %v1192 = vpop.f32.mrb[0].mxu0
        %v1193 = vadd.f32 %v905, %v1192
        %v1194 = vpop.f32.mrb[0].mxu0
        %v1195 = vpop.f32.mrb[0].mxu0
        %v1196 = vadd.f32 %v905, %v1195
        %v1197 = vpop.f32.mrb[0].mxu0
        %1198 = vmatprep.mubr.bf16.mxu0 0
        %1199 = vmatmul.mubr.bf16.gmra.mrb[0].mxu0 %v854
        %v1200 = vpop.f32.mrb[0].mxu0
        %v1201 = vadd.f32 %v905, %v1200
        %v1202 = vpop.f32.mrb[0].mxu0
        %v1203 = vpop.f32.mrb[0].mxu0
        %v1204 = vadd.f32 %v905, %v1203
        %v1205 = vpop.f32.mrb[0].mxu0
        %1206 = vmatprep.mubr.bf16.mxu0 0
        %1207 = vmatmul.mubr.bf16.gmra.mrb[0].mxu0 %v855
        %v1208 = vpop.f32.mrb[0].mxu0
        %v1209 = vadd.f32 %v905, %v1208
        %v1210 = vpop.f32.mrb[0].mxu0
        %v1211 = vpop.f32.mrb[0].mxu0
        %v1212 = vadd.f32 %v905, %v1211
        %v1213 = vpop.f32.mrb[0].mxu0
        %1214 = vmatprep.mubr.bf16.mxu0 0
        %1215 = vmatmul.mubr.bf16.gmra.mrb[0].mxu0 %v856
        %v1216 = vpop.f32.mrb[0].mxu0
        %v1217 = vadd.f32 %v905, %v1216
        %v1218 = vpop.f32.mrb[0].mxu0
        %v1219 = vpop.f32.mrb[0].mxu0
        %v1220 = vadd.f32 %v905, %v1219
        %v1221 = vpop.f32.mrb[0].mxu0
        %1222 = vmatprep.mubr.bf16.mxu0 0
        %1223 = vmatmul.mubr.bf16.gmra.mrb[0].mxu0 %v857
        %v1224 = vpop.f32.mrb[0].mxu0
        %v1225 = vadd.f32 %v905, %v1224
        %v1226 = vpop.f32.mrb[0].mxu0
        %v1227 = vpop.f32.mrb[0].mxu0
        %v1228 = vadd.f32 %v905, %v1227
        %v1229 = vpop.f32.mrb[0].mxu0
        %1230 = vmatprep.mubr.bf16.mxu0 0
        %1231 = vmatmul.mubr.bf16.gmra.mrb[0].mxu0 %v858
        %v1232 = vpop.f32.mrb[0].mxu0
        %v1233 = vadd.f32 %v905, %v1232
        %v1234 = vpop.f32.mrb[0].mxu0
        %v1235 = vpop.f32.mrb[0].mxu0
        %v1236 = vadd.f32 %v905, %v1235
        %v1237 = vpop.f32.mrb[0].mxu0
        %1238 = vmatprep.mubr.bf16.mxu0 0
        %1239 = vmatmul.mubr.bf16.gmra.mrb[0].mxu0 %v859
        %v1240 = vpop.f32.mrb[0].mxu0
        %v1241 = vadd.f32 %v905, %v1240
        %v1242 = vpop.f32.mrb[0].mxu0
        %v1243 = vpop.f32.mrb[0].mxu0
        %v1244 = vadd.f32 %v905, %v1243
        %v1245 = vpop.f32.mrb[0].mxu0
        %1246 = vdwg.mxu0
        %v1247 = vld [vmem:[%s570] sm:$0x1]
        %1248 = vst [vmem:[#allocation2] sm:$0xff] 0
        %1249 = vst [vmem:[#allocation2 + $0x8] sm:$0xff] 0
        %1250 = vst [vmem:[#allocation2 + $0x10] sm:$0xff] 0
        %1251 = vst [vmem:[#allocation2 + $0x18] sm:$0xff] 0
        %1252 = vst [vmem:[#allocation2 + $0x20] sm:$0xff] 0
        %1253 = vst [vmem:[#allocation2 + $0x28] sm:$0xff] 0
        %1254 = vst [vmem:[#allocation2 + $0x30] sm:$0xff] 0
        %1255 = vst [vmem:[#allocation2 + $0x38] sm:$0xff] 0
        %v1256 = vpack.c.bf16 %v1076, %v1072
        %v1257 = vpack.c.bf16 %v1086, %v1082
        %v1258 = vpack.c.bf16 %v1096, %v1092
        %v1259 = vpack.c.bf16 %v1106, %v1102
        %v1260 = vpack.c.bf16 %v1116, %v1112
        %v1261 = vpack.c.bf16 %v1126, %v1122
        %v1262 = vpack.c.bf16 %v1136, %v1132
        %v1263 = vpack.c.bf16 %v1146, %v1142
        %v1264 = vpack.c.bf16 %v1078, %v1074
        %v1265 = vpack.c.bf16 %v1088, %v1084
        %v1266 = vpack.c.bf16 %v1098, %v1094
        %v1267 = vpack.c.bf16 %v1108, %v1104
        %v1268 = vpack.c.bf16 %v1118, %v1114
        %v1269 = vpack.c.bf16 %v1128, %v1124
        %v1270 = vpack.c.bf16 %v1138, %v1134
        %v1271 = vpack.c.bf16 %v1148, %v1144
        %v1272 = vpack.c.bf16 %v1188, %v1185
        %v1273 = vpack.c.bf16 %v1196, %v1193
        %v1274 = vpack.c.bf16 %v1204, %v1201
        %v1275 = vpack.c.bf16 %v1212, %v1209
        %v1276 = vpack.c.bf16 %v1220, %v1217
        %v1277 = vpack.c.bf16 %v1228, %v1225
        %v1278 = vpack.c.bf16 %v1236, %v1233
        %v1279 = vpack.c.bf16 %v1244, %v1241
        %v1281 = vlaneseq
        %v1282 = vshrl.u32 %v1281, 7
        %v1283 = vsub.s32 0, %v1282
        %v1284 = vrot.slane %v1247, %v1283
        %vm1286 = vcmask 64512
        %v1288 = vsel %vm1286, %v1256, 0
        %v1291 = vsel %vm1286, %v1257, 0
        %v1294 = vsel %vm1286, %v1258, 0
        %v1297 = vsel %vm1286, %v1259, 0
        %v1300 = vsel %vm1286, %v1260, 0
        %v1303 = vsel %vm1286, %v1261, 0
        %v1306 = vsel %vm1286, %v1262, 0
        %v1309 = vsel %vm1286, %v1263, 0
        %v1312 = vsel %vm1286, %v1264, 0
        %v1315 = vsel %vm1286, %v1265, 0
        %v1318 = vsel %vm1286, %v1266, 0
        %v1321 = vsel %vm1286, %v1267, 0
        %v1324 = vsel %vm1286, %v1268, 0
        %v1327 = vsel %vm1286, %v1269, 0
        %v1330 = vsel %vm1286, %v1270, 0
        %v1333 = vsel %vm1286, %v1271, 0
        %1335 = vmatprep.subr.bf16.mxu0 0
        %1336 = vmatpush1.bf16.xpose.msra.mxu0 %v1312
        %1337 = vmatprep.subr.bf16.mxu0 0
        %1338 = vmatpush1.bf16.xpose.msra.mxu0 %v1315
        %1339 = vmatprep.subr.bf16.mxu0 0
        %1340 = vmatpush1.bf16.xpose.msra.mxu0 %v1318
        %1341 = vmatprep.subr.bf16.mxu0 0
        %1342 = vmatpush1.bf16.xpose.msra.mxu0 %v1321
        %1343 = vmatprep.subr.bf16.mxu0 0
        %1344 = vmatpush1.bf16.xpose.msra.mxu0 %v1324
        %1345 = vmatprep.subr.bf16.mxu0 0
        %1346 = vmatpush1.bf16.xpose.msra.mxu0 %v1327
        %1347 = vmatprep.subr.bf16.mxu0 0
        %1348 = vmatpush1.bf16.xpose.msra.mxu0 %v1330
        %1349 = vmatprep.subr.bf16.mxu0 0
        %1350 = vmatpush1.bf16.xpose.msra.mxu0 %v1333
        %1351 = vmatprep.subr.bf16.mxu0 0
        %1352 = vmatpush1.bf16.xpose.msra.mxu0 0
        %1353 = vmatprep.subr.bf16.mxu0 0
        %1354 = vmatpush1.bf16.xpose.msra.mxu0 0
        %1355 = vmatprep.subr.bf16.mxu0 0
        %1356 = vmatpush1.bf16.xpose.msra.mxu0 0
        %1357 = vmatprep.subr.bf16.mxu0 0
        %1358 = vmatpush1.bf16.xpose.msra.mxu0 0
        %1359 = vmatprep.subr.bf16.mxu0 0
        %1360 = vmatpush1.bf16.xpose.msra.mxu0 0
        %1361 = vmatprep.subr.bf16.mxu0 0
        %1362 = vmatpush1.bf16.xpose.msra.mxu0 0
        %1363 = vmatprep.subr.bf16.mxu0 0
        %1364 = vmatpush1.bf16.xpose.msra.mxu0 0
        %1365 = vmatprep.subr.bf16.mxu0 0
        %1366 = vmatpush1.bf16.xpose.msra.mxu0 0
        %1367 = vmatprep.mubr.bf16.mxu0 0
        %1368 = vmatmul.mubr.bf16.gmra.mrb[0].mxu0 %v1288
        %v1369 = vpop.f32.mrb[0].mxu0
        %v1370 = vadd.f32 %v1284, %v1369
        %v1371 = vpop.f32.mrb[0].mxu0
        %v1372 = vpop.f32.mrb[0].mxu0
        %v1373 = vadd.f32 %v1284, %v1372
        %v1374 = vpop.f32.mrb[0].mxu0
        %1375 = vmatprep.mubr.bf16.mxu0 0
        %1376 = vmatmul.mubr.bf16.gmra.mrb[0].mxu0 %v1291
        %v1377 = vpop.f32.mrb[0].mxu0
        %v1378 = vadd.f32 %v1284, %v1377
        %v1379 = vpop.f32.mrb[0].mxu0
        %v1380 = vpop.f32.mrb[0].mxu0
        %v1381 = vadd.f32 %v1284, %v1380
        %v1382 = vpop.f32.mrb[0].mxu0
        %1383 = vmatprep.mubr.bf16.mxu0 0
        %1384 = vmatmul.mubr.bf16.gmra.mrb[0].mxu0 %v1294
        %v1385 = vpop.f32.mrb[0].mxu0
        %v1386 = vadd.f32 %v1284, %v1385
        %v1387 = vpop.f32.mrb[0].mxu0
        %v1388 = vpop.f32.mrb[0].mxu0
        %v1389 = vadd.f32 %v1284, %v1388
        %v1390 = vpop.f32.mrb[0].mxu0
        %1391 = vmatprep.mubr.bf16.mxu0 0
        %1392 = vmatmul.mubr.bf16.gmra.mrb[0].mxu0 %v1297
        %v1393 = vpop.f32.mrb[0].mxu0
        %v1394 = vadd.f32 %v1284, %v1393
        %v1395 = vpop.f32.mrb[0].mxu0
        %v1396 = vpop.f32.mrb[0].mxu0
        %v1397 = vadd.f32 %v1284, %v1396
        %v1398 = vpop.f32.mrb[0].mxu0
        %1399 = vmatprep.mubr.bf16.mxu0 0
        %1400 = vmatmul.mubr.bf16.gmra.mrb[0].mxu0 %v1300
        %v1401 = vpop.f32.mrb[0].mxu0
        %v1402 = vadd.f32 %v1284, %v1401
        %v1403 = vpop.f32.mrb[0].mxu0
        %v1404 = vpop.f32.mrb[0].mxu0
        %v1405 = vadd.f32 %v1284, %v1404
        %v1406 = vpop.f32.mrb[0].mxu0
        %1407 = vmatprep.mubr.bf16.mxu0 0
        %1408 = vmatmul.mubr.bf16.gmra.mrb[0].mxu0 %v1303
        %v1409 = vpop.f32.mrb[0].mxu0
        %v1410 = vadd.f32 %v1284, %v1409
        %v1411 = vpop.f32.mrb[0].mxu0
        %v1412 = vpop.f32.mrb[0].mxu0
        %v1413 = vadd.f32 %v1284, %v1412
        %v1414 = vpop.f32.mrb[0].mxu0
        %1415 = vmatprep.mubr.bf16.mxu0 0
        %1416 = vmatmul.mubr.bf16.gmra.mrb[0].mxu0 %v1306
        %v1417 = vpop.f32.mrb[0].mxu0
        %v1418 = vadd.f32 %v1284, %v1417
        %v1419 = vpop.f32.mrb[0].mxu0
        %v1420 = vpop.f32.mrb[0].mxu0
        %v1421 = vadd.f32 %v1284, %v1420
        %v1422 = vpop.f32.mrb[0].mxu0
        %1423 = vmatprep.mubr.bf16.mxu0 0
        %1424 = vmatmul.mubr.bf16.gmra.mrb[0].mxu0 %v1309
        %v1425 = vpop.f32.mrb[0].mxu0
        %v1426 = vadd.f32 %v1284, %v1425
        %v1427 = vpop.f32.mrb[0].mxu0
        %v1428 = vpop.f32.mrb[0].mxu0
        %v1429 = vadd.f32 %v1284, %v1428
        %v1430 = vpop.f32.mrb[0].mxu0
        %1431 = vdwg.mxu0
        %1432 = vmax.xlane.f32.xlu0 %v1370
        %v1433 = vpop.xlane.xlu0 %1432
        %1434 = vmax.xlane.f32.xlu0 %v1373
        %v1435 = vpop.xlane.xlu0 %1434
        %1436 = vmax.xlane.f32.xlu0 %v1378
        %v1437 = vpop.xlane.xlu0 %1436
        %1438 = vmax.xlane.f32.xlu0 %v1381
        %v1439 = vpop.xlane.xlu0 %1438
        %1440 = vmax.xlane.f32.xlu0 %v1386
        %v1441 = vpop.xlane.xlu0 %1440
        %1442 = vmax.xlane.f32.xlu0 %v1389
        %v1443 = vpop.xlane.xlu0 %1442
        %1444 = vmax.xlane.f32.xlu0 %v1394
        %v1445 = vpop.xlane.xlu0 %1444
        %1446 = vmax.xlane.f32.xlu0 %v1397
        %v1447 = vpop.xlane.xlu0 %1446
        %1448 = vmax.xlane.f32.xlu0 %v1402
        %v1449 = vpop.xlane.xlu0 %1448
        %1450 = vmax.xlane.f32.xlu0 %v1405
        %v1451 = vpop.xlane.xlu0 %1450
        %1452 = vmax.xlane.f32.xlu0 %v1410
        %v1453 = vpop.xlane.xlu0 %1452
        %1454 = vmax.xlane.f32.xlu0 %v1413
        %v1455 = vpop.xlane.xlu0 %1454
        %1456 = vmax.xlane.f32.xlu0 %v1418
        %v1457 = vpop.xlane.xlu0 %1456
        %1458 = vmax.xlane.f32.xlu0 %v1421
        %v1459 = vpop.xlane.xlu0 %1458
        %1460 = vmax.xlane.f32.xlu0 %v1426
        %v1461 = vpop.xlane.xlu0 %1460
        %1462 = vmax.xlane.f32.xlu0 %v1429
        %v1463 = vpop.xlane.xlu0 %1462
        %v1464 = vsub.f32 %v1370, %v1433
        %v1465 = vsub.f32 %v1373, %v1435
        %v1466 = vsub.f32 %v1378, %v1437
        %v1467 = vsub.f32 %v1381, %v1439
        %v1468 = vsub.f32 %v1386, %v1441
        %v1469 = vsub.f32 %v1389, %v1443
        %v1470 = vsub.f32 %v1394, %v1445
        %v1471 = vsub.f32 %v1397, %v1447
        %v1472 = vsub.f32 %v1402, %v1449
        %v1473 = vsub.f32 %v1405, %v1451
        %v1474 = vsub.f32 %v1410, %v1453
        %v1475 = vsub.f32 %v1413, %v1455
        %v1476 = vsub.f32 %v1418, %v1457
        %v1477 = vsub.f32 %v1421, %v1459
        %v1478 = vsub.f32 %v1426, %v1461
        %v1479 = vsub.f32 %v1429, %v1463
        %v1480 = vmul.f32 %v1464, 1.442695
        %v1481 = vpow.pop %v1480
        %v1482 = vmul.f32 %v1465, 1.442695
        %v1483 = vpow.pop %v1482
        %v1484 = vmul.f32 %v1466, 1.442695
        %v1485 = vpow.pop %v1484
        %v1486 = vmul.f32 %v1467, 1.442695
        %v1487 = vpow.pop %v1486
        %v1488 = vmul.f32 %v1468, 1.442695
        %v1489 = vpow.pop %v1488
        %v1490 = vmul.f32 %v1469, 1.442695
        %v1491 = vpow.pop %v1490
        %v1492 = vmul.f32 %v1470, 1.442695
        %v1493 = vpow.pop %v1492
        %v1494 = vmul.f32 %v1471, 1.442695
        %v1495 = vpow.pop %v1494
        %v1496 = vmul.f32 %v1472, 1.442695
        %v1497 = vpow.pop %v1496
        %v1498 = vmul.f32 %v1473, 1.442695
        %v1499 = vpow.pop %v1498
        %v1500 = vmul.f32 %v1474, 1.442695
        %v1501 = vpow.pop %v1500
        %v1502 = vmul.f32 %v1475, 1.442695
        %v1503 = vpow.pop %v1502
        %v1504 = vmul.f32 %v1476, 1.442695
        %v1505 = vpow.pop %v1504
        %v1506 = vmul.f32 %v1477, 1.442695
        %v1507 = vpow.pop %v1506
        %v1508 = vmul.f32 %v1478, 1.442695
        %v1509 = vpow.pop %v1508
        %v1510 = vmul.f32 %v1479, 1.442695
        %v1511 = vpow.pop %v1510
        %1512 = vadd.xlane.f32.xlu0 %v1481
        %v1513 = vpop.xlane.xlu0 %1512
        %1514 = vadd.xlane.f32.xlu0 %v1483
        %v1515 = vpop.xlane.xlu0 %1514
        %1516 = vadd.xlane.f32.xlu0 %v1485
        %v1517 = vpop.xlane.xlu0 %1516
        %1518 = vadd.xlane.f32.xlu0 %v1487
        %v1519 = vpop.xlane.xlu0 %1518
        %1520 = vadd.xlane.f32.xlu0 %v1489
        %v1521 = vpop.xlane.xlu0 %1520
        %1522 = vadd.xlane.f32.xlu0 %v1491
        %v1523 = vpop.xlane.xlu0 %1522
        %1524 = vadd.xlane.f32.xlu0 %v1493
        %v1525 = vpop.xlane.xlu0 %1524
        %1526 = vadd.xlane.f32.xlu0 %v1495
        %v1527 = vpop.xlane.xlu0 %1526
        %1528 = vadd.xlane.f32.xlu0 %v1497
        %v1529 = vpop.xlane.xlu0 %1528
        %1530 = vadd.xlane.f32.xlu0 %v1499
        %v1531 = vpop.xlane.xlu0 %1530
        %1532 = vadd.xlane.f32.xlu0 %v1501
        %v1533 = vpop.xlane.xlu0 %1532
        %1534 = vadd.xlane.f32.xlu0 %v1503
        %v1535 = vpop.xlane.xlu0 %1534
        %1536 = vadd.xlane.f32.xlu0 %v1505
        %v1537 = vpop.xlane.xlu0 %1536
        %1538 = vadd.xlane.f32.xlu0 %v1507
        %v1539 = vpop.xlane.xlu0 %1538
        %1540 = vadd.xlane.f32.xlu0 %v1509
        %v1541 = vpop.xlane.xlu0 %1540
        %1542 = vadd.xlane.f32.xlu0 %v1511
        %v1543 = vpop.xlane.xlu0 %1542
        %v1544 = vrcp.pop %v1513
        %v1545 = vrcp.pop %v1515
        %v1546 = vrcp.pop %v1517
        %v1547 = vrcp.pop %v1519
        %v1548 = vrcp.pop %v1521
        %v1549 = vrcp.pop %v1523
        %v1550 = vrcp.pop %v1525
        %v1551 = vrcp.pop %v1527
        %v1552 = vrcp.pop %v1529
        %v1553 = vrcp.pop %v1531
        %v1554 = vrcp.pop %v1533
        %v1555 = vrcp.pop %v1535
        %v1556 = vrcp.pop %v1537
        %v1557 = vrcp.pop %v1539
        %v1558 = vrcp.pop %v1541
        %v1559 = vrcp.pop %v1543
        %v1560 = vmul.f32 %v1481, %v1544
        %v1561 = vmul.f32 %v1483, %v1545
        %v1562 = vmul.f32 %v1485, %v1546
        %v1563 = vmul.f32 %v1487, %v1547
        %v1564 = vmul.f32 %v1489, %v1548
        %v1565 = vmul.f32 %v1491, %v1549
        %v1566 = vmul.f32 %v1493, %v1550
        %v1567 = vmul.f32 %v1495, %v1551
        %v1568 = vmul.f32 %v1497, %v1552
        %v1569 = vmul.f32 %v1499, %v1553
        %v1570 = vmul.f32 %v1501, %v1554
        %v1571 = vmul.f32 %v1503, %v1555
        %v1572 = vmul.f32 %v1505, %v1556
        %v1573 = vmul.f32 %v1507, %v1557
        %v1574 = vmul.f32 %v1509, %v1558
        %v1575 = vmul.f32 %v1511, %v1559
        %v1576 = vpack.c.bf16 %v1561, %v1560
        %v1577 = vpack.c.bf16 %v1563, %v1562
        %v1578 = vpack.c.bf16 %v1565, %v1564
        %v1579 = vpack.c.bf16 %v1567, %v1566
        %v1580 = vpack.c.bf16 %v1569, %v1568
        %v1581 = vpack.c.bf16 %v1571, %v1570
        %v1582 = vpack.c.bf16 %v1573, %v1572
        %v1583 = vpack.c.bf16 %v1575, %v1574
        %1584 = vmatprep.subr.bf16.mxu0 0
        %1585 = vmatpush1.bf16.msra.mxu0 %v1272
        %1586 = vmatprep.subr.bf16.mxu0 0
        %1587 = vmatpush1.bf16.msra.mxu0 %v1273
        %1588 = vmatprep.subr.bf16.mxu0 0
        %1589 = vmatpush1.bf16.msra.mxu0 %v1274
        %1590 = vmatprep.subr.bf16.mxu0 0
        %1591 = vmatpush1.bf16.msra.mxu0 %v1275
        %1592 = vmatprep.subr.bf16.mxu0 0
        %1593 = vmatpush1.bf16.msra.mxu0 %v1276
        %1594 = vmatprep.subr.bf16.mxu0 0
        %1595 = vmatpush1.bf16.msra.mxu0 %v1277
        %1596 = vmatprep.subr.bf16.mxu0 0
        %1597 = vmatpush1.bf16.msra.mxu0 %v1278
        %1598 = vmatprep.subr.bf16.mxu0 0
        %1599 = vmatpush1.bf16.msra.mxu0 %v1279
        %1600 = vmatprep.subr.bf16.mxu0 0
        %1601 = vmatpush1.bf16.msra.mxu0 0
        %1602 = vmatprep.subr.bf16.mxu0 0
        %1603 = vmatpush1.bf16.msra.mxu0 0
        %1604 = vmatprep.subr.bf16.mxu0 0
        %1605 = vmatpush1.bf16.msra.mxu0 0
        %1606 = vmatprep.subr.bf16.mxu0 0
        %1607 = vmatpush1.bf16.msra.mxu0 0
        %1608 = vmatprep.subr.bf16.mxu0 0
        %1609 = vmatpush1.bf16.msra.mxu0 0
        %1610 = vmatprep.subr.bf16.mxu0 0
        %1611 = vmatpush1.bf16.msra.mxu0 0
        %1612 = vmatprep.subr.bf16.mxu0 0
        %1613 = vmatpush1.bf16.msra.mxu0 0
        %1614 = vmatprep.subr.bf16.mxu0 0
        %1615 = vmatpush1.bf16.msra.mxu0 0
        %1616 = vmatprep.mubr.bf16.mxu0 0
        %1617 = vmatmul.mubr.bf16.gmra.mrb[0].mxu0 %v1576
        %v1618 = vpop.f32.mrb[0].mxu0
        %v1619 = vadd.f32 0.0, %v1618
        %v1620 = vpop.f32.mrb[0].mxu0
        %v1621 = vpop.f32.mrb[0].mxu0
        %v1622 = vadd.f32 0.0, %v1621
        %v1623 = vpop.f32.mrb[0].mxu0
        %1624 = vmatprep.mubr.bf16.mxu0 0
        %1625 = vmatmul.mubr.bf16.gmra.mrb[0].mxu0 %v1577
        %v1626 = vpop.f32.mrb[0].mxu0
        %v1627 = vadd.f32 0.0, %v1626
        %v1628 = vpop.f32.mrb[0].mxu0
        %v1629 = vpop.f32.mrb[0].mxu0
        %v1630 = vadd.f32 0.0, %v1629
        %v1631 = vpop.f32.mrb[0].mxu0
        %1632 = vmatprep.mubr.bf16.mxu0 0
        %1633 = vmatmul.mubr.bf16.gmra.mrb[0].mxu0 %v1578
        %v1634 = vpop.f32.mrb[0].mxu0
        %v1635 = vadd.f32 0.0, %v1634
        %v1636 = vpop.f32.mrb[0].mxu0
        %v1637 = vpop.f32.mrb[0].mxu0
        %v1638 = vadd.f32 0.0, %v1637
        %v1639 = vpop.f32.mrb[0].mxu0
        %1640 = vmatprep.mubr.bf16.mxu0 0
        %1641 = vmatmul.mubr.bf16.gmra.mrb[0].mxu0 %v1579
        %v1642 = vpop.f32.mrb[0].mxu0
        %v1643 = vadd.f32 0.0, %v1642
        %v1644 = vpop.f32.mrb[0].mxu0
        %v1645 = vpop.f32.mrb[0].mxu0
        %v1646 = vadd.f32 0.0, %v1645
        %v1647 = vpop.f32.mrb[0].mxu0
        %1648 = vmatprep.mubr.bf16.mxu0 0
        %1649 = vmatmul.mubr.bf16.gmra.mrb[0].mxu0 %v1580
        %v1650 = vpop.f32.mrb[0].mxu0
        %v1651 = vadd.f32 0.0, %v1650
        %v1652 = vpop.f32.mrb[0].mxu0
        %v1653 = vpop.f32.mrb[0].mxu0
        %v1654 = vadd.f32 0.0, %v1653
        %v1655 = vpop.f32.mrb[0].mxu0
        %1656 = vmatprep.mubr.bf16.mxu0 0
        %1657 = vmatmul.mubr.bf16.gmra.mrb[0].mxu0 %v1581
        %v1658 = vpop.f32.mrb[0].mxu0
        %v1659 = vadd.f32 0.0, %v1658
        %v1660 = vpop.f32.mrb[0].mxu0
        %v1661 = vpop.f32.mrb[0].mxu0
        %v1662 = vadd.f32 0.0, %v1661
        %v1663 = vpop.f32.mrb[0].mxu0
        %1664 = vmatprep.mubr.bf16.mxu0 0
        %1665 = vmatmul.mubr.bf16.gmra.mrb[0].mxu0 %v1582
        %v1666 = vpop.f32.mrb[0].mxu0
        %v1667 = vadd.f32 0.0, %v1666
        %v1668 = vpop.f32.mrb[0].mxu0
        %v1669 = vpop.f32.mrb[0].mxu0
        %v1670 = vadd.f32 0.0, %v1669
        %v1671 = vpop.f32.mrb[0].mxu0
        %1672 = vmatprep.mubr.bf16.mxu0 0
        %1673 = vmatmul.mubr.bf16.gmra.mrb[0].mxu0 %v1583
        %v1674 = vpop.f32.mrb[0].mxu0
        %v1675 = vadd.f32 0.0, %v1674
        %v1676 = vpop.f32.mrb[0].mxu0
        %v1677 = vpop.f32.mrb[0].mxu0
        %v1678 = vadd.f32 0.0, %v1677
        %v1679 = vpop.f32.mrb[0].mxu0
        %1680 = vdwg.mxu0
        %v1681 = vpack.c.bf16 %v1622, %v1619
        %v1682 = vpack.c.bf16 %v1630, %v1627
        %v1683 = vpack.c.bf16 %v1638, %v1635
        %v1684 = vpack.c.bf16 %v1646, %v1643
        %v1685 = vpack.c.bf16 %v1654, %v1651
        %v1686 = vpack.c.bf16 %v1662, %v1659
        %v1687 = vpack.c.bf16 %v1670, %v1667
        %v1688 = vpack.c.bf16 %v1678, %v1675
        %1689 = vst.msk [vmem:[#allocation2] sm:$0xff] %vm1286, %v1681
        %1690 = vst.msk [vmem:[#allocation2 + $0x8] sm:$0xff] %vm1286, %v1682
        %1691 = vst.msk [vmem:[#allocation2 + $0x10] sm:$0xff] %vm1286, %v1683
        %1692 = vst.msk [vmem:[#allocation2 + $0x18] sm:$0xff] %vm1286, %v1684
        %1693 = vst.msk [vmem:[#allocation2 + $0x20] sm:$0xff] %vm1286, %v1685
        %1694 = vst.msk [vmem:[#allocation2 + $0x28] sm:$0xff] %vm1286, %v1686
        %1695 = vst.msk [vmem:[#allocation2 + $0x30] sm:$0xff] %vm1286, %v1687
        %1696 = vst.msk [vmem:[#allocation2 + $0x38] sm:$0xff] %vm1286, %v1688
        %1705 = vrot.lane.b32.xlu0 %v1256, 120
        %v1706 = vpop.permute.xlu0 %1705
        %1707 = vrot.lane.b32.xlu0 %v1257, 120
        %v1708 = vpop.permute.xlu0 %1707
        %1709 = vrot.lane.b32.xlu0 %v1258, 120
        %v1710 = vpop.permute.xlu0 %1709
        %1711 = vrot.lane.b32.xlu0 %v1259, 120
        %v1712 = vpop.permute.xlu0 %1711
        %1713 = vrot.lane.b32.xlu0 %v1260, 120
        %v1714 = vpop.permute.xlu0 %1713
        %1715 = vrot.lane.b32.xlu0 %v1261, 120
        %v1716 = vpop.permute.xlu0 %1715
        %1717 = vrot.lane.b32.xlu0 %v1262, 120
        %v1718 = vpop.permute.xlu0 %1717
        %1719 = vrot.lane.b32.xlu0 %v1263, 120
        %v1720 = vpop.permute.xlu0 %1719
        %1729 = vrot.lane.b32.xlu0 %v1264, 120
        %v1730 = vpop.permute.xlu0 %1729
        %1731 = vrot.lane.b32.xlu0 %v1265, 120
        %v1732 = vpop.permute.xlu0 %1731
        %1733 = vrot.lane.b32.xlu0 %v1266, 120
        %v1734 = vpop.permute.xlu0 %1733
        %1735 = vrot.lane.b32.xlu0 %v1267, 120
        %v1736 = vpop.permute.xlu0 %1735
        %1737 = vrot.lane.b32.xlu0 %v1268, 120
        %v1738 = vpop.permute.xlu0 %1737
        %1739 = vrot.lane.b32.xlu0 %v1269, 120
        %v1740 = vpop.permute.xlu0 %1739
        %1741 = vrot.lane.b32.xlu0 %v1270, 120
        %v1742 = vpop.permute.xlu0 %1741
        %1743 = vrot.lane.b32.xlu0 %v1271, 120
        %v1744 = vpop.permute.xlu0 %1743
        %v1746 = vsel %vm1286, %v1706, 0
        %v1749 = vsel %vm1286, %v1708, 0
        %v1752 = vsel %vm1286, %v1710, 0
        %v1755 = vsel %vm1286, %v1712, 0
        %v1758 = vsel %vm1286, %v1714, 0
        %v1761 = vsel %vm1286, %v1716, 0
        %v1764 = vsel %vm1286, %v1718, 0
        %v1767 = vsel %vm1286, %v1720, 0
        %v1770 = vsel %vm1286, %v1730, 0
        %v1773 = vsel %vm1286, %v1732, 0
        %v1776 = vsel %vm1286, %v1734, 0
        %v1779 = vsel %vm1286, %v1736, 0
        %v1782 = vsel %vm1286, %v1738, 0
        %v1785 = vsel %vm1286, %v1740, 0
        %v1788 = vsel %vm1286, %v1742, 0
        %v1791 = vsel %vm1286, %v1744, 0
        %1793 = vmatprep.subr.bf16.mxu0 0
        %1794 = vmatpush1.bf16.xpose.msra.mxu0 %v1770
        %1795 = vmatprep.subr.bf16.mxu0 0
        %1796 = vmatpush1.bf16.xpose.msra.mxu0 %v1773
        %1797 = vmatprep.subr.bf16.mxu0 0
        %1798 = vmatpush1.bf16.xpose.msra.mxu0 %v1776
        %1799 = vmatprep.subr.bf16.mxu0 0
        %1800 = vmatpush1.bf16.xpose.msra.mxu0 %v1779
        %1801 = vmatprep.subr.bf16.mxu0 0
        %1802 = vmatpush1.bf16.xpose.msra.mxu0 %v1782
        %1803 = vmatprep.subr.bf16.mxu0 0
        %1804 = vmatpush1.bf16.xpose.msra.mxu0 %v1785
        %1805 = vmatprep.subr.bf16.mxu0 0
        %1806 = vmatpush1.bf16.xpose.msra.mxu0 %v1788
        %1807 = vmatprep.subr.bf16.mxu0 0
        %1808 = vmatpush1.bf16.xpose.msra.mxu0 %v1791
        %1809 = vmatprep.subr.bf16.mxu0 0
        %1810 = vmatpush1.bf16.xpose.msra.mxu0 0
        %1811 = vmatprep.subr.bf16.mxu0 0
        %1812 = vmatpush1.bf16.xpose.msra.mxu0 0
        %1813 = vmatprep.subr.bf16.mxu0 0
        %1814 = vmatpush1.bf16.xpose.msra.mxu0 0
        %1815 = vmatprep.subr.bf16.mxu0 0
        %1816 = vmatpush1.bf16.xpose.msra.mxu0 0
        %1817 = vmatprep.subr.bf16.mxu0 0
        %1818 = vmatpush1.bf16.xpose.msra.mxu0 0
        %1819 = vmatprep.subr.bf16.mxu0 0
        %1820 = vmatpush1.bf16.xpose.msra.mxu0 0
        %1821 = vmatprep.subr.bf16.mxu0 0
        %1822 = vmatpush1.bf16.xpose.msra.mxu0 0
        %1823 = vmatprep.subr.bf16.mxu0 0
        %1824 = vmatpush1.bf16.xpose.msra.mxu0 0
        %1825 = vmatprep.mubr.bf16.mxu0 0
        %1826 = vmatmul.mubr.bf16.gmra.mrb[0].mxu0 %v1746
        %v1827 = vpop.f32.mrb[0].mxu0
        %v1828 = vadd.f32 %v1284, %v1827
        %v1829 = vpop.f32.mrb[0].mxu0
        %v1830 = vpop.f32.mrb[0].mxu0
        %v1831 = vadd.f32 %v1284, %v1830
        %v1832 = vpop.f32.mrb[0].mxu0
        %1833 = vmatprep.mubr.bf16.mxu0 0
        %1834 = vmatmul.mubr.bf16.gmra.mrb[0].mxu0 %v1749
        %v1835 = vpop.f32.mrb[0].mxu0
        %v1836 = vadd.f32 %v1284, %v1835
        %v1837 = vpop.f32.mrb[0].mxu0
        %v1838 = vpop.f32.mrb[0].mxu0
        %v1839 = vadd.f32 %v1284, %v1838
        %v1840 = vpop.f32.mrb[0].mxu0
        %1841 = vmatprep.mubr.bf16.mxu0 0
        %1842 = vmatmul.mubr.bf16.gmra.mrb[0].mxu0 %v1752
        %v1843 = vpop.f32.mrb[0].mxu0
        %v1844 = vadd.f32 %v1284, %v1843
        %v1845 = vpop.f32.mrb[0].mxu0
        %v1846 = vpop.f32.mrb[0].mxu0
        %v1847 = vadd.f32 %v1284, %v1846
        %v1848 = vpop.f32.mrb[0].mxu0
        %1849 = vmatprep.mubr.bf16.mxu0 0
        %1850 = vmatmul.mubr.bf16.gmra.mrb[0].mxu0 %v1755
        %v1851 = vpop.f32.mrb[0].mxu0
        %v1852 = vadd.f32 %v1284, %v1851
        %v1853 = vpop.f32.mrb[0].mxu0
        %v1854 = vpop.f32.mrb[0].mxu0
        %v1855 = vadd.f32 %v1284, %v1854
        %v1856 = vpop.f32.mrb[0].mxu0
        %1857 = vmatprep.mubr.bf16.mxu0 0
        %1858 = vmatmul.mubr.bf16.gmra.mrb[0].mxu0 %v1758
        %v1859 = vpop.f32.mrb[0].mxu0
        %v1860 = vadd.f32 %v1284, %v1859
        %v1861 = vpop.f32.mrb[0].mxu0
        %v1862 = vpop.f32.mrb[0].mxu0
        %v1863 = vadd.f32 %v1284, %v1862
        %v1864 = vpop.f32.mrb[0].mxu0
        %1865 = vmatprep.mubr.bf16.mxu0 0
        %1866 = vmatmul.mubr.bf16.gmra.mrb[0].mxu0 %v1761
        %v1867 = vpop.f32.mrb[0].mxu0
        %v1868 = vadd.f32 %v1284, %v1867
        %v1869 = vpop.f32.mrb[0].mxu0
        %v1870 = vpop.f32.mrb[0].mxu0
        %v1871 = vadd.f32 %v1284, %v1870
        %v1872 = vpop.f32.mrb[0].mxu0
        %1873 = vmatprep.mubr.bf16.mxu0 0
        %1874 = vmatmul.mubr.bf16.gmra.mrb[0].mxu0 %v1764
        %v1875 = vpop.f32.mrb[0].mxu0
        %v1876 = vadd.f32 %v1284, %v1875
        %v1877 = vpop.f32.mrb[0].mxu0
        %v1878 = vpop.f32.mrb[0].mxu0
        %v1879 = vadd.f32 %v1284, %v1878
        %v1880 = vpop.f32.mrb[0].mxu0
        %1881 = vmatprep.mubr.bf16.mxu0 0
        %1882 = vmatmul.mubr.bf16.gmra.mrb[0].mxu0 %v1767
        %v1883 = vpop.f32.mrb[0].mxu0
        %v1884 = vadd.f32 %v1284, %v1883
        %v1885 = vpop.f32.mrb[0].mxu0
        %v1886 = vpop.f32.mrb[0].mxu0
        %v1887 = vadd.f32 %v1284, %v1886
        %v1888 = vpop.f32.mrb[0].mxu0
        %1889 = vdwg.mxu0
        %1890 = vmax.xlane.f32.xlu0 %v1828
        %v1891 = vpop.xlane.xlu0 %1890
        %1892 = vmax.xlane.f32.xlu0 %v1831
        %v1893 = vpop.xlane.xlu0 %1892
        %1894 = vmax.xlane.f32.xlu0 %v1836
        %v1895 = vpop.xlane.xlu0 %1894
        %1896 = vmax.xlane.f32.xlu0 %v1839
        %v1897 = vpop.xlane.xlu0 %1896
        %1898 = vmax.xlane.f32.xlu0 %v1844
        %v1899 = vpop.xlane.xlu0 %1898
        %1900 = vmax.xlane.f32.xlu0 %v1847
        %v1901 = vpop.xlane.xlu0 %1900
        %1902 = vmax.xlane.f32.xlu0 %v1852
        %v1903 = vpop.xlane.xlu0 %1902
        %1904 = vmax.xlane.f32.xlu0 %v1855
        %v1905 = vpop.xlane.xlu0 %1904
        %1906 = vmax.xlane.f32.xlu0 %v1860
        %v1907 = vpop.xlane.xlu0 %1906
        %1908 = vmax.xlane.f32.xlu0 %v1863
        %v1909 = vpop.xlane.xlu0 %1908
        %1910 = vmax.xlane.f32.xlu0 %v1868
        %v1911 = vpop.xlane.xlu0 %1910
        %1912 = vmax.xlane.f32.xlu0 %v1871
        %v1913 = vpop.xlane.xlu0 %1912
        %1914 = vmax.xlane.f32.xlu0 %v1876
        %v1915 = vpop.xlane.xlu0 %1914
        %1916 = vmax.xlane.f32.xlu0 %v1879
        %v1917 = vpop.xlane.xlu0 %1916
        %1918 = vmax.xlane.f32.xlu0 %v1884
        %v1919 = vpop.xlane.xlu0 %1918
        %1920 = vmax.xlane.f32.xlu0 %v1887
        %v1921 = vpop.xlane.xlu0 %1920
        %v1922 = vsub.f32 %v1828, %v1891
        %v1923 = vsub.f32 %v1831, %v1893
        %v1924 = vsub.f32 %v1836, %v1895
        %v1925 = vsub.f32 %v1839, %v1897
        %v1926 = vsub.f32 %v1844, %v1899
        %v1927 = vsub.f32 %v1847, %v1901
        %v1928 = vsub.f32 %v1852, %v1903
        %v1929 = vsub.f32 %v1855, %v1905
        %v1930 = vsub.f32 %v1860, %v1907
        %v1931 = vsub.f32 %v1863, %v1909
        %v1932 = vsub.f32 %v1868, %v1911
        %v1933 = vsub.f32 %v1871, %v1913
        %v1934 = vsub.f32 %v1876, %v1915
        %v1935 = vsub.f32 %v1879, %v1917
        %v1936 = vsub.f32 %v1884, %v1919
        %v1937 = vsub.f32 %v1887, %v1921
        %v1938 = vmul.f32 %v1922, 1.442695
        %v1939 = vpow.pop %v1938
        %v1940 = vmul.f32 %v1923, 1.442695
        %v1941 = vpow.pop %v1940
        %v1942 = vmul.f32 %v1924, 1.442695
        %v1943 = vpow.pop %v1942
        %v1944 = vmul.f32 %v1925, 1.442695
        %v1945 = vpow.pop %v1944
        %v1946 = vmul.f32 %v1926, 1.442695
        %v1947 = vpow.pop %v1946
        %v1948 = vmul.f32 %v1927, 1.442695
        %v1949 = vpow.pop %v1948
        %v1950 = vmul.f32 %v1928, 1.442695
        %v1951 = vpow.pop %v1950
        %v1952 = vmul.f32 %v1929, 1.442695
        %v1953 = vpow.pop %v1952
        %v1954 = vmul.f32 %v1930, 1.442695
        %v1955 = vpow.pop %v1954
        %v1956 = vmul.f32 %v1931, 1.442695
        %v1957 = vpow.pop %v1956
        %v1958 = vmul.f32 %v1932, 1.442695
        %v1959 = vpow.pop %v1958
        %v1960 = vmul.f32 %v1933, 1.442695
        %v1961 = vpow.pop %v1960
        %v1962 = vmul.f32 %v1934, 1.442695
        %v1963 = vpow.pop %v1962
        %v1964 = vmul.f32 %v1935, 1.442695
        %v1965 = vpow.pop %v1964
        %v1966 = vmul.f32 %v1936, 1.442695
        %v1967 = vpow.pop %v1966
        %v1968 = vmul.f32 %v1937, 1.442695
        %v1969 = vpow.pop %v1968
        %1970 = vadd.xlane.f32.xlu0 %v1939
        %v1971 = vpop.xlane.xlu0 %1970
        %1972 = vadd.xlane.f32.xlu0 %v1941
        %v1973 = vpop.xlane.xlu0 %1972
        %1974 = vadd.xlane.f32.xlu0 %v1943
        %v1975 = vpop.xlane.xlu0 %1974
        %1976 = vadd.xlane.f32.xlu0 %v1945
        %v1977 = vpop.xlane.xlu0 %1976
        %1978 = vadd.xlane.f32.xlu0 %v1947
        %v1979 = vpop.xlane.xlu0 %1978
        %1980 = vadd.xlane.f32.xlu0 %v1949
        %v1981 = vpop.xlane.xlu0 %1980
        %1982 = vadd.xlane.f32.xlu0 %v1951
        %v1983 = vpop.xlane.xlu0 %1982
        %1984 = vadd.xlane.f32.xlu0 %v1953
        %v1985 = vpop.xlane.xlu0 %1984
        %1986 = vadd.xlane.f32.xlu0 %v1955
        %v1987 = vpop.xlane.xlu0 %1986
        %1988 = vadd.xlane.f32.xlu0 %v1957
        %v1989 = vpop.xlane.xlu0 %1988
        %1990 = vadd.xlane.f32.xlu0 %v1959
        %v1991 = vpop.xlane.xlu0 %1990
        %1992 = vadd.xlane.f32.xlu0 %v1961
        %v1993 = vpop.xlane.xlu0 %1992
        %1994 = vadd.xlane.f32.xlu0 %v1963
        %v1995 = vpop.xlane.xlu0 %1994
        %1996 = vadd.xlane.f32.xlu0 %v1965
        %v1997 = vpop.xlane.xlu0 %1996
        %1998 = vadd.xlane.f32.xlu0 %v1967
        %v1999 = vpop.xlane.xlu0 %1998
        %2000 = vadd.xlane.f32.xlu0 %v1969
        %v2001 = vpop.xlane.xlu0 %2000
        %v2002 = vrcp.pop %v1971
        %v2003 = vrcp.pop %v1973
        %v2004 = vrcp.pop %v1975
        %v2005 = vrcp.pop %v1977
        %v2006 = vrcp.pop %v1979
        %v2007 = vrcp.pop %v1981
        %v2008 = vrcp.pop %v1983
        %v2009 = vrcp.pop %v1985
        %v2010 = vrcp.pop %v1987
        %v2011 = vrcp.pop %v1989
        %v2012 = vrcp.pop %v1991
        %v2013 = vrcp.pop %v1993
        %v2014 = vrcp.pop %v1995
        %v2015 = vrcp.pop %v1997
        %v2016 = vrcp.pop %v1999
        %v2017 = vrcp.pop %v2001
        %v2018 = vmul.f32 %v1939, %v2002
        %v2019 = vmul.f32 %v1941, %v2003
        %v2020 = vmul.f32 %v1943, %v2004
        %v2021 = vmul.f32 %v1945, %v2005
        %v2022 = vmul.f32 %v1947, %v2006
        %v2023 = vmul.f32 %v1949, %v2007
        %v2024 = vmul.f32 %v1951, %v2008
        %v2025 = vmul.f32 %v1953, %v2009
        %v2026 = vmul.f32 %v1955, %v2010
        %v2027 = vmul.f32 %v1957, %v2011
        %v2028 = vmul.f32 %v1959, %v2012
        %v2029 = vmul.f32 %v1961, %v2013
        %v2030 = vmul.f32 %v1963, %v2014
        %v2031 = vmul.f32 %v1965, %v2015
        %v2032 = vmul.f32 %v1967, %v2016
        %v2033 = vmul.f32 %v1969, %v2017
        %v2034 = vpack.c.bf16 %v2019, %v2018
        %v2035 = vpack.c.bf16 %v2021, %v2020
        %v2036 = vpack.c.bf16 %v2023, %v2022
        %v2037 = vpack.c.bf16 %v2025, %v2024
        %v2038 = vpack.c.bf16 %v2027, %v2026
        %v2039 = vpack.c.bf16 %v2029, %v2028
        %v2040 = vpack.c.bf16 %v2031, %v2030
        %v2041 = vpack.c.bf16 %v2033, %v2032
        %2050 = vrot.lane.b32.xlu0 %v1272, 120
        %v2051 = vpop.permute.xlu0 %2050
        %2052 = vrot.lane.b32.xlu0 %v1273, 120
        %v2053 = vpop.permute.xlu0 %2052
        %2054 = vrot.lane.b32.xlu0 %v1274, 120
        %v2055 = vpop.permute.xlu0 %2054
        %2056 = vrot.lane.b32.xlu0 %v1275, 120
        %v2057 = vpop.permute.xlu0 %2056
        %2058 = vrot.lane.b32.xlu0 %v1276, 120
        %v2059 = vpop.permute.xlu0 %2058
        %2060 = vrot.lane.b32.xlu0 %v1277, 120
        %v2061 = vpop.permute.xlu0 %2060
        %2062 = vrot.lane.b32.xlu0 %v1278, 120
        %v2063 = vpop.permute.xlu0 %2062
        %2064 = vrot.lane.b32.xlu0 %v1279, 120
        %v2065 = vpop.permute.xlu0 %2064
        %2074 = vmatprep.subr.bf16.mxu0 0
        %2075 = vmatpush1.bf16.msra.mxu0 %v2051
        %2076 = vmatprep.subr.bf16.mxu0 0
        %2077 = vmatpush1.bf16.msra.mxu0 %v2053
        %2078 = vmatprep.subr.bf16.mxu0 0
        %2079 = vmatpush1.bf16.msra.mxu0 %v2055
        %2080 = vmatprep.subr.bf16.mxu0 0
        %2081 = vmatpush1.bf16.msra.mxu0 %v2057
        %2082 = vmatprep.subr.bf16.mxu0 0
        %2083 = vmatpush1.bf16.msra.mxu0 %v2059
        %2084 = vmatprep.subr.bf16.mxu0 0
        %2085 = vmatpush1.bf16.msra.mxu0 %v2061
        %2086 = vmatprep.subr.bf16.mxu0 0
        %2087 = vmatpush1.bf16.msra.mxu0 %v2063
        %2088 = vmatprep.subr.bf16.mxu0 0
        %2089 = vmatpush1.bf16.msra.mxu0 %v2065
        %2090 = vmatprep.subr.bf16.mxu0 0
        %2091 = vmatpush1.bf16.msra.mxu0 0
        %2092 = vmatprep.subr.bf16.mxu0 0
        %2093 = vmatpush1.bf16.msra.mxu0 0
        %2094 = vmatprep.subr.bf16.mxu0 0
        %2095 = vmatpush1.bf16.msra.mxu0 0
        %2096 = vmatprep.subr.bf16.mxu0 0
        %2097 = vmatpush1.bf16.msra.mxu0 0
        %2098 = vmatprep.subr.bf16.mxu0 0
        %2099 = vmatpush1.bf16.msra.mxu0 0
        %2100 = vmatprep.subr.bf16.mxu0 0
        %2101 = vmatpush1.bf16.msra.mxu0 0
        %2102 = vmatprep.subr.bf16.mxu0 0
        %2103 = vmatpush1.bf16.msra.mxu0 0
        %2104 = vmatprep.subr.bf16.mxu0 0
        %2105 = vmatpush1.bf16.msra.mxu0 0
        %2106 = vmatprep.mubr.bf16.mxu0 0
        %2107 = vmatmul.mubr.bf16.gmra.mrb[0].mxu0 %v2034
        %v2108 = vpop.f32.mrb[0].mxu0
        %v2109 = vadd.f32 0.0, %v2108
        %v2110 = vpop.f32.mrb[0].mxu0
        %v2111 = vpop.f32.mrb[0].mxu0
        %v2112 = vadd.f32 0.0, %v2111
        %v2113 = vpop.f32.mrb[0].mxu0
        %2114 = vmatprep.mubr.bf16.mxu0 0
        %2115 = vmatmul.mubr.bf16.gmra.mrb[0].mxu0 %v2035
        %v2116 = vpop.f32.mrb[0].mxu0
        %v2117 = vadd.f32 0.0, %v2116
        %v2118 = vpop.f32.mrb[0].mxu0
        %v2119 = vpop.f32.mrb[0].mxu0
        %v2120 = vadd.f32 0.0, %v2119
        %v2121 = vpop.f32.mrb[0].mxu0
        %2122 = vmatprep.mubr.bf16.mxu0 0
        %2123 = vmatmul.mubr.bf16.gmra.mrb[0].mxu0 %v2036
        %v2124 = vpop.f32.mrb[0].mxu0
        %v2125 = vadd.f32 0.0, %v2124
        %v2126 = vpop.f32.mrb[0].mxu0
        %v2127 = vpop.f32.mrb[0].mxu0
        %v2128 = vadd.f32 0.0, %v2127
        %v2129 = vpop.f32.mrb[0].mxu0
        %2130 = vmatprep.mubr.bf16.mxu0 0
        %2131 = vmatmul.mubr.bf16.gmra.mrb[0].mxu0 %v2037
        %v2132 = vpop.f32.mrb[0].mxu0
        %v2133 = vadd.f32 0.0, %v2132
        %v2134 = vpop.f32.mrb[0].mxu0
        %v2135 = vpop.f32.mrb[0].mxu0
        %v2136 = vadd.f32 0.0, %v2135
        %v2137 = vpop.f32.mrb[0].mxu0
        %2138 = vmatprep.mubr.bf16.mxu0 0
        %2139 = vmatmul.mubr.bf16.gmra.mrb[0].mxu0 %v2038
        %v2140 = vpop.f32.mrb[0].mxu0
        %v2141 = vadd.f32 0.0, %v2140
        %v2142 = vpop.f32.mrb[0].mxu0
        %v2143 = vpop.f32.mrb[0].mxu0
        %v2144 = vadd.f32 0.0, %v2143
        %v2145 = vpop.f32.mrb[0].mxu0
        %2146 = vmatprep.mubr.bf16.mxu0 0
        %2147 = vmatmul.mubr.bf16.gmra.mrb[0].mxu0 %v2039
        %v2148 = vpop.f32.mrb[0].mxu0
        %v2149 = vadd.f32 0.0, %v2148
        %v2150 = vpop.f32.mrb[0].mxu0
        %v2151 = vpop.f32.mrb[0].mxu0
        %v2152 = vadd.f32 0.0, %v2151
        %v2153 = vpop.f32.mrb[0].mxu0
        %2154 = vmatprep.mubr.bf16.mxu0 0
        %2155 = vmatmul.mubr.bf16.gmra.mrb[0].mxu0 %v2040
        %v2156 = vpop.f32.mrb[0].mxu0
        %v2157 = vadd.f32 0.0, %v2156
        %v2158 = vpop.f32.mrb[0].mxu0
        %v2159 = vpop.f32.mrb[0].mxu0
        %v2160 = vadd.f32 0.0, %v2159
        %v2161 = vpop.f32.mrb[0].mxu0
        %2162 = vmatprep.mubr.bf16.mxu0 0
        %2163 = vmatmul.mubr.bf16.gmra.mrb[0].mxu0 %v2041
        %v2164 = vpop.f32.mrb[0].mxu0
        %v2165 = vadd.f32 0.0, %v2164
        %v2166 = vpop.f32.mrb[0].mxu0
        %v2167 = vpop.f32.mrb[0].mxu0
        %v2168 = vadd.f32 0.0, %v2167
        %v2169 = vpop.f32.mrb[0].mxu0
        %2170 = vdwg.mxu0
        %v2171 = vpack.c.bf16 %v2112, %v2109
        %v2172 = vpack.c.bf16 %v2120, %v2117
        %v2173 = vpack.c.bf16 %v2128, %v2125
        %v2174 = vpack.c.bf16 %v2136, %v2133
        %v2175 = vpack.c.bf16 %v2144, %v2141
        %v2176 = vpack.c.bf16 %v2152, %v2149
        %v2177 = vpack.c.bf16 %v2160, %v2157
        %v2178 = vpack.c.bf16 %v2168, %v2165
        %2187 = vrot.lane.b32.xlu0 %v2171, 8
        %v2188 = vpop.permute.xlu0 %2187
        %2189 = vrot.lane.b32.xlu0 %v2172, 8
        %v2190 = vpop.permute.xlu0 %2189
        %2191 = vrot.lane.b32.xlu0 %v2173, 8
        %v2192 = vpop.permute.xlu0 %2191
        %2193 = vrot.lane.b32.xlu0 %v2174, 8
        %v2194 = vpop.permute.xlu0 %2193
        %2195 = vrot.lane.b32.xlu0 %v2175, 8
        %v2196 = vpop.permute.xlu0 %2195
        %2197 = vrot.lane.b32.xlu0 %v2176, 8
        %v2198 = vpop.permute.xlu0 %2197
        %2199 = vrot.lane.b32.xlu0 %v2177, 8
        %v2200 = vpop.permute.xlu0 %2199
        %2201 = vrot.lane.b32.xlu0 %v2178, 8
        %v2202 = vpop.permute.xlu0 %2201
        %vm2211 = vcmask 130112
        %2212 = vst.msk [vmem:[#allocation2] sm:$0xff] %vm2211, %v2188
        %2213 = vst.msk [vmem:[#allocation2 + $0x8] sm:$0xff] %vm2211, %v2190
        %2214 = vst.msk [vmem:[#allocation2 + $0x10] sm:$0xff] %vm2211, %v2192
        %2215 = vst.msk [vmem:[#allocation2 + $0x18] sm:$0xff] %vm2211, %v2194
        %2216 = vst.msk [vmem:[#allocation2 + $0x20] sm:$0xff] %vm2211, %v2196
        %2217 = vst.msk [vmem:[#allocation2 + $0x28] sm:$0xff] %vm2211, %v2198
        %2218 = vst.msk [vmem:[#allocation2 + $0x30] sm:$0xff] %vm2211, %v2200
        %2219 = vst.msk [vmem:[#allocation2 + $0x38] sm:$0xff] %vm2211, %v2202
        %2220 = vrot.lane.b32.xlu0 %v1256, 112
        %v2221 = vpop.permute.xlu0 %2220
        %2222 = vrot.lane.b32.xlu0 %v1257, 112
        %v2223 = vpop.permute.xlu0 %2222
        %2224 = vrot.lane.b32.xlu0 %v1258, 112
        %v2225 = vpop.permute.xlu0 %2224
        %2226 = vrot.lane.b32.xlu0 %v1259, 112
        %v2227 = vpop.permute.xlu0 %2226
        %2228 = vrot.lane.b32.xlu0 %v1260, 112
        %v2229 = vpop.permute.xlu0 %2228
        %2230 = vrot.lane.b32.xlu0 %v1261, 112
        %v2231 = vpop.permute.xlu0 %2230
        %2232 = vrot.lane.b32.xlu0 %v1262, 112
        %v2233 = vpop.permute.xlu0 %2232
        %2234 = vrot.lane.b32.xlu0 %v1263, 112
        %v2235 = vpop.permute.xlu0 %2234
        %2236 = vrot.lane.b32.xlu0 %v1264, 112
        %v2237 = vpop.permute.xlu0 %2236
        %2238 = vrot.lane.b32.xlu0 %v1265, 112
        %v2239 = vpop.permute.xlu0 %2238
        %2240 = vrot.lane.b32.xlu0 %v1266, 112
        %v2241 = vpop.permute.xlu0 %2240
        %2242 = vrot.lane.b32.xlu0 %v1267, 112
        %v2243 = vpop.permute.xlu0 %2242
        %2244 = vrot.lane.b32.xlu0 %v1268, 112
        %v2245 = vpop.permute.xlu0 %2244
        %2246 = vrot.lane.b32.xlu0 %v1269, 112
        %v2247 = vpop.permute.xlu0 %2246
        %2248 = vrot.lane.b32.xlu0 %v1270, 112
        %v2249 = vpop.permute.xlu0 %2248
        %2250 = vrot.lane.b32.xlu0 %v1271, 112
        %v2251 = vpop.permute.xlu0 %2250
        %v2253 = vsel %vm1286, %v2221, 0
        %v2256 = vsel %vm1286, %v2223, 0
        %v2259 = vsel %vm1286, %v2225, 0
        %v2262 = vsel %vm1286, %v2227, 0
        %v2265 = vsel %vm1286, %v2229, 0
        %v2268 = vsel %vm1286, %v2231, 0
        %v2271 = vsel %vm1286, %v2233, 0
        %v2274 = vsel %vm1286, %v2235, 0
        %v2277 = vsel %vm1286, %v2237, 0
        %v2280 = vsel %vm1286, %v2239, 0
        %v2283 = vsel %vm1286, %v2241, 0
        %v2286 = vsel %vm1286, %v2243, 0
        %v2289 = vsel %vm1286, %v2245, 0
        %v2292 = vsel %vm1286, %v2247, 0
        %v2295 = vsel %vm1286, %v2249, 0
        %v2298 = vsel %vm1286, %v2251, 0
        %2300 = vmatprep.subr.bf16.mxu0 0
        %2301 = vmatpush1.bf16.xpose.msra.mxu0 %v2277
        %2302 = vmatprep.subr.bf16.mxu0 0
        %2303 = vmatpush1.bf16.xpose.msra.mxu0 %v2280
        %2304 = vmatprep.subr.bf16.mxu0 0
        %2305 = vmatpush1.bf16.xpose.msra.mxu0 %v2283
        %2306 = vmatprep.subr.bf16.mxu0 0
        %2307 = vmatpush1.bf16.xpose.msra.mxu0 %v2286
        %2308 = vmatprep.subr.bf16.mxu0 0
        %2309 = vmatpush1.bf16.xpose.msra.mxu0 %v2289
        %2310 = vmatprep.subr.bf16.mxu0 0
        %2311 = vmatpush1.bf16.xpose.msra.mxu0 %v2292
        %2312 = vmatprep.subr.bf16.mxu0 0
        %2313 = vmatpush1.bf16.xpose.msra.mxu0 %v2295
        %2314 = vmatprep.subr.bf16.mxu0 0
        %2315 = vmatpush1.bf16.xpose.msra.mxu0 %v2298
        %2316 = vmatprep.subr.bf16.mxu0 0
        %2317 = vmatpush1.bf16.xpose.msra.mxu0 0
        %2318 = vmatprep.subr.bf16.mxu0 0
        %2319 = vmatpush1.bf16.xpose.msra.mxu0 0
        %2320 = vmatprep.subr.bf16.mxu0 0
        %2321 = vmatpush1.bf16.xpose.msra.mxu0 0
        %2322 = vmatprep.subr.bf16.mxu0 0
        %2323 = vmatpush1.bf16.xpose.msra.mxu0 0
        %2324 = vmatprep.subr.bf16.mxu0 0
        %2325 = vmatpush1.bf16.xpose.msra.mxu0 0
        %2326 = vmatprep.subr.bf16.mxu0 0
        %2327 = vmatpush1.bf16.xpose.msra.mxu0 0
        %2328 = vmatprep.subr.bf16.mxu0 0
        %2329 = vmatpush1.bf16.xpose.msra.mxu0 0
        %2330 = vmatprep.subr.bf16.mxu0 0
        %2331 = vmatpush1.bf16.xpose.msra.mxu0 0
        %2332 = vmatprep.mubr.bf16.mxu0 0
        %2333 = vmatmul.mubr.bf16.gmra.mrb[0].mxu0 %v2253
        %v2334 = vpop.f32.mrb[0].mxu0
        %v2335 = vadd.f32 %v1284, %v2334
        %v2336 = vpop.f32.mrb[0].mxu0
        %v2337 = vpop.f32.mrb[0].mxu0
        %v2338 = vadd.f32 %v1284, %v2337
        %v2339 = vpop.f32.mrb[0].mxu0
        %2340 = vmatprep.mubr.bf16.mxu0 0
        %2341 = vmatmul.mubr.bf16.gmra.mrb[0].mxu0 %v2256
        %v2342 = vpop.f32.mrb[0].mxu0
        %v2343 = vadd.f32 %v1284, %v2342
        %v2344 = vpop.f32.mrb[0].mxu0
        %v2345 = vpop.f32.mrb[0].mxu0
        %v2346 = vadd.f32 %v1284, %v2345
        %v2347 = vpop.f32.mrb[0].mxu0
        %2348 = vmatprep.mubr.bf16.mxu0 0
        %2349 = vmatmul.mubr.bf16.gmra.mrb[0].mxu0 %v2259
        %v2350 = vpop.f32.mrb[0].mxu0
        %v2351 = vadd.f32 %v1284, %v2350
        %v2352 = vpop.f32.mrb[0].mxu0
        %v2353 = vpop.f32.mrb[0].mxu0
        %v2354 = vadd.f32 %v1284, %v2353
        %v2355 = vpop.f32.mrb[0].mxu0
        %2356 = vmatprep.mubr.bf16.mxu0 0
        %2357 = vmatmul.mubr.bf16.gmra.mrb[0].mxu0 %v2262
        %v2358 = vpop.f32.mrb[0].mxu0
        %v2359 = vadd.f32 %v1284, %v2358
        %v2360 = vpop.f32.mrb[0].mxu0
        %v2361 = vpop.f32.mrb[0].mxu0
        %v2362 = vadd.f32 %v1284, %v2361
        %v2363 = vpop.f32.mrb[0].mxu0
        %2364 = vmatprep.mubr.bf16.mxu0 0
        %2365 = vmatmul.mubr.bf16.gmra.mrb[0].mxu0 %v2265
        %v2366 = vpop.f32.mrb[0].mxu0
        %v2367 = vadd.f32 %v1284, %v2366
        %v2368 = vpop.f32.mrb[0].mxu0
        %v2369 = vpop.f32.mrb[0].mxu0
        %v2370 = vadd.f32 %v1284, %v2369
        %v2371 = vpop.f32.mrb[0].mxu0
        %2372 = vmatprep.mubr.bf16.mxu0 0
        %2373 = vmatmul.mubr.bf16.gmra.mrb[0].mxu0 %v2268
        %v2374 = vpop.f32.mrb[0].mxu0
        %v2375 = vadd.f32 %v1284, %v2374
        %v2376 = vpop.f32.mrb[0].mxu0
        %v2377 = vpop.f32.mrb[0].mxu0
        %v2378 = vadd.f32 %v1284, %v2377
        %v2379 = vpop.f32.mrb[0].mxu0
        %2380 = vmatprep.mubr.bf16.mxu0 0
        %2381 = vmatmul.mubr.bf16.gmra.mrb[0].mxu0 %v2271
        %v2382 = vpop.f32.mrb[0].mxu0
        %v2383 = vadd.f32 %v1284, %v2382
        %v2384 = vpop.f32.mrb[0].mxu0
        %v2385 = vpop.f32.mrb[0].mxu0
        %v2386 = vadd.f32 %v1284, %v2385
        %v2387 = vpop.f32.mrb[0].mxu0
        %2388 = vmatprep.mubr.bf16.mxu0 0
        %2389 = vmatmul.mubr.bf16.gmra.mrb[0].mxu0 %v2274
        %v2390 = vpop.f32.mrb[0].mxu0
        %v2391 = vadd.f32 %v1284, %v2390
        %v2392 = vpop.f32.mrb[0].mxu0
        %v2393 = vpop.f32.mrb[0].mxu0
        %v2394 = vadd.f32 %v1284, %v2393
        %v2395 = vpop.f32.mrb[0].mxu0
        %2396 = vdwg.mxu0
        %2397 = vmax.xlane.f32.xlu0 %v2335
        %v2398 = vpop.xlane.xlu0 %2397
        %2399 = vmax.xlane.f32.xlu0 %v2338
        %v2400 = vpop.xlane.xlu0 %2399
        %2401 = vmax.xlane.f32.xlu0 %v2343
        %v2402 = vpop.xlane.xlu0 %2401
        %2403 = vmax.xlane.f32.xlu0 %v2346
        %v2404 = vpop.xlane.xlu0 %2403
        %2405 = vmax.xlane.f32.xlu0 %v2351
        %v2406 = vpop.xlane.xlu0 %2405
        %2407 = vmax.xlane.f32.xlu0 %v2354
        %v2408 = vpop.xlane.xlu0 %2407
        %2409 = vmax.xlane.f32.xlu0 %v2359
        %v2410 = vpop.xlane.xlu0 %2409
        %2411 = vmax.xlane.f32.xlu0 %v2362
        %v2412 = vpop.xlane.xlu0 %2411
        %2413 = vmax.xlane.f32.xlu0 %v2367
        %v2414 = vpop.xlane.xlu0 %2413
        %2415 = vmax.xlane.f32.xlu0 %v2370
        %v2416 = vpop.xlane.xlu0 %2415
        %2417 = vmax.xlane.f32.xlu0 %v2375
        %v2418 = vpop.xlane.xlu0 %2417
        %2419 = vmax.xlane.f32.xlu0 %v2378
        %v2420 = vpop.xlane.xlu0 %2419
        %2421 = vmax.xlane.f32.xlu0 %v2383
        %v2422 = vpop.xlane.xlu0 %2421
        %2423 = vmax.xlane.f32.xlu0 %v2386
        %v2424 = vpop.xlane.xlu0 %2423
        %2425 = vmax.xlane.f32.xlu0 %v2391
        %v2426 = vpop.xlane.xlu0 %2425
        %2427 = vmax.xlane.f32.xlu0 %v2394
        %v2428 = vpop.xlane.xlu0 %2427
        %v2429 = vsub.f32 %v2335, %v2398
        %v2430 = vsub.f32 %v2338, %v2400
        %v2431 = vsub.f32 %v2343, %v2402
        %v2432 = vsub.f32 %v2346, %v2404
        %v2433 = vsub.f32 %v2351, %v2406
        %v2434 = vsub.f32 %v2354, %v2408
        %v2435 = vsub.f32 %v2359, %v2410
        %v2436 = vsub.f32 %v2362, %v2412
        %v2437 = vsub.f32 %v2367, %v2414
        %v2438 = vsub.f32 %v2370, %v2416
        %v2439 = vsub.f32 %v2375, %v2418
        %v2440 = vsub.f32 %v2378, %v2420
        %v2441 = vsub.f32 %v2383, %v2422
        %v2442 = vsub.f32 %v2386, %v2424
        %v2443 = vsub.f32 %v2391, %v2426
        %v2444 = vsub.f32 %v2394, %v2428
        %v2445 = vmul.f32 %v2429, 1.442695
        %v2446 = vpow.pop %v2445
        %v2447 = vmul.f32 %v2430, 1.442695
        %v2448 = vpow.pop %v2447
        %v2449 = vmul.f32 %v2431, 1.442695
        %v2450 = vpow.pop %v2449
        %v2451 = vmul.f32 %v2432, 1.442695
        %v2452 = vpow.pop %v2451
        %v2453 = vmul.f32 %v2433, 1.442695
        %v2454 = vpow.pop %v2453
        %v2455 = vmul.f32 %v2434, 1.442695
        %v2456 = vpow.pop %v2455
        %v2457 = vmul.f32 %v2435, 1.442695
        %v2458 = vpow.pop %v2457
        %v2459 = vmul.f32 %v2436, 1.442695
        %v2460 = vpow.pop %v2459
        %v2461 = vmul.f32 %v2437, 1.442695
        %v2462 = vpow.pop %v2461
        %v2463 = vmul.f32 %v2438, 1.442695
        %v2464 = vpow.pop %v2463
        %v2465 = vmul.f32 %v2439, 1.442695
        %v2466 = vpow.pop %v2465
        %v2467 = vmul.f32 %v2440, 1.442695
        %v2468 = vpow.pop %v2467
        %v2469 = vmul.f32 %v2441, 1.442695
        %v2470 = vpow.pop %v2469
        %v2471 = vmul.f32 %v2442, 1.442695
        %v2472 = vpow.pop %v2471
        %v2473 = vmul.f32 %v2443, 1.442695
        %v2474 = vpow.pop %v2473
        %v2475 = vmul.f32 %v2444, 1.442695
        %v2476 = vpow.pop %v2475
        %2477 = vadd.xlane.f32.xlu0 %v2446
        %v2478 = vpop.xlane.xlu0 %2477
        %2479 = vadd.xlane.f32.xlu0 %v2448
        %v2480 = vpop.xlane.xlu0 %2479
        %2481 = vadd.xlane.f32.xlu0 %v2450
        %v2482 = vpop.xlane.xlu0 %2481
        %2483 = vadd.xlane.f32.xlu0 %v2452
        %v2484 = vpop.xlane.xlu0 %2483
        %2485 = vadd.xlane.f32.xlu0 %v2454
        %v2486 = vpop.xlane.xlu0 %2485
        %2487 = vadd.xlane.f32.xlu0 %v2456
        %v2488 = vpop.xlane.xlu0 %2487
        %2489 = vadd.xlane.f32.xlu0 %v2458
        %v2490 = vpop.xlane.xlu0 %2489
        %2491 = vadd.xlane.f32.xlu0 %v2460
        %v2492 = vpop.xlane.xlu0 %2491
        %2493 = vadd.xlane.f32.xlu0 %v2462
        %v2494 = vpop.xlane.xlu0 %2493
        %2495 = vadd.xlane.f32.xlu0 %v2464
        %v2496 = vpop.xlane.xlu0 %2495
        %2497 = vadd.xlane.f32.xlu0 %v2466
        %v2498 = vpop.xlane.xlu0 %2497
        %2499 = vadd.xlane.f32.xlu0 %v2468
        %v2500 = vpop.xlane.xlu0 %2499
        %2501 = vadd.xlane.f32.xlu0 %v2470
        %v2502 = vpop.xlane.xlu0 %2501
        %2503 = vadd.xlane.f32.xlu0 %v2472
        %v2504 = vpop.xlane.xlu0 %2503
        %2505 = vadd.xlane.f32.xlu0 %v2474
        %v2506 = vpop.xlane.xlu0 %2505
        %2507 = vadd.xlane.f32.xlu0 %v2476
        %v2508 = vpop.xlane.xlu0 %2507
        %v2509 = vrcp.pop %v2478
        %v2510 = vrcp.pop %v2480
        %v2511 = vrcp.pop %v2482
        %v2512 = vrcp.pop %v2484
        %v2513 = vrcp.pop %v2486
        %v2514 = vrcp.pop %v2488
        %v2515 = vrcp.pop %v2490
        %v2516 = vrcp.pop %v2492
        %v2517 = vrcp.pop %v2494
        %v2518 = vrcp.pop %v2496
        %v2519 = vrcp.pop %v2498
        %v2520 = vrcp.pop %v2500
        %v2521 = vrcp.pop %v2502
        %v2522 = vrcp.pop %v2504
        %v2523 = vrcp.pop %v2506
        %v2524 = vrcp.pop %v2508
        %v2525 = vmul.f32 %v2446, %v2509
        %v2526 = vmul.f32 %v2448, %v2510
        %v2527 = vmul.f32 %v2450, %v2511
        %v2528 = vmul.f32 %v2452, %v2512
        %v2529 = vmul.f32 %v2454, %v2513
        %v2530 = vmul.f32 %v2456, %v2514
        %v2531 = vmul.f32 %v2458, %v2515
        %v2532 = vmul.f32 %v2460, %v2516
        %v2533 = vmul.f32 %v2462, %v2517
        %v2534 = vmul.f32 %v2464, %v2518
        %v2535 = vmul.f32 %v2466, %v2519
        %v2536 = vmul.f32 %v2468, %v2520
        %v2537 = vmul.f32 %v2470, %v2521
        %v2538 = vmul.f32 %v2472, %v2522
        %v2539 = vmul.f32 %v2474, %v2523
        %v2540 = vmul.f32 %v2476, %v2524
        %v2541 = vpack.c.bf16 %v2526, %v2525
        %v2542 = vpack.c.bf16 %v2528, %v2527
        %v2543 = vpack.c.bf16 %v2530, %v2529
        %v2544 = vpack.c.bf16 %v2532, %v2531
        %v2545 = vpack.c.bf16 %v2534, %v2533
        %v2546 = vpack.c.bf16 %v2536, %v2535
        %v2547 = vpack.c.bf16 %v2538, %v2537
        %v2548 = vpack.c.bf16 %v2540, %v2539
        %2549 = vrot.lane.b32.xlu0 %v1272, 112
        %v2550 = vpop.permute.xlu0 %2549
        %2551 = vrot.lane.b32.xlu0 %v1273, 112
        %v2552 = vpop.permute.xlu0 %2551
        %2553 = vrot.lane.b32.xlu0 %v1274, 112
        %v2554 = vpop.permute.xlu0 %2553
        %2555 = vrot.lane.b32.xlu0 %v1275, 112
        %v2556 = vpop.permute.xlu0 %2555
        %2557 = vrot.lane.b32.xlu0 %v1276, 112
        %v2558 = vpop.permute.xlu0 %2557
        %2559 = vrot.lane.b32.xlu0 %v1277, 112
        %v2560 = vpop.permute.xlu0 %2559
        %2561 = vrot.lane.b32.xlu0 %v1278, 112
        %v2562 = vpop.permute.xlu0 %2561
        %2563 = vrot.lane.b32.xlu0 %v1279, 112
        %v2564 = vpop.permute.xlu0 %2563
        %2573 = vmatprep.subr.bf16.mxu0 0
        %2574 = vmatpush1.bf16.msra.mxu0 %v2550
        %2575 = vmatprep.subr.bf16.mxu0 0
        %2576 = vmatpush1.bf16.msra.mxu0 %v2552
        %2577 = vmatprep.subr.bf16.mxu0 0
        %2578 = vmatpush1.bf16.msra.mxu0 %v2554
        %2579 = vmatprep.subr.bf16.mxu0 0
        %2580 = vmatpush1.bf16.msra.mxu0 %v2556
        %2581 = vmatprep.subr.bf16.mxu0 0
        %2582 = vmatpush1.bf16.msra.mxu0 %v2558
        %2583 = vmatprep.subr.bf16.mxu0 0
        %2584 = vmatpush1.bf16.msra.mxu0 %v2560
        %2585 = vmatprep.subr.bf16.mxu0 0
        %2586 = vmatpush1.bf16.msra.mxu0 %v2562
        %2587 = vmatprep.subr.bf16.mxu0 0
        %2588 = vmatpush1.bf16.msra.mxu0 %v2564
        %2589 = vmatprep.subr.bf16.mxu0 0
        %2590 = vmatpush1.bf16.msra.mxu0 0
        %2591 = vmatprep.subr.bf16.mxu0 0
        %2592 = vmatpush1.bf16.msra.mxu0 0
        %2593 = vmatprep.subr.bf16.mxu0 0
        %2594 = vmatpush1.bf16.msra.mxu0 0
        %2595 = vmatprep.subr.bf16.mxu0 0
        %2596 = vmatpush1.bf16.msra.mxu0 0
        %2597 = vmatprep.subr.bf16.mxu0 0
        %2598 = vmatpush1.bf16.msra.mxu0 0
        %2599 = vmatprep.subr.bf16.mxu0 0
        %2600 = vmatpush1.bf16.msra.mxu0 0
        %2601 = vmatprep.subr.bf16.mxu0 0
        %2602 = vmatpush1.bf16.msra.mxu0 0
        %2603 = vmatprep.subr.bf16.mxu0 0
        %2604 = vmatpush1.bf16.msra.mxu0 0
        %2605 = vmatprep.mubr.bf16.mxu0 0
        %2606 = vmatmul.mubr.bf16.gmra.mrb[0].mxu0 %v2541
        %v2607 = vpop.f32.mrb[0].mxu0
        %v2608 = vadd.f32 0.0, %v2607
        %v2609 = vpop.f32.mrb[0].mxu0
        %v2610 = vpop.f32.mrb[0].mxu0
        %v2611 = vadd.f32 0.0, %v2610
        %v2612 = vpop.f32.mrb[0].mxu0
        %2613 = vmatprep.mubr.bf16.mxu0 0
        %2614 = vmatmul.mubr.bf16.gmra.mrb[0].mxu0 %v2542
        %v2615 = vpop.f32.mrb[0].mxu0
        %v2616 = vadd.f32 0.0, %v2615
        %v2617 = vpop.f32.mrb[0].mxu0
        %v2618 = vpop.f32.mrb[0].mxu0
        %v2619 = vadd.f32 0.0, %v2618
        %v2620 = vpop.f32.mrb[0].mxu0
        %2621 = vmatprep.mubr.bf16.mxu0 0
        %2622 = vmatmul.mubr.bf16.gmra.mrb[0].mxu0 %v2543
        %v2623 = vpop.f32.mrb[0].mxu0
        %v2624 = vadd.f32 0.0, %v2623
        %v2625 = vpop.f32.mrb[0].mxu0
        %v2626 = vpop.f32.mrb[0].mxu0
        %v2627 = vadd.f32 0.0, %v2626
        %v2628 = vpop.f32.mrb[0].mxu0
        %2629 = vmatprep.mubr.bf16.mxu0 0
        %2630 = vmatmul.mubr.bf16.gmra.mrb[0].mxu0 %v2544
        %v2631 = vpop.f32.mrb[0].mxu0
        %v2632 = vadd.f32 0.0, %v2631
        %v2633 = vpop.f32.mrb[0].mxu0
        %v2634 = vpop.f32.mrb[0].mxu0
        %v2635 = vadd.f32 0.0, %v2634
        %v2636 = vpop.f32.mrb[0].mxu0
        %2637 = vmatprep.mubr.bf16.mxu0 0
        %2638 = vmatmul.mubr.bf16.gmra.mrb[0].mxu0 %v2545
        %v2639 = vpop.f32.mrb[0].mxu0
        %v2640 = vadd.f32 0.0, %v2639
        %v2641 = vpop.f32.mrb[0].mxu0
        %v2642 = vpop.f32.mrb[0].mxu0
        %v2643 = vadd.f32 0.0, %v2642
        %v2644 = vpop.f32.mrb[0].mxu0
        %2645 = vmatprep.mubr.bf16.mxu0 0
        %2646 = vmatmul.mubr.bf16.gmra.mrb[0].mxu0 %v2546
        %v2647 = vpop.f32.mrb[0].mxu0
        %v2648 = vadd.f32 0.0, %v2647
        %v2649 = vpop.f32.mrb[0].mxu0
        %v2650 = vpop.f32.mrb[0].mxu0
        %v2651 = vadd.f32 0.0, %v2650
        %v2652 = vpop.f32.mrb[0].mxu0
        %2653 = vmatprep.mubr.bf16.mxu0 0
        %2654 = vmatmul.mubr.bf16.gmra.mrb[0].mxu0 %v2547
        %v2655 = vpop.f32.mrb[0].mxu0
        %v2656 = vadd.f32 0.0, %v2655
        %v2657 = vpop.f32.mrb[0].mxu0
        %v2658 = vpop.f32.mrb[0].mxu0
        %v2659 = vadd.f32 0.0, %v2658
        %v2660 = vpop.f32.mrb[0].mxu0
        %2661 = vmatprep.mubr.bf16.mxu0 0
        %2662 = vmatmul.mubr.bf16.gmra.mrb[0].mxu0 %v2548
        %v2663 = vpop.f32.mrb[0].mxu0
        %v2664 = vadd.f32 0.0, %v2663
        %v2665 = vpop.f32.mrb[0].mxu0
        %v2666 = vpop.f32.mrb[0].mxu0
        %v2667 = vadd.f32 0.0, %v2666
        %v2668 = vpop.f32.mrb[0].mxu0
        %2669 = vdwg.mxu0
        %v2670 = vpack.c.bf16 %v2611, %v2608
        %v2671 = vpack.c.bf16 %v2619, %v2616
        %v2672 = vpack.c.bf16 %v2627, %v2624
        %v2673 = vpack.c.bf16 %v2635, %v2632
        %v2674 = vpack.c.bf16 %v2643, %v2640
        %v2675 = vpack.c.bf16 %v2651, %v2648
        %v2676 = vpack.c.bf16 %v2659, %v2656
        %v2677 = vpack.c.bf16 %v2667, %v2664
        %2686 = vrot.lane.b32.xlu0 %v2670, 16
        %v2687 = vpop.permute.xlu0 %2686
        %2688 = vrot.lane.b32.xlu0 %v2671, 16
        %v2689 = vpop.permute.xlu0 %2688
        %2690 = vrot.lane.b32.xlu0 %v2672, 16
        %v2691 = vpop.permute.xlu0 %2690
        %2692 = vrot.lane.b32.xlu0 %v2673, 16
        %v2693 = vpop.permute.xlu0 %2692
        %2694 = vrot.lane.b32.xlu0 %v2674, 16
        %v2695 = vpop.permute.xlu0 %2694
        %2696 = vrot.lane.b32.xlu0 %v2675, 16
        %v2697 = vpop.permute.xlu0 %2696
        %2698 = vrot.lane.b32.xlu0 %v2676, 16
        %v2699 = vpop.permute.xlu0 %2698
        %2700 = vrot.lane.b32.xlu0 %v2677, 16
        %v2701 = vpop.permute.xlu0 %2700
        %vm2710 = vcmask 195712
        %2711 = vst.msk [vmem:[#allocation2] sm:$0xff] %vm2710, %v2687
        %2712 = vst.msk [vmem:[#allocation2 + $0x8] sm:$0xff] %vm2710, %v2689
        %2713 = vst.msk [vmem:[#allocation2 + $0x10] sm:$0xff] %vm2710, %v2691
        %2714 = vst.msk [vmem:[#allocation2 + $0x18] sm:$0xff] %vm2710, %v2693
        %2715 = vst.msk [vmem:[#allocation2 + $0x20] sm:$0xff] %vm2710, %v2695
        %2716 = vst.msk [vmem:[#allocation2 + $0x28] sm:$0xff] %vm2710, %v2697
        %2717 = vst.msk [vmem:[#allocation2 + $0x30] sm:$0xff] %vm2710, %v2699
        %2718 = vst.msk [vmem:[#allocation2 + $0x38] sm:$0xff] %vm2710, %v2701
        %2719 = vrot.lane.b32.xlu0 %v1256, 104
        %v2720 = vpop.permute.xlu0 %2719
        %2721 = vrot.lane.b32.xlu0 %v1257, 104
        %v2722 = vpop.permute.xlu0 %2721
        %2723 = vrot.lane.b32.xlu0 %v1258, 104
        %v2724 = vpop.permute.xlu0 %2723
        %2725 = vrot.lane.b32.xlu0 %v1259, 104
        %v2726 = vpop.permute.xlu0 %2725
        %2727 = vrot.lane.b32.xlu0 %v1260, 104
        %v2728 = vpop.permute.xlu0 %2727
        %2729 = vrot.lane.b32.xlu0 %v1261, 104
        %v2730 = vpop.permute.xlu0 %2729
        %2731 = vrot.lane.b32.xlu0 %v1262, 104
        %v2732 = vpop.permute.xlu0 %2731
        %2733 = vrot.lane.b32.xlu0 %v1263, 104
        %v2734 = vpop.permute.xlu0 %2733
        %2735 = vrot.lane.b32.xlu0 %v1264, 104
        %v2736 = vpop.permute.xlu0 %2735
        %2737 = vrot.lane.b32.xlu0 %v1265, 104
        %v2738 = vpop.permute.xlu0 %2737
        %2739 = vrot.lane.b32.xlu0 %v1266, 104
        %v2740 = vpop.permute.xlu0 %2739
        %2741 = vrot.lane.b32.xlu0 %v1267, 104
        %v2742 = vpop.permute.xlu0 %2741
        %2743 = vrot.lane.b32.xlu0 %v1268, 104
        %v2744 = vpop.permute.xlu0 %2743
        %2745 = vrot.lane.b32.xlu0 %v1269, 104
        %v2746 = vpop.permute.xlu0 %2745
        %2747 = vrot.lane.b32.xlu0 %v1270, 104
        %v2748 = vpop.permute.xlu0 %2747
        %2749 = vrot.lane.b32.xlu0 %v1271, 104
        %v2750 = vpop.permute.xlu0 %2749
        %v2752 = vsel %vm1286, %v2720, 0
        %v2755 = vsel %vm1286, %v2722, 0
        %v2758 = vsel %vm1286, %v2724, 0
        %v2761 = vsel %vm1286, %v2726, 0
        %v2764 = vsel %vm1286, %v2728, 0
        %v2767 = vsel %vm1286, %v2730, 0
        %v2770 = vsel %vm1286, %v2732, 0
        %v2773 = vsel %vm1286, %v2734, 0
        %v2776 = vsel %vm1286, %v2736, 0
        %v2779 = vsel %vm1286, %v2738, 0
        %v2782 = vsel %vm1286, %v2740, 0
        %v2785 = vsel %vm1286, %v2742, 0
        %v2788 = vsel %vm1286, %v2744, 0
        %v2791 = vsel %vm1286, %v2746, 0
        %v2794 = vsel %vm1286, %v2748, 0
        %v2797 = vsel %vm1286, %v2750, 0
        %2799 = vmatprep.subr.bf16.mxu0 0
        %2800 = vmatpush1.bf16.xpose.msra.mxu0 %v2776
        %2801 = vmatprep.subr.bf16.mxu0 0
        %2802 = vmatpush1.bf16.xpose.msra.mxu0 %v2779
        %2803 = vmatprep.subr.bf16.mxu0 0
        %2804 = vmatpush1.bf16.xpose.msra.mxu0 %v2782
        %2805 = vmatprep.subr.bf16.mxu0 0
        %2806 = vmatpush1.bf16.xpose.msra.mxu0 %v2785
        %2807 = vmatprep.subr.bf16.mxu0 0
        %2808 = vmatpush1.bf16.xpose.msra.mxu0 %v2788
        %2809 = vmatprep.subr.bf16.mxu0 0
        %2810 = vmatpush1.bf16.xpose.msra.mxu0 %v2791
        %2811 = vmatprep.subr.bf16.mxu0 0
        %2812 = vmatpush1.bf16.xpose.msra.mxu0 %v2794
        %2813 = vmatprep.subr.bf16.mxu0 0
        %2814 = vmatpush1.bf16.xpose.msra.mxu0 %v2797
        %2815 = vmatprep.subr.bf16.mxu0 0
        %2816 = vmatpush1.bf16.xpose.msra.mxu0 0
        %2817 = vmatprep.subr.bf16.mxu0 0
        %2818 = vmatpush1.bf16.xpose.msra.mxu0 0
        %2819 = vmatprep.subr.bf16.mxu0 0
        %2820 = vmatpush1.bf16.xpose.msra.mxu0 0
        %2821 = vmatprep.subr.bf16.mxu0 0
        %2822 = vmatpush1.bf16.xpose.msra.mxu0 0
        %2823 = vmatprep.subr.bf16.mxu0 0
        %2824 = vmatpush1.bf16.xpose.msra.mxu0 0
        %2825 = vmatprep.subr.bf16.mxu0 0
        %2826 = vmatpush1.bf16.xpose.msra.mxu0 0
        %2827 = vmatprep.subr.bf16.mxu0 0
        %2828 = vmatpush1.bf16.xpose.msra.mxu0 0
        %2829 = vmatprep.subr.bf16.mxu0 0
        %2830 = vmatpush1.bf16.xpose.msra.mxu0 0
        %2831 = vmatprep.mubr.bf16.mxu0 0
        %2832 = vmatmul.mubr.bf16.gmra.mrb[0].mxu0 %v2752
        %v2833 = vpop.f32.mrb[0].mxu0
        %v2834 = vadd.f32 %v1284, %v2833
        %v2835 = vpop.f32.mrb[0].mxu0
        %v2836 = vpop.f32.mrb[0].mxu0
        %v2837 = vadd.f32 %v1284, %v2836
        %v2838 = vpop.f32.mrb[0].mxu0
        %2839 = vmatprep.mubr.bf16.mxu0 0
        %2840 = vmatmul.mubr.bf16.gmra.mrb[0].mxu0 %v2755
        %v2841 = vpop.f32.mrb[0].mxu0
        %v2842 = vadd.f32 %v1284, %v2841
        %v2843 = vpop.f32.mrb[0].mxu0
        %v2844 = vpop.f32.mrb[0].mxu0
        %v2845 = vadd.f32 %v1284, %v2844
        %v2846 = vpop.f32.mrb[0].mxu0
        %2847 = vmatprep.mubr.bf16.mxu0 0
        %2848 = vmatmul.mubr.bf16.gmra.mrb[0].mxu0 %v2758
        %v2849 = vpop.f32.mrb[0].mxu0
        %v2850 = vadd.f32 %v1284, %v2849
        %v2851 = vpop.f32.mrb[0].mxu0
        %v2852 = vpop.f32.mrb[0].mxu0
        %v2853 = vadd.f32 %v1284, %v2852
        %v2854 = vpop.f32.mrb[0].mxu0
        %2855 = vmatprep.mubr.bf16.mxu0 0
        %2856 = vmatmul.mubr.bf16.gmra.mrb[0].mxu0 %v2761
        %v2857 = vpop.f32.mrb[0].mxu0
        %v2858 = vadd.f32 %v1284, %v2857
        %v2859 = vpop.f32.mrb[0].mxu0
        %v2860 = vpop.f32.mrb[0].mxu0
        %v2861 = vadd.f32 %v1284, %v2860
        %v2862 = vpop.f32.mrb[0].mxu0
        %2863 = vmatprep.mubr.bf16.mxu0 0
        %2864 = vmatmul.mubr.bf16.gmra.mrb[0].mxu0 %v2764
        %v2865 = vpop.f32.mrb[0].mxu0
        %v2866 = vadd.f32 %v1284, %v2865
        %v2867 = vpop.f32.mrb[0].mxu0
        %v2868 = vpop.f32.mrb[0].mxu0
        %v2869 = vadd.f32 %v1284, %v2868
        %v2870 = vpop.f32.mrb[0].mxu0
        %2871 = vmatprep.mubr.bf16.mxu0 0
        %2872 = vmatmul.mubr.bf16.gmra.mrb[0].mxu0 %v2767
        %v2873 = vpop.f32.mrb[0].mxu0
        %v2874 = vadd.f32 %v1284, %v2873
        %v2875 = vpop.f32.mrb[0].mxu0
        %v2876 = vpop.f32.mrb[0].mxu0
        %v2877 = vadd.f32 %v1284, %v2876
        %v2878 = vpop.f32.mrb[0].mxu0
        %2879 = vmatprep.mubr.bf16.mxu0 0
        %2880 = vmatmul.mubr.bf16.gmra.mrb[0].mxu0 %v2770
        %v2881 = vpop.f32.mrb[0].mxu0
        %v2882 = vadd.f32 %v1284, %v2881
        %v2883 = vpop.f32.mrb[0].mxu0
        %v2884 = vpop.f32.mrb[0].mxu0
        %v2885 = vadd.f32 %v1284, %v2884
        %v2886 = vpop.f32.mrb[0].mxu0
        %2887 = vmatprep.mubr.bf16.mxu0 0
        %2888 = vmatmul.mubr.bf16.gmra.mrb[0].mxu0 %v2773
        %v2889 = vpop.f32.mrb[0].mxu0
        %v2890 = vadd.f32 %v1284, %v2889
        %v2891 = vpop.f32.mrb[0].mxu0
        %v2892 = vpop.f32.mrb[0].mxu0
        %v2893 = vadd.f32 %v1284, %v2892
        %v2894 = vpop.f32.mrb[0].mxu0
        %2895 = vdwg.mxu0
        %2896 = vmax.xlane.f32.xlu0 %v2834
        %v2897 = vpop.xlane.xlu0 %2896
        %2898 = vmax.xlane.f32.xlu0 %v2837
        %v2899 = vpop.xlane.xlu0 %2898
        %2900 = vmax.xlane.f32.xlu0 %v2842
        %v2901 = vpop.xlane.xlu0 %2900
        %2902 = vmax.xlane.f32.xlu0 %v2845
        %v2903 = vpop.xlane.xlu0 %2902
        %2904 = vmax.xlane.f32.xlu0 %v2850
        %v2905 = vpop.xlane.xlu0 %2904
        %2906 = vmax.xlane.f32.xlu0 %v2853
        %v2907 = vpop.xlane.xlu0 %2906
        %2908 = vmax.xlane.f32.xlu0 %v2858
        %v2909 = vpop.xlane.xlu0 %2908
        %2910 = vmax.xlane.f32.xlu0 %v2861
        %v2911 = vpop.xlane.xlu0 %2910
        %2912 = vmax.xlane.f32.xlu0 %v2866
        %v2913 = vpop.xlane.xlu0 %2912
        %2914 = vmax.xlane.f32.xlu0 %v2869
        %v2915 = vpop.xlane.xlu0 %2914
        %2916 = vmax.xlane.f32.xlu0 %v2874
        %v2917 = vpop.xlane.xlu0 %2916
        %2918 = vmax.xlane.f32.xlu0 %v2877
        %v2919 = vpop.xlane.xlu0 %2918
        %2920 = vmax.xlane.f32.xlu0 %v2882
        %v2921 = vpop.xlane.xlu0 %2920
        %2922 = vmax.xlane.f32.xlu0 %v2885
        %v2923 = vpop.xlane.xlu0 %2922
        %2924 = vmax.xlane.f32.xlu0 %v2890
        %v2925 = vpop.xlane.xlu0 %2924
        %2926 = vmax.xlane.f32.xlu0 %v2893
        %v2927 = vpop.xlane.xlu0 %2926
        %v2928 = vsub.f32 %v2834, %v2897
        %v2929 = vsub.f32 %v2837, %v2899
        %v2930 = vsub.f32 %v2842, %v2901
        %v2931 = vsub.f32 %v2845, %v2903
        %v2932 = vsub.f32 %v2850, %v2905
        %v2933 = vsub.f32 %v2853, %v2907
        %v2934 = vsub.f32 %v2858, %v2909
        %v2935 = vsub.f32 %v2861, %v2911
        %v2936 = vsub.f32 %v2866, %v2913
        %v2937 = vsub.f32 %v2869, %v2915
        %v2938 = vsub.f32 %v2874, %v2917
        %v2939 = vsub.f32 %v2877, %v2919
        %v2940 = vsub.f32 %v2882, %v2921
        %v2941 = vsub.f32 %v2885, %v2923
        %v2942 = vsub.f32 %v2890, %v2925
        %v2943 = vsub.f32 %v2893, %v2927
        %v2944 = vmul.f32 %v2928, 1.442695
        %v2945 = vpow.pop %v2944
        %v2946 = vmul.f32 %v2929, 1.442695
        %v2947 = vpow.pop %v2946
        %v2948 = vmul.f32 %v2930, 1.442695
        %v2949 = vpow.pop %v2948
        %v2950 = vmul.f32 %v2931, 1.442695
        %v2951 = vpow.pop %v2950
        %v2952 = vmul.f32 %v2932, 1.442695
        %v2953 = vpow.pop %v2952
        %v2954 = vmul.f32 %v2933, 1.442695
        %v2955 = vpow.pop %v2954
        %v2956 = vmul.f32 %v2934, 1.442695
        %v2957 = vpow.pop %v2956
        %v2958 = vmul.f32 %v2935, 1.442695
        %v2959 = vpow.pop %v2958
        %v2960 = vmul.f32 %v2936, 1.442695
        %v2961 = vpow.pop %v2960
        %v2962 = vmul.f32 %v2937, 1.442695
        %v2963 = vpow.pop %v2962
        %v2964 = vmul.f32 %v2938, 1.442695
        %v2965 = vpow.pop %v2964
        %v2966 = vmul.f32 %v2939, 1.442695
        %v2967 = vpow.pop %v2966
        %v2968 = vmul.f32 %v2940, 1.442695
        %v2969 = vpow.pop %v2968
        %v2970 = vmul.f32 %v2941, 1.442695
        %v2971 = vpow.pop %v2970
        %v2972 = vmul.f32 %v2942, 1.442695
        %v2973 = vpow.pop %v2972
        %v2974 = vmul.f32 %v2943, 1.442695
        %v2975 = vpow.pop %v2974
        %2976 = vadd.xlane.f32.xlu0 %v2945
        %v2977 = vpop.xlane.xlu0 %2976
        %2978 = vadd.xlane.f32.xlu0 %v2947
        %v2979 = vpop.xlane.xlu0 %2978
        %2980 = vadd.xlane.f32.xlu0 %v2949
        %v2981 = vpop.xlane.xlu0 %2980
        %2982 = vadd.xlane.f32.xlu0 %v2951
        %v2983 = vpop.xlane.xlu0 %2982
        %2984 = vadd.xlane.f32.xlu0 %v2953
        %v2985 = vpop.xlane.xlu0 %2984
        %2986 = vadd.xlane.f32.xlu0 %v2955
        %v2987 = vpop.xlane.xlu0 %2986
        %2988 = vadd.xlane.f32.xlu0 %v2957
        %v2989 = vpop.xlane.xlu0 %2988
        %2990 = vadd.xlane.f32.xlu0 %v2959
        %v2991 = vpop.xlane.xlu0 %2990
        %2992 = vadd.xlane.f32.xlu0 %v2961
        %v2993 = vpop.xlane.xlu0 %2992
        %2994 = vadd.xlane.f32.xlu0 %v2963
        %v2995 = vpop.xlane.xlu0 %2994
        %2996 = vadd.xlane.f32.xlu0 %v2965
        %v2997 = vpop.xlane.xlu0 %2996
        %2998 = vadd.xlane.f32.xlu0 %v2967
        %v2999 = vpop.xlane.xlu0 %2998
        %3000 = vadd.xlane.f32.xlu0 %v2969
        %v3001 = vpop.xlane.xlu0 %3000
        %3002 = vadd.xlane.f32.xlu0 %v2971
        %v3003 = vpop.xlane.xlu0 %3002
        %3004 = vadd.xlane.f32.xlu0 %v2973
        %v3005 = vpop.xlane.xlu0 %3004
        %3006 = vadd.xlane.f32.xlu0 %v2975
        %v3007 = vpop.xlane.xlu0 %3006
        %v3008 = vrcp.pop %v2977
        %v3009 = vrcp.pop %v2979
        %v3010 = vrcp.pop %v2981
        %v3011 = vrcp.pop %v2983
        %v3012 = vrcp.pop %v2985
        %v3013 = vrcp.pop %v2987
        %v3014 = vrcp.pop %v2989
        %v3015 = vrcp.pop %v2991
        %v3016 = vrcp.pop %v2993
        %v3017 = vrcp.pop %v2995
        %v3018 = vrcp.pop %v2997
        %v3019 = vrcp.pop %v2999
        %v3020 = vrcp.pop %v3001
        %v3021 = vrcp.pop %v3003
        %v3022 = vrcp.pop %v3005
        %v3023 = vrcp.pop %v3007
        %v3024 = vmul.f32 %v2945, %v3008
        %v3025 = vmul.f32 %v2947, %v3009
        %v3026 = vmul.f32 %v2949, %v3010
        %v3027 = vmul.f32 %v2951, %v3011
        %v3028 = vmul.f32 %v2953, %v3012
        %v3029 = vmul.f32 %v2955, %v3013
        %v3030 = vmul.f32 %v2957, %v3014
        %v3031 = vmul.f32 %v2959, %v3015
        %v3032 = vmul.f32 %v2961, %v3016
        %v3033 = vmul.f32 %v2963, %v3017
        %v3034 = vmul.f32 %v2965, %v3018
        %v3035 = vmul.f32 %v2967, %v3019
        %v3036 = vmul.f32 %v2969, %v3020
        %v3037 = vmul.f32 %v2971, %v3021
        %v3038 = vmul.f32 %v2973, %v3022
        %v3039 = vmul.f32 %v2975, %v3023
        %v3040 = vpack.c.bf16 %v3025, %v3024
        %v3041 = vpack.c.bf16 %v3027, %v3026
        %v3042 = vpack.c.bf16 %v3029, %v3028
        %v3043 = vpack.c.bf16 %v3031, %v3030
        %v3044 = vpack.c.bf16 %v3033, %v3032
        %v3045 = vpack.c.bf16 %v3035, %v3034
        %v3046 = vpack.c.bf16 %v3037, %v3036
        %v3047 = vpack.c.bf16 %v3039, %v3038
        %3048 = vrot.lane.b32.xlu0 %v1272, 104
        %v3049 = vpop.permute.xlu0 %3048
        %3050 = vrot.lane.b32.xlu0 %v1273, 104
        %v3051 = vpop.permute.xlu0 %3050
        %3052 = vrot.lane.b32.xlu0 %v1274, 104
        %v3053 = vpop.permute.xlu0 %3052
        %3054 = vrot.lane.b32.xlu0 %v1275, 104
        %v3055 = vpop.permute.xlu0 %3054
        %3056 = vrot.lane.b32.xlu0 %v1276, 104
        %v3057 = vpop.permute.xlu0 %3056
        %3058 = vrot.lane.b32.xlu0 %v1277, 104
        %v3059 = vpop.permute.xlu0 %3058
        %3060 = vrot.lane.b32.xlu0 %v1278, 104
        %v3061 = vpop.permute.xlu0 %3060
        %3062 = vrot.lane.b32.xlu0 %v1279, 104
        %v3063 = vpop.permute.xlu0 %3062
        %3072 = vmatprep.subr.bf16.mxu0 0
        %3073 = vmatpush1.bf16.msra.mxu0 %v3049
        %3074 = vmatprep.subr.bf16.mxu0 0
        %3075 = vmatpush1.bf16.msra.mxu0 %v3051
        %3076 = vmatprep.subr.bf16.mxu0 0
        %3077 = vmatpush1.bf16.msra.mxu0 %v3053
        %3078 = vmatprep.subr.bf16.mxu0 0
        %3079 = vmatpush1.bf16.msra.mxu0 %v3055
        %3080 = vmatprep.subr.bf16.mxu0 0
        %3081 = vmatpush1.bf16.msra.mxu0 %v3057
        %3082 = vmatprep.subr.bf16.mxu0 0
        %3083 = vmatpush1.bf16.msra.mxu0 %v3059
        %3084 = vmatprep.subr.bf16.mxu0 0
        %3085 = vmatpush1.bf16.msra.mxu0 %v3061
        %3086 = vmatprep.subr.bf16.mxu0 0
        %3087 = vmatpush1.bf16.msra.mxu0 %v3063
        %3088 = vmatprep.subr.bf16.mxu0 0
        %3089 = vmatpush1.bf16.msra.mxu0 0
        %3090 = vmatprep.subr.bf16.mxu0 0
        %3091 = vmatpush1.bf16.msra.mxu0 0
        %3092 = vmatprep.subr.bf16.mxu0 0
        %3093 = vmatpush1.bf16.msra.mxu0 0
        %3094 = vmatprep.subr.bf16.mxu0 0
        %3095 = vmatpush1.bf16.msra.mxu0 0
        %3096 = vmatprep.subr.bf16.mxu0 0
        %3097 = vmatpush1.bf16.msra.mxu0 0
        %3098 = vmatprep.subr.bf16.mxu0 0
        %3099 = vmatpush1.bf16.msra.mxu0 0
        %3100 = vmatprep.subr.bf16.mxu0 0
        %3101 = vmatpush1.bf16.msra.mxu0 0
        %3102 = vmatprep.subr.bf16.mxu0 0
        %3103 = vmatpush1.bf16.msra.mxu0 0
        %3104 = vmatprep.mubr.bf16.mxu0 0
        %3105 = vmatmul.mubr.bf16.gmra.mrb[0].mxu0 %v3040
        %v3106 = vpop.f32.mrb[0].mxu0
        %v3107 = vadd.f32 0.0, %v3106
        %v3108 = vpop.f32.mrb[0].mxu0
        %v3109 = vpop.f32.mrb[0].mxu0
        %v3110 = vadd.f32 0.0, %v3109
        %v3111 = vpop.f32.mrb[0].mxu0
        %3112 = vmatprep.mubr.bf16.mxu0 0
        %3113 = vmatmul.mubr.bf16.gmra.mrb[0].mxu0 %v3041
        %v3114 = vpop.f32.mrb[0].mxu0
        %v3115 = vadd.f32 0.0, %v3114
        %v3116 = vpop.f32.mrb[0].mxu0
        %v3117 = vpop.f32.mrb[0].mxu0
        %v3118 = vadd.f32 0.0, %v3117
        %v3119 = vpop.f32.mrb[0].mxu0
        %3120 = vmatprep.mubr.bf16.mxu0 0
        %3121 = vmatmul.mubr.bf16.gmra.mrb[0].mxu0 %v3042
        %v3122 = vpop.f32.mrb[0].mxu0
        %v3123 = vadd.f32 0.0, %v3122
        %v3124 = vpop.f32.mrb[0].mxu0
        %v3125 = vpop.f32.mrb[0].mxu0
        %v3126 = vadd.f32 0.0, %v3125
        %v3127 = vpop.f32.mrb[0].mxu0
        %3128 = vmatprep.mubr.bf16.mxu0 0
        %3129 = vmatmul.mubr.bf16.gmra.mrb[0].mxu0 %v3043
        %v3130 = vpop.f32.mrb[0].mxu0
        %v3131 = vadd.f32 0.0, %v3130
        %v3132 = vpop.f32.mrb[0].mxu0
        %v3133 = vpop.f32.mrb[0].mxu0
        %v3134 = vadd.f32 0.0, %v3133
        %v3135 = vpop.f32.mrb[0].mxu0
        %3136 = vmatprep.mubr.bf16.mxu0 0
        %3137 = vmatmul.mubr.bf16.gmra.mrb[0].mxu0 %v3044
        %v3138 = vpop.f32.mrb[0].mxu0
        %v3139 = vadd.f32 0.0, %v3138
        %v3140 = vpop.f32.mrb[0].mxu0
        %v3141 = vpop.f32.mrb[0].mxu0
        %v3142 = vadd.f32 0.0, %v3141
        %v3143 = vpop.f32.mrb[0].mxu0
        %3144 = vmatprep.mubr.bf16.mxu0 0
        %3145 = vmatmul.mubr.bf16.gmra.mrb[0].mxu0 %v3045
        %v3146 = vpop.f32.mrb[0].mxu0
        %v3147 = vadd.f32 0.0, %v3146
        %v3148 = vpop.f32.mrb[0].mxu0
        %v3149 = vpop.f32.mrb[0].mxu0
        %v3150 = vadd.f32 0.0, %v3149
        %v3151 = vpop.f32.mrb[0].mxu0
        %3152 = vmatprep.mubr.bf16.mxu0 0
        %3153 = vmatmul.mubr.bf16.gmra.mrb[0].mxu0 %v3046
        %v3154 = vpop.f32.mrb[0].mxu0
        %v3155 = vadd.f32 0.0, %v3154
        %v3156 = vpop.f32.mrb[0].mxu0
        %v3157 = vpop.f32.mrb[0].mxu0
        %v3158 = vadd.f32 0.0, %v3157
        %v3159 = vpop.f32.mrb[0].mxu0
        %3160 = vmatprep.mubr.bf16.mxu0 0
        %3161 = vmatmul.mubr.bf16.gmra.mrb[0].mxu0 %v3047
        %v3162 = vpop.f32.mrb[0].mxu0
        %v3163 = vadd.f32 0.0, %v3162
        %v3164 = vpop.f32.mrb[0].mxu0
        %v3165 = vpop.f32.mrb[0].mxu0
        %v3166 = vadd.f32 0.0, %v3165
        %v3167 = vpop.f32.mrb[0].mxu0
        %3168 = vdwg.mxu0
        %v3169 = vpack.c.bf16 %v3110, %v3107
        %v3170 = vpack.c.bf16 %v3118, %v3115
        %v3171 = vpack.c.bf16 %v3126, %v3123
        %v3172 = vpack.c.bf16 %v3134, %v3131
        %v3173 = vpack.c.bf16 %v3142, %v3139
        %v3174 = vpack.c.bf16 %v3150, %v3147
        %v3175 = vpack.c.bf16 %v3158, %v3155
        %v3176 = vpack.c.bf16 %v3166, %v3163
        %3185 = vrot.lane.b32.xlu0 %v3169, 24
        %v3186 = vpop.permute.xlu0 %3185
        %3187 = vrot.lane.b32.xlu0 %v3170, 24
        %v3188 = vpop.permute.xlu0 %3187
        %3189 = vrot.lane.b32.xlu0 %v3171, 24
        %v3190 = vpop.permute.xlu0 %3189
        %3191 = vrot.lane.b32.xlu0 %v3172, 24
        %v3192 = vpop.permute.xlu0 %3191
        %3193 = vrot.lane.b32.xlu0 %v3173, 24
        %v3194 = vpop.permute.xlu0 %3193
        %3195 = vrot.lane.b32.xlu0 %v3174, 24
        %v3196 = vpop.permute.xlu0 %3195
        %3197 = vrot.lane.b32.xlu0 %v3175, 24
        %v3198 = vpop.permute.xlu0 %3197
        %3199 = vrot.lane.b32.xlu0 %v3176, 24
        %v3200 = vpop.permute.xlu0 %3199
        %vm3209 = vcmask 261312
        %3210 = vst.msk [vmem:[#allocation2] sm:$0xff] %vm3209, %v3186
        %3211 = vst.msk [vmem:[#allocation2 + $0x8] sm:$0xff] %vm3209, %v3188
        %3212 = vst.msk [vmem:[#allocation2 + $0x10] sm:$0xff] %vm3209, %v3190
        %3213 = vst.msk [vmem:[#allocation2 + $0x18] sm:$0xff] %vm3209, %v3192
        %3214 = vst.msk [vmem:[#allocation2 + $0x20] sm:$0xff] %vm3209, %v3194
        %3215 = vst.msk [vmem:[#allocation2 + $0x28] sm:$0xff] %vm3209, %v3196
        %3216 = vst.msk [vmem:[#allocation2 + $0x30] sm:$0xff] %vm3209, %v3198
        %3217 = vst.msk [vmem:[#allocation2 + $0x38] sm:$0xff] %vm3209, %v3200
        %v3218 = vld [vmem:[#allocation2] sm:$0xff]
        %v3219 = vld [vmem:[#allocation2 + $0x8] sm:$0xff]
        %v3220 = vld [vmem:[#allocation2 + $0x10] sm:$0xff]
        %v3221 = vld [vmem:[#allocation2 + $0x18] sm:$0xff]
        %v3222 = vld [vmem:[#allocation2 + $0x20] sm:$0xff]
        %v3223 = vld [vmem:[#allocation2 + $0x28] sm:$0xff]
        %v3224 = vld [vmem:[#allocation2 + $0x30] sm:$0xff]
        %v3225 = vld [vmem:[#allocation2 + $0x38] sm:$0xff]
        %v3226 = vld [vmem:[%s6] sm:$0xf]
        %v3227 = vld [vmem:[%s6 + $0x4] sm:$0xf]
        %v3228 = vld [vmem:[%s6 + $0x8] sm:$0xf]
        %v3229 = vld [vmem:[%s6 + $0xc] sm:$0xf]
        %v3230 = vld [vmem:[%s6 + $0x10] sm:$0xf]
        %v3231 = vld [vmem:[%s6 + $0x14] sm:$0xf]
        %v3232 = vld [vmem:[%s6 + $0x18] sm:$0xf]
        %v3233 = vld [vmem:[%s6 + $0x1c] sm:$0xf]
        %v3234 = vld [vmem:[%s6 + $0x20] sm:$0xf]
        %v3235 = vld [vmem:[%s6 + $0x24] sm:$0xf]
        %v3236 = vld [vmem:[%s6 + $0x28] sm:$0xf]
        %v3237 = vld [vmem:[%s6 + $0x2c] sm:$0xf]
        %v3238 = vld [vmem:[%s6 + $0x30] sm:$0xf]
        %v3239 = vld [vmem:[%s6 + $0x34] sm:$0xf]
        %v3240 = vld [vmem:[%s6 + $0x38] sm:$0xf]
        %v3241 = vld [vmem:[%s6 + $0x3c] sm:$0xf]
        %v3242 = vld [vmem:[%s7] sm:$0x1]
        %v3244 = vlaneseq
        %v3245 = vshrl.u32 %v3244, 7
        %v3246 = vsub.s32 0, %v3245
        %v3247 = vrot.slane %v3242, %v3246
        %v3265 = vunpack.c.l.b16 %v3226
        %v3266 = vunpack.c.l.b16 %v3227
        %v3267 = vunpack.c.l.b16 %v3228
        %v3268 = vunpack.c.l.b16 %v3229
        %v3269 = vunpack.c.l.b16 %v3230
        %v3270 = vunpack.c.l.b16 %v3231
        %v3271 = vunpack.c.l.b16 %v3232
        %v3272 = vunpack.c.l.b16 %v3233
        %v3273 = vunpack.c.l.b16 %v3234
        %v3274 = vunpack.c.l.b16 %v3235
        %v3275 = vunpack.c.l.b16 %v3236
        %v3276 = vunpack.c.l.b16 %v3237
        %v3277 = vunpack.c.l.b16 %v3238
        %v3278 = vunpack.c.l.b16 %v3239
        %v3279 = vunpack.c.l.b16 %v3240
        %v3280 = vunpack.c.l.b16 %v3241
        %v3281 = vpack.c.b16 %v3266, %v3265
        %v3282 = vpack.c.b16 %v3268, %v3267
        %v3283 = vpack.c.b16 %v3270, %v3269
        %v3284 = vpack.c.b16 %v3272, %v3271
        %v3285 = vpack.c.b16 %v3274, %v3273
        %v3286 = vpack.c.b16 %v3276, %v3275
        %v3287 = vpack.c.b16 %v3278, %v3277
        %v3288 = vpack.c.b16 %v3280, %v3279
        %3297 = vmatprep.subr.bf16.mxu0 0
        %3298 = vmatpush1.bf16.msra.mxu0 %v3281
        %3299 = vmatprep.subr.bf16.mxu0 0
        %3300 = vmatpush1.bf16.msra.mxu0 %v3282
        %3301 = vmatprep.subr.bf16.mxu0 0
        %3302 = vmatpush1.bf16.msra.mxu0 %v3283
        %3303 = vmatprep.subr.bf16.mxu0 0
        %3304 = vmatpush1.bf16.msra.mxu0 %v3284
        %3305 = vmatprep.subr.bf16.mxu0 0
        %3306 = vmatpush1.bf16.msra.mxu0 %v3285
        %3307 = vmatprep.subr.bf16.mxu0 0
        %3308 = vmatpush1.bf16.msra.mxu0 %v3286
        %3309 = vmatprep.subr.bf16.mxu0 0
        %3310 = vmatpush1.bf16.msra.mxu0 %v3287
        %3311 = vmatprep.subr.bf16.mxu0 0
        %3312 = vmatpush1.bf16.msra.mxu0 %v3288
        %3313 = vmatprep.subr.bf16.mxu0 0
        %3314 = vmatpush1.bf16.msra.mxu0 0
        %3315 = vmatprep.subr.bf16.mxu0 0
        %3316 = vmatpush1.bf16.msra.mxu0 0
        %3317 = vmatprep.subr.bf16.mxu0 0
        %3318 = vmatpush1.bf16.msra.mxu0 0
        %3319 = vmatprep.subr.bf16.mxu0 0
        %3320 = vmatpush1.bf16.msra.mxu0 0
        %3321 = vmatprep.subr.bf16.mxu0 0
        %3322 = vmatpush1.bf16.msra.mxu0 0
        %3323 = vmatprep.subr.bf16.mxu0 0
        %3324 = vmatpush1.bf16.msra.mxu0 0
        %3325 = vmatprep.subr.bf16.mxu0 0
        %3326 = vmatpush1.bf16.msra.mxu0 0
        %3327 = vmatprep.subr.bf16.mxu0 0
        %3328 = vmatpush1.bf16.msra.mxu0 0
        %3329 = vmatprep.mubr.bf16.mxu0 0
        %3330 = vmatmul.mubr.bf16.gmra.mrb[0].mxu0 %v3218
        %v3331 = vpop.f32.mrb[0].mxu0
        %v3332 = vadd.f32 %v3247, %v3331
        %v3333 = vpop.f32.mrb[0].mxu0
        %v3334 = vpop.f32.mrb[0].mxu0
        %v3335 = vadd.f32 %v3247, %v3334
        %v3336 = vpop.f32.mrb[0].mxu0
        %3337 = vmatprep.mubr.bf16.mxu0 0
        %3338 = vmatmul.mubr.bf16.gmra.mrb[0].mxu0 %v3219
        %v3339 = vpop.f32.mrb[0].mxu0
        %v3340 = vadd.f32 %v3247, %v3339
        %v3341 = vpop.f32.mrb[0].mxu0
        %v3342 = vpop.f32.mrb[0].mxu0
        %v3343 = vadd.f32 %v3247, %v3342
        %v3344 = vpop.f32.mrb[0].mxu0
        %3345 = vmatprep.mubr.bf16.mxu0 0
        %3346 = vmatmul.mubr.bf16.gmra.mrb[0].mxu0 %v3220
        %v3347 = vpop.f32.mrb[0].mxu0
        %v3348 = vadd.f32 %v3247, %v3347
        %v3349 = vpop.f32.mrb[0].mxu0
        %v3350 = vpop.f32.mrb[0].mxu0
        %v3351 = vadd.f32 %v3247, %v3350
        %v3352 = vpop.f32.mrb[0].mxu0
        %3353 = vmatprep.mubr.bf16.mxu0 0
        %3354 = vmatmul.mubr.bf16.gmra.mrb[0].mxu0 %v3221
        %v3355 = vpop.f32.mrb[0].mxu0
        %v3356 = vadd.f32 %v3247, %v3355
        %v3357 = vpop.f32.mrb[0].mxu0
        %v3358 = vpop.f32.mrb[0].mxu0
        %v3359 = vadd.f32 %v3247, %v3358
        %v3360 = vpop.f32.mrb[0].mxu0
        %3361 = vmatprep.mubr.bf16.mxu0 0
        %3362 = vmatmul.mubr.bf16.gmra.mrb[0].mxu0 %v3222
        %v3363 = vpop.f32.mrb[0].mxu0
        %v3364 = vadd.f32 %v3247, %v3363
        %v3365 = vpop.f32.mrb[0].mxu0
        %v3366 = vpop.f32.mrb[0].mxu0
        %v3367 = vadd.f32 %v3247, %v3366
        %v3368 = vpop.f32.mrb[0].mxu0
        %3369 = vmatprep.mubr.bf16.mxu0 0
        %3370 = vmatmul.mubr.bf16.gmra.mrb[0].mxu0 %v3223
        %v3371 = vpop.f32.mrb[0].mxu0
        %v3372 = vadd.f32 %v3247, %v3371
        %v3373 = vpop.f32.mrb[0].mxu0
        %v3374 = vpop.f32.mrb[0].mxu0
        %v3375 = vadd.f32 %v3247, %v3374
        %v3376 = vpop.f32.mrb[0].mxu0
        %3377 = vmatprep.mubr.bf16.mxu0 0
        %3378 = vmatmul.mubr.bf16.gmra.mrb[0].mxu0 %v3224
        %v3379 = vpop.f32.mrb[0].mxu0
        %v3380 = vadd.f32 %v3247, %v3379
        %v3381 = vpop.f32.mrb[0].mxu0
        %v3382 = vpop.f32.mrb[0].mxu0
        %v3383 = vadd.f32 %v3247, %v3382
        %v3384 = vpop.f32.mrb[0].mxu0
        %3385 = vmatprep.mubr.bf16.mxu0 0
        %3386 = vmatmul.mubr.bf16.gmra.mrb[0].mxu0 %v3225
        %v3387 = vpop.f32.mrb[0].mxu0
        %v3388 = vadd.f32 %v3247, %v3387
        %v3389 = vpop.f32.mrb[0].mxu0
        %v3390 = vpop.f32.mrb[0].mxu0
        %v3391 = vadd.f32 %v3247, %v3390
        %v3392 = vpop.f32.mrb[0].mxu0
        %3393 = vdwg.mxu0
        %v3394 = vadd.f32 %v836, %v3332
        %v3395 = vadd.f32 %v837, %v3335
        %v3396 = vadd.f32 %v838, %v3340
        %v3397 = vadd.f32 %v839, %v3343
        %v3398 = vadd.f32 %v840, %v3348
        %v3399 = vadd.f32 %v841, %v3351
        %v3400 = vadd.f32 %v842, %v3356
        %v3401 = vadd.f32 %v843, %v3359
        %v3402 = vadd.f32 %v844, %v3364
        %v3403 = vadd.f32 %v845, %v3367
        %v3404 = vadd.f32 %v846, %v3372
        %v3405 = vadd.f32 %v847, %v3375
        %v3406 = vadd.f32 %v848, %v3380
        %v3407 = vadd.f32 %v849, %v3383
        %v3408 = vadd.f32 %v850, %v3388
        %v3409 = vadd.f32 %v851, %v3391
        %3410 = vadd.xlane.f32.xlu0 %v3394
        %v3411 = vpop.xlane.xlu0 %3410
        %3412 = vadd.xlane.f32.xlu0 %v3395
        %v3413 = vpop.xlane.xlu0 %3412
        %3414 = vadd.xlane.f32.xlu0 %v3396
        %v3415 = vpop.xlane.xlu0 %3414
        %3416 = vadd.xlane.f32.xlu0 %v3397
        %v3417 = vpop.xlane.xlu0 %3416
        %3418 = vadd.xlane.f32.xlu0 %v3398
        %v3419 = vpop.xlane.xlu0 %3418
        %3420 = vadd.xlane.f32.xlu0 %v3399
        %v3421 = vpop.xlane.xlu0 %3420
        %3422 = vadd.xlane.f32.xlu0 %v3400
        %v3423 = vpop.xlane.xlu0 %3422
        %3424 = vadd.xlane.f32.xlu0 %v3401
        %v3425 = vpop.xlane.xlu0 %3424
        %3426 = vadd.xlane.f32.xlu0 %v3402
        %v3427 = vpop.xlane.xlu0 %3426
        %3428 = vadd.xlane.f32.xlu0 %v3403
        %v3429 = vpop.xlane.xlu0 %3428
        %3430 = vadd.xlane.f32.xlu0 %v3404
        %v3431 = vpop.xlane.xlu0 %3430
        %3432 = vadd.xlane.f32.xlu0 %v3405
        %v3433 = vpop.xlane.xlu0 %3432
        %3434 = vadd.xlane.f32.xlu0 %v3406
        %v3435 = vpop.xlane.xlu0 %3434
        %3436 = vadd.xlane.f32.xlu0 %v3407
        %v3437 = vpop.xlane.xlu0 %3436
        %3438 = vadd.xlane.f32.xlu0 %v3408
        %v3439 = vpop.xlane.xlu0 %3438
        %3440 = vadd.xlane.f32.xlu0 %v3409
        %v3441 = vpop.xlane.xlu0 %3440
        %v3442 = vmul.f32 %v3411, 0.03125
        %v3443 = vmul.f32 %v3413, 0.03125
        %v3444 = vmul.f32 %v3415, 0.03125
        %v3445 = vmul.f32 %v3417, 0.03125
        %v3446 = vmul.f32 %v3419, 0.03125
        %v3447 = vmul.f32 %v3421, 0.03125
        %v3448 = vmul.f32 %v3423, 0.03125
        %v3449 = vmul.f32 %v3425, 0.03125
        %v3450 = vmul.f32 %v3427, 0.03125
        %v3451 = vmul.f32 %v3429, 0.03125
        %v3452 = vmul.f32 %v3431, 0.03125
        %v3453 = vmul.f32 %v3433, 0.03125
        %v3454 = vmul.f32 %v3435, 0.03125
        %v3455 = vmul.f32 %v3437, 0.03125
        %v3456 = vmul.f32 %v3439, 0.03125
        %v3457 = vmul.f32 %v3441, 0.03125
        %v3458 = vsub.f32 %v3394, %v3442
        %v3459 = vsub.f32 %v3395, %v3443
        %v3460 = vsub.f32 %v3396, %v3444
        %v3461 = vsub.f32 %v3397, %v3445
        %v3462 = vsub.f32 %v3398, %v3446
        %v3463 = vsub.f32 %v3399, %v3447
        %v3464 = vsub.f32 %v3400, %v3448
        %v3465 = vsub.f32 %v3401, %v3449
        %v3466 = vsub.f32 %v3402, %v3450
        %v3467 = vsub.f32 %v3403, %v3451
        %v3468 = vsub.f32 %v3404, %v3452
        %v3469 = vsub.f32 %v3405, %v3453
        %v3470 = vsub.f32 %v3406, %v3454
        %v3471 = vsub.f32 %v3407, %v3455
        %v3472 = vsub.f32 %v3408, %v3456
        %v3473 = vsub.f32 %v3409, %v3457
        %v3474 = vsel %vm677, %v3458, 0.0
        %v3475 = vsel %vm677, %v3459, 0.0
        %v3476 = vsel %vm677, %v3460, 0.0
        %v3477 = vsel %vm677, %v3461, 0.0
        %v3478 = vsel %vm677, %v3462, 0.0
        %v3479 = vsel %vm677, %v3463, 0.0
        %v3480 = vsel %vm677, %v3464, 0.0
        %v3481 = vsel %vm677, %v3465, 0.0
        %v3482 = vsel %vm677, %v3466, 0.0
        %v3483 = vsel %vm677, %v3467, 0.0
        %v3484 = vsel %vm677, %v3468, 0.0
        %v3485 = vsel %vm677, %v3469, 0.0
        %v3486 = vsel %vm677, %v3470, 0.0
        %v3487 = vsel %vm677, %v3471, 0.0
        %v3488 = vsel %vm677, %v3472, 0.0
        %v3489 = vsel %vm677, %v3473, 0.0
        %v3490 = vmul.f32 %v3474, %v3474
        %v3491 = vmul.f32 %v3475, %v3475
        %v3492 = vmul.f32 %v3476, %v3476
        %v3493 = vmul.f32 %v3477, %v3477
        %v3494 = vmul.f32 %v3478, %v3478
        %v3495 = vmul.f32 %v3479, %v3479
        %v3496 = vmul.f32 %v3480, %v3480
        %v3497 = vmul.f32 %v3481, %v3481
        %v3498 = vmul.f32 %v3482, %v3482
        %v3499 = vmul.f32 %v3483, %v3483
        %v3500 = vmul.f32 %v3484, %v3484
        %v3501 = vmul.f32 %v3485, %v3485
        %v3502 = vmul.f32 %v3486, %v3486
        %v3503 = vmul.f32 %v3487, %v3487
        %v3504 = vmul.f32 %v3488, %v3488
        %v3505 = vmul.f32 %v3489, %v3489
        %3506 = vadd.xlane.f32.xlu0 %v3490
        %v3507 = vpop.xlane.xlu0 %3506
        %3508 = vadd.xlane.f32.xlu0 %v3491
        %v3509 = vpop.xlane.xlu0 %3508
        %3510 = vadd.xlane.f32.xlu0 %v3492
        %v3511 = vpop.xlane.xlu0 %3510
        %3512 = vadd.xlane.f32.xlu0 %v3493
        %v3513 = vpop.xlane.xlu0 %3512
        %3514 = vadd.xlane.f32.xlu0 %v3494
        %v3515 = vpop.xlane.xlu0 %3514
        %3516 = vadd.xlane.f32.xlu0 %v3495
        %v3517 = vpop.xlane.xlu0 %3516
        %3518 = vadd.xlane.f32.xlu0 %v3496
        %v3519 = vpop.xlane.xlu0 %3518
        %3520 = vadd.xlane.f32.xlu0 %v3497
        %v3521 = vpop.xlane.xlu0 %3520
        %3522 = vadd.xlane.f32.xlu0 %v3498
        %v3523 = vpop.xlane.xlu0 %3522
        %3524 = vadd.xlane.f32.xlu0 %v3499
        %v3525 = vpop.xlane.xlu0 %3524
        %3526 = vadd.xlane.f32.xlu0 %v3500
        %v3527 = vpop.xlane.xlu0 %3526
        %3528 = vadd.xlane.f32.xlu0 %v3501
        %v3529 = vpop.xlane.xlu0 %3528
        %3530 = vadd.xlane.f32.xlu0 %v3502
        %v3531 = vpop.xlane.xlu0 %3530
        %3532 = vadd.xlane.f32.xlu0 %v3503
        %v3533 = vpop.xlane.xlu0 %3532
        %3534 = vadd.xlane.f32.xlu0 %v3504
        %v3535 = vpop.xlane.xlu0 %3534
        %3536 = vadd.xlane.f32.xlu0 %v3505
        %v3537 = vpop.xlane.xlu0 %3536
        %v3538 = vmul.f32 %v3507, 0.03125
        %v3539 = vmul.f32 %v3509, 0.03125
        %v3540 = vmul.f32 %v3511, 0.03125
        %v3541 = vmul.f32 %v3513, 0.03125
        %v3542 = vmul.f32 %v3515, 0.03125
        %v3543 = vmul.f32 %v3517, 0.03125
        %v3544 = vmul.f32 %v3519, 0.03125
        %v3545 = vmul.f32 %v3521, 0.03125
        %v3546 = vmul.f32 %v3523, 0.03125
        %v3547 = vmul.f32 %v3525, 0.03125
        %v3548 = vmul.f32 %v3527, 0.03125
        %v3549 = vmul.f32 %v3529, 0.03125
        %v3550 = vmul.f32 %v3531, 0.03125
        %v3551 = vmul.f32 %v3533, 0.03125
        %v3552 = vmul.f32 %v3535, 0.03125
        %v3553 = vmul.f32 %v3537, 0.03125
        %v3554 = vadd.f32 %v3538, 1e-12
        %v3555 = vadd.f32 %v3539, 1e-12
        %v3556 = vadd.f32 %v3540, 1e-12
        %v3557 = vadd.f32 %v3541, 1e-12
        %v3558 = vadd.f32 %v3542, 1e-12
        %v3559 = vadd.f32 %v3543, 1e-12
        %v3560 = vadd.f32 %v3544, 1e-12
        %v3561 = vadd.f32 %v3545, 1e-12
        %v3562 = vadd.f32 %v3546, 1e-12
        %v3563 = vadd.f32 %v3547, 1e-12
        %v3564 = vadd.f32 %v3548, 1e-12
        %v3565 = vadd.f32 %v3549, 1e-12
        %v3566 = vadd.f32 %v3550, 1e-12
        %v3567 = vadd.f32 %v3551, 1e-12
        %v3568 = vadd.f32 %v3552, 1e-12
        %v3569 = vadd.f32 %v3553, 1e-12
        %v3570 = vrsqrt.pop %v3554
        %v3571 = vrsqrt.pop %v3555
        %v3572 = vrsqrt.pop %v3556
        %v3573 = vrsqrt.pop %v3557
        %v3574 = vrsqrt.pop %v3558
        %v3575 = vrsqrt.pop %v3559
        %v3576 = vrsqrt.pop %v3560
        %v3577 = vrsqrt.pop %v3561
        %v3578 = vrsqrt.pop %v3562
        %v3579 = vrsqrt.pop %v3563
        %v3580 = vrsqrt.pop %v3564
        %v3581 = vrsqrt.pop %v3565
        %v3582 = vrsqrt.pop %v3566
        %v3583 = vrsqrt.pop %v3567
        %v3584 = vrsqrt.pop %v3568
        %v3585 = vrsqrt.pop %v3569
        %v3586 = vmul.f32 %v3474, %v3570
        %v3587 = vmul.f32 %v3475, %v3571
        %v3588 = vmul.f32 %v3476, %v3572
        %v3589 = vmul.f32 %v3477, %v3573
        %v3590 = vmul.f32 %v3478, %v3574
        %v3591 = vmul.f32 %v3479, %v3575
        %v3592 = vmul.f32 %v3480, %v3576
        %v3593 = vmul.f32 %v3481, %v3577
        %v3594 = vmul.f32 %v3482, %v3578
        %v3595 = vmul.f32 %v3483, %v3579
        %v3596 = vmul.f32 %v3484, %v3580
        %v3597 = vmul.f32 %v3485, %v3581
        %v3598 = vmul.f32 %v3486, %v3582
        %v3599 = vmul.f32 %v3487, %v3583
        %v3600 = vmul.f32 %v3488, %v3584
        %v3601 = vmul.f32 %v3489, %v3585
        %v3602 = vld [vmem:[%s8] sm:$0x1]
        %v3604 = vlaneseq
        %v3605 = vshrl.u32 %v3604, 7
        %v3606 = vsub.s32 0, %v3605
        %v3607 = vrot.slane %v3602, %v3606
        %v3609 = vmul.f32 %v3586, %v3607
        %v3610 = vmul.f32 %v3587, %v3607
        %v3611 = vmul.f32 %v3588, %v3607
        %v3612 = vmul.f32 %v3589, %v3607
        %v3613 = vmul.f32 %v3590, %v3607
        %v3614 = vmul.f32 %v3591, %v3607
        %v3615 = vmul.f32 %v3592, %v3607
        %v3616 = vmul.f32 %v3593, %v3607
        %v3617 = vmul.f32 %v3594, %v3607
        %v3618 = vmul.f32 %v3595, %v3607
        %v3619 = vmul.f32 %v3596, %v3607
        %v3620 = vmul.f32 %v3597, %v3607
        %v3621 = vmul.f32 %v3598, %v3607
        %v3622 = vmul.f32 %v3599, %v3607
        %v3623 = vmul.f32 %v3600, %v3607
        %v3624 = vmul.f32 %v3601, %v3607
        %v3625 = vld [vmem:[%s9] sm:$0x1]
        %v3627 = vlaneseq
        %v3628 = vshrl.u32 %v3627, 7
        %v3629 = vsub.s32 0, %v3628
        %v3630 = vrot.slane %v3625, %v3629
        %v3632 = vadd.f32 %v3609, %v3630
        %v3633 = vadd.f32 %v3610, %v3630
        %v3634 = vadd.f32 %v3611, %v3630
        %v3635 = vadd.f32 %v3612, %v3630
        %v3636 = vadd.f32 %v3613, %v3630
        %v3637 = vadd.f32 %v3614, %v3630
        %v3638 = vadd.f32 %v3615, %v3630
        %v3639 = vadd.f32 %v3616, %v3630
        %v3640 = vadd.f32 %v3617, %v3630
        %v3641 = vadd.f32 %v3618, %v3630
        %v3642 = vadd.f32 %v3619, %v3630
        %v3643 = vadd.f32 %v3620, %v3630
        %v3644 = vadd.f32 %v3621, %v3630
        %v3645 = vadd.f32 %v3622, %v3630
        %v3646 = vadd.f32 %v3623, %v3630
        %v3647 = vadd.f32 %v3624, %v3630
        %v3648 = vpack.c.bf16 %v3633, %v3632
        %v3649 = vpack.c.bf16 %v3635, %v3634
        %v3650 = vpack.c.bf16 %v3637, %v3636
        %v3651 = vpack.c.bf16 %v3639, %v3638
        %v3652 = vpack.c.bf16 %v3641, %v3640
        %v3653 = vpack.c.bf16 %v3643, %v3642
        %v3654 = vpack.c.bf16 %v3645, %v3644
        %v3655 = vpack.c.bf16 %v3647, %v3646
        %v3656 = vld [vmem:[%s10] sm:$0xf]
        %v3657 = vld [vmem:[%s10 + $0x4] sm:$0xf]
        %v3658 = vld [vmem:[%s10 + $0x8] sm:$0xf]
        %v3659 = vld [vmem:[%s10 + $0xc] sm:$0xf]
        %v3660 = vld [vmem:[%s10 + $0x10] sm:$0xf]
        %v3661 = vld [vmem:[%s10 + $0x14] sm:$0xf]
        %v3662 = vld [vmem:[%s10 + $0x18] sm:$0xf]
        %v3663 = vld [vmem:[%s10 + $0x1c] sm:$0xf]
        %v3664 = vld [vmem:[%s10 + $0x20] sm:$0xf]
        %v3665 = vld [vmem:[%s10 + $0x24] sm:$0xf]
        %v3666 = vld [vmem:[%s10 + $0x28] sm:$0xf]
        %v3667 = vld [vmem:[%s10 + $0x2c] sm:$0xf]
        %v3668 = vld [vmem:[%s10 + $0x30] sm:$0xf]
        %v3669 = vld [vmem:[%s10 + $0x34] sm:$0xf]
        %v3670 = vld [vmem:[%s10 + $0x38] sm:$0xf]
        %v3671 = vld [vmem:[%s10 + $0x3c] sm:$0xf]
        %v3672 = vld [vmem:[%s11] sm:$0x1]
        %v3674 = vlaneseq
        %v3675 = vshrl.u32 %v3674, 7
        %v3676 = vsub.s32 0, %v3675
        %v3677 = vrot.slane %v3672, %v3676
        %v3695 = vunpack.c.l.b16 %v3656
        %v3696 = vunpack.c.l.b16 %v3657
        %v3697 = vunpack.c.l.b16 %v3658
        %v3698 = vunpack.c.l.b16 %v3659
        %v3699 = vunpack.c.l.b16 %v3660
        %v3700 = vunpack.c.l.b16 %v3661
        %v3701 = vunpack.c.l.b16 %v3662
        %v3702 = vunpack.c.l.b16 %v3663
        %v3703 = vunpack.c.l.b16 %v3664
        %v3704 = vunpack.c.l.b16 %v3665
        %v3705 = vunpack.c.l.b16 %v3666
        %v3706 = vunpack.c.l.b16 %v3667
        %v3707 = vunpack.c.l.b16 %v3668
        %v3708 = vunpack.c.l.b16 %v3669
        %v3709 = vunpack.c.l.b16 %v3670
        %v3710 = vunpack.c.l.b16 %v3671
        %v3711 = vpack.c.b16 %v3696, %v3695
        %v3712 = vpack.c.b16 %v3698, %v3697
        %v3713 = vpack.c.b16 %v3700, %v3699
        %v3714 = vpack.c.b16 %v3702, %v3701
        %v3715 = vpack.c.b16 %v3704, %v3703
        %v3716 = vpack.c.b16 %v3706, %v3705
        %v3717 = vpack.c.b16 %v3708, %v3707
        %v3718 = vpack.c.b16 %v3710, %v3709
        %3727 = vmatprep.subr.bf16.mxu0 0
        %3728 = vmatpush1.bf16.msra.mxu0 %v3711
        %3729 = vmatprep.subr.bf16.mxu0 0
        %3730 = vmatpush1.bf16.msra.mxu0 %v3712
        %3731 = vmatprep.subr.bf16.mxu0 0
        %3732 = vmatpush1.bf16.msra.mxu0 %v3713
        %3733 = vmatprep.subr.bf16.mxu0 0
        %3734 = vmatpush1.bf16.msra.mxu0 %v3714
        %3735 = vmatprep.subr.bf16.mxu0 0
        %3736 = vmatpush1.bf16.msra.mxu0 %v3715
        %3737 = vmatprep.subr.bf16.mxu0 0
        %3738 = vmatpush1.bf16.msra.mxu0 %v3716
        %3739 = vmatprep.subr.bf16.mxu0 0
        %3740 = vmatpush1.bf16.msra.mxu0 %v3717
        %3741 = vmatprep.subr.bf16.mxu0 0
        %3742 = vmatpush1.bf16.msra.mxu0 %v3718
        %3743 = vmatprep.subr.bf16.mxu0 0
        %3744 = vmatpush1.bf16.msra.mxu0 0
        %3745 = vmatprep.subr.bf16.mxu0 0
        %3746 = vmatpush1.bf16.msra.mxu0 0
        %3747 = vmatprep.subr.bf16.mxu0 0
        %3748 = vmatpush1.bf16.msra.mxu0 0
        %3749 = vmatprep.subr.bf16.mxu0 0
        %3750 = vmatpush1.bf16.msra.mxu0 0
        %3751 = vmatprep.subr.bf16.mxu0 0
        %3752 = vmatpush1.bf16.msra.mxu0 0
        %3753 = vmatprep.subr.bf16.mxu0 0
        %3754 = vmatpush1.bf16.msra.mxu0 0
        %3755 = vmatprep.subr.bf16.mxu0 0
        %3756 = vmatpush1.bf16.msra.mxu0 0
        %3757 = vmatprep.subr.bf16.mxu0 0
        %3758 = vmatpush1.bf16.msra.mxu0 0
        %3759 = vmatprep.mubr.bf16.mxu0 0
        %3760 = vmatmul.mubr.bf16.gmra.mrb[0].mxu0 %v3648
        %v3761 = vpop.f32.mrb[0].mxu0
        %v3762 = vadd.f32 %v3677, %v3761
        %v3763 = vpop.f32.mrb[0].mxu0
        %v3764 = vpop.f32.mrb[0].mxu0
        %v3765 = vadd.f32 %v3677, %v3764
        %v3766 = vpop.f32.mrb[0].mxu0
        %3767 = vmatprep.mubr.bf16.mxu0 0
        %3768 = vmatmul.mubr.bf16.gmra.mrb[0].mxu0 %v3649
        %v3769 = vpop.f32.mrb[0].mxu0
        %v3770 = vadd.f32 %v3677, %v3769
        %v3771 = vpop.f32.mrb[0].mxu0
        %v3772 = vpop.f32.mrb[0].mxu0
        %v3773 = vadd.f32 %v3677, %v3772
        %v3774 = vpop.f32.mrb[0].mxu0
        %3775 = vmatprep.mubr.bf16.mxu0 0
        %3776 = vmatmul.mubr.bf16.gmra.mrb[0].mxu0 %v3650
        %v3777 = vpop.f32.mrb[0].mxu0
        %v3778 = vadd.f32 %v3677, %v3777
        %v3779 = vpop.f32.mrb[0].mxu0
        %v3780 = vpop.f32.mrb[0].mxu0
        %v3781 = vadd.f32 %v3677, %v3780
        %v3782 = vpop.f32.mrb[0].mxu0
        %3783 = vmatprep.mubr.bf16.mxu0 0
        %3784 = vmatmul.mubr.bf16.gmra.mrb[0].mxu0 %v3651
        %v3785 = vpop.f32.mrb[0].mxu0
        %v3786 = vadd.f32 %v3677, %v3785
        %v3787 = vpop.f32.mrb[0].mxu0
        %v3788 = vpop.f32.mrb[0].mxu0
        %v3789 = vadd.f32 %v3677, %v3788
        %v3790 = vpop.f32.mrb[0].mxu0
        %3791 = vmatprep.mubr.bf16.mxu0 0
        %3792 = vmatmul.mubr.bf16.gmra.mrb[0].mxu0 %v3652
        %v3793 = vpop.f32.mrb[0].mxu0
        %v3794 = vadd.f32 %v3677, %v3793
        %v3795 = vpop.f32.mrb[0].mxu0
        %v3796 = vpop.f32.mrb[0].mxu0
        %v3797 = vadd.f32 %v3677, %v3796
        %v3798 = vpop.f32.mrb[0].mxu0
        %3799 = vmatprep.mubr.bf16.mxu0 0
        %3800 = vmatmul.mubr.bf16.gmra.mrb[0].mxu0 %v3653
        %v3801 = vpop.f32.mrb[0].mxu0
        %v3802 = vadd.f32 %v3677, %v3801
        %v3803 = vpop.f32.mrb[0].mxu0
        %v3804 = vpop.f32.mrb[0].mxu0
        %v3805 = vadd.f32 %v3677, %v3804
        %v3806 = vpop.f32.mrb[0].mxu0
        %3807 = vmatprep.mubr.bf16.mxu0 0
        %3808 = vmatmul.mubr.bf16.gmra.mrb[0].mxu0 %v3654
        %v3809 = vpop.f32.mrb[0].mxu0
        %v3810 = vadd.f32 %v3677, %v3809
        %v3811 = vpop.f32.mrb[0].mxu0
        %v3812 = vpop.f32.mrb[0].mxu0
        %v3813 = vadd.f32 %v3677, %v3812
        %v3814 = vpop.f32.mrb[0].mxu0
        %3815 = vmatprep.mubr.bf16.mxu0 0
        %3816 = vmatmul.mubr.bf16.gmra.mrb[0].mxu0 %v3655
        %v3817 = vpop.f32.mrb[0].mxu0
        %v3818 = vadd.f32 %v3677, %v3817
        %v3819 = vpop.f32.mrb[0].mxu0
        %v3820 = vpop.f32.mrb[0].mxu0
        %v3821 = vadd.f32 %v3677, %v3820
        %v3822 = vpop.f32.mrb[0].mxu0
        %3823 = vdwg.mxu0
        %v3824 = vmul.f32 %v3762, 0.5
        %v3825 = vmul.f32 %v3765, 0.5
        %v3826 = vmul.f32 %v3770, 0.5
        %v3827 = vmul.f32 %v3773, 0.5
        %v3828 = vmul.f32 %v3778, 0.5
        %v3829 = vmul.f32 %v3781, 0.5
        %v3830 = vmul.f32 %v3786, 0.5
        %v3831 = vmul.f32 %v3789, 0.5
        %v3832 = vmul.f32 %v3794, 0.5
        %v3833 = vmul.f32 %v3797, 0.5
        %v3834 = vmul.f32 %v3802, 0.5
        %v3835 = vmul.f32 %v3805, 0.5
        %v3836 = vmul.f32 %v3810, 0.5
        %v3837 = vmul.f32 %v3813, 0.5
        %v3838 = vmul.f32 %v3818, 0.5
        %v3839 = vmul.f32 %v3821, 0.5
        %v3840 = vmul.f32 %v3762, 0.044715
        %v3841 = vmul.f32 %v3765, 0.044715
        %v3842 = vmul.f32 %v3770, 0.044715
        %v3843 = vmul.f32 %v3773, 0.044715
        %v3844 = vmul.f32 %v3778, 0.044715
        %v3845 = vmul.f32 %v3781, 0.044715
        %v3846 = vmul.f32 %v3786, 0.044715
        %v3847 = vmul.f32 %v3789, 0.044715
        %v3848 = vmul.f32 %v3794, 0.044715
        %v3849 = vmul.f32 %v3797, 0.044715
        %v3850 = vmul.f32 %v3802, 0.044715
        %v3851 = vmul.f32 %v3805, 0.044715
        %v3852 = vmul.f32 %v3810, 0.044715
        %v3853 = vmul.f32 %v3813, 0.044715
        %v3854 = vmul.f32 %v3818, 0.044715
        %v3855 = vmul.f32 %v3821, 0.044715
        %v3856 = vmul.f32 %v3840, %v3762
        %v3857 = vmul.f32 %v3841, %v3765
        %v3858 = vmul.f32 %v3842, %v3770
        %v3859 = vmul.f32 %v3843, %v3773
        %v3860 = vmul.f32 %v3844, %v3778
        %v3861 = vmul.f32 %v3845, %v3781
        %v3862 = vmul.f32 %v3846, %v3786
        %v3863 = vmul.f32 %v3847, %v3789
        %v3864 = vmul.f32 %v3848, %v3794
        %v3865 = vmul.f32 %v3849, %v3797
        %v3866 = vmul.f32 %v3850, %v3802
        %v3867 = vmul.f32 %v3851, %v3805
        %v3868 = vmul.f32 %v3852, %v3810
        %v3869 = vmul.f32 %v3853, %v3813
        %v3870 = vmul.f32 %v3854, %v3818
        %v3871 = vmul.f32 %v3855, %v3821
        %v3872 = vmul.f32 %v3856, %v3762
        %v3873 = vmul.f32 %v3857, %v3765
        %v3874 = vmul.f32 %v3858, %v3770
        %v3875 = vmul.f32 %v3859, %v3773
        %v3876 = vmul.f32 %v3860, %v3778
        %v3877 = vmul.f32 %v3861, %v3781
        %v3878 = vmul.f32 %v3862, %v3786
        %v3879 = vmul.f32 %v3863, %v3789
        %v3880 = vmul.f32 %v3864, %v3794
        %v3881 = vmul.f32 %v3865, %v3797
        %v3882 = vmul.f32 %v3866, %v3802
        %v3883 = vmul.f32 %v3867, %v3805
        %v3884 = vmul.f32 %v3868, %v3810
        %v3885 = vmul.f32 %v3869, %v3813
        %v3886 = vmul.f32 %v3870, %v3818
        %v3887 = vmul.f32 %v3871, %v3821
        %v3888 = vadd.f32 %v3762, %v3872
        %v3889 = vadd.f32 %v3765, %v3873
        %v3890 = vadd.f32 %v3770, %v3874
        %v3891 = vadd.f32 %v3773, %v3875
        %v3892 = vadd.f32 %v3778, %v3876
        %v3893 = vadd.f32 %v3781, %v3877
        %v3894 = vadd.f32 %v3786, %v3878
        %v3895 = vadd.f32 %v3789, %v3879
        %v3896 = vadd.f32 %v3794, %v3880
        %v3897 = vadd.f32 %v3797, %v3881
        %v3898 = vadd.f32 %v3802, %v3882
        %v3899 = vadd.f32 %v3805, %v3883
        %v3900 = vadd.f32 %v3810, %v3884
        %v3901 = vadd.f32 %v3813, %v3885
        %v3902 = vadd.f32 %v3818, %v3886
        %v3903 = vadd.f32 %v3821, %v3887
        %v3904 = vmul.f32 %v3888, 0.7978846
        %v3905 = vmul.f32 %v3889, 0.7978846
        %v3906 = vmul.f32 %v3890, 0.7978846
        %v3907 = vmul.f32 %v3891, 0.7978846
        %v3908 = vmul.f32 %v3892, 0.7978846
        %v3909 = vmul.f32 %v3893, 0.7978846
        %v3910 = vmul.f32 %v3894, 0.7978846
        %v3911 = vmul.f32 %v3895, 0.7978846
        %v3912 = vmul.f32 %v3896, 0.7978846
        %v3913 = vmul.f32 %v3897, 0.7978846
        %v3914 = vmul.f32 %v3898, 0.7978846
        %v3915 = vmul.f32 %v3899, 0.7978846
        %v3916 = vmul.f32 %v3900, 0.7978846
        %v3917 = vmul.f32 %v3901, 0.7978846
        %v3918 = vmul.f32 %v3902, 0.7978846
        %v3919 = vmul.f32 %v3903, 0.7978846
        %v3920 = vtanh.pop %v3904
        %v3921 = vtanh.pop %v3905
        %v3922 = vtanh.pop %v3906
        %v3923 = vtanh.pop %v3907
        %v3924 = vtanh.pop %v3908
        %v3925 = vtanh.pop %v3909
        %v3926 = vtanh.pop %v3910
        %v3927 = vtanh.pop %v3911
        %v3928 = vtanh.pop %v3912
        %v3929 = vtanh.pop %v3913
        %v3930 = vtanh.pop %v3914
        %v3931 = vtanh.pop %v3915
        %v3932 = vtanh.pop %v3916
        %v3933 = vtanh.pop %v3917
        %v3934 = vtanh.pop %v3918
        %v3935 = vtanh.pop %v3919
        %v3936 = vadd.f32 %v3920, 1.0
        %v3937 = vadd.f32 %v3921, 1.0
        %v3938 = vadd.f32 %v3922, 1.0
        %v3939 = vadd.f32 %v3923, 1.0
        %v3940 = vadd.f32 %v3924, 1.0
        %v3941 = vadd.f32 %v3925, 1.0
        %v3942 = vadd.f32 %v3926, 1.0
        %v3943 = vadd.f32 %v3927, 1.0
        %v3944 = vadd.f32 %v3928, 1.0
        %v3945 = vadd.f32 %v3929, 1.0
        %v3946 = vadd.f32 %v3930, 1.0
        %v3947 = vadd.f32 %v3931, 1.0
        %v3948 = vadd.f32 %v3932, 1.0
        %v3949 = vadd.f32 %v3933, 1.0
        %v3950 = vadd.f32 %v3934, 1.0
        %v3951 = vadd.f32 %v3935, 1.0
        %v3952 = vmul.f32 %v3824, %v3936
        %v3953 = vmul.f32 %v3825, %v3937
        %v3954 = vmul.f32 %v3826, %v3938
        %v3955 = vmul.f32 %v3827, %v3939
        %v3956 = vmul.f32 %v3828, %v3940
        %v3957 = vmul.f32 %v3829, %v3941
        %v3958 = vmul.f32 %v3830, %v3942
        %v3959 = vmul.f32 %v3831, %v3943
        %v3960 = vmul.f32 %v3832, %v3944
        %v3961 = vmul.f32 %v3833, %v3945
        %v3962 = vmul.f32 %v3834, %v3946
        %v3963 = vmul.f32 %v3835, %v3947
        %v3964 = vmul.f32 %v3836, %v3948
        %v3965 = vmul.f32 %v3837, %v3949
        %v3966 = vmul.f32 %v3838, %v3950
        %v3967 = vmul.f32 %v3839, %v3951
        %v3968 = vpack.c.bf16 %v3953, %v3952
        %v3969 = vpack.c.bf16 %v3955, %v3954
        %v3970 = vpack.c.bf16 %v3957, %v3956
        %v3971 = vpack.c.bf16 %v3959, %v3958
        %v3972 = vpack.c.bf16 %v3961, %v3960
        %v3973 = vpack.c.bf16 %v3963, %v3962
        %v3974 = vpack.c.bf16 %v3965, %v3964
        %v3975 = vpack.c.bf16 %v3967, %v3966
        %v3976 = vld [vmem:[#allocation3] sm:$0xf]
        %v3977 = vld [vmem:[#allocation3 + $0x4] sm:$0xf]
        %v3978 = vld [vmem:[#allocation3 + $0x8] sm:$0xf]
        %v3979 = vld [vmem:[#allocation3 + $0xc] sm:$0xf]
        %v3980 = vld [vmem:[#allocation3 + $0x10] sm:$0xf]
        %v3981 = vld [vmem:[#allocation3 + $0x14] sm:$0xf]
        %v3982 = vld [vmem:[#allocation3 + $0x18] sm:$0xf]
        %v3983 = vld [vmem:[#allocation3 + $0x1c] sm:$0xf]
        %v3984 = vld [vmem:[#allocation3 + $0x20] sm:$0xf]
        %v3985 = vld [vmem:[#allocation3 + $0x24] sm:$0xf]
        %v3986 = vld [vmem:[#allocation3 + $0x28] sm:$0xf]
        %v3987 = vld [vmem:[#allocation3 + $0x2c] sm:$0xf]
        %v3988 = vld [vmem:[#allocation3 + $0x30] sm:$0xf]
        %v3989 = vld [vmem:[#allocation3 + $0x34] sm:$0xf]
        %v3990 = vld [vmem:[#allocation3 + $0x38] sm:$0xf]
        %v3991 = vld [vmem:[#allocation3 + $0x3c] sm:$0xf]
        %v3992 = vld [vmem:[%s13] sm:$0x1]
        %v3994 = vlaneseq
        %v3995 = vshrl.u32 %v3994, 7
        %v3996 = vsub.s32 0, %v3995
        %v3997 = vrot.slane %v3992, %v3996
        %v4015 = vunpack.c.l.b16 %v3976
        %v4016 = vunpack.c.l.b16 %v3977
        %v4017 = vunpack.c.l.b16 %v3978
        %v4018 = vunpack.c.l.b16 %v3979
        %v4019 = vunpack.c.l.b16 %v3980
        %v4020 = vunpack.c.l.b16 %v3981
        %v4021 = vunpack.c.l.b16 %v3982
        %v4022 = vunpack.c.l.b16 %v3983
        %v4023 = vunpack.c.l.b16 %v3984
        %v4024 = vunpack.c.l.b16 %v3985
        %v4025 = vunpack.c.l.b16 %v3986
        %v4026 = vunpack.c.l.b16 %v3987
        %v4027 = vunpack.c.l.b16 %v3988
        %v4028 = vunpack.c.l.b16 %v3989
        %v4029 = vunpack.c.l.b16 %v3990
        %v4030 = vunpack.c.l.b16 %v3991
        %v4031 = vpack.c.b16 %v4016, %v4015
        %v4032 = vpack.c.b16 %v4018, %v4017
        %v4033 = vpack.c.b16 %v4020, %v4019
        %v4034 = vpack.c.b16 %v4022, %v4021
        %v4035 = vpack.c.b16 %v4024, %v4023
        %v4036 = vpack.c.b16 %v4026, %v4025
        %v4037 = vpack.c.b16 %v4028, %v4027
        %v4038 = vpack.c.b16 %v4030, %v4029
        %4047 = vmatprep.subr.bf16.mxu0 0
        %4048 = vmatpush1.bf16.msra.mxu0 %v4031
        %4049 = vmatprep.subr.bf16.mxu0 0
        %4050 = vmatpush1.bf16.msra.mxu0 %v4032
        %4051 = vmatprep.subr.bf16.mxu0 0
        %4052 = vmatpush1.bf16.msra.mxu0 %v4033
        %4053 = vmatprep.subr.bf16.mxu0 0
        %4054 = vmatpush1.bf16.msra.mxu0 %v4034
        %4055 = vmatprep.subr.bf16.mxu0 0
        %4056 = vmatpush1.bf16.msra.mxu0 %v4035
        %4057 = vmatprep.subr.bf16.mxu0 0
        %4058 = vmatpush1.bf16.msra.mxu0 %v4036
        %4059 = vmatprep.subr.bf16.mxu0 0
        %4060 = vmatpush1.bf16.msra.mxu0 %v4037
        %4061 = vmatprep.subr.bf16.mxu0 0
        %4062 = vmatpush1.bf16.msra.mxu0 %v4038
        %4063 = vmatprep.subr.bf16.mxu0 0
        %4064 = vmatpush1.bf16.msra.mxu0 0
        %4065 = vmatprep.subr.bf16.mxu0 0
        %4066 = vmatpush1.bf16.msra.mxu0 0
        %4067 = vmatprep.subr.bf16.mxu0 0
        %4068 = vmatpush1.bf16.msra.mxu0 0
        %4069 = vmatprep.subr.bf16.mxu0 0
        %4070 = vmatpush1.bf16.msra.mxu0 0
        %4071 = vmatprep.subr.bf16.mxu0 0
        %4072 = vmatpush1.bf16.msra.mxu0 0
        %4073 = vmatprep.subr.bf16.mxu0 0
        %4074 = vmatpush1.bf16.msra.mxu0 0
        %4075 = vmatprep.subr.bf16.mxu0 0
        %4076 = vmatpush1.bf16.msra.mxu0 0
        %4077 = vmatprep.subr.bf16.mxu0 0
        %4078 = vmatpush1.bf16.msra.mxu0 0
        %4079 = vmatprep.mubr.bf16.mxu0 0
        %4080 = vmatmul.mubr.bf16.gmra.mrb[0].mxu0 %v3968
        %v4081 = vpop.f32.mrb[0].mxu0
        %v4082 = vadd.f32 %v3997, %v4081
        %v4083 = vpop.f32.mrb[0].mxu0
        %v4084 = vpop.f32.mrb[0].mxu0
        %v4085 = vadd.f32 %v3997, %v4084
        %v4086 = vpop.f32.mrb[0].mxu0
        %4087 = vmatprep.mubr.bf16.mxu0 0
        %4088 = vmatmul.mubr.bf16.gmra.mrb[0].mxu0 %v3969
        %v4089 = vpop.f32.mrb[0].mxu0
        %v4090 = vadd.f32 %v3997, %v4089
        %v4091 = vpop.f32.mrb[0].mxu0
        %v4092 = vpop.f32.mrb[0].mxu0
        %v4093 = vadd.f32 %v3997, %v4092
        %v4094 = vpop.f32.mrb[0].mxu0
        %4095 = vmatprep.mubr.bf16.mxu0 0
        %4096 = vmatmul.mubr.bf16.gmra.mrb[0].mxu0 %v3970
        %v4097 = vpop.f32.mrb[0].mxu0
        %v4098 = vadd.f32 %v3997, %v4097
        %v4099 = vpop.f32.mrb[0].mxu0
        %v4100 = vpop.f32.mrb[0].mxu0
        %v4101 = vadd.f32 %v3997, %v4100
        %v4102 = vpop.f32.mrb[0].mxu0
        %4103 = vmatprep.mubr.bf16.mxu0 0
        %4104 = vmatmul.mubr.bf16.gmra.mrb[0].mxu0 %v3971
        %v4105 = vpop.f32.mrb[0].mxu0
        %v4106 = vadd.f32 %v3997, %v4105
        %v4107 = vpop.f32.mrb[0].mxu0
        %v4108 = vpop.f32.mrb[0].mxu0
        %v4109 = vadd.f32 %v3997, %v4108
        %v4110 = vpop.f32.mrb[0].mxu0
        %4111 = vmatprep.mubr.bf16.mxu0 0
        %4112 = vmatmul.mubr.bf16.gmra.mrb[0].mxu0 %v3972
        %v4113 = vpop.f32.mrb[0].mxu0
        %v4114 = vadd.f32 %v3997, %v4113
        %v4115 = vpop.f32.mrb[0].mxu0
        %v4116 = vpop.f32.mrb[0].mxu0
        %v4117 = vadd.f32 %v3997, %v4116
        %v4118 = vpop.f32.mrb[0].mxu0
        %4119 = vmatprep.mubr.bf16.mxu0 0
        %4120 = vmatmul.mubr.bf16.gmra.mrb[0].mxu0 %v3973
        %v4121 = vpop.f32.mrb[0].mxu0
        %v4122 = vadd.f32 %v3997, %v4121
        %v4123 = vpop.f32.mrb[0].mxu0
        %v4124 = vpop.f32.mrb[0].mxu0
        %v4125 = vadd.f32 %v3997, %v4124
        %v4126 = vpop.f32.mrb[0].mxu0
        %4127 = vmatprep.mubr.bf16.mxu0 0
        %4128 = vmatmul.mubr.bf16.gmra.mrb[0].mxu0 %v3974
        %v4129 = vpop.f32.mrb[0].mxu0
        %v4130 = vadd.f32 %v3997, %v4129
        %v4131 = vpop.f32.mrb[0].mxu0
        %v4132 = vpop.f32.mrb[0].mxu0
        %v4133 = vadd.f32 %v3997, %v4132
        %v4134 = vpop.f32.mrb[0].mxu0
        %4135 = vmatprep.mubr.bf16.mxu0 0
        %4136 = vmatmul.mubr.bf16.gmra.mrb[0].mxu0 %v3975
        %v4137 = vpop.f32.mrb[0].mxu0
        %v4138 = vadd.f32 %v3997, %v4137
        %v4139 = vpop.f32.mrb[0].mxu0
        %v4140 = vpop.f32.mrb[0].mxu0
        %v4141 = vadd.f32 %v3997, %v4140
        %v4142 = vpop.f32.mrb[0].mxu0
        %4143 = vdwg.mxu0
        %v4144 = vadd.f32 %v3632, %v4082
        %v4145 = vadd.f32 %v3633, %v4085
        %v4146 = vadd.f32 %v3634, %v4090
        %v4147 = vadd.f32 %v3635, %v4093
        %v4148 = vadd.f32 %v3636, %v4098
        %v4149 = vadd.f32 %v3637, %v4101
        %v4150 = vadd.f32 %v3638, %v4106
        %v4151 = vadd.f32 %v3639, %v4109
        %v4152 = vadd.f32 %v3640, %v4114
        %v4153 = vadd.f32 %v3641, %v4117
        %v4154 = vadd.f32 %v3642, %v4122
        %v4155 = vadd.f32 %v3643, %v4125
        %v4156 = vadd.f32 %v3644, %v4130
        %v4157 = vadd.f32 %v3645, %v4133
        %v4158 = vadd.f32 %v3646, %v4138
        %v4159 = vadd.f32 %v3647, %v4141
        %4160 = vadd.xlane.f32.xlu0 %v4144
        %v4161 = vpop.xlane.xlu0 %4160
        %4162 = vadd.xlane.f32.xlu0 %v4145
        %v4163 = vpop.xlane.xlu0 %4162
        %4164 = vadd.xlane.f32.xlu0 %v4146
        %v4165 = vpop.xlane.xlu0 %4164
        %4166 = vadd.xlane.f32.xlu0 %v4147
        %v4167 = vpop.xlane.xlu0 %4166
        %4168 = vadd.xlane.f32.xlu0 %v4148
        %v4169 = vpop.xlane.xlu0 %4168
        %4170 = vadd.xlane.f32.xlu0 %v4149
        %v4171 = vpop.xlane.xlu0 %4170
        %4172 = vadd.xlane.f32.xlu0 %v4150
        %v4173 = vpop.xlane.xlu0 %4172
        %4174 = vadd.xlane.f32.xlu0 %v4151
        %v4175 = vpop.xlane.xlu0 %4174
        %4176 = vadd.xlane.f32.xlu0 %v4152
        %v4177 = vpop.xlane.xlu0 %4176
        %4178 = vadd.xlane.f32.xlu0 %v4153
        %v4179 = vpop.xlane.xlu0 %4178
        %4180 = vadd.xlane.f32.xlu0 %v4154
        %v4181 = vpop.xlane.xlu0 %4180
        %4182 = vadd.xlane.f32.xlu0 %v4155
        %v4183 = vpop.xlane.xlu0 %4182
        %4184 = vadd.xlane.f32.xlu0 %v4156
        %v4185 = vpop.xlane.xlu0 %4184
        %4186 = vadd.xlane.f32.xlu0 %v4157
        %v4187 = vpop.xlane.xlu0 %4186
        %4188 = vadd.xlane.f32.xlu0 %v4158
        %v4189 = vpop.xlane.xlu0 %4188
        %4190 = vadd.xlane.f32.xlu0 %v4159
        %v4191 = vpop.xlane.xlu0 %4190
        %v4192 = vmul.f32 %v4161, 0.03125
        %v4193 = vmul.f32 %v4163, 0.03125
        %v4194 = vmul.f32 %v4165, 0.03125
        %v4195 = vmul.f32 %v4167, 0.03125
        %v4196 = vmul.f32 %v4169, 0.03125
        %v4197 = vmul.f32 %v4171, 0.03125
        %v4198 = vmul.f32 %v4173, 0.03125
        %v4199 = vmul.f32 %v4175, 0.03125
        %v4200 = vmul.f32 %v4177, 0.03125
        %v4201 = vmul.f32 %v4179, 0.03125
        %v4202 = vmul.f32 %v4181, 0.03125
        %v4203 = vmul.f32 %v4183, 0.03125
        %v4204 = vmul.f32 %v4185, 0.03125
        %v4205 = vmul.f32 %v4187, 0.03125
        %v4206 = vmul.f32 %v4189, 0.03125
        %v4207 = vmul.f32 %v4191, 0.03125
        %v4208 = vsub.f32 %v4144, %v4192
        %v4209 = vsub.f32 %v4145, %v4193
        %v4210 = vsub.f32 %v4146, %v4194
        %v4211 = vsub.f32 %v4147, %v4195
        %v4212 = vsub.f32 %v4148, %v4196
        %v4213 = vsub.f32 %v4149, %v4197
        %v4214 = vsub.f32 %v4150, %v4198
        %v4215 = vsub.f32 %v4151, %v4199
        %v4216 = vsub.f32 %v4152, %v4200
        %v4217 = vsub.f32 %v4153, %v4201
        %v4218 = vsub.f32 %v4154, %v4202
        %v4219 = vsub.f32 %v4155, %v4203
        %v4220 = vsub.f32 %v4156, %v4204
        %v4221 = vsub.f32 %v4157, %v4205
        %v4222 = vsub.f32 %v4158, %v4206
        %v4223 = vsub.f32 %v4159, %v4207
        %v4224 = vsel %vm677, %v4208, 0.0
        %v4225 = vsel %vm677, %v4209, 0.0
        %v4226 = vsel %vm677, %v4210, 0.0
        %v4227 = vsel %vm677, %v4211, 0.0
        %v4228 = vsel %vm677, %v4212, 0.0
        %v4229 = vsel %vm677, %v4213, 0.0
        %v4230 = vsel %vm677, %v4214, 0.0
        %v4231 = vsel %vm677, %v4215, 0.0
        %v4232 = vsel %vm677, %v4216, 0.0
        %v4233 = vsel %vm677, %v4217, 0.0
        %v4234 = vsel %vm677, %v4218, 0.0
        %v4235 = vsel %vm677, %v4219, 0.0
        %v4236 = vsel %vm677, %v4220, 0.0
        %v4237 = vsel %vm677, %v4221, 0.0
        %v4238 = vsel %vm677, %v4222, 0.0
        %v4239 = vsel %vm677, %v4223, 0.0
        %v4240 = vmul.f32 %v4224, %v4224
        %v4241 = vmul.f32 %v4225, %v4225
        %v4242 = vmul.f32 %v4226, %v4226
        %v4243 = vmul.f32 %v4227, %v4227
        %v4244 = vmul.f32 %v4228, %v4228
        %v4245 = vmul.f32 %v4229, %v4229
        %v4246 = vmul.f32 %v4230, %v4230
        %v4247 = vmul.f32 %v4231, %v4231
        %v4248 = vmul.f32 %v4232, %v4232
        %v4249 = vmul.f32 %v4233, %v4233
        %v4250 = vmul.f32 %v4234, %v4234
        %v4251 = vmul.f32 %v4235, %v4235
        %v4252 = vmul.f32 %v4236, %v4236
        %v4253 = vmul.f32 %v4237, %v4237
        %v4254 = vmul.f32 %v4238, %v4238
        %v4255 = vmul.f32 %v4239, %v4239
        %4256 = vadd.xlane.f32.xlu0 %v4240
        %v4257 = vpop.xlane.xlu0 %4256
        %4258 = vadd.xlane.f32.xlu0 %v4241
        %v4259 = vpop.xlane.xlu0 %4258
        %4260 = vadd.xlane.f32.xlu0 %v4242
        %v4261 = vpop.xlane.xlu0 %4260
        %4262 = vadd.xlane.f32.xlu0 %v4243
        %v4263 = vpop.xlane.xlu0 %4262
        %4264 = vadd.xlane.f32.xlu0 %v4244
        %v4265 = vpop.xlane.xlu0 %4264
        %4266 = vadd.xlane.f32.xlu0 %v4245
        %v4267 = vpop.xlane.xlu0 %4266
        %4268 = vadd.xlane.f32.xlu0 %v4246
        %v4269 = vpop.xlane.xlu0 %4268
        %4270 = vadd.xlane.f32.xlu0 %v4247
        %v4271 = vpop.xlane.xlu0 %4270
        %4272 = vadd.xlane.f32.xlu0 %v4248
        %v4273 = vpop.xlane.xlu0 %4272
        %4274 = vadd.xlane.f32.xlu0 %v4249
        %v4275 = vpop.xlane.xlu0 %4274
        %4276 = vadd.xlane.f32.xlu0 %v4250
        %v4277 = vpop.xlane.xlu0 %4276
        %4278 = vadd.xlane.f32.xlu0 %v4251
        %v4279 = vpop.xlane.xlu0 %4278
        %4280 = vadd.xlane.f32.xlu0 %v4252
        %v4281 = vpop.xlane.xlu0 %4280
        %4282 = vadd.xlane.f32.xlu0 %v4253
        %v4283 = vpop.xlane.xlu0 %4282
        %4284 = vadd.xlane.f32.xlu0 %v4254
        %v4285 = vpop.xlane.xlu0 %4284
        %4286 = vadd.xlane.f32.xlu0 %v4255
        %v4287 = vpop.xlane.xlu0 %4286
        %v4288 = vmul.f32 %v4257, 0.03125
        %v4289 = vmul.f32 %v4259, 0.03125
        %v4290 = vmul.f32 %v4261, 0.03125
        %v4291 = vmul.f32 %v4263, 0.03125
        %v4292 = vmul.f32 %v4265, 0.03125
        %v4293 = vmul.f32 %v4267, 0.03125
        %v4294 = vmul.f32 %v4269, 0.03125
        %v4295 = vmul.f32 %v4271, 0.03125
        %v4296 = vmul.f32 %v4273, 0.03125
        %v4297 = vmul.f32 %v4275, 0.03125
        %v4298 = vmul.f32 %v4277, 0.03125
        %v4299 = vmul.f32 %v4279, 0.03125
        %v4300 = vmul.f32 %v4281, 0.03125
        %v4301 = vmul.f32 %v4283, 0.03125
        %v4302 = vmul.f32 %v4285, 0.03125
        %v4303 = vmul.f32 %v4287, 0.03125
        %v4304 = vadd.f32 %v4288, 1e-12
        %v4305 = vadd.f32 %v4289, 1e-12
        %v4306 = vadd.f32 %v4290, 1e-12
        %v4307 = vadd.f32 %v4291, 1e-12
        %v4308 = vadd.f32 %v4292, 1e-12
        %v4309 = vadd.f32 %v4293, 1e-12
        %v4310 = vadd.f32 %v4294, 1e-12
        %v4311 = vadd.f32 %v4295, 1e-12
        %v4312 = vadd.f32 %v4296, 1e-12
        %v4313 = vadd.f32 %v4297, 1e-12
        %v4314 = vadd.f32 %v4298, 1e-12
        %v4315 = vadd.f32 %v4299, 1e-12
        %v4316 = vadd.f32 %v4300, 1e-12
        %v4317 = vadd.f32 %v4301, 1e-12
        %v4318 = vadd.f32 %v4302, 1e-12
        %v4319 = vadd.f32 %v4303, 1e-12
        %v4320 = vrsqrt.pop %v4304
        %v4321 = vrsqrt.pop %v4305
        %v4322 = vrsqrt.pop %v4306
        %v4323 = vrsqrt.pop %v4307
        %v4324 = vrsqrt.pop %v4308
        %v4325 = vrsqrt.pop %v4309
        %v4326 = vrsqrt.pop %v4310
        %v4327 = vrsqrt.pop %v4311
        %v4328 = vrsqrt.pop %v4312
        %v4329 = vrsqrt.pop %v4313
        %v4330 = vrsqrt.pop %v4314
        %v4331 = vrsqrt.pop %v4315
        %v4332 = vrsqrt.pop %v4316
        %v4333 = vrsqrt.pop %v4317
        %v4334 = vrsqrt.pop %v4318
        %v4335 = vrsqrt.pop %v4319
        %v4336 = vmul.f32 %v4224, %v4320
        %v4337 = vmul.f32 %v4225, %v4321
        %v4338 = vmul.f32 %v4226, %v4322
        %v4339 = vmul.f32 %v4227, %v4323
        %v4340 = vmul.f32 %v4228, %v4324
        %v4341 = vmul.f32 %v4229, %v4325
        %v4342 = vmul.f32 %v4230, %v4326
        %v4343 = vmul.f32 %v4231, %v4327
        %v4344 = vmul.f32 %v4232, %v4328
        %v4345 = vmul.f32 %v4233, %v4329
        %v4346 = vmul.f32 %v4234, %v4330
        %v4347 = vmul.f32 %v4235, %v4331
        %v4348 = vmul.f32 %v4236, %v4332
        %v4349 = vmul.f32 %v4237, %v4333
        %v4350 = vmul.f32 %v4238, %v4334
        %v4351 = vmul.f32 %v4239, %v4335
        %v4352 = vld [vmem:[#allocation5] sm:$0x1]
        %v4354 = vlaneseq
        %v4355 = vshrl.u32 %v4354, 7
        %v4356 = vsub.s32 0, %v4355
        %v4357 = vrot.slane %v4352, %v4356
        %v4359 = vmul.f32 %v4336, %v4357
        %v4360 = vmul.f32 %v4337, %v4357
        %v4361 = vmul.f32 %v4338, %v4357
        %v4362 = vmul.f32 %v4339, %v4357
        %v4363 = vmul.f32 %v4340, %v4357
        %v4364 = vmul.f32 %v4341, %v4357
        %v4365 = vmul.f32 %v4342, %v4357
        %v4366 = vmul.f32 %v4343, %v4357
        %v4367 = vmul.f32 %v4344, %v4357
        %v4368 = vmul.f32 %v4345, %v4357
        %v4369 = vmul.f32 %v4346, %v4357
        %v4370 = vmul.f32 %v4347, %v4357
        %v4371 = vmul.f32 %v4348, %v4357
        %v4372 = vmul.f32 %v4349, %v4357
        %v4373 = vmul.f32 %v4350, %v4357
        %v4374 = vmul.f32 %v4351, %v4357
        %v4375 = vld [vmem:[#allocation7] sm:$0x1]
        %v4377 = vlaneseq
        %v4378 = vshrl.u32 %v4377, 7
        %v4379 = vsub.s32 0, %v4378
        %v4380 = vrot.slane %v4375, %v4379
        %v4382 = vadd.f32 %v4359, %v4380
        %v4383 = vadd.f32 %v4360, %v4380
        %v4384 = vadd.f32 %v4361, %v4380
        %v4385 = vadd.f32 %v4362, %v4380
        %v4386 = vadd.f32 %v4363, %v4380
        %v4387 = vadd.f32 %v4364, %v4380
        %v4388 = vadd.f32 %v4365, %v4380
        %v4389 = vadd.f32 %v4366, %v4380
        %v4390 = vadd.f32 %v4367, %v4380
        %v4391 = vadd.f32 %v4368, %v4380
        %v4392 = vadd.f32 %v4369, %v4380
        %v4393 = vadd.f32 %v4370, %v4380
        %v4394 = vadd.f32 %v4371, %v4380
        %v4395 = vadd.f32 %v4372, %v4380
        %v4396 = vadd.f32 %v4373, %v4380
        %v4397 = vadd.f32 %v4374, %v4380
        %v4398 = vpack.c.bf16 %v4383, %v4382
        %v4399 = vpack.c.bf16 %v4385, %v4384
        %v4400 = vpack.c.bf16 %v4387, %v4386
        %v4401 = vpack.c.bf16 %v4389, %v4388
        %v4402 = vpack.c.bf16 %v4391, %v4390
        %v4403 = vpack.c.bf16 %v4393, %v4392
        %v4404 = vpack.c.bf16 %v4395, %v4394
        %v4405 = vpack.c.bf16 %v4397, %v4396
        %v4414 = vunpack.c.l.b16 %v4398
        %v4415 = vunpack.c.h.b16 %v4398
        %v4416 = vunpack.c.l.b16 %v4399
        %v4417 = vunpack.c.h.b16 %v4399
        %v4418 = vunpack.c.l.b16 %v4400
        %v4419 = vunpack.c.h.b16 %v4400
        %v4420 = vunpack.c.l.b16 %v4401
        %v4421 = vunpack.c.h.b16 %v4401
        %v4422 = vunpack.c.l.b16 %v4402
        %v4423 = vunpack.c.h.b16 %v4402
        %v4424 = vunpack.c.l.b16 %v4403
        %v4425 = vunpack.c.h.b16 %v4403
        %v4426 = vunpack.c.l.b16 %v4404
        %v4427 = vunpack.c.h.b16 %v4404
        %v4428 = vunpack.c.l.b16 %v4405
        %v4429 = vunpack.c.h.b16 %v4405
        %v4430 = vpack.c.b16 %v4414, %v4414
        %v4431 = vpack.c.b16 %v4415, %v4415
        %v4432 = vpack.c.b16 %v4416, %v4416
        %v4433 = vpack.c.b16 %v4417, %v4417
        %v4434 = vpack.c.b16 %v4418, %v4418
        %v4435 = vpack.c.b16 %v4419, %v4419
        %v4436 = vpack.c.b16 %v4420, %v4420
        %v4437 = vpack.c.b16 %v4421, %v4421
        %v4438 = vpack.c.b16 %v4422, %v4422
        %v4439 = vpack.c.b16 %v4423, %v4423
        %v4440 = vpack.c.b16 %v4424, %v4424
        %v4441 = vpack.c.b16 %v4425, %v4425
        %v4442 = vpack.c.b16 %v4426, %v4426
        %v4443 = vpack.c.b16 %v4427, %v4427
        %v4444 = vpack.c.b16 %v4428, %v4428
        %v4445 = vpack.c.b16 %v4429, %v4429
        %4462 = vst [vmem:[%s575] sm:$0xf] %v4430
        %4463 = vst [vmem:[%s575 + $0x4] sm:$0xf] %v4431
        %4464 = vst [vmem:[%s575 + $0x8] sm:$0xf] %v4432
        %4465 = vst [vmem:[%s575 + $0xc] sm:$0xf] %v4433
        %4466 = vst [vmem:[%s575 + $0x10] sm:$0xf] %v4434
        %4467 = vst [vmem:[%s575 + $0x14] sm:$0xf] %v4435
        %4468 = vst [vmem:[%s575 + $0x18] sm:$0xf] %v4436
        %4469 = vst [vmem:[%s575 + $0x1c] sm:$0xf] %v4437
        %4470 = vst [vmem:[%s575 + $0x20] sm:$0xf] %v4438
        %4471 = vst [vmem:[%s575 + $0x24] sm:$0xf] %v4439
        %4472 = vst [vmem:[%s575 + $0x28] sm:$0xf] %v4440
        %4473 = vst [vmem:[%s575 + $0x2c] sm:$0xf] %v4441
        %4474 = vst [vmem:[%s575 + $0x30] sm:$0xf] %v4442
        %4475 = vst [vmem:[%s575 + $0x34] sm:$0xf] %v4443
        %4476 = vst [vmem:[%s575 + $0x38] sm:$0xf] %v4444
        %4477 = vst [vmem:[%s575 + $0x3c] sm:$0xf] %v4445
        %p4478 = scmp.lt.s32.totalorder %s29, 1
        %s4479 = scalar_select %p4478, %s29, 1
        %s4480 = smul.addr %s4479, 16
        %s4481 = smul.addr %s4480, 4
        %s4482 = scalar_lea.vmem %s16, %s4481
        // Predicated region
        $region97: #{molformer_with_regression_head.2} parent=83 // pred_check
          %p4483 = pneg %p393
        $region98: #{molformer_with_regression_head.2} parent=83 // pred_check_branch
          %4485 = sbr.rel (%p4483) target = $region100
        $region99: #{molformer_with_regression_head.2} parent=83 // pred_region
          _
        $region100: #{molformer_with_regression_head.2} parent=83 // pred_fallthru
          _
      $region84: #{molformer_with_regression_head.2} parent=5 // pred_fallthru
        _
      %p4486 = scmp.le.s32.totalorder 2, %s24
      // Predicated region
      $region101: #{molformer_with_regression_head.2} parent=5 // pred_check
        %p4487 = pneg %p4486
      $region102: #{molformer_with_regression_head.2} parent=5 // pred_check_branch
        %4489 = sbr.rel (%p4487) target = $region104
      $region103: #{molformer_with_regression_head.2} parent=5 // pred_region
        %s4490 = ssub.s32 %s24, 2
        // Predicated region
        $region105: #{molformer_with_regression_head.2} parent=103 // pred_check
          %p4491 = pneg %p399
        $region106: #{molformer_with_regression_head.2} parent=103 // pred_check_branch
          %4493 = sbr.rel (%p4491) target = $region108
        $region107: #{molformer_with_regression_head.2} parent=103 // pred_region
          %p4494 = scmp.lt.s32.totalorder %s30, 1
          %s4495 = scalar_select %p4494, %s30, 1
          %s4496 = smul.addr %s4495, 16
          %s4497 = smul.addr %s4496, 4
          %s4498 = scalar_lea.vmem %s16, %s4497
        $region108: #{molformer_with_regression_head.2} parent=103 // pred_fallthru
          _
      $region104: #{molformer_with_regression_head.2} parent=5 // pred_fallthru
        _
    $region6: #{molformer_with_regression_head.2} parent=1 // loop_footer
      %s28 = sadd.s32 1, %s24
    $region7: #{molformer_with_regression_head.2} parent=1 // loop_footer_branch
      %23 = sbr.rel target = $region3
    $region8: #{molformer_with_regression_head.2} parent=1 // loop_exit
      _
    %4499 = vsyncpa [#allocation4], 1
    %s4500 = scalar_lea.sflag [#allocation4], 1
    %4501 = vsyncpa %s4500, 1
    %4502 = vsyncpa [#allocation6], 1

</llo_original>
